<compile_context>
chip_gen: v7x
topology: tpu7x:2x2x1
jax: 0.10.0
libtpu: 0.0.40
codegen_flags: <defaults>
</compile_context>

<pallas_src>
import jax
import jax.numpy as jnp
from jax import lax
from jax.experimental import pallas as pl
from jax.experimental.pallas import tpu as pltpu

EPS = 1e-5   # PyTorch BatchNorm1d default eps
K = 5        # conv kernel size


# --------------------------------------------------------------------------
# Parameter slab layout (all small weights/biases in one (R, 128) f32 VMEM slab)
# --------------------------------------------------------------------------
def _slab_layout(A):
    """name -> (row_offset, rows, cols); offsets 8-row aligned for clean loads."""
    entries = [
        ("w1", K * 1, 16), ("b1", 1, 16),        # conv1 im2col weight / bias
        ("w2", K * 16, 32), ("b2", 1, 32),       # conv2
        ("w3", K * 32, 64), ("b3", 1, 64),       # conv3
        ("bl", 1, 128),                          # fc_lidar bias (BN folded)
        ("wa1", A, 64), ("ba1", 1, 64),          # action fc1 (BN folded)
        ("wa2", 64, 128), ("ba2", 1, 128),       # action fc2 (BN folded)
        ("wfx", 128, 64), ("wfa", 128, 64), ("bf", 1, 64),   # fusion (split, BN folded)
        ("wo", 64, 1), ("bo", 1, 1),             # fc_out
    ]
    layout = {}
    off = 0
    for name, rows, cols in entries:
        layout[name] = (off, rows, cols)
        off += ((rows + 7) // 8) * 8
    total = ((off + 7) // 8) * 8
    return layout, total


# --------------------------------------------------------------------------
# Fused kernel (built per static shape via closure)
# --------------------------------------------------------------------------
def _make_kernel(B, L, nchunk, layout):
    Tc = L // nchunk
    CK = Tc * 64            # contraction rows per fc_lidar chunk

    def kernel(xp1_ref, action_ref, slab_ref, wl_hbm_ref, out_ref,
               p_ref, xflat_ref, wlbuf_ref, sem):
        f32 = jnp.float32

        def sl(name):
            off, rows, cols = layout[name]
            return slab_ref[off:off + rows, 0:cols]

        # ---- kick off streaming of the first two fc_lidar weight chunks
        #      (HBM -> VMEM); they overlap the conv stack / action branch below.
        def start_chunk(c, slot):
            cp = pltpu.make_async_copy(wl_hbm_ref.at[c], wlbuf_ref.at[slot],
                                       sem.at[slot])
            cp.start()
            return cp

        copies = [None] * nchunk
        copies[0] = start_chunk(0, 0)
        if nchunk > 1:
            copies[1] = start_chunk(1, 1)

        # ---- conv1 (Cin=1 -> 16): 5-tap broadcast multiply-accumulate on the
        #      pre-padded input (kept entirely in registers; trivial FLOPs).
        xp1 = xp1_ref[...]                                   # (B, L+4, 1)
        w1 = sl("w1")                                        # (5, 16)
        h1 = xp1[:, 0:L, :] * w1[0:1, :]
        for k in range(1, K):
            h1 = h1 + xp1[:, k:k + L, :] * w1[k:k + 1, :]
        h1 = jnp.maximum(h1 + sl("b1"), 0.0)                 # (B, L, 16)

        # ---- conv2 / conv3: im2col along K -> ONE MXU matmul per layer.
        #      Taps are written once into a shared patch scratch (halo rows
        #      pre-zeroed), then a single (B*L, 5*Cin) x (5*Cin, Cout) dot.
        def conv_im2col(h, wname, bname):
            C = h.shape[-1]
            W = K * C
            zero_halo = jnp.zeros((B, 2, W), f32)
            p_ref[:, 0:2, 0:W] = zero_halo
            p_ref[:, L - 2:L, 0:W] = zero_halo
            for k in range(K):
                lo = max(0, 2 - k)                 # valid output time range for tap k
                hi = min(L, L + 2 - k)
                p_ref[:, lo:hi, k * C:(k + 1) * C] = h[:, lo + k - 2:hi + k - 2, :]
            patches = p_ref[:, :, 0:W]                        # (B, L, W)
            y = jnp.dot(patches.reshape(B * L, W), sl(wname),
                        preferred_element_type=f32)
            return jnp.maximum(y + sl(bname), 0.0)            # (B*L, Cout)

        h2 = conv_im2col(h1, "w2", "b2").reshape(B, L, 32)    # (B, L, 32)
        h3 = conv_im2col(h2, "w3", "b3")                      # (B*L, 64)

        # ---- time-major flatten (B, L, 64) -> (B, L*64) via aligned per-step
        #      stores into a VMEM scratch (no lane-merging value reshape).
        h3r = h3.reshape(B, L, 64)
        for t in range(L):
            xflat_ref[:, t * 64:(t + 1) * 64] = h3r[:, t, :]

        # ---- action branch (independent of the streaming weight DMAs)
        act = action_ref[...]
        a = jnp.maximum(jnp.dot(act, sl("wa1"), preferred_element_type=f32)
                        + sl("ba1"), 0.0)                     # (B, 64)
        a = jnp.maximum(jnp.dot(a, sl("wa2"), preferred_element_type=f32)
                        + sl("ba2"), 0.0)                     # (B, 128)

        # ---- fc_lidar: chunked, double-buffered accumulation.  Weights are bf16
        #      in HBM; activations are cast to bf16 per chunk (f32 accumulation).
        y = jnp.zeros((B, 128), f32)
        for c in range(nchunk):
            slot = c & 1
            copies[c].wait()
            xc = xflat_ref[:, c * CK:(c + 1) * CK].astype(jnp.bfloat16)
            y = y + jnp.dot(xc, wlbuf_ref[slot], preferred_element_type=f32)
            if c + 2 < nchunk:
                copies[c + 2] = start_chunk(c + 2, slot)
        x = jnp.maximum(y + sl("bl"), 0.0)                    # (B, 128)

        # ---- fusion (concat avoided by splitting the fusion weight) + fc_out
        h = jnp.maximum(jnp.dot(x, sl("wfx"), preferred_element_type=f32)
                        + jnp.dot(a, sl("wfa"), preferred_element_type=f32)
                        + sl("bf"), 0.0)                      # (B, 64)
        out_ref[...] = jnp.dot(h, sl("wo"), preferred_element_type=f32) + sl("bo")

    return kernel


# --------------------------------------------------------------------------
# Wrapper (jittable, no host sync, no per-call fallback)
# --------------------------------------------------------------------------
def forward(lidar, action, slab, wl_chunks):
    B, L = lidar.shape
    A = action.shape[1]
    nchunk, CK, _ = wl_chunks.shape
    layout, R = _slab_layout(A)
    assert slab.shape == (R, 128)
    assert CK == (L // nchunk) * 64

    # zero-padding the conv1 input is pure layout prep; do it once in the wrapper
    xp1 = jnp.pad(lidar, ((0, 0), (2, 2)))[..., None]         # (B, L+4, 1)

    vmem = pl.BlockSpec(memory_space=pltpu.MemorySpace.VMEM)
    # pl.ANY leaves wl_chunks un-staged (HBM-resident); the kernel streams it
    # manually chunk-by-chunk with make_async_copy.
    hbm = pl.BlockSpec(memory_space=pl.ANY)

    kernel = _make_kernel(B, L, nchunk, layout)
    return pl.pallas_call(
        kernel,
        out_shape=jax.ShapeDtypeStruct((B, 1), jnp.float32),
        in_specs=[vmem, vmem, vmem, hbm],
        out_specs=vmem,
        scratch_shapes=[
            pltpu.VMEM((B, L, K * 32), jnp.float32),          # shared im2col patches
            pltpu.VMEM((B, L * 64), jnp.float32),             # flattened conv features
            pltpu.VMEM((2, CK, 128), jnp.bfloat16),           # wl chunk double-buffer
            pltpu.SemaphoreType.DMA((2,)),
        ],
    )(xp1, action, slab, wl_chunks)


# --------------------------------------------------------------------------
# Parameter construction (PyTorch-convention shapes) + BN folding / packing
# --------------------------------------------------------------------------
def make_params(key, L, A):
    ks = list(jax.random.split(key, 40))
    it = iter(ks)
    nxt = lambda: next(it)

    def lin_w(k, out_f, in_f):
        return jax.random.uniform(k, (out_f, in_f), jnp.float32, -1.0, 1.0) / jnp.sqrt(in_f)

    def lin_b(k, out_f, fan_in):
        return jax.random.uniform(k, (out_f,), jnp.float32, -1.0, 1.0) / jnp.sqrt(fan_in)

    def bn(n):
        gamma = 1.0 + 0.1 * jax.random.normal(nxt(), (n,), jnp.float32)
        beta = 0.1 * jax.random.normal(nxt(), (n,), jnp.float32)
        mean = 0.1 * jax.random.normal(nxt(), (n,), jnp.float32)
        var = jax.random.uniform(nxt(), (n,), jnp.float32, 0.5, 1.5)
        return gamma, beta, mean, var

    pt = {}
    pt["conv1_w"] = jax.random.uniform(nxt(), (16, 1, 5), jnp.float32, -1, 1) / jnp.sqrt(1 * 5)
    pt["conv1_b"] = lin_b(nxt(), 16, 1 * 5)
    pt["conv2_w"] = jax.random.uniform(nxt(), (32, 16, 5), jnp.float32, -1, 1) / jnp.sqrt(16 * 5)
    pt["conv2_b"] = lin_b(nxt(), 32, 16 * 5)
    pt["conv3_w"] = jax.random.uniform(nxt(), (64, 32, 5), jnp.float32, -1, 1) / jnp.sqrt(32 * 5)
    pt["conv3_b"] = lin_b(nxt(), 64, 32 * 5)
    pt["fc_lidar_w"] = lin_w(nxt(), 128, 64 * L)
    pt["fc_lidar_b"] = lin_b(nxt(), 128, 64 * L)
    pt["lidar_bn1"] = bn(128)
    pt["action_fc1_w"] = lin_w(nxt(), 64, A)
    pt["action_fc1_b"] = lin_b(nxt(), 64, A)
    pt["action_bn1"] = bn(64)
    pt["action_fc2_w"] = lin_w(nxt(), 128, 64)
    pt["action_fc2_b"] = lin_b(nxt(), 128, 64)
    pt["action_bn2"] = bn(128)
    pt["fusion_w"] = lin_w(nxt(), 64, 256)
    pt["fusion_b"] = lin_b(nxt(), 64, 256)
    pt["fusion_bn1"] = bn(64)
    pt["out_w"] = lin_w(nxt(), 1, 64)
    pt["out_b"] = lin_b(nxt(), 1, 64)
    return pt


def _fold_bn(bn_params):
    gamma, beta, mean, var = bn_params
    scale = gamma / jnp.sqrt(var + EPS)
    shift = beta - mean * scale
    return scale, shift


def to_kernel_params(pt, L, A, nchunk):
    """Fold eval-mode BN into Linear layers, build the param slab + wl chunks."""
    P = {}

    def conv_im2col_w(w):   # (Cout, Cin, K) -> (K*Cin, Cout), row = k*Cin + cin
        Cout, Cin, Kk = w.shape
        return jnp.transpose(w, (2, 1, 0)).reshape(Kk * Cin, Cout)

    P["w1"] = conv_im2col_w(pt["conv1_w"])
    P["b1"] = pt["conv1_b"].reshape(1, -1)
    P["w2"] = conv_im2col_w(pt["conv2_w"])
    P["b2"] = pt["conv2_b"].reshape(1, -1)
    P["w3"] = conv_im2col_w(pt["conv3_w"])
    P["b3"] = pt["conv3_b"].reshape(1, -1)

    # fc_lidar + lidar_bn1 folded; rows permuted from PyTorch's channel-major
    # (c, t) flatten to the kernel's time-major (t, c) flatten.  bf16 storage
    # halves the dominant HBM transfer (matmul accumulates in f32).
    s, t = _fold_bn(pt["lidar_bn1"])
    w = pt["fc_lidar_w"] * s[:, None]                          # (128, 64*L)
    b = pt["fc_lidar_b"] * s + t
    wl = jnp.transpose(w.reshape(128, 64, L), (2, 1, 0)).reshape(L * 64, 128)
    CK = (L // nchunk) * 64
    wl_chunks = wl.reshape(nchunk, CK, 128).astype(jnp.bfloat16)
    P["bl"] = b.reshape(1, -1)

    s, t = _fold_bn(pt["action_bn1"])
    P["wa1"] = (pt["action_fc1_w"] * s[:, None]).T             # (A, 64)
    P["ba1"] = (pt["action_fc1_b"] * s + t).reshape(1, -1)
    s, t = _fold_bn(pt["action_bn2"])
    P["wa2"] = (pt["action_fc2_w"] * s[:, None]).T             # (64, 128)
    P["ba2"] = (pt["action_fc2_b"] * s + t).reshape(1, -1)

    s, t = _fold_bn(pt["fusion_bn1"])
    wf = (pt["fusion_w"] * s[:, None]).T                       # (256, 64)
    P["wfx"] = wf[:128]
    P["wfa"] = wf[128:]
    P["bf"] = (pt["fusion_b"] * s + t).reshape(1, -1)
    P["wo"] = pt["out_w"].T                                    # (64, 1)
    P["bo"] = pt["out_b"].reshape(1, 1)

    layout, R = _slab_layout(A)
    slab = jnp.zeros((R, 128), jnp.float32)
    for name, (off, rows, cols) in layout.items():
        assert P[name].shape == (rows, cols), (name, P[name].shape, (rows, cols))
        slab = slab.at[off:off + rows, :cols].set(P[name].astype(jnp.float32))
    return slab, wl_chunks


# --------------------------------------------------------------------------
# Plain-JAX reference with PyTorch (NCW / eval-mode) semantics
# --------------------------------------------------------------------------
def reference(lidar, action, pt):
    def bn(z, p):
        gamma, beta, mean, var = p
        return (z - mean) / jnp.sqrt(var + EPS) * gamma + beta

    def conv1d(x, w, b):  # x: (B,C,L), w: (O,I,5), pad 2
        y = lax.conv_general_dilated(x, w, (1,), [(2, 2)],
                                     dimension_numbers=("NCH", "OIH", "NCH"))
        return y + b[None, :, None]

    x = lidar[:, None, :]
    x = jax.nn.relu(conv1d(x, pt["conv1_w"], pt["conv1_b"]))
    x = jax.nn.relu(conv1d(x, pt["conv2_w"], pt["conv2_b"]))
    x = jax.nn.relu(conv1d(x, pt["conv3_w"], pt["conv3_b"]))
    x = x.reshape(x.shape[0], -1)                             # channel-major, like torch.view
    x = jax.nn.relu(bn(x @ pt["fc_lidar_w"].T + pt["fc_lidar_b"], pt["lidar_bn1"]))
    a = jax.nn.relu(bn(action @ pt["action_fc1_w"].T + pt["action_fc1_b"], pt["action_bn1"]))
    a = jax.nn.relu(bn(a @ pt["action_fc2_w"].T + pt["action_fc2_b"], pt["action_bn2"]))
    c = jnp.concatenate([x, a], axis=1)
    c = jax.nn.relu(bn(c @ pt["fusion_w"].T + pt["fusion_b"], pt["fusion_bn1"]))
    return c @ pt["out_w"].T + pt["out_b"]


if __name__ == "__main__":
    B, L, A = 2, 128, 3  # small lidar_input_size=128, action_input_size=3
    key = jax.random.PRNGKey(0)
    k_lidar, k_action, k_params = jax.random.split(key, 3)
    lidar = jax.random.normal(k_lidar, (B, L), jnp.float32)
    action = jax.random.normal(k_action, (B, A), jnp.float32)

    pt = make_params(k_params, L=L, A=A)
    nchunk = 4 if L % 4 == 0 else (2 if L % 2 == 0 else 1)
    slab, wl_chunks = to_kernel_params(pt, L, A, nchunk)

    fwd = jax.jit(forward)
    out = jax.block_until_ready(fwd(lidar, action, slab, wl_chunks))
    assert out.shape == (B, 1)

    ref = reference(lidar, action, pt)
    if not jnp.allclose(out, ref, rtol=2e-2, atol=2e-2):
        raise AssertionError(
            f"mismatch: max abs err = {float(jnp.max(jnp.abs(out - ref)))}")
    print("KERNEL_OK")
</pallas_src>

<mosaic_0001>
module attributes {stable_mosaic.version = 11 : i64} {
  func.func @kernel(%arg0: memref<2x132x1xf32, #tpu.memory_space<vmem>>, %arg1: memref<2x3xf32, #tpu.memory_space<vmem>>, %arg2: memref<704x128xf32, #tpu.memory_space<vmem>>, %arg3: memref<4x2048x128xbf16, #tpu.memory_space<any>>, %arg4: memref<2x1xf32, #tpu.memory_space<vmem>>, %arg5: memref<2x128x160xf32, #tpu.memory_space<vmem>>, %arg6: memref<2x8192xf32, #tpu.memory_space<vmem>>, %arg7: memref<2x2048x128xbf16, #tpu.memory_space<vmem>>, %arg8: memref<2x!tpu.dma_semaphore, #tpu.memory_space<semaphore_mem>>) attributes {dimension_semantics = [], scalar_prefetch = 0 : i64, scratch_operands = 4 : i64, tpu.core_type = #tpu.core_type<tc>} {
    %c0_i32 = arith.constant 0 : i32
    %c0_i32_0 = arith.constant 0 : i32
    %c0_i32_1 = arith.constant 0 : i32
    %c0_i32_2 = arith.constant 0 : i32
    %c0_i32_3 = arith.constant 0 : i32
    %0 = tpu.memref_slice %arg3[%c0_i32, %c0_i32_2, %c0_i32_3] : memref<4x2048x128xbf16, #tpu.memory_space<any>> -> memref<1x2048x128xbf16, #tpu.memory_space<any>>
    %1 = tpu.memref_squeeze %0 : memref<1x2048x128xbf16, #tpu.memory_space<any>> -> memref<2048x128xbf16, #tpu.memory_space<any>>
    %c0_i32_4 = arith.constant 0 : i32
    %c0_i32_5 = arith.constant 0 : i32
    %2 = tpu.memref_slice %arg7[%c0_i32_0, %c0_i32_4, %c0_i32_5] : memref<2x2048x128xbf16, #tpu.memory_space<vmem>> -> memref<1x2048x128xbf16, #tpu.memory_space<vmem>>
    %3 = tpu.memref_squeeze %2 : memref<1x2048x128xbf16, #tpu.memory_space<vmem>> -> memref<2048x128xbf16, #tpu.memory_space<vmem>>
    %4 = tpu.memref_slice %arg8[%c0_i32_1] : memref<2x!tpu.dma_semaphore, #tpu.memory_space<semaphore_mem>> -> memref<1x!tpu.dma_semaphore, #tpu.memory_space<semaphore_mem>>
    %5 = tpu.memref_squeeze %4 : memref<1x!tpu.dma_semaphore, #tpu.memory_space<semaphore_mem>> -> memref<!tpu.dma_semaphore, #tpu.memory_space<semaphore_mem>>
    tpu.enqueue_dma source(%1 : memref<2048x128xbf16, #tpu.memory_space<any>>) target(%3 : memref<2048x128xbf16, #tpu.memory_space<vmem>>) target_semaphore(%5 : memref<!tpu.dma_semaphore, #tpu.memory_space<semaphore_mem>>)
    %c1_i32 = arith.constant 1 : i32
    %c1_i32_6 = arith.constant 1 : i32
    %c1_i32_7 = arith.constant 1 : i32
    %c0_i32_8 = arith.constant 0 : i32
    %c0_i32_9 = arith.constant 0 : i32
    %6 = tpu.memref_slice %arg3[%c1_i32, %c0_i32_8, %c0_i32_9] : memref<4x2048x128xbf16, #tpu.memory_space<any>> -> memref<1x2048x128xbf16, #tpu.memory_space<any>>
    %7 = tpu.memref_squeeze %6 : memref<1x2048x128xbf16, #tpu.memory_space<any>> -> memref<2048x128xbf16, #tpu.memory_space<any>>
    %c0_i32_10 = arith.constant 0 : i32
    %c0_i32_11 = arith.constant 0 : i32
    %8 = tpu.memref_slice %arg7[%c1_i32_6, %c0_i32_10, %c0_i32_11] : memref<2x2048x128xbf16, #tpu.memory_space<vmem>> -> memref<1x2048x128xbf16, #tpu.memory_space<vmem>>
    %9 = tpu.memref_squeeze %8 : memref<1x2048x128xbf16, #tpu.memory_space<vmem>> -> memref<2048x128xbf16, #tpu.memory_space<vmem>>
    %10 = tpu.memref_slice %arg8[%c1_i32_7] : memref<2x!tpu.dma_semaphore, #tpu.memory_space<semaphore_mem>> -> memref<1x!tpu.dma_semaphore, #tpu.memory_space<semaphore_mem>>
    %11 = tpu.memref_squeeze %10 : memref<1x!tpu.dma_semaphore, #tpu.memory_space<semaphore_mem>> -> memref<!tpu.dma_semaphore, #tpu.memory_space<semaphore_mem>>
    tpu.enqueue_dma source(%7 : memref<2048x128xbf16, #tpu.memory_space<any>>) target(%9 : memref<2048x128xbf16, #tpu.memory_space<vmem>>) target_semaphore(%11 : memref<!tpu.dma_semaphore, #tpu.memory_space<semaphore_mem>>)
    %c0 = arith.constant 0 : index
    %c0_12 = arith.constant 0 : index
    %c0_13 = arith.constant 0 : index
    %12 = vector.load %arg0[%c0, %c0_12, %c0_13] : memref<2x132x1xf32, #tpu.memory_space<vmem>>, vector<2x132x1xf32>
    %c0_14 = arith.constant 0 : index
    %c0_15 = arith.constant 0 : index
    %13 = vector.load %arg2[%c0_14, %c0_15] : memref<704x128xf32, #tpu.memory_space<vmem>>, vector<5x16xf32>
    %14 = vector.extract_strided_slice %12 {offsets = [0, 0, 0], sizes = [2, 128, 1], strides = [1, 1, 1]} : vector<2x132x1xf32> to vector<2x128x1xf32>
    %15 = vector.extract_strided_slice %13 {offsets = [0, 0], sizes = [1, 16], strides = [1, 1]} : vector<5x16xf32> to vector<1x16xf32>
    %16 = vector.shape_cast %15 : vector<1x16xf32> to vector<1x1x16xf32>
    %17 = vector.broadcast %14 : vector<2x128x1xf32> to vector<2x128x16xf32>
    %18 = vector.broadcast %16 : vector<1x1x16xf32> to vector<2x128x16xf32>
    %19 = arith.mulf %17, %18 : vector<2x128x16xf32>
    %20 = vector.extract_strided_slice %12 {offsets = [0, 1, 0], sizes = [2, 128, 1], strides = [1, 1, 1]} : vector<2x132x1xf32> to vector<2x128x1xf32>
    %21 = vector.extract_strided_slice %13 {offsets = [1, 0], sizes = [1, 16], strides = [1, 1]} : vector<5x16xf32> to vector<1x16xf32>
    %22 = vector.shape_cast %21 : vector<1x16xf32> to vector<1x1x16xf32>
    %23 = vector.broadcast %20 : vector<2x128x1xf32> to vector<2x128x16xf32>
    %24 = vector.broadcast %22 : vector<1x1x16xf32> to vector<2x128x16xf32>
    %25 = arith.mulf %23, %24 : vector<2x128x16xf32>
    %26 = arith.addf %19, %25 : vector<2x128x16xf32>
    %27 = vector.extract_strided_slice %12 {offsets = [0, 2, 0], sizes = [2, 128, 1], strides = [1, 1, 1]} : vector<2x132x1xf32> to vector<2x128x1xf32>
    %28 = vector.extract_strided_slice %13 {offsets = [2, 0], sizes = [1, 16], strides = [1, 1]} : vector<5x16xf32> to vector<1x16xf32>
    %29 = vector.shape_cast %28 : vector<1x16xf32> to vector<1x1x16xf32>
    %30 = vector.broadcast %27 : vector<2x128x1xf32> to vector<2x128x16xf32>
    %31 = vector.broadcast %29 : vector<1x1x16xf32> to vector<2x128x16xf32>
    %32 = arith.mulf %30, %31 : vector<2x128x16xf32>
    %33 = arith.addf %26, %32 : vector<2x128x16xf32>
    %34 = vector.extract_strided_slice %12 {offsets = [0, 3, 0], sizes = [2, 128, 1], strides = [1, 1, 1]} : vector<2x132x1xf32> to vector<2x128x1xf32>
    %35 = vector.extract_strided_slice %13 {offsets = [3, 0], sizes = [1, 16], strides = [1, 1]} : vector<5x16xf32> to vector<1x16xf32>
    %36 = vector.shape_cast %35 : vector<1x16xf32> to vector<1x1x16xf32>
    %37 = vector.broadcast %34 : vector<2x128x1xf32> to vector<2x128x16xf32>
    %38 = vector.broadcast %36 : vector<1x1x16xf32> to vector<2x128x16xf32>
    %39 = arith.mulf %37, %38 : vector<2x128x16xf32>
    %40 = arith.addf %33, %39 : vector<2x128x16xf32>
    %41 = vector.extract_strided_slice %12 {offsets = [0, 4, 0], sizes = [2, 128, 1], strides = [1, 1, 1]} : vector<2x132x1xf32> to vector<2x128x1xf32>
    %42 = vector.extract_strided_slice %13 {offsets = [4, 0], sizes = [1, 16], strides = [1, 1]} : vector<5x16xf32> to vector<1x16xf32>
    %43 = vector.shape_cast %42 : vector<1x16xf32> to vector<1x1x16xf32>
    %44 = vector.broadcast %41 : vector<2x128x1xf32> to vector<2x128x16xf32>
    %45 = vector.broadcast %43 : vector<1x1x16xf32> to vector<2x128x16xf32>
    %46 = arith.mulf %44, %45 : vector<2x128x16xf32>
    %47 = arith.addf %40, %46 : vector<2x128x16xf32>
    %c8 = arith.constant 8 : index
    %c0_16 = arith.constant 0 : index
    %48 = vector.load %arg2[%c8, %c0_16] : memref<704x128xf32, #tpu.memory_space<vmem>>, vector<1x16xf32>
    %49 = vector.shape_cast %48 : vector<1x16xf32> to vector<1x1x16xf32>
    %50 = vector.broadcast %49 : vector<1x1x16xf32> to vector<2x128x16xf32>
    %51 = arith.addf %47, %50 : vector<2x128x16xf32>
    %cst = arith.constant 0.000000e+00 : f32
    %52 = vector.broadcast %cst : f32 to vector<2x128x16xf32>
    %53 = arith.maximumf %51, %52 : vector<2x128x16xf32>
    %cst_17 = arith.constant 0.000000e+00 : f32
    %54 = vector.broadcast %cst_17 : f32 to vector<2x2x80xf32>
    %c0_18 = arith.constant 0 : index
    %c0_19 = arith.constant 0 : index
    %c0_20 = arith.constant 0 : index
    %55 = vector.load %arg5[%c0_18, %c0_19, %c0_20] : memref<2x128x160xf32, #tpu.memory_space<vmem>>, vector<2x2x80xf32>
    tpu.vector_store %arg5[%c0_18, %c0_19, %c0_20], %54 {strides = array<i32>} : memref<2x128x160xf32, #tpu.memory_space<vmem>>, vector<2x2x80xf32>,
    %c0_21 = arith.constant 0 : index
    %c126 = arith.constant 126 : index
    %c0_22 = arith.constant 0 : index
    %56 = vector.load %arg5[%c0_21, %c126, %c0_22] : memref<2x128x160xf32, #tpu.memory_space<vmem>>, vector<2x2x80xf32>
    tpu.vector_store %arg5[%c0_21, %c126, %c0_22], %54 {strides = array<i32>} : memref<2x128x160xf32, #tpu.memory_space<vmem>>, vector<2x2x80xf32>,
    %57 = vector.extract_strided_slice %53 {offsets = [0, 0, 0], sizes = [2, 126, 16], strides = [1, 1, 1]} : vector<2x128x16xf32> to vector<2x126x16xf32>
    %c0_23 = arith.constant 0 : index
    %c2 = arith.constant 2 : index
    %c0_24 = arith.constant 0 : index
    %58 = vector.load %arg5[%c0_23, %c2, %c0_24] : memref<2x128x160xf32, #tpu.memory_space<vmem>>, vector<2x126x16xf32>
    tpu.vector_store %arg5[%c0_23, %c2, %c0_24], %57 {strides = array<i32>} : memref<2x128x160xf32, #tpu.memory_space<vmem>>, vector<2x126x16xf32>,
    %59 = vector.extract_strided_slice %53 {offsets = [0, 0, 0], sizes = [2, 127, 16], strides = [1, 1, 1]} : vector<2x128x16xf32> to vector<2x127x16xf32>
    %c0_25 = arith.constant 0 : index
    %c1 = arith.constant 1 : index
    %c16 = arith.constant 16 : index
    %60 = vector.load %arg5[%c0_25, %c1, %c16] : memref<2x128x160xf32, #tpu.memory_space<vmem>>, vector<2x127x16xf32>
    tpu.vector_store %arg5[%c0_25, %c1, %c16], %59 {strides = array<i32>} : memref<2x128x160xf32, #tpu.memory_space<vmem>>, vector<2x127x16xf32>,
    %c0_26 = arith.constant 0 : index
    %c0_27 = arith.constant 0 : index
    %c32 = arith.constant 32 : index
    %61 = vector.load %arg5[%c0_26, %c0_27, %c32] : memref<2x128x160xf32, #tpu.memory_space<vmem>>, vector<2x128x16xf32>
    tpu.vector_store %arg5[%c0_26, %c0_27, %c32], %53 {strides = array<i32>} : memref<2x128x160xf32, #tpu.memory_space<vmem>>, vector<2x128x16xf32>,
    %62 = vector.extract_strided_slice %53 {offsets = [0, 1, 0], sizes = [2, 127, 16], strides = [1, 1, 1]} : vector<2x128x16xf32> to vector<2x127x16xf32>
    %c0_28 = arith.constant 0 : index
    %c0_29 = arith.constant 0 : index
    %c48 = arith.constant 48 : index
    %63 = vector.load %arg5[%c0_28, %c0_29, %c48] : memref<2x128x160xf32, #tpu.memory_space<vmem>>, vector<2x127x16xf32>
    tpu.vector_store %arg5[%c0_28, %c0_29, %c48], %62 {strides = array<i32>} : memref<2x128x160xf32, #tpu.memory_space<vmem>>, vector<2x127x16xf32>,
    %64 = vector.extract_strided_slice %53 {offsets = [0, 2, 0], sizes = [2, 126, 16], strides = [1, 1, 1]} : vector<2x128x16xf32> to vector<2x126x16xf32>
    %c0_30 = arith.constant 0 : index
    %c0_31 = arith.constant 0 : index
    %c64 = arith.constant 64 : index
    %65 = vector.load %arg5[%c0_30, %c0_31, %c64] : memref<2x128x160xf32, #tpu.memory_space<vmem>>, vector<2x126x16xf32>
    tpu.vector_store %arg5[%c0_30, %c0_31, %c64], %64 {strides = array<i32>} : memref<2x128x160xf32, #tpu.memory_space<vmem>>, vector<2x126x16xf32>,
    %c0_32 = arith.constant 0 : index
    %c0_33 = arith.constant 0 : index
    %c0_34 = arith.constant 0 : index
    %66 = vector.load %arg5[%c0_32, %c0_33, %c0_34] : memref<2x128x160xf32, #tpu.memory_space<vmem>>, vector<2x128x80xf32>
    %67 = vector.shape_cast %66 : vector<2x128x80xf32> to vector<256x80xf32>
    %c16_35 = arith.constant 16 : index
    %c0_36 = arith.constant 0 : index
    %68 = vector.load %arg2[%c16_35, %c0_36] : memref<704x128xf32, #tpu.memory_space<vmem>>, vector<80x32xf32>
    %cst_37 = arith.constant dense<0.000000e+00> : vector<256x32xf32>
    %69 = tpu.matmul %67, %68, %cst_37 {dimension_numbers = #tpu.dot_dimension_numbers<[1], [0], [0], [1], [0, 0, 1, 1], [], []>} : vector<256x80xf32>, vector<80x32xf32>, vector<256x32xf32> -> vector<256x32xf32>
    %c96 = arith.constant 96 : index
    %c0_38 = arith.constant 0 : index
    %70 = vector.load %arg2[%c96, %c0_38] : memref<704x128xf32, #tpu.memory_space<vmem>>, vector<1x32xf32>
    %71 = vector.broadcast %70 : vector<1x32xf32> to vector<256x32xf32>
    %72 = arith.addf %69, %71 : vector<256x32xf32>
    %cst_39 = arith.constant 0.000000e+00 : f32
    %73 = vector.broadcast %cst_39 : f32 to vector<256x32xf32>
    %74 = arith.maximumf %72, %73 : vector<256x32xf32>
    %75 = vector.shape_cast %74 : vector<256x32xf32> to vector<2x128x32xf32>
    %cst_40 = arith.constant 0.000000e+00 : f32
    %76 = vector.broadcast %cst_40 : f32 to vector<2x2x160xf32>
    %c0_41 = arith.constant 0 : index
    %c0_42 = arith.constant 0 : index
    %c0_43 = arith.constant 0 : index
    %77 = vector.load %arg5[%c0_41, %c0_42, %c0_43] : memref<2x128x160xf32, #tpu.memory_space<vmem>>, vector<2x2x160xf32>
    tpu.vector_store %arg5[%c0_41, %c0_42, %c0_43], %76 {strides = array<i32>} : memref<2x128x160xf32, #tpu.memory_space<vmem>>, vector<2x2x160xf32>,
    %c0_44 = arith.constant 0 : index
    %c126_45 = arith.constant 126 : index
    %c0_46 = arith.constant 0 : index
    %78 = vector.load %arg5[%c0_44, %c126_45, %c0_46] : memref<2x128x160xf32, #tpu.memory_space<vmem>>, vector<2x2x160xf32>
    tpu.vector_store %arg5[%c0_44, %c126_45, %c0_46], %76 {strides = array<i32>} : memref<2x128x160xf32, #tpu.memory_space<vmem>>, vector<2x2x160xf32>,
    %79 = vector.extract_strided_slice %75 {offsets = [0, 0, 0], sizes = [2, 126, 32], strides = [1, 1, 1]} : vector<2x128x32xf32> to vector<2x126x32xf32>
    %c0_47 = arith.constant 0 : index
    %c2_48 = arith.constant 2 : index
    %c0_49 = arith.constant 0 : index
    %80 = vector.load %arg5[%c0_47, %c2_48, %c0_49] : memref<2x128x160xf32, #tpu.memory_space<vmem>>, vector<2x126x32xf32>
    tpu.vector_store %arg5[%c0_47, %c2_48, %c0_49], %79 {strides = array<i32>} : memref<2x128x160xf32, #tpu.memory_space<vmem>>, vector<2x126x32xf32>,
    %81 = vector.extract_strided_slice %75 {offsets = [0, 0, 0], sizes = [2, 127, 32], strides = [1, 1, 1]} : vector<2x128x32xf32> to vector<2x127x32xf32>
    %c0_50 = arith.constant 0 : index
    %c1_51 = arith.constant 1 : index
    %c32_52 = arith.constant 32 : index
    %82 = vector.load %arg5[%c0_50, %c1_51, %c32_52] : memref<2x128x160xf32, #tpu.memory_space<vmem>>, vector<2x127x32xf32>
    tpu.vector_store %arg5[%c0_50, %c1_51, %c32_52], %81 {strides = array<i32>} : memref<2x128x160xf32, #tpu.memory_space<vmem>>, vector<2x127x32xf32>,
    %c0_53 = arith.constant 0 : index
    %c0_54 = arith.constant 0 : index
    %c64_55 = arith.constant 64 : index
    %83 = vector.load %arg5[%c0_53, %c0_54, %c64_55] : memref<2x128x160xf32, #tpu.memory_space<vmem>>, vector<2x128x32xf32>
    tpu.vector_store %arg5[%c0_53, %c0_54, %c64_55], %75 {strides = array<i32>} : memref<2x128x160xf32, #tpu.memory_space<vmem>>, vector<2x128x32xf32>,
    %84 = vector.extract_strided_slice %75 {offsets = [0, 1, 0], sizes = [2, 127, 32], strides = [1, 1, 1]} : vector<2x128x32xf32> to vector<2x127x32xf32>
    %c0_56 = arith.constant 0 : index
    %c0_57 = arith.constant 0 : index
    %c96_58 = arith.constant 96 : index
    %85 = vector.load %arg5[%c0_56, %c0_57, %c96_58] : memref<2x128x160xf32, #tpu.memory_space<vmem>>, vector<2x127x32xf32>
    tpu.vector_store %arg5[%c0_56, %c0_57, %c96_58], %84 {strides = array<i32>} : memref<2x128x160xf32, #tpu.memory_space<vmem>>, vector<2x127x32xf32>,
    %86 = vector.extract_strided_slice %75 {offsets = [0, 2, 0], sizes = [2, 126, 32], strides = [1, 1, 1]} : vector<2x128x32xf32> to vector<2x126x32xf32>
    %c0_59 = arith.constant 0 : index
    %c0_60 = arith.constant 0 : index
    %c128 = arith.constant 128 : index
    %87 = vector.load %arg5[%c0_59, %c0_60, %c128] : memref<2x128x160xf32, #tpu.memory_space<vmem>>, vector<2x126x32xf32>
    tpu.vector_store %arg5[%c0_59, %c0_60, %c128], %86 {strides = array<i32>} : memref<2x128x160xf32, #tpu.memory_space<vmem>>, vector<2x126x32xf32>,
    %c0_61 = arith.constant 0 : index
    %c0_62 = arith.constant 0 : index
    %c0_63 = arith.constant 0 : index
    %88 = vector.load %arg5[%c0_61, %c0_62, %c0_63] : memref<2x128x160xf32, #tpu.memory_space<vmem>>, vector<2x128x160xf32>
    %89 = vector.shape_cast %88 : vector<2x128x160xf32> to vector<256x160xf32>
    %c104 = arith.constant 104 : index
    %c0_64 = arith.constant 0 : index
    %90 = vector.load %arg2[%c104, %c0_64] : memref<704x128xf32, #tpu.memory_space<vmem>>, vector<160x64xf32>
    %cst_65 = arith.constant dense<0.000000e+00> : vector<256x64xf32>
    %91 = tpu.matmul %89, %90, %cst_65 {dimension_numbers = #tpu.dot_dimension_numbers<[1], [0], [0], [1], [0, 0, 1, 1], [], []>} : vector<256x160xf32>, vector<160x64xf32>, vector<256x64xf32> -> vector<256x64xf32>
    %c264 = arith.constant 264 : index
    %c0_66 = arith.constant 0 : index
    %92 = vector.load %arg2[%c264, %c0_66] : memref<704x128xf32, #tpu.memory_space<vmem>>, vector<1x64xf32>
    %93 = vector.broadcast %92 : vector<1x64xf32> to vector<256x64xf32>
    %94 = arith.addf %91, %93 : vector<256x64xf32>
    %cst_67 = arith.constant 0.000000e+00 : f32
    %95 = vector.broadcast %cst_67 : f32 to vector<256x64xf32>
    %96 = arith.maximumf %94, %95 : vector<256x64xf32>
    %97 = vector.shape_cast %96 : vector<256x64xf32> to vector<2x128x64xf32>
    %98 = vector.extract_strided_slice %97 {offsets = [0, 0, 0], sizes = [2, 1, 64], strides = [1, 1, 1]} : vector<2x128x64xf32> to vector<2x1x64xf32>
    %99 = vector.shape_cast %98 : vector<2x1x64xf32> to vector<2x64xf32>
    %c0_68 = arith.constant 0 : index
    %c0_69 = arith.constant 0 : index
    %100 = vector.load %arg6[%c0_68, %c0_69] : memref<2x8192xf32, #tpu.memory_space<vmem>>, vector<2x64xf32>
    tpu.vector_store %arg6[%c0_68, %c0_69], %99 {strides = array<i32>} : memref<2x8192xf32, #tpu.memory_space<vmem>>, vector<2x64xf32>,
    %101 = vector.extract_strided_slice %97 {offsets = [0, 1, 0], sizes = [2, 1, 64], strides = [1, 1, 1]} : vector<2x128x64xf32> to vector<2x1x64xf32>
    %102 = vector.shape_cast %101 : vector<2x1x64xf32> to vector<2x64xf32>
    %c0_70 = arith.constant 0 : index
    %c64_71 = arith.constant 64 : index
    %103 = vector.load %arg6[%c0_70, %c64_71] : memref<2x8192xf32, #tpu.memory_space<vmem>>, vector<2x64xf32>
    tpu.vector_store %arg6[%c0_70, %c64_71], %102 {strides = array<i32>} : memref<2x8192xf32, #tpu.memory_space<vmem>>, vector<2x64xf32>,
    %104 = vector.extract_strided_slice %97 {offsets = [0, 2, 0], sizes = [2, 1, 64], strides = [1, 1, 1]} : vector<2x128x64xf32> to vector<2x1x64xf32>
    %105 = vector.shape_cast %104 : vector<2x1x64xf32> to vector<2x64xf32>
    %c0_72 = arith.constant 0 : index
    %c128_73 = arith.constant 128 : index
    %106 = vector.load %arg6[%c0_72, %c128_73] : memref<2x8192xf32, #tpu.memory_space<vmem>>, vector<2x64xf32>
    tpu.vector_store %arg6[%c0_72, %c128_73], %105 {strides = array<i32>} : memref<2x8192xf32, #tpu.memory_space<vmem>>, vector<2x64xf32>,
    %107 = vector.extract_strided_slice %97 {offsets = [0, 3, 0], sizes = [2, 1, 64], strides = [1, 1, 1]} : vector<2x128x64xf32> to vector<2x1x64xf32>
    %108 = vector.shape_cast %107 : vector<2x1x64xf32> to vector<2x64xf32>
    %c0_74 = arith.constant 0 : index
    %c192 = arith.constant 192 : index
    %109 = vector.load %arg6[%c0_74, %c192] : memref<2x8192xf32, #tpu.memory_space<vmem>>, vector<2x64xf32>
    tpu.vector_store %arg6[%c0_74, %c192], %108 {strides = array<i32>} : memref<2x8192xf32, #tpu.memory_space<vmem>>, vector<2x64xf32>,
    %110 = vector.extract_strided_slice %97 {offsets = [0, 4, 0], sizes = [2, 1, 64], strides = [1, 1, 1]} : vector<2x128x64xf32> to vector<2x1x64xf32>
    %111 = vector.shape_cast %110 : vector<2x1x64xf32> to vector<2x64xf32>
    %c0_75 = arith.constant 0 : index
    %c256 = arith.constant 256 : index
    %112 = vector.load %arg6[%c0_75, %c256] : memref<2x8192xf32, #tpu.memory_space<vmem>>, vector<2x64xf32>
    tpu.vector_store %arg6[%c0_75, %c256], %111 {strides = array<i32>} : memref<2x8192xf32, #tpu.memory_space<vmem>>, vector<2x64xf32>,
    %113 = vector.extract_strided_slice %97 {offsets = [0, 5, 0], sizes = [2, 1, 64], strides = [1, 1, 1]} : vector<2x128x64xf32> to vector<2x1x64xf32>
    %114 = vector.shape_cast %113 : vector<2x1x64xf32> to vector<2x64xf32>
    %c0_76 = arith.constant 0 : index
    %c320 = arith.constant 320 : index
    %115 = vector.load %arg6[%c0_76, %c320] : memref<2x8192xf32, #tpu.memory_space<vmem>>, vector<2x64xf32>
    tpu.vector_store %arg6[%c0_76, %c320], %114 {strides = array<i32>} : memref<2x8192xf32, #tpu.memory_space<vmem>>, vector<2x64xf32>,
    %116 = vector.extract_strided_slice %97 {offsets = [0, 6, 0], sizes = [2, 1, 64], strides = [1, 1, 1]} : vector<2x128x64xf32> to vector<2x1x64xf32>
    %117 = vector.shape_cast %116 : vector<2x1x64xf32> to vector<2x64xf32>
    %c0_77 = arith.constant 0 : index
    %c384 = arith.constant 384 : index
    %118 = vector.load %arg6[%c0_77, %c384] : memref<2x8192xf32, #tpu.memory_space<vmem>>, vector<2x64xf32>
    tpu.vector_store %arg6[%c0_77, %c384], %117 {strides = array<i32>} : memref<2x8192xf32, #tpu.memory_space<vmem>>, vector<2x64xf32>,
    %119 = vector.extract_strided_slice %97 {offsets = [0, 7, 0], sizes = [2, 1, 64], strides = [1, 1, 1]} : vector<2x128x64xf32> to vector<2x1x64xf32>
    %120 = vector.shape_cast %119 : vector<2x1x64xf32> to vector<2x64xf32>
    %c0_78 = arith.constant 0 : index
    %c448 = arith.constant 448 : index
    %121 = vector.load %arg6[%c0_78, %c448] : memref<2x8192xf32, #tpu.memory_space<vmem>>, vector<2x64xf32>
    tpu.vector_store %arg6[%c0_78, %c448], %120 {strides = array<i32>} : memref<2x8192xf32, #tpu.memory_space<vmem>>, vector<2x64xf32>,
    %122 = vector.extract_strided_slice %97 {offsets = [0, 8, 0], sizes = [2, 1, 64], strides = [1, 1, 1]} : vector<2x128x64xf32> to vector<2x1x64xf32>
    %123 = vector.shape_cast %122 : vector<2x1x64xf32> to vector<2x64xf32>
    %c0_79 = arith.constant 0 : index
    %c512 = arith.constant 512 : index
    %124 = vector.load %arg6[%c0_79, %c512] : memref<2x8192xf32, #tpu.memory_space<vmem>>, vector<2x64xf32>
    tpu.vector_store %arg6[%c0_79, %c512], %123 {strides = array<i32>} : memref<2x8192xf32, #tpu.memory_space<vmem>>, vector<2x64xf32>,
    %125 = vector.extract_strided_slice %97 {offsets = [0, 9, 0], sizes = [2, 1, 64], strides = [1, 1, 1]} : vector<2x128x64xf32> to vector<2x1x64xf32>
    %126 = vector.shape_cast %125 : vector<2x1x64xf32> to vector<2x64xf32>
    %c0_80 = arith.constant 0 : index
    %c576 = arith.constant 576 : index
    %127 = vector.load %arg6[%c0_80, %c576] : memref<2x8192xf32, #tpu.memory_space<vmem>>, vector<2x64xf32>
    tpu.vector_store %arg6[%c0_80, %c576], %126 {strides = array<i32>} : memref<2x8192xf32, #tpu.memory_space<vmem>>, vector<2x64xf32>,
    %128 = vector.extract_strided_slice %97 {offsets = [0, 10, 0], sizes = [2, 1, 64], strides = [1, 1, 1]} : vector<2x128x64xf32> to vector<2x1x64xf32>
    %129 = vector.shape_cast %128 : vector<2x1x64xf32> to vector<2x64xf32>
    %c0_81 = arith.constant 0 : index
    %c640 = arith.constant 640 : index
    %130 = vector.load %arg6[%c0_81, %c640] : memref<2x8192xf32, #tpu.memory_space<vmem>>, vector<2x64xf32>
    tpu.vector_store %arg6[%c0_81, %c640], %129 {strides = array<i32>} : memref<2x8192xf32, #tpu.memory_space<vmem>>, vector<2x64xf32>,
    %131 = vector.extract_strided_slice %97 {offsets = [0, 11, 0], sizes = [2, 1, 64], strides = [1, 1, 1]} : vector<2x128x64xf32> to vector<2x1x64xf32>
    %132 = vector.shape_cast %131 : vector<2x1x64xf32> to vector<2x64xf32>
    %c0_82 = arith.constant 0 : index
    %c704 = arith.constant 704 : index
    %133 = vector.load %arg6[%c0_82, %c704] : memref<2x8192xf32, #tpu.memory_space<vmem>>, vector<2x64xf32>
    tpu.vector_store %arg6[%c0_82, %c704], %132 {strides = array<i32>} : memref<2x8192xf32, #tpu.memory_space<vmem>>, vector<2x64xf32>,
    %134 = vector.extract_strided_slice %97 {offsets = [0, 12, 0], sizes = [2, 1, 64], strides = [1, 1, 1]} : vector<2x128x64xf32> to vector<2x1x64xf32>
    %135 = vector.shape_cast %134 : vector<2x1x64xf32> to vector<2x64xf32>
    %c0_83 = arith.constant 0 : index
    %c768 = arith.constant 768 : index
    %136 = vector.load %arg6[%c0_83, %c768] : memref<2x8192xf32, #tpu.memory_space<vmem>>, vector<2x64xf32>
    tpu.vector_store %arg6[%c0_83, %c768], %135 {strides = array<i32>} : memref<2x8192xf32, #tpu.memory_space<vmem>>, vector<2x64xf32>,
    %137 = vector.extract_strided_slice %97 {offsets = [0, 13, 0], sizes = [2, 1, 64], strides = [1, 1, 1]} : vector<2x128x64xf32> to vector<2x1x64xf32>
    %138 = vector.shape_cast %137 : vector<2x1x64xf32> to vector<2x64xf32>
    %c0_84 = arith.constant 0 : index
    %c832 = arith.constant 832 : index
    %139 = vector.load %arg6[%c0_84, %c832] : memref<2x8192xf32, #tpu.memory_space<vmem>>, vector<2x64xf32>
    tpu.vector_store %arg6[%c0_84, %c832], %138 {strides = array<i32>} : memref<2x8192xf32, #tpu.memory_space<vmem>>, vector<2x64xf32>,
    %140 = vector.extract_strided_slice %97 {offsets = [0, 14, 0], sizes = [2, 1, 64], strides = [1, 1, 1]} : vector<2x128x64xf32> to vector<2x1x64xf32>
    %141 = vector.shape_cast %140 : vector<2x1x64xf32> to vector<2x64xf32>
    %c0_85 = arith.constant 0 : index
    %c896 = arith.constant 896 : index
    %142 = vector.load %arg6[%c0_85, %c896] : memref<2x8192xf32, #tpu.memory_space<vmem>>, vector<2x64xf32>
    tpu.vector_store %arg6[%c0_85, %c896], %141 {strides = array<i32>} : memref<2x8192xf32, #tpu.memory_space<vmem>>, vector<2x64xf32>,
    %143 = vector.extract_strided_slice %97 {offsets = [0, 15, 0], sizes = [2, 1, 64], strides = [1, 1, 1]} : vector<2x128x64xf32> to vector<2x1x64xf32>
    %144 = vector.shape_cast %143 : vector<2x1x64xf32> to vector<2x64xf32>
    %c0_86 = arith.constant 0 : index
    %c960 = arith.constant 960 : index
    %145 = vector.load %arg6[%c0_86, %c960] : memref<2x8192xf32, #tpu.memory_space<vmem>>, vector<2x64xf32>
    tpu.vector_store %arg6[%c0_86, %c960], %144 {strides = array<i32>} : memref<2x8192xf32, #tpu.memory_space<vmem>>, vector<2x64xf32>,
    %146 = vector.extract_strided_slice %97 {offsets = [0, 16, 0], sizes = [2, 1, 64], strides = [1, 1, 1]} : vector<2x128x64xf32> to vector<2x1x64xf32>
    %147 = vector.shape_cast %146 : vector<2x1x64xf32> to vector<2x64xf32>
    %c0_87 = arith.constant 0 : index
    %c1024 = arith.constant 1024 : index
    %148 = vector.load %arg6[%c0_87, %c1024] : memref<2x8192xf32, #tpu.memory_space<vmem>>, vector<2x64xf32>
    tpu.vector_store %arg6[%c0_87, %c1024], %147 {strides = array<i32>} : memref<2x8192xf32, #tpu.memory_space<vmem>>, vector<2x64xf32>,
    %149 = vector.extract_strided_slice %97 {offsets = [0, 17, 0], sizes = [2, 1, 64], strides = [1, 1, 1]} : vector<2x128x64xf32> to vector<2x1x64xf32>
    %150 = vector.shape_cast %149 : vector<2x1x64xf32> to vector<2x64xf32>
    %c0_88 = arith.constant 0 : index
    %c1088 = arith.constant 1088 : index
    %151 = vector.load %arg6[%c0_88, %c1088] : memref<2x8192xf32, #tpu.memory_space<vmem>>, vector<2x64xf32>
    tpu.vector_store %arg6[%c0_88, %c1088], %150 {strides = array<i32>} : memref<2x8192xf32, #tpu.memory_space<vmem>>, vector<2x64xf32>,
    %152 = vector.extract_strided_slice %97 {offsets = [0, 18, 0], sizes = [2, 1, 64], strides = [1, 1, 1]} : vector<2x128x64xf32> to vector<2x1x64xf32>
    %153 = vector.shape_cast %152 : vector<2x1x64xf32> to vector<2x64xf32>
    %c0_89 = arith.constant 0 : index
    %c1152 = arith.constant 1152 : index
    %154 = vector.load %arg6[%c0_89, %c1152] : memref<2x8192xf32, #tpu.memory_space<vmem>>, vector<2x64xf32>
    tpu.vector_store %arg6[%c0_89, %c1152], %153 {strides = array<i32>} : memref<2x8192xf32, #tpu.memory_space<vmem>>, vector<2x64xf32>,
    %155 = vector.extract_strided_slice %97 {offsets = [0, 19, 0], sizes = [2, 1, 64], strides = [1, 1, 1]} : vector<2x128x64xf32> to vector<2x1x64xf32>
    %156 = vector.shape_cast %155 : vector<2x1x64xf32> to vector<2x64xf32>
    %c0_90 = arith.constant 0 : index
    %c1216 = arith.constant 1216 : index
    %157 = vector.load %arg6[%c0_90, %c1216] : memref<2x8192xf32, #tpu.memory_space<vmem>>, vector<2x64xf32>
    tpu.vector_store %arg6[%c0_90, %c1216], %156 {strides = array<i32>} : memref<2x8192xf32, #tpu.memory_space<vmem>>, vector<2x64xf32>,
    %158 = vector.extract_strided_slice %97 {offsets = [0, 20, 0], sizes = [2, 1, 64], strides = [1, 1, 1]} : vector<2x128x64xf32> to vector<2x1x64xf32>
    %159 = vector.shape_cast %158 : vector<2x1x64xf32> to vector<2x64xf32>
    %c0_91 = arith.constant 0 : index
    %c1280 = arith.constant 1280 : index
    %160 = vector.load %arg6[%c0_91, %c1280] : memref<2x8192xf32, #tpu.memory_space<vmem>>, vector<2x64xf32>
    tpu.vector_store %arg6[%c0_91, %c1280], %159 {strides = array<i32>} : memref<2x8192xf32, #tpu.memory_space<vmem>>, vector<2x64xf32>,
    %161 = vector.extract_strided_slice %97 {offsets = [0, 21, 0], sizes = [2, 1, 64], strides = [1, 1, 1]} : vector<2x128x64xf32> to vector<2x1x64xf32>
    %162 = vector.shape_cast %161 : vector<2x1x64xf32> to vector<2x64xf32>
    %c0_92 = arith.constant 0 : index
    %c1344 = arith.constant 1344 : index
    %163 = vector.load %arg6[%c0_92, %c1344] : memref<2x8192xf32, #tpu.memory_space<vmem>>, vector<2x64xf32>
    tpu.vector_store %arg6[%c0_92, %c1344], %162 {strides = array<i32>} : memref<2x8192xf32, #tpu.memory_space<vmem>>, vector<2x64xf32>,
    %164 = vector.extract_strided_slice %97 {offsets = [0, 22, 0], sizes = [2, 1, 64], strides = [1, 1, 1]} : vector<2x128x64xf32> to vector<2x1x64xf32>
    %165 = vector.shape_cast %164 : vector<2x1x64xf32> to vector<2x64xf32>
    %c0_93 = arith.constant 0 : index
    %c1408 = arith.constant 1408 : index
    %166 = vector.load %arg6[%c0_93, %c1408] : memref<2x8192xf32, #tpu.memory_space<vmem>>, vector<2x64xf32>
    tpu.vector_store %arg6[%c0_93, %c1408], %165 {strides = array<i32>} : memref<2x8192xf32, #tpu.memory_space<vmem>>, vector<2x64xf32>,
    %167 = vector.extract_strided_slice %97 {offsets = [0, 23, 0], sizes = [2, 1, 64], strides = [1, 1, 1]} : vector<2x128x64xf32> to vector<2x1x64xf32>
    %168 = vector.shape_cast %167 : vector<2x1x64xf32> to vector<2x64xf32>
    %c0_94 = arith.constant 0 : index
    %c1472 = arith.constant 1472 : index
    %169 = vector.load %arg6[%c0_94, %c1472] : memref<2x8192xf32, #tpu.memory_space<vmem>>, vector<2x64xf32>
    tpu.vector_store %arg6[%c0_94, %c1472], %168 {strides = array<i32>} : memref<2x8192xf32, #tpu.memory_space<vmem>>, vector<2x64xf32>,
    %170 = vector.extract_strided_slice %97 {offsets = [0, 24, 0], sizes = [2, 1, 64], strides = [1, 1, 1]} : vector<2x128x64xf32> to vector<2x1x64xf32>
    %171 = vector.shape_cast %170 : vector<2x1x64xf32> to vector<2x64xf32>
    %c0_95 = arith.constant 0 : index
    %c1536 = arith.constant 1536 : index
    %172 = vector.load %arg6[%c0_95, %c1536] : memref<2x8192xf32, #tpu.memory_space<vmem>>, vector<2x64xf32>
    tpu.vector_store %arg6[%c0_95, %c1536], %171 {strides = array<i32>} : memref<2x8192xf32, #tpu.memory_space<vmem>>, vector<2x64xf32>,
    %173 = vector.extract_strided_slice %97 {offsets = [0, 25, 0], sizes = [2, 1, 64], strides = [1, 1, 1]} : vector<2x128x64xf32> to vector<2x1x64xf32>
    %174 = vector.shape_cast %173 : vector<2x1x64xf32> to vector<2x64xf32>
    %c0_96 = arith.constant 0 : index
    %c1600 = arith.constant 1600 : index
    %175 = vector.load %arg6[%c0_96, %c1600] : memref<2x8192xf32, #tpu.memory_space<vmem>>, vector<2x64xf32>
    tpu.vector_store %arg6[%c0_96, %c1600], %174 {strides = array<i32>} : memref<2x8192xf32, #tpu.memory_space<vmem>>, vector<2x64xf32>,
    %176 = vector.extract_strided_slice %97 {offsets = [0, 26, 0], sizes = [2, 1, 64], strides = [1, 1, 1]} : vector<2x128x64xf32> to vector<2x1x64xf32>
    %177 = vector.shape_cast %176 : vector<2x1x64xf32> to vector<2x64xf32>
    %c0_97 = arith.constant 0 : index
    %c1664 = arith.constant 1664 : index
    %178 = vector.load %arg6[%c0_97, %c1664] : memref<2x8192xf32, #tpu.memory_space<vmem>>, vector<2x64xf32>
    tpu.vector_store %arg6[%c0_97, %c1664], %177 {strides = array<i32>} : memref<2x8192xf32, #tpu.memory_space<vmem>>, vector<2x64xf32>,
    %179 = vector.extract_strided_slice %97 {offsets = [0, 27, 0], sizes = [2, 1, 64], strides = [1, 1, 1]} : vector<2x128x64xf32> to vector<2x1x64xf32>
    %180 = vector.shape_cast %179 : vector<2x1x64xf32> to vector<2x64xf32>
    %c0_98 = arith.constant 0 : index
    %c1728 = arith.constant 1728 : index
    %181 = vector.load %arg6[%c0_98, %c1728] : memref<2x8192xf32, #tpu.memory_space<vmem>>, vector<2x64xf32>
    tpu.vector_store %arg6[%c0_98, %c1728], %180 {strides = array<i32>} : memref<2x8192xf32, #tpu.memory_space<vmem>>, vector<2x64xf32>,
    %182 = vector.extract_strided_slice %97 {offsets = [0, 28, 0], sizes = [2, 1, 64], strides = [1, 1, 1]} : vector<2x128x64xf32> to vector<2x1x64xf32>
    %183 = vector.shape_cast %182 : vector<2x1x64xf32> to vector<2x64xf32>
    %c0_99 = arith.constant 0 : index
    %c1792 = arith.constant 1792 : index
    %184 = vector.load %arg6[%c0_99, %c1792] : memref<2x8192xf32, #tpu.memory_space<vmem>>, vector<2x64xf32>
    tpu.vector_store %arg6[%c0_99, %c1792], %183 {strides = array<i32>} : memref<2x8192xf32, #tpu.memory_space<vmem>>, vector<2x64xf32>,
    %185 = vector.extract_strided_slice %97 {offsets = [0, 29, 0], sizes = [2, 1, 64], strides = [1, 1, 1]} : vector<2x128x64xf32> to vector<2x1x64xf32>
    %186 = vector.shape_cast %185 : vector<2x1x64xf32> to vector<2x64xf32>
    %c0_100 = arith.constant 0 : index
    %c1856 = arith.constant 1856 : index
    %187 = vector.load %arg6[%c0_100, %c1856] : memref<2x8192xf32, #tpu.memory_space<vmem>>, vector<2x64xf32>
    tpu.vector_store %arg6[%c0_100, %c1856], %186 {strides = array<i32>} : memref<2x8192xf32, #tpu.memory_space<vmem>>, vector<2x64xf32>,
    %188 = vector.extract_strided_slice %97 {offsets = [0, 30, 0], sizes = [2, 1, 64], strides = [1, 1, 1]} : vector<2x128x64xf32> to vector<2x1x64xf32>
    %189 = vector.shape_cast %188 : vector<2x1x64xf32> to vector<2x64xf32>
    %c0_101 = arith.constant 0 : index
    %c1920 = arith.constant 1920 : index
    %190 = vector.load %arg6[%c0_101, %c1920] : memref<2x8192xf32, #tpu.memory_space<vmem>>, vector<2x64xf32>
    tpu.vector_store %arg6[%c0_101, %c1920], %189 {strides = array<i32>} : memref<2x8192xf32, #tpu.memory_space<vmem>>, vector<2x64xf32>,
    %191 = vector.extract_strided_slice %97 {offsets = [0, 31, 0], sizes = [2, 1, 64], strides = [1, 1, 1]} : vector<2x128x64xf32> to vector<2x1x64xf32>
    %192 = vector.shape_cast %191 : vector<2x1x64xf32> to vector<2x64xf32>
    %c0_102 = arith.constant 0 : index
    %c1984 = arith.constant 1984 : index
    %193 = vector.load %arg6[%c0_102, %c1984] : memref<2x8192xf32, #tpu.memory_space<vmem>>, vector<2x64xf32>
    tpu.vector_store %arg6[%c0_102, %c1984], %192 {strides = array<i32>} : memref<2x8192xf32, #tpu.memory_space<vmem>>, vector<2x64xf32>,
    %194 = vector.extract_strided_slice %97 {offsets = [0, 32, 0], sizes = [2, 1, 64], strides = [1, 1, 1]} : vector<2x128x64xf32> to vector<2x1x64xf32>
    %195 = vector.shape_cast %194 : vector<2x1x64xf32> to vector<2x64xf32>
    %c0_103 = arith.constant 0 : index
    %c2048 = arith.constant 2048 : index
    %196 = vector.load %arg6[%c0_103, %c2048] : memref<2x8192xf32, #tpu.memory_space<vmem>>, vector<2x64xf32>
    tpu.vector_store %arg6[%c0_103, %c2048], %195 {strides = array<i32>} : memref<2x8192xf32, #tpu.memory_space<vmem>>, vector<2x64xf32>,
    %197 = vector.extract_strided_slice %97 {offsets = [0, 33, 0], sizes = [2, 1, 64], strides = [1, 1, 1]} : vector<2x128x64xf32> to vector<2x1x64xf32>
    %198 = vector.shape_cast %197 : vector<2x1x64xf32> to vector<2x64xf32>
    %c0_104 = arith.constant 0 : index
    %c2112 = arith.constant 2112 : index
    %199 = vector.load %arg6[%c0_104, %c2112] : memref<2x8192xf32, #tpu.memory_space<vmem>>, vector<2x64xf32>
    tpu.vector_store %arg6[%c0_104, %c2112], %198 {strides = array<i32>} : memref<2x8192xf32, #tpu.memory_space<vmem>>, vector<2x64xf32>,
    %200 = vector.extract_strided_slice %97 {offsets = [0, 34, 0], sizes = [2, 1, 64], strides = [1, 1, 1]} : vector<2x128x64xf32> to vector<2x1x64xf32>
    %201 = vector.shape_cast %200 : vector<2x1x64xf32> to vector<2x64xf32>
    %c0_105 = arith.constant 0 : index
    %c2176 = arith.constant 2176 : index
    %202 = vector.load %arg6[%c0_105, %c2176] : memref<2x8192xf32, #tpu.memory_space<vmem>>, vector<2x64xf32>
    tpu.vector_store %arg6[%c0_105, %c2176], %201 {strides = array<i32>} : memref<2x8192xf32, #tpu.memory_space<vmem>>, vector<2x64xf32>,
    %203 = vector.extract_strided_slice %97 {offsets = [0, 35, 0], sizes = [2, 1, 64], strides = [1, 1, 1]} : vector<2x128x64xf32> to vector<2x1x64xf32>
    %204 = vector.shape_cast %203 : vector<2x1x64xf32> to vector<2x64xf32>
    %c0_106 = arith.constant 0 : index
    %c2240 = arith.constant 2240 : index
    %205 = vector.load %arg6[%c0_106, %c2240] : memref<2x8192xf32, #tpu.memory_space<vmem>>, vector<2x64xf32>
    tpu.vector_store %arg6[%c0_106, %c2240], %204 {strides = array<i32>} : memref<2x8192xf32, #tpu.memory_space<vmem>>, vector<2x64xf32>,
    %206 = vector.extract_strided_slice %97 {offsets = [0, 36, 0], sizes = [2, 1, 64], strides = [1, 1, 1]} : vector<2x128x64xf32> to vector<2x1x64xf32>
    %207 = vector.shape_cast %206 : vector<2x1x64xf32> to vector<2x64xf32>
    %c0_107 = arith.constant 0 : index
    %c2304 = arith.constant 2304 : index
    %208 = vector.load %arg6[%c0_107, %c2304] : memref<2x8192xf32, #tpu.memory_space<vmem>>, vector<2x64xf32>
    tpu.vector_store %arg6[%c0_107, %c2304], %207 {strides = array<i32>} : memref<2x8192xf32, #tpu.memory_space<vmem>>, vector<2x64xf32>,
    %209 = vector.extract_strided_slice %97 {offsets = [0, 37, 0], sizes = [2, 1, 64], strides = [1, 1, 1]} : vector<2x128x64xf32> to vector<2x1x64xf32>
    %210 = vector.shape_cast %209 : vector<2x1x64xf32> to vector<2x64xf32>
    %c0_108 = arith.constant 0 : index
    %c2368 = arith.constant 2368 : index
    %211 = vector.load %arg6[%c0_108, %c2368] : memref<2x8192xf32, #tpu.memory_space<vmem>>, vector<2x64xf32>
    tpu.vector_store %arg6[%c0_108, %c2368], %210 {strides = array<i32>} : memref<2x8192xf32, #tpu.memory_space<vmem>>, vector<2x64xf32>,
    %212 = vector.extract_strided_slice %97 {offsets = [0, 38, 0], sizes = [2, 1, 64], strides = [1, 1, 1]} : vector<2x128x64xf32> to vector<2x1x64xf32>
    %213 = vector.shape_cast %212 : vector<2x1x64xf32> to vector<2x64xf32>
    %c0_109 = arith.constant 0 : index
    %c2432 = arith.constant 2432 : index
    %214 = vector.load %arg6[%c0_109, %c2432] : memref<2x8192xf32, #tpu.memory_space<vmem>>, vector<2x64xf32>
    tpu.vector_store %arg6[%c0_109, %c2432], %213 {strides = array<i32>} : memref<2x8192xf32, #tpu.memory_space<vmem>>, vector<2x64xf32>,
    %215 = vector.extract_strided_slice %97 {offsets = [0, 39, 0], sizes = [2, 1, 64], strides = [1, 1, 1]} : vector<2x128x64xf32> to vector<2x1x64xf32>
    %216 = vector.shape_cast %215 : vector<2x1x64xf32> to vector<2x64xf32>
    %c0_110 = arith.constant 0 : index
    %c2496 = arith.constant 2496 : index
    %217 = vector.load %arg6[%c0_110, %c2496] : memref<2x8192xf32, #tpu.memory_space<vmem>>, vector<2x64xf32>
    tpu.vector_store %arg6[%c0_110, %c2496], %216 {strides = array<i32>} : memref<2x8192xf32, #tpu.memory_space<vmem>>, vector<2x64xf32>,
    %218 = vector.extract_strided_slice %97 {offsets = [0, 40, 0], sizes = [2, 1, 64], strides = [1, 1, 1]} : vector<2x128x64xf32> to vector<2x1x64xf32>
    %219 = vector.shape_cast %218 : vector<2x1x64xf32> to vector<2x64xf32>
    %c0_111 = arith.constant 0 : index
    %c2560 = arith.constant 2560 : index
    %220 = vector.load %arg6[%c0_111, %c2560] : memref<2x8192xf32, #tpu.memory_space<vmem>>, vector<2x64xf32>
    tpu.vector_store %arg6[%c0_111, %c2560], %219 {strides = array<i32>} : memref<2x8192xf32, #tpu.memory_space<vmem>>, vector<2x64xf32>,
    %221 = vector.extract_strided_slice %97 {offsets = [0, 41, 0], sizes = [2, 1, 64], strides = [1, 1, 1]} : vector<2x128x64xf32> to vector<2x1x64xf32>
    %222 = vector.shape_cast %221 : vector<2x1x64xf32> to vector<2x64xf32>
    %c0_112 = arith.constant 0 : index
    %c2624 = arith.constant 2624 : index
    %223 = vector.load %arg6[%c0_112, %c2624] : memref<2x8192xf32, #tpu.memory_space<vmem>>, vector<2x64xf32>
    tpu.vector_store %arg6[%c0_112, %c2624], %222 {strides = array<i32>} : memref<2x8192xf32, #tpu.memory_space<vmem>>, vector<2x64xf32>,
    %224 = vector.extract_strided_slice %97 {offsets = [0, 42, 0], sizes = [2, 1, 64], strides = [1, 1, 1]} : vector<2x128x64xf32> to vector<2x1x64xf32>
    %225 = vector.shape_cast %224 : vector<2x1x64xf32> to vector<2x64xf32>
    %c0_113 = arith.constant 0 : index
    %c2688 = arith.constant 2688 : index
    %226 = vector.load %arg6[%c0_113, %c2688] : memref<2x8192xf32, #tpu.memory_space<vmem>>, vector<2x64xf32>
    tpu.vector_store %arg6[%c0_113, %c2688], %225 {strides = array<i32>} : memref<2x8192xf32, #tpu.memory_space<vmem>>, vector<2x64xf32>,
    %227 = vector.extract_strided_slice %97 {offsets = [0, 43, 0], sizes = [2, 1, 64], strides = [1, 1, 1]} : vector<2x128x64xf32> to vector<2x1x64xf32>
    %228 = vector.shape_cast %227 : vector<2x1x64xf32> to vector<2x64xf32>
    %c0_114 = arith.constant 0 : index
    %c2752 = arith.constant 2752 : index
    %229 = vector.load %arg6[%c0_114, %c2752] : memref<2x8192xf32, #tpu.memory_space<vmem>>, vector<2x64xf32>
    tpu.vector_store %arg6[%c0_114, %c2752], %228 {strides = array<i32>} : memref<2x8192xf32, #tpu.memory_space<vmem>>, vector<2x64xf32>,
    %230 = vector.extract_strided_slice %97 {offsets = [0, 44, 0], sizes = [2, 1, 64], strides = [1, 1, 1]} : vector<2x128x64xf32> to vector<2x1x64xf32>
    %231 = vector.shape_cast %230 : vector<2x1x64xf32> to vector<2x64xf32>
    %c0_115 = arith.constant 0 : index
    %c2816 = arith.constant 2816 : index
    %232 = vector.load %arg6[%c0_115, %c2816] : memref<2x8192xf32, #tpu.memory_space<vmem>>, vector<2x64xf32>
    tpu.vector_store %arg6[%c0_115, %c2816], %231 {strides = array<i32>} : memref<2x8192xf32, #tpu.memory_space<vmem>>, vector<2x64xf32>,
    %233 = vector.extract_strided_slice %97 {offsets = [0, 45, 0], sizes = [2, 1, 64], strides = [1, 1, 1]} : vector<2x128x64xf32> to vector<2x1x64xf32>
    %234 = vector.shape_cast %233 : vector<2x1x64xf32> to vector<2x64xf32>
    %c0_116 = arith.constant 0 : index
    %c2880 = arith.constant 2880 : index
    %235 = vector.load %arg6[%c0_116, %c2880] : memref<2x8192xf32, #tpu.memory_space<vmem>>, vector<2x64xf32>
    tpu.vector_store %arg6[%c0_116, %c2880], %234 {strides = array<i32>} : memref<2x8192xf32, #tpu.memory_space<vmem>>, vector<2x64xf32>,
    %236 = vector.extract_strided_slice %97 {offsets = [0, 46, 0], sizes = [2, 1, 64], strides = [1, 1, 1]} : vector<2x128x64xf32> to vector<2x1x64xf32>
    %237 = vector.shape_cast %236 : vector<2x1x64xf32> to vector<2x64xf32>
    %c0_117 = arith.constant 0 : index
    %c2944 = arith.constant 2944 : index
    %238 = vector.load %arg6[%c0_117, %c2944] : memref<2x8192xf32, #tpu.memory_space<vmem>>, vector<2x64xf32>
    tpu.vector_store %arg6[%c0_117, %c2944], %237 {strides = array<i32>} : memref<2x8192xf32, #tpu.memory_space<vmem>>, vector<2x64xf32>,
    %239 = vector.extract_strided_slice %97 {offsets = [0, 47, 0], sizes = [2, 1, 64], strides = [1, 1, 1]} : vector<2x128x64xf32> to vector<2x1x64xf32>
    %240 = vector.shape_cast %239 : vector<2x1x64xf32> to vector<2x64xf32>
    %c0_118 = arith.constant 0 : index
    %c3008 = arith.constant 3008 : index
    %241 = vector.load %arg6[%c0_118, %c3008] : memref<2x8192xf32, #tpu.memory_space<vmem>>, vector<2x64xf32>
    tpu.vector_store %arg6[%c0_118, %c3008], %240 {strides = array<i32>} : memref<2x8192xf32, #tpu.memory_space<vmem>>, vector<2x64xf32>,
    %242 = vector.extract_strided_slice %97 {offsets = [0, 48, 0], sizes = [2, 1, 64], strides = [1, 1, 1]} : vector<2x128x64xf32> to vector<2x1x64xf32>
    %243 = vector.shape_cast %242 : vector<2x1x64xf32> to vector<2x64xf32>
    %c0_119 = arith.constant 0 : index
    %c3072 = arith.constant 3072 : index
    %244 = vector.load %arg6[%c0_119, %c3072] : memref<2x8192xf32, #tpu.memory_space<vmem>>, vector<2x64xf32>
    tpu.vector_store %arg6[%c0_119, %c3072], %243 {strides = array<i32>} : memref<2x8192xf32, #tpu.memory_space<vmem>>, vector<2x64xf32>,
    %245 = vector.extract_strided_slice %97 {offsets = [0, 49, 0], sizes = [2, 1, 64], strides = [1, 1, 1]} : vector<2x128x64xf32> to vector<2x1x64xf32>
    %246 = vector.shape_cast %245 : vector<2x1x64xf32> to vector<2x64xf32>
    %c0_120 = arith.constant 0 : index
    %c3136 = arith.constant 3136 : index
    %247 = vector.load %arg6[%c0_120, %c3136] : memref<2x8192xf32, #tpu.memory_space<vmem>>, vector<2x64xf32>
    tpu.vector_store %arg6[%c0_120, %c3136], %246 {strides = array<i32>} : memref<2x8192xf32, #tpu.memory_space<vmem>>, vector<2x64xf32>,
    %248 = vector.extract_strided_slice %97 {offsets = [0, 50, 0], sizes = [2, 1, 64], strides = [1, 1, 1]} : vector<2x128x64xf32> to vector<2x1x64xf32>
    %249 = vector.shape_cast %248 : vector<2x1x64xf32> to vector<2x64xf32>
    %c0_121 = arith.constant 0 : index
    %c3200 = arith.constant 3200 : index
    %250 = vector.load %arg6[%c0_121, %c3200] : memref<2x8192xf32, #tpu.memory_space<vmem>>, vector<2x64xf32>
    tpu.vector_store %arg6[%c0_121, %c3200], %249 {strides = array<i32>} : memref<2x8192xf32, #tpu.memory_space<vmem>>, vector<2x64xf32>,
    %251 = vector.extract_strided_slice %97 {offsets = [0, 51, 0], sizes = [2, 1, 64], strides = [1, 1, 1]} : vector<2x128x64xf32> to vector<2x1x64xf32>
    %252 = vector.shape_cast %251 : vector<2x1x64xf32> to vector<2x64xf32>
    %c0_122 = arith.constant 0 : index
    %c3264 = arith.constant 3264 : index
    %253 = vector.load %arg6[%c0_122, %c3264] : memref<2x8192xf32, #tpu.memory_space<vmem>>, vector<2x64xf32>
    tpu.vector_store %arg6[%c0_122, %c3264], %252 {strides = array<i32>} : memref<2x8192xf32, #tpu.memory_space<vmem>>, vector<2x64xf32>,
    %254 = vector.extract_strided_slice %97 {offsets = [0, 52, 0], sizes = [2, 1, 64], strides = [1, 1, 1]} : vector<2x128x64xf32> to vector<2x1x64xf32>
    %255 = vector.shape_cast %254 : vector<2x1x64xf32> to vector<2x64xf32>
    %c0_123 = arith.constant 0 : index
    %c3328 = arith.constant 3328 : index
    %256 = vector.load %arg6[%c0_123, %c3328] : memref<2x8192xf32, #tpu.memory_space<vmem>>, vector<2x64xf32>
    tpu.vector_store %arg6[%c0_123, %c3328], %255 {strides = array<i32>} : memref<2x8192xf32, #tpu.memory_space<vmem>>, vector<2x64xf32>,
    %257 = vector.extract_strided_slice %97 {offsets = [0, 53, 0], sizes = [2, 1, 64], strides = [1, 1, 1]} : vector<2x128x64xf32> to vector<2x1x64xf32>
    %258 = vector.shape_cast %257 : vector<2x1x64xf32> to vector<2x64xf32>
    %c0_124 = arith.constant 0 : index
    %c3392 = arith.constant 3392 : index
    %259 = vector.load %arg6[%c0_124, %c3392] : memref<2x8192xf32, #tpu.memory_space<vmem>>, vector<2x64xf32>
    tpu.vector_store %arg6[%c0_124, %c3392], %258 {strides = array<i32>} : memref<2x8192xf32, #tpu.memory_space<vmem>>, vector<2x64xf32>,
    %260 = vector.extract_strided_slice %97 {offsets = [0, 54, 0], sizes = [2, 1, 64], strides = [1, 1, 1]} : vector<2x128x64xf32> to vector<2x1x64xf32>
    %261 = vector.shape_cast %260 : vector<2x1x64xf32> to vector<2x64xf32>
    %c0_125 = arith.constant 0 : index
    %c3456 = arith.constant 3456 : index
    %262 = vector.load %arg6[%c0_125, %c3456] : memref<2x8192xf32, #tpu.memory_space<vmem>>, vector<2x64xf32>
    tpu.vector_store %arg6[%c0_125, %c3456], %261 {strides = array<i32>} : memref<2x8192xf32, #tpu.memory_space<vmem>>, vector<2x64xf32>,
    %263 = vector.extract_strided_slice %97 {offsets = [0, 55, 0], sizes = [2, 1, 64], strides = [1, 1, 1]} : vector<2x128x64xf32> to vector<2x1x64xf32>
    %264 = vector.shape_cast %263 : vector<2x1x64xf32> to vector<2x64xf32>
    %c0_126 = arith.constant 0 : index
    %c3520 = arith.constant 3520 : index
    %265 = vector.load %arg6[%c0_126, %c3520] : memref<2x8192xf32, #tpu.memory_space<vmem>>, vector<2x64xf32>
    tpu.vector_store %arg6[%c0_126, %c3520], %264 {strides = array<i32>} : memref<2x8192xf32, #tpu.memory_space<vmem>>, vector<2x64xf32>,
    %266 = vector.extract_strided_slice %97 {offsets = [0, 56, 0], sizes = [2, 1, 64], strides = [1, 1, 1]} : vector<2x128x64xf32> to vector<2x1x64xf32>
    %267 = vector.shape_cast %266 : vector<2x1x64xf32> to vector<2x64xf32>
    %c0_127 = arith.constant 0 : index
    %c3584 = arith.constant 3584 : index
    %268 = vector.load %arg6[%c0_127, %c3584] : memref<2x8192xf32, #tpu.memory_space<vmem>>, vector<2x64xf32>
    tpu.vector_store %arg6[%c0_127, %c3584], %267 {strides = array<i32>} : memref<2x8192xf32, #tpu.memory_space<vmem>>, vector<2x64xf32>,
    %269 = vector.extract_strided_slice %97 {offsets = [0, 57, 0], sizes = [2, 1, 64], strides = [1, 1, 1]} : vector<2x128x64xf32> to vector<2x1x64xf32>
    %270 = vector.shape_cast %269 : vector<2x1x64xf32> to vector<2x64xf32>
    %c0_128 = arith.constant 0 : index
    %c3648 = arith.constant 3648 : index
    %271 = vector.load %arg6[%c0_128, %c3648] : memref<2x8192xf32, #tpu.memory_space<vmem>>, vector<2x64xf32>
    tpu.vector_store %arg6[%c0_128, %c3648], %270 {strides = array<i32>} : memref<2x8192xf32, #tpu.memory_space<vmem>>, vector<2x64xf32>,
    %272 = vector.extract_strided_slice %97 {offsets = [0, 58, 0], sizes = [2, 1, 64], strides = [1, 1, 1]} : vector<2x128x64xf32> to vector<2x1x64xf32>
    %273 = vector.shape_cast %272 : vector<2x1x64xf32> to vector<2x64xf32>
    %c0_129 = arith.constant 0 : index
    %c3712 = arith.constant 3712 : index
    %274 = vector.load %arg6[%c0_129, %c3712] : memref<2x8192xf32, #tpu.memory_space<vmem>>, vector<2x64xf32>
    tpu.vector_store %arg6[%c0_129, %c3712], %273 {strides = array<i32>} : memref<2x8192xf32, #tpu.memory_space<vmem>>, vector<2x64xf32>,
    %275 = vector.extract_strided_slice %97 {offsets = [0, 59, 0], sizes = [2, 1, 64], strides = [1, 1, 1]} : vector<2x128x64xf32> to vector<2x1x64xf32>
    %276 = vector.shape_cast %275 : vector<2x1x64xf32> to vector<2x64xf32>
    %c0_130 = arith.constant 0 : index
    %c3776 = arith.constant 3776 : index
    %277 = vector.load %arg6[%c0_130, %c3776] : memref<2x8192xf32, #tpu.memory_space<vmem>>, vector<2x64xf32>
    tpu.vector_store %arg6[%c0_130, %c3776], %276 {strides = array<i32>} : memref<2x8192xf32, #tpu.memory_space<vmem>>, vector<2x64xf32>,
    %278 = vector.extract_strided_slice %97 {offsets = [0, 60, 0], sizes = [2, 1, 64], strides = [1, 1, 1]} : vector<2x128x64xf32> to vector<2x1x64xf32>
    %279 = vector.shape_cast %278 : vector<2x1x64xf32> to vector<2x64xf32>
    %c0_131 = arith.constant 0 : index
    %c3840 = arith.constant 3840 : index
    %280 = vector.load %arg6[%c0_131, %c3840] : memref<2x8192xf32, #tpu.memory_space<vmem>>, vector<2x64xf32>
    tpu.vector_store %arg6[%c0_131, %c3840], %279 {strides = array<i32>} : memref<2x8192xf32, #tpu.memory_space<vmem>>, vector<2x64xf32>,
    %281 = vector.extract_strided_slice %97 {offsets = [0, 61, 0], sizes = [2, 1, 64], strides = [1, 1, 1]} : vector<2x128x64xf32> to vector<2x1x64xf32>
    %282 = vector.shape_cast %281 : vector<2x1x64xf32> to vector<2x64xf32>
    %c0_132 = arith.constant 0 : index
    %c3904 = arith.constant 3904 : index
    %283 = vector.load %arg6[%c0_132, %c3904] : memref<2x8192xf32, #tpu.memory_space<vmem>>, vector<2x64xf32>
    tpu.vector_store %arg6[%c0_132, %c3904], %282 {strides = array<i32>} : memref<2x8192xf32, #tpu.memory_space<vmem>>, vector<2x64xf32>,
    %284 = vector.extract_strided_slice %97 {offsets = [0, 62, 0], sizes = [2, 1, 64], strides = [1, 1, 1]} : vector<2x128x64xf32> to vector<2x1x64xf32>
    %285 = vector.shape_cast %284 : vector<2x1x64xf32> to vector<2x64xf32>
    %c0_133 = arith.constant 0 : index
    %c3968 = arith.constant 3968 : index
    %286 = vector.load %arg6[%c0_133, %c3968] : memref<2x8192xf32, #tpu.memory_space<vmem>>, vector<2x64xf32>
    tpu.vector_store %arg6[%c0_133, %c3968], %285 {strides = array<i32>} : memref<2x8192xf32, #tpu.memory_space<vmem>>, vector<2x64xf32>,
    %287 = vector.extract_strided_slice %97 {offsets = [0, 63, 0], sizes = [2, 1, 64], strides = [1, 1, 1]} : vector<2x128x64xf32> to vector<2x1x64xf32>
    %288 = vector.shape_cast %287 : vector<2x1x64xf32> to vector<2x64xf32>
    %c0_134 = arith.constant 0 : index
    %c4032 = arith.constant 4032 : index
    %289 = vector.load %arg6[%c0_134, %c4032] : memref<2x8192xf32, #tpu.memory_space<vmem>>, vector<2x64xf32>
    tpu.vector_store %arg6[%c0_134, %c4032], %288 {strides = array<i32>} : memref<2x8192xf32, #tpu.memory_space<vmem>>, vector<2x64xf32>,
    %290 = vector.extract_strided_slice %97 {offsets = [0, 64, 0], sizes = [2, 1, 64], strides = [1, 1, 1]} : vector<2x128x64xf32> to vector<2x1x64xf32>
    %291 = vector.shape_cast %290 : vector<2x1x64xf32> to vector<2x64xf32>
    %c0_135 = arith.constant 0 : index
    %c4096 = arith.constant 4096 : index
    %292 = vector.load %arg6[%c0_135, %c4096] : memref<2x8192xf32, #tpu.memory_space<vmem>>, vector<2x64xf32>
    tpu.vector_store %arg6[%c0_135, %c4096], %291 {strides = array<i32>} : memref<2x8192xf32, #tpu.memory_space<vmem>>, vector<2x64xf32>,
    %293 = vector.extract_strided_slice %97 {offsets = [0, 65, 0], sizes = [2, 1, 64], strides = [1, 1, 1]} : vector<2x128x64xf32> to vector<2x1x64xf32>
    %294 = vector.shape_cast %293 : vector<2x1x64xf32> to vector<2x64xf32>
    %c0_136 = arith.constant 0 : index
    %c4160 = arith.constant 4160 : index
    %295 = vector.load %arg6[%c0_136, %c4160] : memref<2x8192xf32, #tpu.memory_space<vmem>>, vector<2x64xf32>
    tpu.vector_store %arg6[%c0_136, %c4160], %294 {strides = array<i32>} : memref<2x8192xf32, #tpu.memory_space<vmem>>, vector<2x64xf32>,
    %296 = vector.extract_strided_slice %97 {offsets = [0, 66, 0], sizes = [2, 1, 64], strides = [1, 1, 1]} : vector<2x128x64xf32> to vector<2x1x64xf32>
    %297 = vector.shape_cast %296 : vector<2x1x64xf32> to vector<2x64xf32>
    %c0_137 = arith.constant 0 : index
    %c4224 = arith.constant 4224 : index
    %298 = vector.load %arg6[%c0_137, %c4224] : memref<2x8192xf32, #tpu.memory_space<vmem>>, vector<2x64xf32>
    tpu.vector_store %arg6[%c0_137, %c4224], %297 {strides = array<i32>} : memref<2x8192xf32, #tpu.memory_space<vmem>>, vector<2x64xf32>,
    %299 = vector.extract_strided_slice %97 {offsets = [0, 67, 0], sizes = [2, 1, 64], strides = [1, 1, 1]} : vector<2x128x64xf32> to vector<2x1x64xf32>
    %300 = vector.shape_cast %299 : vector<2x1x64xf32> to vector<2x64xf32>
    %c0_138 = arith.constant 0 : index
    %c4288 = arith.constant 4288 : index
    %301 = vector.load %arg6[%c0_138, %c4288] : memref<2x8192xf32, #tpu.memory_space<vmem>>, vector<2x64xf32>
    tpu.vector_store %arg6[%c0_138, %c4288], %300 {strides = array<i32>} : memref<2x8192xf32, #tpu.memory_space<vmem>>, vector<2x64xf32>,
    %302 = vector.extract_strided_slice %97 {offsets = [0, 68, 0], sizes = [2, 1, 64], strides = [1, 1, 1]} : vector<2x128x64xf32> to vector<2x1x64xf32>
    %303 = vector.shape_cast %302 : vector<2x1x64xf32> to vector<2x64xf32>
    %c0_139 = arith.constant 0 : index
    %c4352 = arith.constant 4352 : index
    %304 = vector.load %arg6[%c0_139, %c4352] : memref<2x8192xf32, #tpu.memory_space<vmem>>, vector<2x64xf32>
    tpu.vector_store %arg6[%c0_139, %c4352], %303 {strides = array<i32>} : memref<2x8192xf32, #tpu.memory_space<vmem>>, vector<2x64xf32>,
    %305 = vector.extract_strided_slice %97 {offsets = [0, 69, 0], sizes = [2, 1, 64], strides = [1, 1, 1]} : vector<2x128x64xf32> to vector<2x1x64xf32>
    %306 = vector.shape_cast %305 : vector<2x1x64xf32> to vector<2x64xf32>
    %c0_140 = arith.constant 0 : index
    %c4416 = arith.constant 4416 : index
    %307 = vector.load %arg6[%c0_140, %c4416] : memref<2x8192xf32, #tpu.memory_space<vmem>>, vector<2x64xf32>
    tpu.vector_store %arg6[%c0_140, %c4416], %306 {strides = array<i32>} : memref<2x8192xf32, #tpu.memory_space<vmem>>, vector<2x64xf32>,
    %308 = vector.extract_strided_slice %97 {offsets = [0, 70, 0], sizes = [2, 1, 64], strides = [1, 1, 1]} : vector<2x128x64xf32> to vector<2x1x64xf32>
    %309 = vector.shape_cast %308 : vector<2x1x64xf32> to vector<2x64xf32>
    %c0_141 = arith.constant 0 : index
    %c4480 = arith.constant 4480 : index
    %310 = vector.load %arg6[%c0_141, %c4480] : memref<2x8192xf32, #tpu.memory_space<vmem>>, vector<2x64xf32>
    tpu.vector_store %arg6[%c0_141, %c4480], %309 {strides = array<i32>} : memref<2x8192xf32, #tpu.memory_space<vmem>>, vector<2x64xf32>,
    %311 = vector.extract_strided_slice %97 {offsets = [0, 71, 0], sizes = [2, 1, 64], strides = [1, 1, 1]} : vector<2x128x64xf32> to vector<2x1x64xf32>
    %312 = vector.shape_cast %311 : vector<2x1x64xf32> to vector<2x64xf32>
    %c0_142 = arith.constant 0 : index
    %c4544 = arith.constant 4544 : index
    %313 = vector.load %arg6[%c0_142, %c4544] : memref<2x8192xf32, #tpu.memory_space<vmem>>, vector<2x64xf32>
    tpu.vector_store %arg6[%c0_142, %c4544], %312 {strides = array<i32>} : memref<2x8192xf32, #tpu.memory_space<vmem>>, vector<2x64xf32>,
    %314 = vector.extract_strided_slice %97 {offsets = [0, 72, 0], sizes = [2, 1, 64], strides = [1, 1, 1]} : vector<2x128x64xf32> to vector<2x1x64xf32>
    %315 = vector.shape_cast %314 : vector<2x1x64xf32> to vector<2x64xf32>
    %c0_143 = arith.constant 0 : index
    %c4608 = arith.constant 4608 : index
    %316 = vector.load %arg6[%c0_143, %c4608] : memref<2x8192xf32, #tpu.memory_space<vmem>>, vector<2x64xf32>
    tpu.vector_store %arg6[%c0_143, %c4608], %315 {strides = array<i32>} : memref<2x8192xf32, #tpu.memory_space<vmem>>, vector<2x64xf32>,
    %317 = vector.extract_strided_slice %97 {offsets = [0, 73, 0], sizes = [2, 1, 64], strides = [1, 1, 1]} : vector<2x128x64xf32> to vector<2x1x64xf32>
    %318 = vector.shape_cast %317 : vector<2x1x64xf32> to vector<2x64xf32>
    %c0_144 = arith.constant 0 : index
    %c4672 = arith.constant 4672 : index
    %319 = vector.load %arg6[%c0_144, %c4672] : memref<2x8192xf32, #tpu.memory_space<vmem>>, vector<2x64xf32>
    tpu.vector_store %arg6[%c0_144, %c4672], %318 {strides = array<i32>} : memref<2x8192xf32, #tpu.memory_space<vmem>>, vector<2x64xf32>,
    %320 = vector.extract_strided_slice %97 {offsets = [0, 74, 0], sizes = [2, 1, 64], strides = [1, 1, 1]} : vector<2x128x64xf32> to vector<2x1x64xf32>
    %321 = vector.shape_cast %320 : vector<2x1x64xf32> to vector<2x64xf32>
    %c0_145 = arith.constant 0 : index
    %c4736 = arith.constant 4736 : index
    %322 = vector.load %arg6[%c0_145, %c4736] : memref<2x8192xf32, #tpu.memory_space<vmem>>, vector<2x64xf32>
    tpu.vector_store %arg6[%c0_145, %c4736], %321 {strides = array<i32>} : memref<2x8192xf32, #tpu.memory_space<vmem>>, vector<2x64xf32>,
    %323 = vector.extract_strided_slice %97 {offsets = [0, 75, 0], sizes = [2, 1, 64], strides = [1, 1, 1]} : vector<2x128x64xf32> to vector<2x1x64xf32>
    %324 = vector.shape_cast %323 : vector<2x1x64xf32> to vector<2x64xf32>
    %c0_146 = arith.constant 0 : index
    %c4800 = arith.constant 4800 : index
    %325 = vector.load %arg6[%c0_146, %c4800] : memref<2x8192xf32, #tpu.memory_space<vmem>>, vector<2x64xf32>
    tpu.vector_store %arg6[%c0_146, %c4800], %324 {strides = array<i32>} : memref<2x8192xf32, #tpu.memory_space<vmem>>, vector<2x64xf32>,
    %326 = vector.extract_strided_slice %97 {offsets = [0, 76, 0], sizes = [2, 1, 64], strides = [1, 1, 1]} : vector<2x128x64xf32> to vector<2x1x64xf32>
    %327 = vector.shape_cast %326 : vector<2x1x64xf32> to vector<2x64xf32>
    %c0_147 = arith.constant 0 : index
    %c4864 = arith.constant 4864 : index
    %328 = vector.load %arg6[%c0_147, %c4864] : memref<2x8192xf32, #tpu.memory_space<vmem>>, vector<2x64xf32>
    tpu.vector_store %arg6[%c0_147, %c4864], %327 {strides = array<i32>} : memref<2x8192xf32, #tpu.memory_space<vmem>>, vector<2x64xf32>,
    %329 = vector.extract_strided_slice %97 {offsets = [0, 77, 0], sizes = [2, 1, 64], strides = [1, 1, 1]} : vector<2x128x64xf32> to vector<2x1x64xf32>
    %330 = vector.shape_cast %329 : vector<2x1x64xf32> to vector<2x64xf32>
    %c0_148 = arith.constant 0 : index
    %c4928 = arith.constant 4928 : index
    %331 = vector.load %arg6[%c0_148, %c4928] : memref<2x8192xf32, #tpu.memory_space<vmem>>, vector<2x64xf32>
    tpu.vector_store %arg6[%c0_148, %c4928], %330 {strides = array<i32>} : memref<2x8192xf32, #tpu.memory_space<vmem>>, vector<2x64xf32>,
    %332 = vector.extract_strided_slice %97 {offsets = [0, 78, 0], sizes = [2, 1, 64], strides = [1, 1, 1]} : vector<2x128x64xf32> to vector<2x1x64xf32>
    %333 = vector.shape_cast %332 : vector<2x1x64xf32> to vector<2x64xf32>
    %c0_149 = arith.constant 0 : index
    %c4992 = arith.constant 4992 : index
    %334 = vector.load %arg6[%c0_149, %c4992] : memref<2x8192xf32, #tpu.memory_space<vmem>>, vector<2x64xf32>
    tpu.vector_store %arg6[%c0_149, %c4992], %333 {strides = array<i32>} : memref<2x8192xf32, #tpu.memory_space<vmem>>, vector<2x64xf32>,
    %335 = vector.extract_strided_slice %97 {offsets = [0, 79, 0], sizes = [2, 1, 64], strides = [1, 1, 1]} : vector<2x128x64xf32> to vector<2x1x64xf32>
    %336 = vector.shape_cast %335 : vector<2x1x64xf32> to vector<2x64xf32>
    %c0_150 = arith.constant 0 : index
    %c5056 = arith.constant 5056 : index
    %337 = vector.load %arg6[%c0_150, %c5056] : memref<2x8192xf32, #tpu.memory_space<vmem>>, vector<2x64xf32>
    tpu.vector_store %arg6[%c0_150, %c5056], %336 {strides = array<i32>} : memref<2x8192xf32, #tpu.memory_space<vmem>>, vector<2x64xf32>,
    %338 = vector.extract_strided_slice %97 {offsets = [0, 80, 0], sizes = [2, 1, 64], strides = [1, 1, 1]} : vector<2x128x64xf32> to vector<2x1x64xf32>
    %339 = vector.shape_cast %338 : vector<2x1x64xf32> to vector<2x64xf32>
    %c0_151 = arith.constant 0 : index
    %c5120 = arith.constant 5120 : index
    %340 = vector.load %arg6[%c0_151, %c5120] : memref<2x8192xf32, #tpu.memory_space<vmem>>, vector<2x64xf32>
    tpu.vector_store %arg6[%c0_151, %c5120], %339 {strides = array<i32>} : memref<2x8192xf32, #tpu.memory_space<vmem>>, vector<2x64xf32>,
    %341 = vector.extract_strided_slice %97 {offsets = [0, 81, 0], sizes = [2, 1, 64], strides = [1, 1, 1]} : vector<2x128x64xf32> to vector<2x1x64xf32>
    %342 = vector.shape_cast %341 : vector<2x1x64xf32> to vector<2x64xf32>
    %c0_152 = arith.constant 0 : index
    %c5184 = arith.constant 5184 : index
    %343 = vector.load %arg6[%c0_152, %c5184] : memref<2x8192xf32, #tpu.memory_space<vmem>>, vector<2x64xf32>
    tpu.vector_store %arg6[%c0_152, %c5184], %342 {strides = array<i32>} : memref<2x8192xf32, #tpu.memory_space<vmem>>, vector<2x64xf32>,
    %344 = vector.extract_strided_slice %97 {offsets = [0, 82, 0], sizes = [2, 1, 64], strides = [1, 1, 1]} : vector<2x128x64xf32> to vector<2x1x64xf32>
    %345 = vector.shape_cast %344 : vector<2x1x64xf32> to vector<2x64xf32>
    %c0_153 = arith.constant 0 : index
    %c5248 = arith.constant 5248 : index
    %346 = vector.load %arg6[%c0_153, %c5248] : memref<2x8192xf32, #tpu.memory_space<vmem>>, vector<2x64xf32>
    tpu.vector_store %arg6[%c0_153, %c5248], %345 {strides = array<i32>} : memref<2x8192xf32, #tpu.memory_space<vmem>>, vector<2x64xf32>,
    %347 = vector.extract_strided_slice %97 {offsets = [0, 83, 0], sizes = [2, 1, 64], strides = [1, 1, 1]} : vector<2x128x64xf32> to vector<2x1x64xf32>
    %348 = vector.shape_cast %347 : vector<2x1x64xf32> to vector<2x64xf32>
    %c0_154 = arith.constant 0 : index
    %c5312 = arith.constant 5312 : index
    %349 = vector.load %arg6[%c0_154, %c5312] : memref<2x8192xf32, #tpu.memory_space<vmem>>, vector<2x64xf32>
    tpu.vector_store %arg6[%c0_154, %c5312], %348 {strides = array<i32>} : memref<2x8192xf32, #tpu.memory_space<vmem>>, vector<2x64xf32>,
    %350 = vector.extract_strided_slice %97 {offsets = [0, 84, 0], sizes = [2, 1, 64], strides = [1, 1, 1]} : vector<2x128x64xf32> to vector<2x1x64xf32>
    %351 = vector.shape_cast %350 : vector<2x1x64xf32> to vector<2x64xf32>
    %c0_155 = arith.constant 0 : index
    %c5376 = arith.constant 5376 : index
    %352 = vector.load %arg6[%c0_155, %c5376] : memref<2x8192xf32, #tpu.memory_space<vmem>>, vector<2x64xf32>
    tpu.vector_store %arg6[%c0_155, %c5376], %351 {strides = array<i32>} : memref<2x8192xf32, #tpu.memory_space<vmem>>, vector<2x64xf32>,
    %353 = vector.extract_strided_slice %97 {offsets = [0, 85, 0], sizes = [2, 1, 64], strides = [1, 1, 1]} : vector<2x128x64xf32> to vector<2x1x64xf32>
    %354 = vector.shape_cast %353 : vector<2x1x64xf32> to vector<2x64xf32>
    %c0_156 = arith.constant 0 : index
    %c5440 = arith.constant 5440 : index
    %355 = vector.load %arg6[%c0_156, %c5440] : memref<2x8192xf32, #tpu.memory_space<vmem>>, vector<2x64xf32>
    tpu.vector_store %arg6[%c0_156, %c5440], %354 {strides = array<i32>} : memref<2x8192xf32, #tpu.memory_space<vmem>>, vector<2x64xf32>,
    %356 = vector.extract_strided_slice %97 {offsets = [0, 86, 0], sizes = [2, 1, 64], strides = [1, 1, 1]} : vector<2x128x64xf32> to vector<2x1x64xf32>
    %357 = vector.shape_cast %356 : vector<2x1x64xf32> to vector<2x64xf32>
    %c0_157 = arith.constant 0 : index
    %c5504 = arith.constant 5504 : index
    %358 = vector.load %arg6[%c0_157, %c5504] : memref<2x8192xf32, #tpu.memory_space<vmem>>, vector<2x64xf32>
    tpu.vector_store %arg6[%c0_157, %c5504], %357 {strides = array<i32>} : memref<2x8192xf32, #tpu.memory_space<vmem>>, vector<2x64xf32>,
    %359 = vector.extract_strided_slice %97 {offsets = [0, 87, 0], sizes = [2, 1, 64], strides = [1, 1, 1]} : vector<2x128x64xf32> to vector<2x1x64xf32>
    %360 = vector.shape_cast %359 : vector<2x1x64xf32> to vector<2x64xf32>
    %c0_158 = arith.constant 0 : index
    %c5568 = arith.constant 5568 : index
    %361 = vector.load %arg6[%c0_158, %c5568] : memref<2x8192xf32, #tpu.memory_space<vmem>>, vector<2x64xf32>
    tpu.vector_store %arg6[%c0_158, %c5568], %360 {strides = array<i32>} : memref<2x8192xf32, #tpu.memory_space<vmem>>, vector<2x64xf32>,
    %362 = vector.extract_strided_slice %97 {offsets = [0, 88, 0], sizes = [2, 1, 64], strides = [1, 1, 1]} : vector<2x128x64xf32> to vector<2x1x64xf32>
    %363 = vector.shape_cast %362 : vector<2x1x64xf32> to vector<2x64xf32>
    %c0_159 = arith.constant 0 : index
    %c5632 = arith.constant 5632 : index
    %364 = vector.load %arg6[%c0_159, %c5632] : memref<2x8192xf32, #tpu.memory_space<vmem>>, vector<2x64xf32>
    tpu.vector_store %arg6[%c0_159, %c5632], %363 {strides = array<i32>} : memref<2x8192xf32, #tpu.memory_space<vmem>>, vector<2x64xf32>,
    %365 = vector.extract_strided_slice %97 {offsets = [0, 89, 0], sizes = [2, 1, 64], strides = [1, 1, 1]} : vector<2x128x64xf32> to vector<2x1x64xf32>
    %366 = vector.shape_cast %365 : vector<2x1x64xf32> to vector<2x64xf32>
    %c0_160 = arith.constant 0 : index
    %c5696 = arith.constant 5696 : index
    %367 = vector.load %arg6[%c0_160, %c5696] : memref<2x8192xf32, #tpu.memory_space<vmem>>, vector<2x64xf32>
    tpu.vector_store %arg6[%c0_160, %c5696], %366 {strides = array<i32>} : memref<2x8192xf32, #tpu.memory_space<vmem>>, vector<2x64xf32>,
    %368 = vector.extract_strided_slice %97 {offsets = [0, 90, 0], sizes = [2, 1, 64], strides = [1, 1, 1]} : vector<2x128x64xf32> to vector<2x1x64xf32>
    %369 = vector.shape_cast %368 : vector<2x1x64xf32> to vector<2x64xf32>
    %c0_161 = arith.constant 0 : index
    %c5760 = arith.constant 5760 : index
    %370 = vector.load %arg6[%c0_161, %c5760] : memref<2x8192xf32, #tpu.memory_space<vmem>>, vector<2x64xf32>
    tpu.vector_store %arg6[%c0_161, %c5760], %369 {strides = array<i32>} : memref<2x8192xf32, #tpu.memory_space<vmem>>, vector<2x64xf32>,
    %371 = vector.extract_strided_slice %97 {offsets = [0, 91, 0], sizes = [2, 1, 64], strides = [1, 1, 1]} : vector<2x128x64xf32> to vector<2x1x64xf32>
    %372 = vector.shape_cast %371 : vector<2x1x64xf32> to vector<2x64xf32>
    %c0_162 = arith.constant 0 : index
    %c5824 = arith.constant 5824 : index
    %373 = vector.load %arg6[%c0_162, %c5824] : memref<2x8192xf32, #tpu.memory_space<vmem>>, vector<2x64xf32>
    tpu.vector_store %arg6[%c0_162, %c5824], %372 {strides = array<i32>} : memref<2x8192xf32, #tpu.memory_space<vmem>>, vector<2x64xf32>,
    %374 = vector.extract_strided_slice %97 {offsets = [0, 92, 0], sizes = [2, 1, 64], strides = [1, 1, 1]} : vector<2x128x64xf32> to vector<2x1x64xf32>
    %375 = vector.shape_cast %374 : vector<2x1x64xf32> to vector<2x64xf32>
    %c0_163 = arith.constant 0 : index
    %c5888 = arith.constant 5888 : index
    %376 = vector.load %arg6[%c0_163, %c5888] : memref<2x8192xf32, #tpu.memory_space<vmem>>, vector<2x64xf32>
    tpu.vector_store %arg6[%c0_163, %c5888], %375 {strides = array<i32>} : memref<2x8192xf32, #tpu.memory_space<vmem>>, vector<2x64xf32>,
    %377 = vector.extract_strided_slice %97 {offsets = [0, 93, 0], sizes = [2, 1, 64], strides = [1, 1, 1]} : vector<2x128x64xf32> to vector<2x1x64xf32>
    %378 = vector.shape_cast %377 : vector<2x1x64xf32> to vector<2x64xf32>
    %c0_164 = arith.constant 0 : index
    %c5952 = arith.constant 5952 : index
    %379 = vector.load %arg6[%c0_164, %c5952] : memref<2x8192xf32, #tpu.memory_space<vmem>>, vector<2x64xf32>
    tpu.vector_store %arg6[%c0_164, %c5952], %378 {strides = array<i32>} : memref<2x8192xf32, #tpu.memory_space<vmem>>, vector<2x64xf32>,
    %380 = vector.extract_strided_slice %97 {offsets = [0, 94, 0], sizes = [2, 1, 64], strides = [1, 1, 1]} : vector<2x128x64xf32> to vector<2x1x64xf32>
    %381 = vector.shape_cast %380 : vector<2x1x64xf32> to vector<2x64xf32>
    %c0_165 = arith.constant 0 : index
    %c6016 = arith.constant 6016 : index
    %382 = vector.load %arg6[%c0_165, %c6016] : memref<2x8192xf32, #tpu.memory_space<vmem>>, vector<2x64xf32>
    tpu.vector_store %arg6[%c0_165, %c6016], %381 {strides = array<i32>} : memref<2x8192xf32, #tpu.memory_space<vmem>>, vector<2x64xf32>,
    %383 = vector.extract_strided_slice %97 {offsets = [0, 95, 0], sizes = [2, 1, 64], strides = [1, 1, 1]} : vector<2x128x64xf32> to vector<2x1x64xf32>
    %384 = vector.shape_cast %383 : vector<2x1x64xf32> to vector<2x64xf32>
    %c0_166 = arith.constant 0 : index
    %c6080 = arith.constant 6080 : index
    %385 = vector.load %arg6[%c0_166, %c6080] : memref<2x8192xf32, #tpu.memory_space<vmem>>, vector<2x64xf32>
    tpu.vector_store %arg6[%c0_166, %c6080], %384 {strides = array<i32>} : memref<2x8192xf32, #tpu.memory_space<vmem>>, vector<2x64xf32>,
    %386 = vector.extract_strided_slice %97 {offsets = [0, 96, 0], sizes = [2, 1, 64], strides = [1, 1, 1]} : vector<2x128x64xf32> to vector<2x1x64xf32>
    %387 = vector.shape_cast %386 : vector<2x1x64xf32> to vector<2x64xf32>
    %c0_167 = arith.constant 0 : index
    %c6144 = arith.constant 6144 : index
    %388 = vector.load %arg6[%c0_167, %c6144] : memref<2x8192xf32, #tpu.memory_space<vmem>>, vector<2x64xf32>
    tpu.vector_store %arg6[%c0_167, %c6144], %387 {strides = array<i32>} : memref<2x8192xf32, #tpu.memory_space<vmem>>, vector<2x64xf32>,
    %389 = vector.extract_strided_slice %97 {offsets = [0, 97, 0], sizes = [2, 1, 64], strides = [1, 1, 1]} : vector<2x128x64xf32> to vector<2x1x64xf32>
    %390 = vector.shape_cast %389 : vector<2x1x64xf32> to vector<2x64xf32>
    %c0_168 = arith.constant 0 : index
    %c6208 = arith.constant 6208 : index
    %391 = vector.load %arg6[%c0_168, %c6208] : memref<2x8192xf32, #tpu.memory_space<vmem>>, vector<2x64xf32>
    tpu.vector_store %arg6[%c0_168, %c6208], %390 {strides = array<i32>} : memref<2x8192xf32, #tpu.memory_space<vmem>>, vector<2x64xf32>,
    %392 = vector.extract_strided_slice %97 {offsets = [0, 98, 0], sizes = [2, 1, 64], strides = [1, 1, 1]} : vector<2x128x64xf32> to vector<2x1x64xf32>
    %393 = vector.shape_cast %392 : vector<2x1x64xf32> to vector<2x64xf32>
    %c0_169 = arith.constant 0 : index
    %c6272 = arith.constant 6272 : index
    %394 = vector.load %arg6[%c0_169, %c6272] : memref<2x8192xf32, #tpu.memory_space<vmem>>, vector<2x64xf32>
    tpu.vector_store %arg6[%c0_169, %c6272], %393 {strides = array<i32>} : memref<2x8192xf32, #tpu.memory_space<vmem>>, vector<2x64xf32>,
    %395 = vector.extract_strided_slice %97 {offsets = [0, 99, 0], sizes = [2, 1, 64], strides = [1, 1, 1]} : vector<2x128x64xf32> to vector<2x1x64xf32>
    %396 = vector.shape_cast %395 : vector<2x1x64xf32> to vector<2x64xf32>
    %c0_170 = arith.constant 0 : index
    %c6336 = arith.constant 6336 : index
    %397 = vector.load %arg6[%c0_170, %c6336] : memref<2x8192xf32, #tpu.memory_space<vmem>>, vector<2x64xf32>
    tpu.vector_store %arg6[%c0_170, %c6336], %396 {strides = array<i32>} : memref<2x8192xf32, #tpu.memory_space<vmem>>, vector<2x64xf32>,
    %398 = vector.extract_strided_slice %97 {offsets = [0, 100, 0], sizes = [2, 1, 64], strides = [1, 1, 1]} : vector<2x128x64xf32> to vector<2x1x64xf32>
    %399 = vector.shape_cast %398 : vector<2x1x64xf32> to vector<2x64xf32>
    %c0_171 = arith.constant 0 : index
    %c6400 = arith.constant 6400 : index
    %400 = vector.load %arg6[%c0_171, %c6400] : memref<2x8192xf32, #tpu.memory_space<vmem>>, vector<2x64xf32>
    tpu.vector_store %arg6[%c0_171, %c6400], %399 {strides = array<i32>} : memref<2x8192xf32, #tpu.memory_space<vmem>>, vector<2x64xf32>,
    %401 = vector.extract_strided_slice %97 {offsets = [0, 101, 0], sizes = [2, 1, 64], strides = [1, 1, 1]} : vector<2x128x64xf32> to vector<2x1x64xf32>
    %402 = vector.shape_cast %401 : vector<2x1x64xf32> to vector<2x64xf32>
    %c0_172 = arith.constant 0 : index
    %c6464 = arith.constant 6464 : index
    %403 = vector.load %arg6[%c0_172, %c6464] : memref<2x8192xf32, #tpu.memory_space<vmem>>, vector<2x64xf32>
    tpu.vector_store %arg6[%c0_172, %c6464], %402 {strides = array<i32>} : memref<2x8192xf32, #tpu.memory_space<vmem>>, vector<2x64xf32>,
    %404 = vector.extract_strided_slice %97 {offsets = [0, 102, 0], sizes = [2, 1, 64], strides = [1, 1, 1]} : vector<2x128x64xf32> to vector<2x1x64xf32>
    %405 = vector.shape_cast %404 : vector<2x1x64xf32> to vector<2x64xf32>
    %c0_173 = arith.constant 0 : index
    %c6528 = arith.constant 6528 : index
    %406 = vector.load %arg6[%c0_173, %c6528] : memref<2x8192xf32, #tpu.memory_space<vmem>>, vector<2x64xf32>
    tpu.vector_store %arg6[%c0_173, %c6528], %405 {strides = array<i32>} : memref<2x8192xf32, #tpu.memory_space<vmem>>, vector<2x64xf32>,
    %407 = vector.extract_strided_slice %97 {offsets = [0, 103, 0], sizes = [2, 1, 64], strides = [1, 1, 1]} : vector<2x128x64xf32> to vector<2x1x64xf32>
    %408 = vector.shape_cast %407 : vector<2x1x64xf32> to vector<2x64xf32>
    %c0_174 = arith.constant 0 : index
    %c6592 = arith.constant 6592 : index
    %409 = vector.load %arg6[%c0_174, %c6592] : memref<2x8192xf32, #tpu.memory_space<vmem>>, vector<2x64xf32>
    tpu.vector_store %arg6[%c0_174, %c6592], %408 {strides = array<i32>} : memref<2x8192xf32, #tpu.memory_space<vmem>>, vector<2x64xf32>,
    %410 = vector.extract_strided_slice %97 {offsets = [0, 104, 0], sizes = [2, 1, 64], strides = [1, 1, 1]} : vector<2x128x64xf32> to vector<2x1x64xf32>
    %411 = vector.shape_cast %410 : vector<2x1x64xf32> to vector<2x64xf32>
    %c0_175 = arith.constant 0 : index
    %c6656 = arith.constant 6656 : index
    %412 = vector.load %arg6[%c0_175, %c6656] : memref<2x8192xf32, #tpu.memory_space<vmem>>, vector<2x64xf32>
    tpu.vector_store %arg6[%c0_175, %c6656], %411 {strides = array<i32>} : memref<2x8192xf32, #tpu.memory_space<vmem>>, vector<2x64xf32>,
    %413 = vector.extract_strided_slice %97 {offsets = [0, 105, 0], sizes = [2, 1, 64], strides = [1, 1, 1]} : vector<2x128x64xf32> to vector<2x1x64xf32>
    %414 = vector.shape_cast %413 : vector<2x1x64xf32> to vector<2x64xf32>
    %c0_176 = arith.constant 0 : index
    %c6720 = arith.constant 6720 : index
    %415 = vector.load %arg6[%c0_176, %c6720] : memref<2x8192xf32, #tpu.memory_space<vmem>>, vector<2x64xf32>
    tpu.vector_store %arg6[%c0_176, %c6720], %414 {strides = array<i32>} : memref<2x8192xf32, #tpu.memory_space<vmem>>, vector<2x64xf32>,
    %416 = vector.extract_strided_slice %97 {offsets = [0, 106, 0], sizes = [2, 1, 64], strides = [1, 1, 1]} : vector<2x128x64xf32> to vector<2x1x64xf32>
    %417 = vector.shape_cast %416 : vector<2x1x64xf32> to vector<2x64xf32>
    %c0_177 = arith.constant 0 : index
    %c6784 = arith.constant 6784 : index
    %418 = vector.load %arg6[%c0_177, %c6784] : memref<2x8192xf32, #tpu.memory_space<vmem>>, vector<2x64xf32>
    tpu.vector_store %arg6[%c0_177, %c6784], %417 {strides = array<i32>} : memref<2x8192xf32, #tpu.memory_space<vmem>>, vector<2x64xf32>,
    %419 = vector.extract_strided_slice %97 {offsets = [0, 107, 0], sizes = [2, 1, 64], strides = [1, 1, 1]} : vector<2x128x64xf32> to vector<2x1x64xf32>
    %420 = vector.shape_cast %419 : vector<2x1x64xf32> to vector<2x64xf32>
    %c0_178 = arith.constant 0 : index
    %c6848 = arith.constant 6848 : index
    %421 = vector.load %arg6[%c0_178, %c6848] : memref<2x8192xf32, #tpu.memory_space<vmem>>, vector<2x64xf32>
    tpu.vector_store %arg6[%c0_178, %c6848], %420 {strides = array<i32>} : memref<2x8192xf32, #tpu.memory_space<vmem>>, vector<2x64xf32>,
    %422 = vector.extract_strided_slice %97 {offsets = [0, 108, 0], sizes = [2, 1, 64], strides = [1, 1, 1]} : vector<2x128x64xf32> to vector<2x1x64xf32>
    %423 = vector.shape_cast %422 : vector<2x1x64xf32> to vector<2x64xf32>
    %c0_179 = arith.constant 0 : index
    %c6912 = arith.constant 6912 : index
    %424 = vector.load %arg6[%c0_179, %c6912] : memref<2x8192xf32, #tpu.memory_space<vmem>>, vector<2x64xf32>
    tpu.vector_store %arg6[%c0_179, %c6912], %423 {strides = array<i32>} : memref<2x8192xf32, #tpu.memory_space<vmem>>, vector<2x64xf32>,
    %425 = vector.extract_strided_slice %97 {offsets = [0, 109, 0], sizes = [2, 1, 64], strides = [1, 1, 1]} : vector<2x128x64xf32> to vector<2x1x64xf32>
    %426 = vector.shape_cast %425 : vector<2x1x64xf32> to vector<2x64xf32>
    %c0_180 = arith.constant 0 : index
    %c6976 = arith.constant 6976 : index
    %427 = vector.load %arg6[%c0_180, %c6976] : memref<2x8192xf32, #tpu.memory_space<vmem>>, vector<2x64xf32>
    tpu.vector_store %arg6[%c0_180, %c6976], %426 {strides = array<i32>} : memref<2x8192xf32, #tpu.memory_space<vmem>>, vector<2x64xf32>,
    %428 = vector.extract_strided_slice %97 {offsets = [0, 110, 0], sizes = [2, 1, 64], strides = [1, 1, 1]} : vector<2x128x64xf32> to vector<2x1x64xf32>
    %429 = vector.shape_cast %428 : vector<2x1x64xf32> to vector<2x64xf32>
    %c0_181 = arith.constant 0 : index
    %c7040 = arith.constant 7040 : index
    %430 = vector.load %arg6[%c0_181, %c7040] : memref<2x8192xf32, #tpu.memory_space<vmem>>, vector<2x64xf32>
    tpu.vector_store %arg6[%c0_181, %c7040], %429 {strides = array<i32>} : memref<2x8192xf32, #tpu.memory_space<vmem>>, vector<2x64xf32>,
    %431 = vector.extract_strided_slice %97 {offsets = [0, 111, 0], sizes = [2, 1, 64], strides = [1, 1, 1]} : vector<2x128x64xf32> to vector<2x1x64xf32>
    %432 = vector.shape_cast %431 : vector<2x1x64xf32> to vector<2x64xf32>
    %c0_182 = arith.constant 0 : index
    %c7104 = arith.constant 7104 : index
    %433 = vector.load %arg6[%c0_182, %c7104] : memref<2x8192xf32, #tpu.memory_space<vmem>>, vector<2x64xf32>
    tpu.vector_store %arg6[%c0_182, %c7104], %432 {strides = array<i32>} : memref<2x8192xf32, #tpu.memory_space<vmem>>, vector<2x64xf32>,
    %434 = vector.extract_strided_slice %97 {offsets = [0, 112, 0], sizes = [2, 1, 64], strides = [1, 1, 1]} : vector<2x128x64xf32> to vector<2x1x64xf32>
    %435 = vector.shape_cast %434 : vector<2x1x64xf32> to vector<2x64xf32>
    %c0_183 = arith.constant 0 : index
    %c7168 = arith.constant 7168 : index
    %436 = vector.load %arg6[%c0_183, %c7168] : memref<2x8192xf32, #tpu.memory_space<vmem>>, vector<2x64xf32>
    tpu.vector_store %arg6[%c0_183, %c7168], %435 {strides = array<i32>} : memref<2x8192xf32, #tpu.memory_space<vmem>>, vector<2x64xf32>,
    %437 = vector.extract_strided_slice %97 {offsets = [0, 113, 0], sizes = [2, 1, 64], strides = [1, 1, 1]} : vector<2x128x64xf32> to vector<2x1x64xf32>
    %438 = vector.shape_cast %437 : vector<2x1x64xf32> to vector<2x64xf32>
    %c0_184 = arith.constant 0 : index
    %c7232 = arith.constant 7232 : index
    %439 = vector.load %arg6[%c0_184, %c7232] : memref<2x8192xf32, #tpu.memory_space<vmem>>, vector<2x64xf32>
    tpu.vector_store %arg6[%c0_184, %c7232], %438 {strides = array<i32>} : memref<2x8192xf32, #tpu.memory_space<vmem>>, vector<2x64xf32>,
    %440 = vector.extract_strided_slice %97 {offsets = [0, 114, 0], sizes = [2, 1, 64], strides = [1, 1, 1]} : vector<2x128x64xf32> to vector<2x1x64xf32>
    %441 = vector.shape_cast %440 : vector<2x1x64xf32> to vector<2x64xf32>
    %c0_185 = arith.constant 0 : index
    %c7296 = arith.constant 7296 : index
    %442 = vector.load %arg6[%c0_185, %c7296] : memref<2x8192xf32, #tpu.memory_space<vmem>>, vector<2x64xf32>
    tpu.vector_store %arg6[%c0_185, %c7296], %441 {strides = array<i32>} : memref<2x8192xf32, #tpu.memory_space<vmem>>, vector<2x64xf32>,
    %443 = vector.extract_strided_slice %97 {offsets = [0, 115, 0], sizes = [2, 1, 64], strides = [1, 1, 1]} : vector<2x128x64xf32> to vector<2x1x64xf32>
    %444 = vector.shape_cast %443 : vector<2x1x64xf32> to vector<2x64xf32>
    %c0_186 = arith.constant 0 : index
    %c7360 = arith.constant 7360 : index
    %445 = vector.load %arg6[%c0_186, %c7360] : memref<2x8192xf32, #tpu.memory_space<vmem>>, vector<2x64xf32>
    tpu.vector_store %arg6[%c0_186, %c7360], %444 {strides = array<i32>} : memref<2x8192xf32, #tpu.memory_space<vmem>>, vector<2x64xf32>,
    %446 = vector.extract_strided_slice %97 {offsets = [0, 116, 0], sizes = [2, 1, 64], strides = [1, 1, 1]} : vector<2x128x64xf32> to vector<2x1x64xf32>
    %447 = vector.shape_cast %446 : vector<2x1x64xf32> to vector<2x64xf32>
    %c0_187 = arith.constant 0 : index
    %c7424 = arith.constant 7424 : index
    %448 = vector.load %arg6[%c0_187, %c7424] : memref<2x8192xf32, #tpu.memory_space<vmem>>, vector<2x64xf32>
    tpu.vector_store %arg6[%c0_187, %c7424], %447 {strides = array<i32>} : memref<2x8192xf32, #tpu.memory_space<vmem>>, vector<2x64xf32>,
    %449 = vector.extract_strided_slice %97 {offsets = [0, 117, 0], sizes = [2, 1, 64], strides = [1, 1, 1]} : vector<2x128x64xf32> to vector<2x1x64xf32>
    %450 = vector.shape_cast %449 : vector<2x1x64xf32> to vector<2x64xf32>
    %c0_188 = arith.constant 0 : index
    %c7488 = arith.constant 7488 : index
    %451 = vector.load %arg6[%c0_188, %c7488] : memref<2x8192xf32, #tpu.memory_space<vmem>>, vector<2x64xf32>
    tpu.vector_store %arg6[%c0_188, %c7488], %450 {strides = array<i32>} : memref<2x8192xf32, #tpu.memory_space<vmem>>, vector<2x64xf32>,
    %452 = vector.extract_strided_slice %97 {offsets = [0, 118, 0], sizes = [2, 1, 64], strides = [1, 1, 1]} : vector<2x128x64xf32> to vector<2x1x64xf32>
    %453 = vector.shape_cast %452 : vector<2x1x64xf32> to vector<2x64xf32>
    %c0_189 = arith.constant 0 : index
    %c7552 = arith.constant 7552 : index
    %454 = vector.load %arg6[%c0_189, %c7552] : memref<2x8192xf32, #tpu.memory_space<vmem>>, vector<2x64xf32>
    tpu.vector_store %arg6[%c0_189, %c7552], %453 {strides = array<i32>} : memref<2x8192xf32, #tpu.memory_space<vmem>>, vector<2x64xf32>,
    %455 = vector.extract_strided_slice %97 {offsets = [0, 119, 0], sizes = [2, 1, 64], strides = [1, 1, 1]} : vector<2x128x64xf32> to vector<2x1x64xf32>
    %456 = vector.shape_cast %455 : vector<2x1x64xf32> to vector<2x64xf32>
    %c0_190 = arith.constant 0 : index
    %c7616 = arith.constant 7616 : index
    %457 = vector.load %arg6[%c0_190, %c7616] : memref<2x8192xf32, #tpu.memory_space<vmem>>, vector<2x64xf32>
    tpu.vector_store %arg6[%c0_190, %c7616], %456 {strides = array<i32>} : memref<2x8192xf32, #tpu.memory_space<vmem>>, vector<2x64xf32>,
    %458 = vector.extract_strided_slice %97 {offsets = [0, 120, 0], sizes = [2, 1, 64], strides = [1, 1, 1]} : vector<2x128x64xf32> to vector<2x1x64xf32>
    %459 = vector.shape_cast %458 : vector<2x1x64xf32> to vector<2x64xf32>
    %c0_191 = arith.constant 0 : index
    %c7680 = arith.constant 7680 : index
    %460 = vector.load %arg6[%c0_191, %c7680] : memref<2x8192xf32, #tpu.memory_space<vmem>>, vector<2x64xf32>
    tpu.vector_store %arg6[%c0_191, %c7680], %459 {strides = array<i32>} : memref<2x8192xf32, #tpu.memory_space<vmem>>, vector<2x64xf32>,
    %461 = vector.extract_strided_slice %97 {offsets = [0, 121, 0], sizes = [2, 1, 64], strides = [1, 1, 1]} : vector<2x128x64xf32> to vector<2x1x64xf32>
    %462 = vector.shape_cast %461 : vector<2x1x64xf32> to vector<2x64xf32>
    %c0_192 = arith.constant 0 : index
    %c7744 = arith.constant 7744 : index
    %463 = vector.load %arg6[%c0_192, %c7744] : memref<2x8192xf32, #tpu.memory_space<vmem>>, vector<2x64xf32>
    tpu.vector_store %arg6[%c0_192, %c7744], %462 {strides = array<i32>} : memref<2x8192xf32, #tpu.memory_space<vmem>>, vector<2x64xf32>,
    %464 = vector.extract_strided_slice %97 {offsets = [0, 122, 0], sizes = [2, 1, 64], strides = [1, 1, 1]} : vector<2x128x64xf32> to vector<2x1x64xf32>
    %465 = vector.shape_cast %464 : vector<2x1x64xf32> to vector<2x64xf32>
    %c0_193 = arith.constant 0 : index
    %c7808 = arith.constant 7808 : index
    %466 = vector.load %arg6[%c0_193, %c7808] : memref<2x8192xf32, #tpu.memory_space<vmem>>, vector<2x64xf32>
    tpu.vector_store %arg6[%c0_193, %c7808], %465 {strides = array<i32>} : memref<2x8192xf32, #tpu.memory_space<vmem>>, vector<2x64xf32>,
    %467 = vector.extract_strided_slice %97 {offsets = [0, 123, 0], sizes = [2, 1, 64], strides = [1, 1, 1]} : vector<2x128x64xf32> to vector<2x1x64xf32>
    %468 = vector.shape_cast %467 : vector<2x1x64xf32> to vector<2x64xf32>
    %c0_194 = arith.constant 0 : index
    %c7872 = arith.constant 7872 : index
    %469 = vector.load %arg6[%c0_194, %c7872] : memref<2x8192xf32, #tpu.memory_space<vmem>>, vector<2x64xf32>
    tpu.vector_store %arg6[%c0_194, %c7872], %468 {strides = array<i32>} : memref<2x8192xf32, #tpu.memory_space<vmem>>, vector<2x64xf32>,
    %470 = vector.extract_strided_slice %97 {offsets = [0, 124, 0], sizes = [2, 1, 64], strides = [1, 1, 1]} : vector<2x128x64xf32> to vector<2x1x64xf32>
    %471 = vector.shape_cast %470 : vector<2x1x64xf32> to vector<2x64xf32>
    %c0_195 = arith.constant 0 : index
    %c7936 = arith.constant 7936 : index
    %472 = vector.load %arg6[%c0_195, %c7936] : memref<2x8192xf32, #tpu.memory_space<vmem>>, vector<2x64xf32>
    tpu.vector_store %arg6[%c0_195, %c7936], %471 {strides = array<i32>} : memref<2x8192xf32, #tpu.memory_space<vmem>>, vector<2x64xf32>,
    %473 = vector.extract_strided_slice %97 {offsets = [0, 125, 0], sizes = [2, 1, 64], strides = [1, 1, 1]} : vector<2x128x64xf32> to vector<2x1x64xf32>
    %474 = vector.shape_cast %473 : vector<2x1x64xf32> to vector<2x64xf32>
    %c0_196 = arith.constant 0 : index
    %c8000 = arith.constant 8000 : index
    %475 = vector.load %arg6[%c0_196, %c8000] : memref<2x8192xf32, #tpu.memory_space<vmem>>, vector<2x64xf32>
    tpu.vector_store %arg6[%c0_196, %c8000], %474 {strides = array<i32>} : memref<2x8192xf32, #tpu.memory_space<vmem>>, vector<2x64xf32>,
    %476 = vector.extract_strided_slice %97 {offsets = [0, 126, 0], sizes = [2, 1, 64], strides = [1, 1, 1]} : vector<2x128x64xf32> to vector<2x1x64xf32>
    %477 = vector.shape_cast %476 : vector<2x1x64xf32> to vector<2x64xf32>
    %c0_197 = arith.constant 0 : index
    %c8064 = arith.constant 8064 : index
    %478 = vector.load %arg6[%c0_197, %c8064] : memref<2x8192xf32, #tpu.memory_space<vmem>>, vector<2x64xf32>
    tpu.vector_store %arg6[%c0_197, %c8064], %477 {strides = array<i32>} : memref<2x8192xf32, #tpu.memory_space<vmem>>, vector<2x64xf32>,
    %479 = vector.extract_strided_slice %97 {offsets = [0, 127, 0], sizes = [2, 1, 64], strides = [1, 1, 1]} : vector<2x128x64xf32> to vector<2x1x64xf32>
    %480 = vector.shape_cast %479 : vector<2x1x64xf32> to vector<2x64xf32>
    %c0_198 = arith.constant 0 : index
    %c8128 = arith.constant 8128 : index
    %481 = vector.load %arg6[%c0_198, %c8128] : memref<2x8192xf32, #tpu.memory_space<vmem>>, vector<2x64xf32>
    tpu.vector_store %arg6[%c0_198, %c8128], %480 {strides = array<i32>} : memref<2x8192xf32, #tpu.memory_space<vmem>>, vector<2x64xf32>,
    %c0_199 = arith.constant 0 : index
    %c0_200 = arith.constant 0 : index
    %482 = vector.load %arg1[%c0_199, %c0_200] : memref<2x3xf32, #tpu.memory_space<vmem>>, vector<2x3xf32>
    %c280 = arith.constant 280 : index
    %c0_201 = arith.constant 0 : index
    %483 = vector.load %arg2[%c280, %c0_201] : memref<704x128xf32, #tpu.memory_space<vmem>>, vector<3x64xf32>
    %cst_202 = arith.constant dense<0.000000e+00> : vector<2x64xf32>
    %484 = tpu.matmul %482, %483, %cst_202 {dimension_numbers = #tpu.dot_dimension_numbers<[1], [0], [0], [1], [0, 0, 1, 1], [], []>} : vector<2x3xf32>, vector<3x64xf32>, vector<2x64xf32> -> vector<2x64xf32>
    %c288 = arith.constant 288 : index
    %c0_203 = arith.constant 0 : index
    %485 = vector.load %arg2[%c288, %c0_203] : memref<704x128xf32, #tpu.memory_space<vmem>>, vector<1x64xf32>
    %486 = vector.broadcast %485 : vector<1x64xf32> to vector<2x64xf32>
    %487 = arith.addf %484, %486 : vector<2x64xf32>
    %cst_204 = arith.constant 0.000000e+00 : f32
    %488 = vector.broadcast %cst_204 : f32 to vector<2x64xf32>
    %489 = arith.maximumf %487, %488 : vector<2x64xf32>
    %c296 = arith.constant 296 : index
    %c0_205 = arith.constant 0 : index
    %490 = vector.load %arg2[%c296, %c0_205] : memref<704x128xf32, #tpu.memory_space<vmem>>, vector<64x128xf32>
    %cst_206 = arith.constant dense<0.000000e+00> : vector<2x128xf32>
    %491 = tpu.matmul %489, %490, %cst_206 {dimension_numbers = #tpu.dot_dimension_numbers<[1], [0], [0], [1], [0, 0, 1, 1], [], []>} : vector<2x64xf32>, vector<64x128xf32>, vector<2x128xf32> -> vector<2x128xf32>
    %c360 = arith.constant 360 : index
    %c0_207 = arith.constant 0 : index
    %492 = vector.load %arg2[%c360, %c0_207] : memref<704x128xf32, #tpu.memory_space<vmem>>, vector<1x128xf32>
    %493 = vector.broadcast %492 : vector<1x128xf32> to vector<2x128xf32>
    %494 = arith.addf %491, %493 : vector<2x128xf32>
    %cst_208 = arith.constant 0.000000e+00 : f32
    %495 = vector.broadcast %cst_208 : f32 to vector<2x128xf32>
    %496 = arith.maximumf %494, %495 : vector<2x128xf32>
    %cst_209 = arith.constant 0.000000e+00 : f32
    %497 = vector.broadcast %cst_209 : f32 to vector<2x128xf32>
    %c0_i32_210 = arith.constant 0 : i32
    %c0_i32_211 = arith.constant 0 : i32
    %c0_i32_212 = arith.constant 0 : i32
    %c0_i32_213 = arith.constant 0 : i32
    %c0_i32_214 = arith.constant 0 : i32
    %498 = tpu.memref_slice %arg3[%c0_i32_210, %c0_i32_213, %c0_i32_214] : memref<4x2048x128xbf16, #tpu.memory_space<any>> -> memref<1x2048x128xbf16, #tpu.memory_space<any>>
    %499 = tpu.memref_squeeze %498 : memref<1x2048x128xbf16, #tpu.memory_space<any>> -> memref<2048x128xbf16, #tpu.memory_space<any>>
    %c0_i32_215 = arith.constant 0 : i32
    %c0_i32_216 = arith.constant 0 : i32
    %500 = tpu.memref_slice %arg7[%c0_i32_211, %c0_i32_215, %c0_i32_216] : memref<2x2048x128xbf16, #tpu.memory_space<vmem>> -> memref<1x2048x128xbf16, #tpu.memory_space<vmem>>
    %501 = tpu.memref_squeeze %500 : memref<1x2048x128xbf16, #tpu.memory_space<vmem>> -> memref<2048x128xbf16, #tpu.memory_space<vmem>>
    %502 = tpu.memref_slice %arg8[%c0_i32_212] : memref<2x!tpu.dma_semaphore, #tpu.memory_space<semaphore_mem>> -> memref<1x!tpu.dma_semaphore, #tpu.memory_space<semaphore_mem>>
    %503 = tpu.memref_squeeze %502 : memref<1x!tpu.dma_semaphore, #tpu.memory_space<semaphore_mem>> -> memref<!tpu.dma_semaphore, #tpu.memory_space<semaphore_mem>>
    tpu.wait_dma2 semaphore(%503 : memref<!tpu.dma_semaphore, #tpu.memory_space<semaphore_mem>>) src(%499 : memref<2048x128xbf16, #tpu.memory_space<any>>) dst(%501 : memref<2048x128xbf16, #tpu.memory_space<vmem>>)
    %c0_217 = arith.constant 0 : index
    %c0_218 = arith.constant 0 : index
    %504 = vector.load %arg6[%c0_217, %c0_218] : memref<2x8192xf32, #tpu.memory_space<vmem>>, vector<2x2048xf32>
    %505 = arith.truncf %504 : vector<2x2048xf32> to vector<2x2048xbf16>
    %c0_219 = arith.constant 0 : index
    %c0_220 = arith.constant 0 : index
    %c0_221 = arith.constant 0 : index
    %506 = vector.load %arg7[%c0_219, %c0_220, %c0_221] : memref<2x2048x128xbf16, #tpu.memory_space<vmem>>, vector<1x2048x128xbf16>
    %507 = vector.shape_cast %506 : vector<1x2048x128xbf16> to vector<2048x128xbf16>
    %cst_222 = arith.constant dense<0.000000e+00> : vector<2x128xf32>
    %508 = tpu.matmul %505, %507, %cst_222 {dimension_numbers = #tpu.dot_dimension_numbers<[1], [0], [0], [1], [0, 0, 1, 1], [], []>} : vector<2x2048xbf16>, vector<2048x128xbf16>, vector<2x128xf32> -> vector<2x128xf32>
    %509 = arith.addf %497, %508 : vector<2x128xf32>
    %c2_i32 = arith.constant 2 : i32
    %c0_i32_223 = arith.constant 0 : i32
    %c0_i32_224 = arith.constant 0 : i32
    %c0_i32_225 = arith.constant 0 : i32
    %c0_i32_226 = arith.constant 0 : i32
    %510 = tpu.memref_slice %arg3[%c2_i32, %c0_i32_225, %c0_i32_226] : memref<4x2048x128xbf16, #tpu.memory_space<any>> -> memref<1x2048x128xbf16, #tpu.memory_space<any>>
    %511 = tpu.memref_squeeze %510 : memref<1x2048x128xbf16, #tpu.memory_space<any>> -> memref<2048x128xbf16, #tpu.memory_space<any>>
    %c0_i32_227 = arith.constant 0 : i32
    %c0_i32_228 = arith.constant 0 : i32
    %512 = tpu.memref_slice %arg7[%c0_i32_223, %c0_i32_227, %c0_i32_228] : memref<2x2048x128xbf16, #tpu.memory_space<vmem>> -> memref<1x2048x128xbf16, #tpu.memory_space<vmem>>
    %513 = tpu.memref_squeeze %512 : memref<1x2048x128xbf16, #tpu.memory_space<vmem>> -> memref<2048x128xbf16, #tpu.memory_space<vmem>>
    %514 = tpu.memref_slice %arg8[%c0_i32_224] : memref<2x!tpu.dma_semaphore, #tpu.memory_space<semaphore_mem>> -> memref<1x!tpu.dma_semaphore, #tpu.memory_space<semaphore_mem>>
    %515 = tpu.memref_squeeze %514 : memref<1x!tpu.dma_semaphore, #tpu.memory_space<semaphore_mem>> -> memref<!tpu.dma_semaphore, #tpu.memory_space<semaphore_mem>>
    tpu.enqueue_dma source(%511 : memref<2048x128xbf16, #tpu.memory_space<any>>) target(%513 : memref<2048x128xbf16, #tpu.memory_space<vmem>>) target_semaphore(%515 : memref<!tpu.dma_semaphore, #tpu.memory_space<semaphore_mem>>)
    %c1_i32_229 = arith.constant 1 : i32
    %c1_i32_230 = arith.constant 1 : i32
    %c1_i32_231 = arith.constant 1 : i32
    %c0_i32_232 = arith.constant 0 : i32
    %c0_i32_233 = arith.constant 0 : i32
    %516 = tpu.memref_slice %arg3[%c1_i32_229, %c0_i32_232, %c0_i32_233] : memref<4x2048x128xbf16, #tpu.memory_space<any>> -> memref<1x2048x128xbf16, #tpu.memory_space<any>>
    %517 = tpu.memref_squeeze %516 : memref<1x2048x128xbf16, #tpu.memory_space<any>> -> memref<2048x128xbf16, #tpu.memory_space<any>>
    %c0_i32_234 = arith.constant 0 : i32
    %c0_i32_235 = arith.constant 0 : i32
    %518 = tpu.memref_slice %arg7[%c1_i32_230, %c0_i32_234, %c0_i32_235] : memref<2x2048x128xbf16, #tpu.memory_space<vmem>> -> memref<1x2048x128xbf16, #tpu.memory_space<vmem>>
    %519 = tpu.memref_squeeze %518 : memref<1x2048x128xbf16, #tpu.memory_space<vmem>> -> memref<2048x128xbf16, #tpu.memory_space<vmem>>
    %520 = tpu.memref_slice %arg8[%c1_i32_231] : memref<2x!tpu.dma_semaphore, #tpu.memory_space<semaphore_mem>> -> memref<1x!tpu.dma_semaphore, #tpu.memory_space<semaphore_mem>>
    %521 = tpu.memref_squeeze %520 : memref<1x!tpu.dma_semaphore, #tpu.memory_space<semaphore_mem>> -> memref<!tpu.dma_semaphore, #tpu.memory_space<semaphore_mem>>
    tpu.wait_dma2 semaphore(%521 : memref<!tpu.dma_semaphore, #tpu.memory_space<semaphore_mem>>) src(%517 : memref<2048x128xbf16, #tpu.memory_space<any>>) dst(%519 : memref<2048x128xbf16, #tpu.memory_space<vmem>>)
    %c0_236 = arith.constant 0 : index
    %c2048_237 = arith.constant 2048 : index
    %522 = vector.load %arg6[%c0_236, %c2048_237] : memref<2x8192xf32, #tpu.memory_space<vmem>>, vector<2x2048xf32>
    %523 = arith.truncf %522 : vector<2x2048xf32> to vector<2x2048xbf16>
    %c1_238 = arith.constant 1 : index
    %c0_239 = arith.constant 0 : index
    %c0_240 = arith.constant 0 : index
    %524 = vector.load %arg7[%c1_238, %c0_239, %c0_240] : memref<2x2048x128xbf16, #tpu.memory_space<vmem>>, vector<1x2048x128xbf16>
    %525 = vector.shape_cast %524 : vector<1x2048x128xbf16> to vector<2048x128xbf16>
    %cst_241 = arith.constant dense<0.000000e+00> : vector<2x128xf32>
    %526 = tpu.matmul %523, %525, %cst_241 {dimension_numbers = #tpu.dot_dimension_numbers<[1], [0], [0], [1], [0, 0, 1, 1], [], []>} : vector<2x2048xbf16>, vector<2048x128xbf16>, vector<2x128xf32> -> vector<2x128xf32>
    %527 = arith.addf %509, %526 : vector<2x128xf32>
    %c3_i32 = arith.constant 3 : i32
    %c1_i32_242 = arith.constant 1 : i32
    %c1_i32_243 = arith.constant 1 : i32
    %c0_i32_244 = arith.constant 0 : i32
    %c0_i32_245 = arith.constant 0 : i32
    %528 = tpu.memref_slice %arg3[%c3_i32, %c0_i32_244, %c0_i32_245] : memref<4x2048x128xbf16, #tpu.memory_space<any>> -> memref<1x2048x128xbf16, #tpu.memory_space<any>>
    %529 = tpu.memref_squeeze %528 : memref<1x2048x128xbf16, #tpu.memory_space<any>> -> memref<2048x128xbf16, #tpu.memory_space<any>>
    %c0_i32_246 = arith.constant 0 : i32
    %c0_i32_247 = arith.constant 0 : i32
    %530 = tpu.memref_slice %arg7[%c1_i32_242, %c0_i32_246, %c0_i32_247] : memref<2x2048x128xbf16, #tpu.memory_space<vmem>> -> memref<1x2048x128xbf16, #tpu.memory_space<vmem>>
    %531 = tpu.memref_squeeze %530 : memref<1x2048x128xbf16, #tpu.memory_space<vmem>> -> memref<2048x128xbf16, #tpu.memory_space<vmem>>
    %532 = tpu.memref_slice %arg8[%c1_i32_243] : memref<2x!tpu.dma_semaphore, #tpu.memory_space<semaphore_mem>> -> memref<1x!tpu.dma_semaphore, #tpu.memory_space<semaphore_mem>>
    %533 = tpu.memref_squeeze %532 : memref<1x!tpu.dma_semaphore, #tpu.memory_space<semaphore_mem>> -> memref<!tpu.dma_semaphore, #tpu.memory_space<semaphore_mem>>
    tpu.enqueue_dma source(%529 : memref<2048x128xbf16, #tpu.memory_space<any>>) target(%531 : memref<2048x128xbf16, #tpu.memory_space<vmem>>) target_semaphore(%533 : memref<!tpu.dma_semaphore, #tpu.memory_space<semaphore_mem>>)
    %c2_i32_248 = arith.constant 2 : i32
    %c0_i32_249 = arith.constant 0 : i32
    %c0_i32_250 = arith.constant 0 : i32
    %c0_i32_251 = arith.constant 0 : i32
    %c0_i32_252 = arith.constant 0 : i32
    %534 = tpu.memref_slice %arg3[%c2_i32_248, %c0_i32_251, %c0_i32_252] : memref<4x2048x128xbf16, #tpu.memory_space<any>> -> memref<1x2048x128xbf16, #tpu.memory_space<any>>
    %535 = tpu.memref_squeeze %534 : memref<1x2048x128xbf16, #tpu.memory_space<any>> -> memref<2048x128xbf16, #tpu.memory_space<any>>
    %c0_i32_253 = arith.constant 0 : i32
    %c0_i32_254 = arith.constant 0 : i32
    %536 = tpu.memref_slice %arg7[%c0_i32_249, %c0_i32_253, %c0_i32_254] : memref<2x2048x128xbf16, #tpu.memory_space<vmem>> -> memref<1x2048x128xbf16, #tpu.memory_space<vmem>>
    %537 = tpu.memref_squeeze %536 : memref<1x2048x128xbf16, #tpu.memory_space<vmem>> -> memref<2048x128xbf16, #tpu.memory_space<vmem>>
    %538 = tpu.memref_slice %arg8[%c0_i32_250] : memref<2x!tpu.dma_semaphore, #tpu.memory_space<semaphore_mem>> -> memref<1x!tpu.dma_semaphore, #tpu.memory_space<semaphore_mem>>
    %539 = tpu.memref_squeeze %538 : memref<1x!tpu.dma_semaphore, #tpu.memory_space<semaphore_mem>> -> memref<!tpu.dma_semaphore, #tpu.memory_space<semaphore_mem>>
    tpu.wait_dma2 semaphore(%539 : memref<!tpu.dma_semaphore, #tpu.memory_space<semaphore_mem>>) src(%535 : memref<2048x128xbf16, #tpu.memory_space<any>>) dst(%537 : memref<2048x128xbf16, #tpu.memory_space<vmem>>)
    %c0_255 = arith.constant 0 : index
    %c4096_256 = arith.constant 4096 : index
    %540 = vector.load %arg6[%c0_255, %c4096_256] : memref<2x8192xf32, #tpu.memory_space<vmem>>, vector<2x2048xf32>
    %541 = arith.truncf %540 : vector<2x2048xf32> to vector<2x2048xbf16>
    %c0_257 = arith.constant 0 : index
    %c0_258 = arith.constant 0 : index
    %c0_259 = arith.constant 0 : index
    %542 = vector.load %arg7[%c0_257, %c0_258, %c0_259] : memref<2x2048x128xbf16, #tpu.memory_space<vmem>>, vector<1x2048x128xbf16>
    %543 = vector.shape_cast %542 : vector<1x2048x128xbf16> to vector<2048x128xbf16>
    %cst_260 = arith.constant dense<0.000000e+00> : vector<2x128xf32>
    %544 = tpu.matmul %541, %543, %cst_260 {dimension_numbers = #tpu.dot_dimension_numbers<[1], [0], [0], [1], [0, 0, 1, 1], [], []>} : vector<2x2048xbf16>, vector<2048x128xbf16>, vector<2x128xf32> -> vector<2x128xf32>
    %545 = arith.addf %527, %544 : vector<2x128xf32>
    %c3_i32_261 = arith.constant 3 : i32
    %c1_i32_262 = arith.constant 1 : i32
    %c1_i32_263 = arith.constant 1 : i32
    %c0_i32_264 = arith.constant 0 : i32
    %c0_i32_265 = arith.constant 0 : i32
    %546 = tpu.memref_slice %arg3[%c3_i32_261, %c0_i32_264, %c0_i32_265] : memref<4x2048x128xbf16, #tpu.memory_space<any>> -> memref<1x2048x128xbf16, #tpu.memory_space<any>>
    %547 = tpu.memref_squeeze %546 : memref<1x2048x128xbf16, #tpu.memory_space<any>> -> memref<2048x128xbf16, #tpu.memory_space<any>>
    %c0_i32_266 = arith.constant 0 : i32
    %c0_i32_267 = arith.constant 0 : i32
    %548 = tpu.memref_slice %arg7[%c1_i32_262, %c0_i32_266, %c0_i32_267] : memref<2x2048x128xbf16, #tpu.memory_space<vmem>> -> memref<1x2048x128xbf16, #tpu.memory_space<vmem>>
    %549 = tpu.memref_squeeze %548 : memref<1x2048x128xbf16, #tpu.memory_space<vmem>> -> memref<2048x128xbf16, #tpu.memory_space<vmem>>
    %550 = tpu.memref_slice %arg8[%c1_i32_263] : memref<2x!tpu.dma_semaphore, #tpu.memory_space<semaphore_mem>> -> memref<1x!tpu.dma_semaphore, #tpu.memory_space<semaphore_mem>>
    %551 = tpu.memref_squeeze %550 : memref<1x!tpu.dma_semaphore, #tpu.memory_space<semaphore_mem>> -> memref<!tpu.dma_semaphore, #tpu.memory_space<semaphore_mem>>
    tpu.wait_dma2 semaphore(%551 : memref<!tpu.dma_semaphore, #tpu.memory_space<semaphore_mem>>) src(%547 : memref<2048x128xbf16, #tpu.memory_space<any>>) dst(%549 : memref<2048x128xbf16, #tpu.memory_space<vmem>>)
    %c0_268 = arith.constant 0 : index
    %c6144_269 = arith.constant 6144 : index
    %552 = vector.load %arg6[%c0_268, %c6144_269] : memref<2x8192xf32, #tpu.memory_space<vmem>>, vector<2x2048xf32>
    %553 = arith.truncf %552 : vector<2x2048xf32> to vector<2x2048xbf16>
    %c1_270 = arith.constant 1 : index
    %c0_271 = arith.constant 0 : index
    %c0_272 = arith.constant 0 : index
    %554 = vector.load %arg7[%c1_270, %c0_271, %c0_272] : memref<2x2048x128xbf16, #tpu.memory_space<vmem>>, vector<1x2048x128xbf16>
    %555 = vector.shape_cast %554 : vector<1x2048x128xbf16> to vector<2048x128xbf16>
    %cst_273 = arith.constant dense<0.000000e+00> : vector<2x128xf32>
    %556 = tpu.matmul %553, %555, %cst_273 {dimension_numbers = #tpu.dot_dimension_numbers<[1], [0], [0], [1], [0, 0, 1, 1], [], []>} : vector<2x2048xbf16>, vector<2048x128xbf16>, vector<2x128xf32> -> vector<2x128xf32>
    %557 = arith.addf %545, %556 : vector<2x128xf32>
    %c272 = arith.constant 272 : index
    %c0_274 = arith.constant 0 : index
    %558 = vector.load %arg2[%c272, %c0_274] : memref<704x128xf32, #tpu.memory_space<vmem>>, vector<1x128xf32>
    %559 = vector.broadcast %558 : vector<1x128xf32> to vector<2x128xf32>
    %560 = arith.addf %557, %559 : vector<2x128xf32>
    %cst_275 = arith.constant 0.000000e+00 : f32
    %561 = vector.broadcast %cst_275 : f32 to vector<2x128xf32>
    %562 = arith.maximumf %560, %561 : vector<2x128xf32>
    %c368 = arith.constant 368 : index
    %c0_276 = arith.constant 0 : index
    %563 = vector.load %arg2[%c368, %c0_276] : memref<704x128xf32, #tpu.memory_space<vmem>>, vector<128x64xf32>
    %cst_277 = arith.constant dense<0.000000e+00> : vector<2x64xf32>
    %564 = tpu.matmul %562, %563, %cst_277 {dimension_numbers = #tpu.dot_dimension_numbers<[1], [0], [0], [1], [0, 0, 1, 1], [], []>} : vector<2x128xf32>, vector<128x64xf32>, vector<2x64xf32> -> vector<2x64xf32>
    %c496 = arith.constant 496 : index
    %c0_278 = arith.constant 0 : index
    %565 = vector.load %arg2[%c496, %c0_278] : memref<704x128xf32, #tpu.memory_space<vmem>>, vector<128x64xf32>
    %cst_279 = arith.constant dense<0.000000e+00> : vector<2x64xf32>
    %566 = tpu.matmul %496, %565, %cst_279 {dimension_numbers = #tpu.dot_dimension_numbers<[1], [0], [0], [1], [0, 0, 1, 1], [], []>} : vector<2x128xf32>, vector<128x64xf32>, vector<2x64xf32> -> vector<2x64xf32>
    %567 = arith.addf %564, %566 : vector<2x64xf32>
    %c624 = arith.constant 624 : index
    %c0_280 = arith.constant 0 : index
    %568 = vector.load %arg2[%c624, %c0_280] : memref<704x128xf32, #tpu.memory_space<vmem>>, vector<1x64xf32>
    %569 = vector.broadcast %568 : vector<1x64xf32> to vector<2x64xf32>
    %570 = arith.addf %567, %569 : vector<2x64xf32>
    %cst_281 = arith.constant 0.000000e+00 : f32
    %571 = vector.broadcast %cst_281 : f32 to vector<2x64xf32>
    %572 = arith.maximumf %570, %571 : vector<2x64xf32>
    %c632 = arith.constant 632 : index
    %c0_282 = arith.constant 0 : index
    %573 = vector.load %arg2[%c632, %c0_282] : memref<704x128xf32, #tpu.memory_space<vmem>>, vector<64x1xf32>
    %cst_283 = arith.constant dense<0.000000e+00> : vector<2x1xf32>
    %574 = tpu.matmul %572, %573, %cst_283 {dimension_numbers = #tpu.dot_dimension_numbers<[1], [0], [0], [1], [0, 0, 1, 1], [], []>} : vector<2x64xf32>, vector<64x1xf32>, vector<2x1xf32> -> vector<2x1xf32>
    %c696 = arith.constant 696 : index
    %c0_284 = arith.constant 0 : index
    %575 = vector.load %arg2[%c696, %c0_284] : memref<704x128xf32, #tpu.memory_space<vmem>>, vector<1x1xf32>
    %576 = vector.broadcast %575 : vector<1x1xf32> to vector<2x1xf32>
    %577 = arith.addf %574, %576 : vector<2x1xf32>
    %c0_285 = arith.constant 0 : index
    %c0_286 = arith.constant 0 : index
    %578 = vector.load %arg4[%c0_285, %c0_286] : memref<2x1xf32, #tpu.memory_space<vmem>>, vector<2x1xf32>
    tpu.vector_store %arg4[%c0_285, %c0_286], %577 {strides = array<i32>} : memref<2x1xf32, #tpu.memory_space<vmem>>, vector<2x1xf32>,
    return
  }
}

</mosaic_0001>

<llo_original>
// kernel: forward.1
$region0: #{forward.1}
  #allocation0 [shape = 'u32[]', space=smem, size = 0x4, offset = 0x4, fixed_abs, tag = 'smem constant byte address 0x4 - core index']
  #allocation1 [shape = 'u32[144,128]{1,0:T(1,128)}', space=vmem, size = 0x12000, scoped, tag = 'internal scratch']
  #allocation2 [shape = 'f32[2,128,160]{2,1,0:T(8,128)}', space=vmem, size = 0x40000, scoped, tag = 'scratch operand']
  #allocation3 [shape = 'f32[2,8192]{1,0:T(2,128)}', space=vmem, size = 0x10000, scoped, tag = 'scratch operand']
  #allocation4 [shape = 'bf16[2,2048,128]{2,1,0:T(16,128)(2,1)}', space=vmem, size = 0x100000, scoped, tag = 'scratch operand']
  #allocation5 [shape = 's32[2]{0}', space=sflag, size = 0x8, scoped, tag = 'scratch operand']
  #allocation10 [shape = 's32[]', space=sflag, size = 0x4, offset = 0, fixed_abs, tag = 'sflag constant byte address 0x0 - dummy sync flag']
  #allocation11 [shape = 's32[]', space=sflag, size = 0x4, offset = 0, fixed_abs, tag = 'sflag constant byte address 0x0 - dummy sync flag']
  #allocation12 [shape = 'u32[]', space=smem, size = 0x4, offset = 0x44, fixed_abs, tag = 'smem constant byte address 0x44 - assertion arg 0']
  #allocation13 [shape = 'u32[]', space=smem, size = 0x4, offset = 0x48, fixed_abs, tag = 'smem constant byte address 0x48 - assertion arg 1']
  #allocation14 [shape = 's32[]', space=sflag, size = 0x4, offset = 0, fixed_abs, tag = 'sflag constant byte address 0x0 - dummy sync flag']
  #allocation15 [shape = 's32[]', space=sflag, size = 0x4, offset = 0, fixed_abs, tag = 'sflag constant byte address 0x0 - dummy sync flag']
  #allocation16 [shape = 's32[]', space=sflag, size = 0x4, offset = 0, fixed_abs, tag = 'sflag constant byte address 0x0 - dummy sync flag']
  #allocation17 [shape = 's32[]', space=sflag, size = 0x4, offset = 0, fixed_abs, tag = 'sflag constant byte address 0x0 - dummy sync flag']
  #allocation18 [shape = 's32[]', space=sflag, size = 0x4, offset = 0, fixed_abs, tag = 'sflag constant byte address 0x0 - dummy sync flag']
  #allocation19 [shape = 's32[]', space=sflag, size = 0x4, offset = 0, fixed_abs, tag = 'sflag constant byte address 0x0 - dummy sync flag']
  %s0 = inlined_call_operand.vmem [shape: f32[2,132,1], index: 0, kind: input, shape index: {}]
  %s1 = inlined_call_operand.hbm [shape: f32[2,3], index: 1, kind: input, shape index: {}]
  %s2 = inlined_call_operand.hbm [shape: f32[704,128], index: 2, kind: input, shape index: {}]
  %s3 = inlined_call_operand.hbm [shape: bf16[4,2048,128], index: 3, kind: input, shape index: {}]
  %s4 = inlined_call_operand.vmem [shape: f32[2,1], index: 4, kind: output, shape index: {}]
  %s5 = sld [smem:[#allocation0]]
  $region46: #{forward.1} parent=0
    _
  %s7 = ssub.s32 1, %s5
  %s8 = scalar_select 0, %s7, %s5
  $region1: #{forward.1} parent=0
    #allocation6 [shape = 'u8[1024]{0}', space=vmem, size = 0x400, scoped, tag = 'input window, operand 1, single buffered']
    #allocation7 [shape = 's32[1]{0}', space=sflag, size = 0x4, scoped, tag = 'scoped memory for forward.1']
    #allocation8 [shape = 'u8[360448]{0}', space=vmem, size = 0x58000, scoped, tag = 'input window, operand 2, single buffered']
    #allocation9 [shape = 's32[1]{0}', space=sflag, size = 0x4, scoped, tag = 'scoped memory for forward.1']
    %9 = vsyncpa [#allocation7], 0
    %10 = vsyncpa [#allocation9], 0
    // Predicated region
    $region2: #{forward.1} parent=1 // pred_check
      _
    $region3: #{forward.1} parent=1 // pred_check_branch
      %12 = sbr.rel (0) target = $region5
    $region4: #{forward.1} parent=1 // pred_region
      _
    $region5: #{forward.1} parent=1 // pred_fallthru
      _
    // Predicated region
    $region6: #{forward.1} parent=1 // pred_check
      _
    $region7: #{forward.1} parent=1 // pred_check_branch
      %14 = sbr.rel (0) target = $region9
    $region8: #{forward.1} parent=1 // pred_region
      %s16 = ssub.s32 32, 32
      %17 = vsyncadd [#allocation7], %s16
      %s19 = sshll.u32 [#allocation6], 4
      %s20 = int_to_ptr.vmem [resolvable:$true] %s19
      %22 = dma.hbm_to_vmem [thread:$0]  %s1, 32, %s20, [#allocation7]
    $region9: #{forward.1} parent=1 // pred_fallthru
      _
    // Predicated region
    $region10: #{forward.1} parent=1 // pred_check
      _
    $region11: #{forward.1} parent=1 // pred_check_branch
      %24 = sbr.rel (0) target = $region13
    $region12: #{forward.1} parent=1 // pred_region
      %s26 = ssub.s32 11264, 11264
      %27 = vsyncadd [#allocation9], %s26
      %s28 = sshll.u32 [#allocation8], 4
      %s29 = int_to_ptr.vmem [resolvable:$true] %s28
      %34 = dma.hbm_to_vmem [thread:$0]  %s2, 11264, %s29, [#allocation9], 128, 128, 8
    $region13: #{forward.1} parent=1 // pred_fallthru
      _
    // Predicated region
    $region14: #{forward.1} parent=1 // pred_check
      _
    $region15: #{forward.1} parent=1 // pred_check_branch
      %36 = sbr.rel (0) target = $region17
    $region16: #{forward.1} parent=1 // pred_region
      %37 = dma.done [#allocation7], 32
    $region17: #{forward.1} parent=1 // pred_fallthru
      _
    // Predicated region
    $region18: #{forward.1} parent=1 // pred_check
      _
    $region19: #{forward.1} parent=1 // pred_check_branch
      %39 = sbr.rel (0) target = $region21
    $region20: #{forward.1} parent=1 // pred_region
      %40 = dma.done [#allocation9], 11264
    $region21: #{forward.1} parent=1 // pred_fallthru
      _
    // Predicated region
    $region22: #{forward.1} parent=1 // pred_check
      _
    $region23: #{forward.1} parent=1 // pred_check_branch
      %43 = sbr.rel target = $region25
    $region24: #{forward.1} parent=1 // pred_region
      %44 = sst [smem:[#allocation12]] [#allocation11]
      %45 = sst [smem:[#allocation13]] [#allocation10]
    $region25: #{forward.1} parent=1 // pred_fallthru
      _
    %47 = shalt.err (0)
    %s49 = sshll.u32 [#allocation4], 4
    %s50 = int_to_ptr.vmem [resolvable:$true] %s49
    %52 = dma.hbm_to_vmem [thread:$0]  %s3, 16384, %s50, [#allocation5]
    %s53 = scalar_lea.hbm %s3, 16384
    %s54 = scalar_lea.vmem [#allocation4], 1024
    %s55 = scalar_lea.sflag [#allocation5], 1
    // Predicated region
    $region26: #{forward.1} parent=1 // pred_check
      _
    $region27: #{forward.1} parent=1 // pred_check_branch
      %57 = sbr.rel target = $region29
    $region28: #{forward.1} parent=1 // pred_region
      %58 = sst [smem:[#allocation12]] [#allocation15]
      %59 = sst [smem:[#allocation13]] [#allocation14]
    $region29: #{forward.1} parent=1 // pred_fallthru
      _
    %61 = shalt.err (0)
    %s63 = sshll.u32 %s54, 4
    %s64 = int_to_ptr.vmem [resolvable:$true] %s63
    %66 = dma.hbm_to_vmem [thread:$0]  %s53, 16384, %s64, %s55
    %v67 = vld [vmem:[%s0] sm:$0xff]
    %v68 = vld [vmem:[%s0 + $0x8] sm:$0xff]
    %v69 = vld [vmem:[%s0 + $0x10] sm:$0xff]
    %v70 = vld [vmem:[%s0 + $0x18] sm:$0xff]
    %v71 = vld [vmem:[%s0 + $0x20] sm:$0xff]
    %v72 = vld [vmem:[%s0 + $0x28] sm:$0xff]
    %v73 = vld [vmem:[%s0 + $0x30] sm:$0xff]
    %v74 = vld [vmem:[%s0 + $0x38] sm:$0xff]
    %v75 = vld [vmem:[%s0 + $0x40] sm:$0xff]
    %v76 = vld [vmem:[%s0 + $0x48] sm:$0xff]
    %v77 = vld [vmem:[%s0 + $0x50] sm:$0xff]
    %v78 = vld [vmem:[%s0 + $0x58] sm:$0xff]
    %v79 = vld [vmem:[%s0 + $0x60] sm:$0xff]
    %v80 = vld [vmem:[%s0 + $0x68] sm:$0xff]
    %v81 = vld [vmem:[%s0 + $0x70] sm:$0xff]
    %v82 = vld [vmem:[%s0 + $0x78] sm:$0xff]
    %v83 = vld [vmem:[%s0 + $0x80] sm:$0xf]
    %v84 = vld [vmem:[%s0 + $0x88] sm:$0xff]
    %v85 = vld [vmem:[%s0 + $0x90] sm:$0xff]
    %v86 = vld [vmem:[%s0 + $0x98] sm:$0xff]
    %v87 = vld [vmem:[%s0 + $0xa0] sm:$0xff]
    %v88 = vld [vmem:[%s0 + $0xa8] sm:$0xff]
    %v89 = vld [vmem:[%s0 + $0xb0] sm:$0xff]
    %v90 = vld [vmem:[%s0 + $0xb8] sm:$0xff]
    %v91 = vld [vmem:[%s0 + $0xc0] sm:$0xff]
    %v92 = vld [vmem:[%s0 + $0xc8] sm:$0xff]
    %v93 = vld [vmem:[%s0 + $0xd0] sm:$0xff]
    %v94 = vld [vmem:[%s0 + $0xd8] sm:$0xff]
    %v95 = vld [vmem:[%s0 + $0xe0] sm:$0xff]
    %v96 = vld [vmem:[%s0 + $0xe8] sm:$0xff]
    %v97 = vld [vmem:[%s0 + $0xf0] sm:$0xff]
    %v98 = vld [vmem:[%s0 + $0xf8] sm:$0xff]
    %v99 = vld [vmem:[%s0 + $0x100] sm:$0xff]
    %v100 = vld [vmem:[%s0 + $0x108] sm:$0xf]
    %v101 = vld [vmem:[#allocation8] sm:$0x1f]
    %103 = vset.pattern.permute.xlu0 0
    %104 = vperm.xlu0 %103, %v67
    %v105 = vpop.permute.xlu0 %104
    %108 = vset.pattern.permute.xlu0 0
    %109 = vperm.xlu0 %108, %v68
    %v110 = vpop.permute.xlu0 %109
    %113 = vset.pattern.permute.xlu0 0
    %114 = vperm.xlu0 %113, %v69
    %v115 = vpop.permute.xlu0 %114
    %118 = vset.pattern.permute.xlu0 0
    %119 = vperm.xlu0 %118, %v70
    %v120 = vpop.permute.xlu0 %119
    %123 = vset.pattern.permute.xlu0 0
    %124 = vperm.xlu0 %123, %v71
    %v125 = vpop.permute.xlu0 %124
    %128 = vset.pattern.permute.xlu0 0
    %129 = vperm.xlu0 %128, %v72
    %v130 = vpop.permute.xlu0 %129
    %133 = vset.pattern.permute.xlu0 0
    %134 = vperm.xlu0 %133, %v73
    %v135 = vpop.permute.xlu0 %134
    %138 = vset.pattern.permute.xlu0 0
    %139 = vperm.xlu0 %138, %v74
    %v140 = vpop.permute.xlu0 %139
    %143 = vset.pattern.permute.xlu0 0
    %144 = vperm.xlu0 %143, %v75
    %v145 = vpop.permute.xlu0 %144
    %148 = vset.pattern.permute.xlu0 0
    %149 = vperm.xlu0 %148, %v76
    %v150 = vpop.permute.xlu0 %149
    %153 = vset.pattern.permute.xlu0 0
    %154 = vperm.xlu0 %153, %v77
    %v155 = vpop.permute.xlu0 %154
    %158 = vset.pattern.permute.xlu0 0
    %159 = vperm.xlu0 %158, %v78
    %v160 = vpop.permute.xlu0 %159
    %163 = vset.pattern.permute.xlu0 0
    %164 = vperm.xlu0 %163, %v79
    %v165 = vpop.permute.xlu0 %164
    %168 = vset.pattern.permute.xlu0 0
    %169 = vperm.xlu0 %168, %v80
    %v170 = vpop.permute.xlu0 %169
    %173 = vset.pattern.permute.xlu0 0
    %174 = vperm.xlu0 %173, %v81
    %v175 = vpop.permute.xlu0 %174
    %178 = vset.pattern.permute.xlu0 0
    %179 = vperm.xlu0 %178, %v82
    %v180 = vpop.permute.xlu0 %179
    %183 = vset.pattern.permute.xlu0 0
    %184 = vperm.xlu0 %183, %v84
    %v185 = vpop.permute.xlu0 %184
    %188 = vset.pattern.permute.xlu0 0
    %189 = vperm.xlu0 %188, %v85
    %v190 = vpop.permute.xlu0 %189
    %193 = vset.pattern.permute.xlu0 0
    %194 = vperm.xlu0 %193, %v86
    %v195 = vpop.permute.xlu0 %194
    %198 = vset.pattern.permute.xlu0 0
    %199 = vperm.xlu0 %198, %v87
    %v200 = vpop.permute.xlu0 %199
    %203 = vset.pattern.permute.xlu0 0
    %204 = vperm.xlu0 %203, %v88
    %v205 = vpop.permute.xlu0 %204
    %208 = vset.pattern.permute.xlu0 0
    %209 = vperm.xlu0 %208, %v89
    %v210 = vpop.permute.xlu0 %209
    %213 = vset.pattern.permute.xlu0 0
    %214 = vperm.xlu0 %213, %v90
    %v215 = vpop.permute.xlu0 %214
    %218 = vset.pattern.permute.xlu0 0
    %219 = vperm.xlu0 %218, %v91
    %v220 = vpop.permute.xlu0 %219
    %223 = vset.pattern.permute.xlu0 0
    %224 = vperm.xlu0 %223, %v92
    %v225 = vpop.permute.xlu0 %224
    %228 = vset.pattern.permute.xlu0 0
    %229 = vperm.xlu0 %228, %v93
    %v230 = vpop.permute.xlu0 %229
    %233 = vset.pattern.permute.xlu0 0
    %234 = vperm.xlu0 %233, %v94
    %v235 = vpop.permute.xlu0 %234
    %238 = vset.pattern.permute.xlu0 0
    %239 = vperm.xlu0 %238, %v95
    %v240 = vpop.permute.xlu0 %239
    %243 = vset.pattern.permute.xlu0 0
    %244 = vperm.xlu0 %243, %v96
    %v245 = vpop.permute.xlu0 %244
    %248 = vset.pattern.permute.xlu0 0
    %249 = vperm.xlu0 %248, %v97
    %v250 = vpop.permute.xlu0 %249
    %253 = vset.pattern.permute.xlu0 0
    %254 = vperm.xlu0 %253, %v98
    %v255 = vpop.permute.xlu0 %254
    %258 = vset.pattern.permute.xlu0 0
    %259 = vperm.xlu0 %258, %v99
    %v260 = vpop.permute.xlu0 %259
    %v262 = vlaneseq
    %v263 = vshrl.u32 %v262, 7
    %v264 = vsub.s32 0, %v263
    %v265 = vrot.slane %v101, %v264
    %v266 = vmul.f32 %v105, %v265
    %v267 = vmul.f32 %v110, %v265
    %v268 = vmul.f32 %v115, %v265
    %v269 = vmul.f32 %v120, %v265
    %v270 = vmul.f32 %v125, %v265
    %v271 = vmul.f32 %v130, %v265
    %v272 = vmul.f32 %v135, %v265
    %v273 = vmul.f32 %v140, %v265
    %v274 = vmul.f32 %v145, %v265
    %v275 = vmul.f32 %v150, %v265
    %v276 = vmul.f32 %v155, %v265
    %v277 = vmul.f32 %v160, %v265
    %v278 = vmul.f32 %v165, %v265
    %v279 = vmul.f32 %v170, %v265
    %v280 = vmul.f32 %v175, %v265
    %v281 = vmul.f32 %v180, %v265
    %v282 = vmul.f32 %v185, %v265
    %v283 = vmul.f32 %v190, %v265
    %v284 = vmul.f32 %v195, %v265
    %v285 = vmul.f32 %v200, %v265
    %v286 = vmul.f32 %v205, %v265
    %v287 = vmul.f32 %v210, %v265
    %v288 = vmul.f32 %v215, %v265
    %v289 = vmul.f32 %v220, %v265
    %v290 = vmul.f32 %v225, %v265
    %v291 = vmul.f32 %v230, %v265
    %v292 = vmul.f32 %v235, %v265
    %v293 = vmul.f32 %v240, %v265
    %v294 = vmul.f32 %v245, %v265
    %v295 = vmul.f32 %v250, %v265
    %v296 = vmul.f32 %v255, %v265
    %v297 = vmul.f32 %v260, %v265
    %299 = vset.pattern.permute.xlu0 0
    %300 = vperm.xlu0 %299, %v83
    %v301 = vpop.permute.xlu0 %300
    %304 = vset.pattern.permute.xlu0 0
    %305 = vperm.xlu0 %304, %v100
    %v306 = vpop.permute.xlu0 %305
    %v308 = vlaneseq
    %v309 = vshrl.u32 %v308, 7
    %v310 = vsub.s32 1, %v309
    %v311 = vrot.slane %v101, %v310
    %v312 = vmul.f32 %v105, %v311
    %v313 = vmul.f32 %v110, %v311
    %v314 = vmul.f32 %v115, %v311
    %v315 = vmul.f32 %v120, %v311
    %v316 = vmul.f32 %v125, %v311
    %v317 = vmul.f32 %v130, %v311
    %v318 = vmul.f32 %v135, %v311
    %v319 = vmul.f32 %v140, %v311
    %v320 = vmul.f32 %v145, %v311
    %v321 = vmul.f32 %v150, %v311
    %v322 = vmul.f32 %v155, %v311
    %v323 = vmul.f32 %v160, %v311
    %v324 = vmul.f32 %v165, %v311
    %v325 = vmul.f32 %v170, %v311
    %v326 = vmul.f32 %v175, %v311
    %v327 = vmul.f32 %v180, %v311
    %v328 = vmul.f32 %v301, %v311
    %v329 = vmul.f32 %v185, %v311
    %v330 = vmul.f32 %v190, %v311
    %v331 = vmul.f32 %v195, %v311
    %v332 = vmul.f32 %v200, %v311
    %v333 = vmul.f32 %v205, %v311
    %v334 = vmul.f32 %v210, %v311
    %v335 = vmul.f32 %v215, %v311
    %v336 = vmul.f32 %v220, %v311
    %v337 = vmul.f32 %v225, %v311
    %v338 = vmul.f32 %v230, %v311
    %v339 = vmul.f32 %v235, %v311
    %v340 = vmul.f32 %v240, %v311
    %v341 = vmul.f32 %v245, %v311
    %v342 = vmul.f32 %v250, %v311
    %v343 = vmul.f32 %v255, %v311
    %v344 = vmul.f32 %v260, %v311
    %v345 = vmul.f32 %v306, %v311
    %vm380 = vcmask 1046528
    %v381 = vrot.slane %v312, 1
    %v382 = vrot.slane %v313, 1
    %v383 = vsel %vm380, %v381, %v382
    %v384 = vrot.slane %v314, 1
    %v385 = vsel %vm380, %v382, %v384
    %v386 = vrot.slane %v315, 1
    %v387 = vsel %vm380, %v384, %v386
    %v388 = vrot.slane %v316, 1
    %v389 = vsel %vm380, %v386, %v388
    %v390 = vrot.slane %v317, 1
    %v391 = vsel %vm380, %v388, %v390
    %v392 = vrot.slane %v318, 1
    %v393 = vsel %vm380, %v390, %v392
    %v394 = vrot.slane %v319, 1
    %v395 = vsel %vm380, %v392, %v394
    %v396 = vrot.slane %v320, 1
    %v397 = vsel %vm380, %v394, %v396
    %v398 = vrot.slane %v321, 1
    %v399 = vsel %vm380, %v396, %v398
    %v400 = vrot.slane %v322, 1
    %v401 = vsel %vm380, %v398, %v400
    %v402 = vrot.slane %v323, 1
    %v403 = vsel %vm380, %v400, %v402
    %v404 = vrot.slane %v324, 1
    %v405 = vsel %vm380, %v402, %v404
    %v406 = vrot.slane %v325, 1
    %v407 = vsel %vm380, %v404, %v406
    %v408 = vrot.slane %v326, 1
    %v409 = vsel %vm380, %v406, %v408
    %v410 = vrot.slane %v327, 1
    %v411 = vsel %vm380, %v408, %v410
    %v412 = vrot.slane %v328, 1
    %v413 = vsel %vm380, %v410, %v412
    %v414 = vrot.slane %v329, 1
    %v415 = vrot.slane %v330, 1
    %v416 = vsel %vm380, %v414, %v415
    %v417 = vrot.slane %v331, 1
    %v418 = vsel %vm380, %v415, %v417
    %v419 = vrot.slane %v332, 1
    %v420 = vsel %vm380, %v417, %v419
    %v421 = vrot.slane %v333, 1
    %v422 = vsel %vm380, %v419, %v421
    %v423 = vrot.slane %v334, 1
    %v424 = vsel %vm380, %v421, %v423
    %v425 = vrot.slane %v335, 1
    %v426 = vsel %vm380, %v423, %v425
    %v427 = vrot.slane %v336, 1
    %v428 = vsel %vm380, %v425, %v427
    %v429 = vrot.slane %v337, 1
    %v430 = vsel %vm380, %v427, %v429
    %v431 = vrot.slane %v338, 1
    %v432 = vsel %vm380, %v429, %v431
    %v433 = vrot.slane %v339, 1
    %v434 = vsel %vm380, %v431, %v433
    %v435 = vrot.slane %v340, 1
    %v436 = vsel %vm380, %v433, %v435
    %v437 = vrot.slane %v341, 1
    %v438 = vsel %vm380, %v435, %v437
    %v439 = vrot.slane %v342, 1
    %v440 = vsel %vm380, %v437, %v439
    %v441 = vrot.slane %v343, 1
    %v442 = vsel %vm380, %v439, %v441
    %v443 = vrot.slane %v344, 1
    %v444 = vsel %vm380, %v441, %v443
    %v445 = vrot.slane %v345, 1
    %v446 = vsel %vm380, %v443, %v445
    %v479 = vadd.f32 %v266, %v383
    %v480 = vadd.f32 %v267, %v385
    %v481 = vadd.f32 %v268, %v387
    %v482 = vadd.f32 %v269, %v389
    %v483 = vadd.f32 %v270, %v391
    %v484 = vadd.f32 %v271, %v393
    %v485 = vadd.f32 %v272, %v395
    %v486 = vadd.f32 %v273, %v397
    %v487 = vadd.f32 %v274, %v399
    %v488 = vadd.f32 %v275, %v401
    %v489 = vadd.f32 %v276, %v403
    %v490 = vadd.f32 %v277, %v405
    %v491 = vadd.f32 %v278, %v407
    %v492 = vadd.f32 %v279, %v409
    %v493 = vadd.f32 %v280, %v411
    %v494 = vadd.f32 %v281, %v413
    %v495 = vadd.f32 %v282, %v416
    %v496 = vadd.f32 %v283, %v418
    %v497 = vadd.f32 %v284, %v420
    %v498 = vadd.f32 %v285, %v422
    %v499 = vadd.f32 %v286, %v424
    %v500 = vadd.f32 %v287, %v426
    %v501 = vadd.f32 %v288, %v428
    %v502 = vadd.f32 %v289, %v430
    %v503 = vadd.f32 %v290, %v432
    %v504 = vadd.f32 %v291, %v434
    %v505 = vadd.f32 %v292, %v436
    %v506 = vadd.f32 %v293, %v438
    %v507 = vadd.f32 %v294, %v440
    %v508 = vadd.f32 %v295, %v442
    %v509 = vadd.f32 %v296, %v444
    %v510 = vadd.f32 %v297, %v446
    %v511 = vlaneseq
    %v512 = vshrl.u32 %v511, 7
    %v513 = vsub.s32 2, %v512
    %v514 = vrot.slane %v101, %v513
    %v515 = vmul.f32 %v105, %v514
    %v516 = vmul.f32 %v110, %v514
    %v517 = vmul.f32 %v115, %v514
    %v518 = vmul.f32 %v120, %v514
    %v519 = vmul.f32 %v125, %v514
    %v520 = vmul.f32 %v130, %v514
    %v521 = vmul.f32 %v135, %v514
    %v522 = vmul.f32 %v140, %v514
    %v523 = vmul.f32 %v145, %v514
    %v524 = vmul.f32 %v150, %v514
    %v525 = vmul.f32 %v155, %v514
    %v526 = vmul.f32 %v160, %v514
    %v527 = vmul.f32 %v165, %v514
    %v528 = vmul.f32 %v170, %v514
    %v529 = vmul.f32 %v175, %v514
    %v530 = vmul.f32 %v180, %v514
    %v531 = vmul.f32 %v301, %v514
    %v532 = vmul.f32 %v185, %v514
    %v533 = vmul.f32 %v190, %v514
    %v534 = vmul.f32 %v195, %v514
    %v535 = vmul.f32 %v200, %v514
    %v536 = vmul.f32 %v205, %v514
    %v537 = vmul.f32 %v210, %v514
    %v538 = vmul.f32 %v215, %v514
    %v539 = vmul.f32 %v220, %v514
    %v540 = vmul.f32 %v225, %v514
    %v541 = vmul.f32 %v230, %v514
    %v542 = vmul.f32 %v235, %v514
    %v543 = vmul.f32 %v240, %v514
    %v544 = vmul.f32 %v245, %v514
    %v545 = vmul.f32 %v250, %v514
    %v546 = vmul.f32 %v255, %v514
    %v547 = vmul.f32 %v260, %v514
    %v548 = vmul.f32 %v306, %v514
    %vm583 = vcmask 1045504
    %v584 = vrot.slane %v515, 2
    %v585 = vrot.slane %v516, 2
    %v586 = vsel %vm583, %v584, %v585
    %v587 = vrot.slane %v517, 2
    %v588 = vsel %vm583, %v585, %v587
    %v589 = vrot.slane %v518, 2
    %v590 = vsel %vm583, %v587, %v589
    %v591 = vrot.slane %v519, 2
    %v592 = vsel %vm583, %v589, %v591
    %v593 = vrot.slane %v520, 2
    %v594 = vsel %vm583, %v591, %v593
    %v595 = vrot.slane %v521, 2
    %v596 = vsel %vm583, %v593, %v595
    %v597 = vrot.slane %v522, 2
    %v598 = vsel %vm583, %v595, %v597
    %v599 = vrot.slane %v523, 2
    %v600 = vsel %vm583, %v597, %v599
    %v601 = vrot.slane %v524, 2
    %v602 = vsel %vm583, %v599, %v601
    %v603 = vrot.slane %v525, 2
    %v604 = vsel %vm583, %v601, %v603
    %v605 = vrot.slane %v526, 2
    %v606 = vsel %vm583, %v603, %v605
    %v607 = vrot.slane %v527, 2
    %v608 = vsel %vm583, %v605, %v607
    %v609 = vrot.slane %v528, 2
    %v610 = vsel %vm583, %v607, %v609
    %v611 = vrot.slane %v529, 2
    %v612 = vsel %vm583, %v609, %v611
    %v613 = vrot.slane %v530, 2
    %v614 = vsel %vm583, %v611, %v613
    %v615 = vrot.slane %v531, 2
    %v616 = vsel %vm583, %v613, %v615
    %v617 = vrot.slane %v532, 2
    %v618 = vrot.slane %v533, 2
    %v619 = vsel %vm583, %v617, %v618
    %v620 = vrot.slane %v534, 2
    %v621 = vsel %vm583, %v618, %v620
    %v622 = vrot.slane %v535, 2
    %v623 = vsel %vm583, %v620, %v622
    %v624 = vrot.slane %v536, 2
    %v625 = vsel %vm583, %v622, %v624
    %v626 = vrot.slane %v537, 2
    %v627 = vsel %vm583, %v624, %v626
    %v628 = vrot.slane %v538, 2
    %v629 = vsel %vm583, %v626, %v628
    %v630 = vrot.slane %v539, 2
    %v631 = vsel %vm583, %v628, %v630
    %v632 = vrot.slane %v540, 2
    %v633 = vsel %vm583, %v630, %v632
    %v634 = vrot.slane %v541, 2
    %v635 = vsel %vm583, %v632, %v634
    %v636 = vrot.slane %v542, 2
    %v637 = vsel %vm583, %v634, %v636
    %v638 = vrot.slane %v543, 2
    %v639 = vsel %vm583, %v636, %v638
    %v640 = vrot.slane %v544, 2
    %v641 = vsel %vm583, %v638, %v640
    %v642 = vrot.slane %v545, 2
    %v643 = vsel %vm583, %v640, %v642
    %v644 = vrot.slane %v546, 2
    %v645 = vsel %vm583, %v642, %v644
    %v646 = vrot.slane %v547, 2
    %v647 = vsel %vm583, %v644, %v646
    %v648 = vrot.slane %v548, 2
    %v649 = vsel %vm583, %v646, %v648
    %v682 = vadd.f32 %v479, %v586
    %v683 = vadd.f32 %v480, %v588
    %v684 = vadd.f32 %v481, %v590
    %v685 = vadd.f32 %v482, %v592
    %v686 = vadd.f32 %v483, %v594
    %v687 = vadd.f32 %v484, %v596
    %v688 = vadd.f32 %v485, %v598
    %v689 = vadd.f32 %v486, %v600
    %v690 = vadd.f32 %v487, %v602
    %v691 = vadd.f32 %v488, %v604
    %v692 = vadd.f32 %v489, %v606
    %v693 = vadd.f32 %v490, %v608
    %v694 = vadd.f32 %v491, %v610
    %v695 = vadd.f32 %v492, %v612
    %v696 = vadd.f32 %v493, %v614
    %v697 = vadd.f32 %v494, %v616
    %v698 = vadd.f32 %v495, %v619
    %v699 = vadd.f32 %v496, %v621
    %v700 = vadd.f32 %v497, %v623
    %v701 = vadd.f32 %v498, %v625
    %v702 = vadd.f32 %v499, %v627
    %v703 = vadd.f32 %v500, %v629
    %v704 = vadd.f32 %v501, %v631
    %v705 = vadd.f32 %v502, %v633
    %v706 = vadd.f32 %v503, %v635
    %v707 = vadd.f32 %v504, %v637
    %v708 = vadd.f32 %v505, %v639
    %v709 = vadd.f32 %v506, %v641
    %v710 = vadd.f32 %v507, %v643
    %v711 = vadd.f32 %v508, %v645
    %v712 = vadd.f32 %v509, %v647
    %v713 = vadd.f32 %v510, %v649
    %v714 = vlaneseq
    %v715 = vshrl.u32 %v714, 7
    %v716 = vsub.s32 3, %v715
    %v717 = vrot.slane %v101, %v716
    %v718 = vmul.f32 %v105, %v717
    %v719 = vmul.f32 %v110, %v717
    %v720 = vmul.f32 %v115, %v717
    %v721 = vmul.f32 %v120, %v717
    %v722 = vmul.f32 %v125, %v717
    %v723 = vmul.f32 %v130, %v717
    %v724 = vmul.f32 %v135, %v717
    %v725 = vmul.f32 %v140, %v717
    %v726 = vmul.f32 %v145, %v717
    %v727 = vmul.f32 %v150, %v717
    %v728 = vmul.f32 %v155, %v717
    %v729 = vmul.f32 %v160, %v717
    %v730 = vmul.f32 %v165, %v717
    %v731 = vmul.f32 %v170, %v717
    %v732 = vmul.f32 %v175, %v717
    %v733 = vmul.f32 %v180, %v717
    %v734 = vmul.f32 %v301, %v717
    %v735 = vmul.f32 %v185, %v717
    %v736 = vmul.f32 %v190, %v717
    %v737 = vmul.f32 %v195, %v717
    %v738 = vmul.f32 %v200, %v717
    %v739 = vmul.f32 %v205, %v717
    %v740 = vmul.f32 %v210, %v717
    %v741 = vmul.f32 %v215, %v717
    %v742 = vmul.f32 %v220, %v717
    %v743 = vmul.f32 %v225, %v717
    %v744 = vmul.f32 %v230, %v717
    %v745 = vmul.f32 %v235, %v717
    %v746 = vmul.f32 %v240, %v717
    %v747 = vmul.f32 %v245, %v717
    %v748 = vmul.f32 %v250, %v717
    %v749 = vmul.f32 %v255, %v717
    %v750 = vmul.f32 %v260, %v717
    %v751 = vmul.f32 %v306, %v717
    %vm786 = vcmask 1044480
    %v787 = vrot.slane %v718, 3
    %v788 = vrot.slane %v719, 3
    %v789 = vsel %vm786, %v787, %v788
    %v790 = vrot.slane %v720, 3
    %v791 = vsel %vm786, %v788, %v790
    %v792 = vrot.slane %v721, 3
    %v793 = vsel %vm786, %v790, %v792
    %v794 = vrot.slane %v722, 3
    %v795 = vsel %vm786, %v792, %v794
    %v796 = vrot.slane %v723, 3
    %v797 = vsel %vm786, %v794, %v796
    %v798 = vrot.slane %v724, 3
    %v799 = vsel %vm786, %v796, %v798
    %v800 = vrot.slane %v725, 3
    %v801 = vsel %vm786, %v798, %v800
    %v802 = vrot.slane %v726, 3
    %v803 = vsel %vm786, %v800, %v802
    %v804 = vrot.slane %v727, 3
    %v805 = vsel %vm786, %v802, %v804
    %v806 = vrot.slane %v728, 3
    %v807 = vsel %vm786, %v804, %v806
    %v808 = vrot.slane %v729, 3
    %v809 = vsel %vm786, %v806, %v808
    %v810 = vrot.slane %v730, 3
    %v811 = vsel %vm786, %v808, %v810
    %v812 = vrot.slane %v731, 3
    %v813 = vsel %vm786, %v810, %v812
    %v814 = vrot.slane %v732, 3
    %v815 = vsel %vm786, %v812, %v814
    %v816 = vrot.slane %v733, 3
    %v817 = vsel %vm786, %v814, %v816
    %v818 = vrot.slane %v734, 3
    %v819 = vsel %vm786, %v816, %v818
    %v820 = vrot.slane %v735, 3
    %v821 = vrot.slane %v736, 3
    %v822 = vsel %vm786, %v820, %v821
    %v823 = vrot.slane %v737, 3
    %v824 = vsel %vm786, %v821, %v823
    %v825 = vrot.slane %v738, 3
    %v826 = vsel %vm786, %v823, %v825
    %v827 = vrot.slane %v739, 3
    %v828 = vsel %vm786, %v825, %v827
    %v829 = vrot.slane %v740, 3
    %v830 = vsel %vm786, %v827, %v829
    %v831 = vrot.slane %v741, 3
    %v832 = vsel %vm786, %v829, %v831
    %v833 = vrot.slane %v742, 3
    %v834 = vsel %vm786, %v831, %v833
    %v835 = vrot.slane %v743, 3
    %v836 = vsel %vm786, %v833, %v835
    %v837 = vrot.slane %v744, 3
    %v838 = vsel %vm786, %v835, %v837
    %v839 = vrot.slane %v745, 3
    %v840 = vsel %vm786, %v837, %v839
    %v841 = vrot.slane %v746, 3
    %v842 = vsel %vm786, %v839, %v841
    %v843 = vrot.slane %v747, 3
    %v844 = vsel %vm786, %v841, %v843
    %v845 = vrot.slane %v748, 3
    %v846 = vsel %vm786, %v843, %v845
    %v847 = vrot.slane %v749, 3
    %v848 = vsel %vm786, %v845, %v847
    %v849 = vrot.slane %v750, 3
    %v850 = vsel %vm786, %v847, %v849
    %v851 = vrot.slane %v751, 3
    %v852 = vsel %vm786, %v849, %v851
    %v885 = vadd.f32 %v682, %v789
    %v886 = vadd.f32 %v683, %v791
    %v887 = vadd.f32 %v684, %v793
    %v888 = vadd.f32 %v685, %v795
    %v889 = vadd.f32 %v686, %v797
    %v890 = vadd.f32 %v687, %v799
    %v891 = vadd.f32 %v688, %v801
    %v892 = vadd.f32 %v689, %v803
    %v893 = vadd.f32 %v690, %v805
    %v894 = vadd.f32 %v691, %v807
    %v895 = vadd.f32 %v692, %v809
    %v896 = vadd.f32 %v693, %v811
    %v897 = vadd.f32 %v694, %v813
    %v898 = vadd.f32 %v695, %v815
    %v899 = vadd.f32 %v696, %v817
    %v900 = vadd.f32 %v697, %v819
    %v901 = vadd.f32 %v698, %v822
    %v902 = vadd.f32 %v699, %v824
    %v903 = vadd.f32 %v700, %v826
    %v904 = vadd.f32 %v701, %v828
    %v905 = vadd.f32 %v702, %v830
    %v906 = vadd.f32 %v703, %v832
    %v907 = vadd.f32 %v704, %v834
    %v908 = vadd.f32 %v705, %v836
    %v909 = vadd.f32 %v706, %v838
    %v910 = vadd.f32 %v707, %v840
    %v911 = vadd.f32 %v708, %v842
    %v912 = vadd.f32 %v709, %v844
    %v913 = vadd.f32 %v710, %v846
    %v914 = vadd.f32 %v711, %v848
    %v915 = vadd.f32 %v712, %v850
    %v916 = vadd.f32 %v713, %v852
    %v917 = vlaneseq
    %v918 = vshrl.u32 %v917, 7
    %v919 = vsub.s32 4, %v918
    %v920 = vrot.slane %v101, %v919
    %v921 = vmul.f32 %v105, %v920
    %v922 = vmul.f32 %v110, %v920
    %v923 = vmul.f32 %v115, %v920
    %v924 = vmul.f32 %v120, %v920
    %v925 = vmul.f32 %v125, %v920
    %v926 = vmul.f32 %v130, %v920
    %v927 = vmul.f32 %v135, %v920
    %v928 = vmul.f32 %v140, %v920
    %v929 = vmul.f32 %v145, %v920
    %v930 = vmul.f32 %v150, %v920
    %v931 = vmul.f32 %v155, %v920
    %v932 = vmul.f32 %v160, %v920
    %v933 = vmul.f32 %v165, %v920
    %v934 = vmul.f32 %v170, %v920
    %v935 = vmul.f32 %v175, %v920
    %v936 = vmul.f32 %v180, %v920
    %v937 = vmul.f32 %v301, %v920
    %v938 = vmul.f32 %v185, %v920
    %v939 = vmul.f32 %v190, %v920
    %v940 = vmul.f32 %v195, %v920
    %v941 = vmul.f32 %v200, %v920
    %v942 = vmul.f32 %v205, %v920
    %v943 = vmul.f32 %v210, %v920
    %v944 = vmul.f32 %v215, %v920
    %v945 = vmul.f32 %v220, %v920
    %v946 = vmul.f32 %v225, %v920
    %v947 = vmul.f32 %v230, %v920
    %v948 = vmul.f32 %v235, %v920
    %v949 = vmul.f32 %v240, %v920
    %v950 = vmul.f32 %v245, %v920
    %v951 = vmul.f32 %v250, %v920
    %v952 = vmul.f32 %v255, %v920
    %v953 = vmul.f32 %v260, %v920
    %v954 = vmul.f32 %v306, %v920
    %vm989 = vcmask 1043456
    %v990 = vrot.slane %v921, 4
    %v991 = vrot.slane %v922, 4
    %v992 = vsel %vm989, %v990, %v991
    %v993 = vrot.slane %v923, 4
    %v994 = vsel %vm989, %v991, %v993
    %v995 = vrot.slane %v924, 4
    %v996 = vsel %vm989, %v993, %v995
    %v997 = vrot.slane %v925, 4
    %v998 = vsel %vm989, %v995, %v997
    %v999 = vrot.slane %v926, 4
    %v1000 = vsel %vm989, %v997, %v999
    %v1001 = vrot.slane %v927, 4
    %v1002 = vsel %vm989, %v999, %v1001
    %v1003 = vrot.slane %v928, 4
    %v1004 = vsel %vm989, %v1001, %v1003
    %v1005 = vrot.slane %v929, 4
    %v1006 = vsel %vm989, %v1003, %v1005
    %v1007 = vrot.slane %v930, 4
    %v1008 = vsel %vm989, %v1005, %v1007
    %v1009 = vrot.slane %v931, 4
    %v1010 = vsel %vm989, %v1007, %v1009
    %v1011 = vrot.slane %v932, 4
    %v1012 = vsel %vm989, %v1009, %v1011
    %v1013 = vrot.slane %v933, 4
    %v1014 = vsel %vm989, %v1011, %v1013
    %v1015 = vrot.slane %v934, 4
    %v1016 = vsel %vm989, %v1013, %v1015
    %v1017 = vrot.slane %v935, 4
    %v1018 = vsel %vm989, %v1015, %v1017
    %v1019 = vrot.slane %v936, 4
    %v1020 = vsel %vm989, %v1017, %v1019
    %v1021 = vrot.slane %v937, 4
    %v1022 = vsel %vm989, %v1019, %v1021
    %v1023 = vrot.slane %v938, 4
    %v1024 = vrot.slane %v939, 4
    %v1025 = vsel %vm989, %v1023, %v1024
    %v1026 = vrot.slane %v940, 4
    %v1027 = vsel %vm989, %v1024, %v1026
    %v1028 = vrot.slane %v941, 4
    %v1029 = vsel %vm989, %v1026, %v1028
    %v1030 = vrot.slane %v942, 4
    %v1031 = vsel %vm989, %v1028, %v1030
    %v1032 = vrot.slane %v943, 4
    %v1033 = vsel %vm989, %v1030, %v1032
    %v1034 = vrot.slane %v944, 4
    %v1035 = vsel %vm989, %v1032, %v1034
    %v1036 = vrot.slane %v945, 4
    %v1037 = vsel %vm989, %v1034, %v1036
    %v1038 = vrot.slane %v946, 4
    %v1039 = vsel %vm989, %v1036, %v1038
    %v1040 = vrot.slane %v947, 4
    %v1041 = vsel %vm989, %v1038, %v1040
    %v1042 = vrot.slane %v948, 4
    %v1043 = vsel %vm989, %v1040, %v1042
    %v1044 = vrot.slane %v949, 4
    %v1045 = vsel %vm989, %v1042, %v1044
    %v1046 = vrot.slane %v950, 4
    %v1047 = vsel %vm989, %v1044, %v1046
    %v1048 = vrot.slane %v951, 4
    %v1049 = vsel %vm989, %v1046, %v1048
    %v1050 = vrot.slane %v952, 4
    %v1051 = vsel %vm989, %v1048, %v1050
    %v1052 = vrot.slane %v953, 4
    %v1053 = vsel %vm989, %v1050, %v1052
    %v1054 = vrot.slane %v954, 4
    %v1055 = vsel %vm989, %v1052, %v1054
    %v1088 = vadd.f32 %v885, %v992
    %v1089 = vadd.f32 %v886, %v994
    %v1090 = vadd.f32 %v887, %v996
    %v1091 = vadd.f32 %v888, %v998
    %v1092 = vadd.f32 %v889, %v1000
    %v1093 = vadd.f32 %v890, %v1002
    %v1094 = vadd.f32 %v891, %v1004
    %v1095 = vadd.f32 %v892, %v1006
    %v1096 = vadd.f32 %v893, %v1008
    %v1097 = vadd.f32 %v894, %v1010
    %v1098 = vadd.f32 %v895, %v1012
    %v1099 = vadd.f32 %v896, %v1014
    %v1100 = vadd.f32 %v897, %v1016
    %v1101 = vadd.f32 %v898, %v1018
    %v1102 = vadd.f32 %v899, %v1020
    %v1103 = vadd.f32 %v900, %v1022
    %v1104 = vadd.f32 %v901, %v1025
    %v1105 = vadd.f32 %v902, %v1027
    %v1106 = vadd.f32 %v903, %v1029
    %v1107 = vadd.f32 %v904, %v1031
    %v1108 = vadd.f32 %v905, %v1033
    %v1109 = vadd.f32 %v906, %v1035
    %v1110 = vadd.f32 %v907, %v1037
    %v1111 = vadd.f32 %v908, %v1039
    %v1112 = vadd.f32 %v909, %v1041
    %v1113 = vadd.f32 %v910, %v1043
    %v1114 = vadd.f32 %v911, %v1045
    %v1115 = vadd.f32 %v912, %v1047
    %v1116 = vadd.f32 %v913, %v1049
    %v1117 = vadd.f32 %v914, %v1051
    %v1118 = vadd.f32 %v915, %v1053
    %v1119 = vadd.f32 %v916, %v1055
    %v1120 = vld [vmem:[#allocation8 + $0x8] sm:$0x1]
    %v1121 = vlaneseq
    %v1122 = vshrl.u32 %v1121, 7
    %v1123 = vsub.s32 0, %v1122
    %v1124 = vrot.slane %v1120, %v1123
    %v1125 = vadd.f32 %v1088, %v1124
    %v1126 = vadd.f32 %v1089, %v1124
    %v1127 = vadd.f32 %v1090, %v1124
    %v1128 = vadd.f32 %v1091, %v1124
    %v1129 = vadd.f32 %v1092, %v1124
    %v1130 = vadd.f32 %v1093, %v1124
    %v1131 = vadd.f32 %v1094, %v1124
    %v1132 = vadd.f32 %v1095, %v1124
    %v1133 = vadd.f32 %v1096, %v1124
    %v1134 = vadd.f32 %v1097, %v1124
    %v1135 = vadd.f32 %v1098, %v1124
    %v1136 = vadd.f32 %v1099, %v1124
    %v1137 = vadd.f32 %v1100, %v1124
    %v1138 = vadd.f32 %v1101, %v1124
    %v1139 = vadd.f32 %v1102, %v1124
    %v1140 = vadd.f32 %v1103, %v1124
    %v1141 = vadd.f32 %v1104, %v1124
    %v1142 = vadd.f32 %v1105, %v1124
    %v1143 = vadd.f32 %v1106, %v1124
    %v1144 = vadd.f32 %v1107, %v1124
    %v1145 = vadd.f32 %v1108, %v1124
    %v1146 = vadd.f32 %v1109, %v1124
    %v1147 = vadd.f32 %v1110, %v1124
    %v1148 = vadd.f32 %v1111, %v1124
    %v1149 = vadd.f32 %v1112, %v1124
    %v1150 = vadd.f32 %v1113, %v1124
    %v1151 = vadd.f32 %v1114, %v1124
    %v1152 = vadd.f32 %v1115, %v1124
    %v1153 = vadd.f32 %v1116, %v1124
    %v1154 = vadd.f32 %v1117, %v1124
    %v1155 = vadd.f32 %v1118, %v1124
    %v1156 = vadd.f32 %v1119, %v1124
    %v1157 = vmax.f32 %v1125, 0.0
    %v1158 = vmax.f32 %v1126, 0.0
    %v1159 = vmax.f32 %v1127, 0.0
    %v1160 = vmax.f32 %v1128, 0.0
    %v1161 = vmax.f32 %v1129, 0.0
    %v1162 = vmax.f32 %v1130, 0.0
    %v1163 = vmax.f32 %v1131, 0.0
    %v1164 = vmax.f32 %v1132, 0.0
    %v1165 = vmax.f32 %v1133, 0.0
    %v1166 = vmax.f32 %v1134, 0.0
    %v1167 = vmax.f32 %v1135, 0.0
    %v1168 = vmax.f32 %v1136, 0.0
    %v1169 = vmax.f32 %v1137, 0.0
    %v1170 = vmax.f32 %v1138, 0.0
    %v1171 = vmax.f32 %v1139, 0.0
    %v1172 = vmax.f32 %v1140, 0.0
    %v1173 = vmax.f32 %v1141, 0.0
    %v1174 = vmax.f32 %v1142, 0.0
    %v1175 = vmax.f32 %v1143, 0.0
    %v1176 = vmax.f32 %v1144, 0.0
    %v1177 = vmax.f32 %v1145, 0.0
    %v1178 = vmax.f32 %v1146, 0.0
    %v1179 = vmax.f32 %v1147, 0.0
    %v1180 = vmax.f32 %v1148, 0.0
    %v1181 = vmax.f32 %v1149, 0.0
    %v1182 = vmax.f32 %v1150, 0.0
    %v1183 = vmax.f32 %v1151, 0.0
    %v1184 = vmax.f32 %v1152, 0.0
    %v1185 = vmax.f32 %v1153, 0.0
    %v1186 = vmax.f32 %v1154, 0.0
    %v1187 = vmax.f32 %v1155, 0.0
    %v1188 = vmax.f32 %v1156, 0.0
    %vm1189 = vcmask 648192
    %1190 = vst.msk [vmem:[#allocation2] sm:$0x3] %vm1189, 0.0
    %1191 = vst.msk [vmem:[#allocation2 + $0x100] sm:$0x3] %vm1189, 0.0
    %vm1192 = vcmask 654342
    %1193 = vst.msk [vmem:[#allocation2 + $0xf0] sm:$0xc0] %vm1192, 0.0
    %1194 = vst.msk [vmem:[#allocation2 + $0x1f0] sm:$0xc0] %vm1192, 0.0
    %vm1227 = vcmask 1041408
    %v1228 = vrot.slane %v1157, 6
    %v1229 = vrot.slane %v1158, 6
    %v1230 = vsel %vm1227, %v1228, %v1229
    %v1231 = vrot.slane %v1159, 6
    %v1232 = vsel %vm1227, %v1229, %v1231
    %v1233 = vrot.slane %v1160, 6
    %v1234 = vsel %vm1227, %v1231, %v1233
    %v1235 = vrot.slane %v1161, 6
    %v1236 = vsel %vm1227, %v1233, %v1235
    %v1237 = vrot.slane %v1162, 6
    %v1238 = vsel %vm1227, %v1235, %v1237
    %v1239 = vrot.slane %v1163, 6
    %v1240 = vsel %vm1227, %v1237, %v1239
    %v1241 = vrot.slane %v1164, 6
    %v1242 = vsel %vm1227, %v1239, %v1241
    %v1243 = vrot.slane %v1165, 6
    %v1244 = vsel %vm1227, %v1241, %v1243
    %v1245 = vrot.slane %v1166, 6
    %v1246 = vsel %vm1227, %v1243, %v1245
    %v1247 = vrot.slane %v1167, 6
    %v1248 = vsel %vm1227, %v1245, %v1247
    %v1249 = vrot.slane %v1168, 6
    %v1250 = vsel %vm1227, %v1247, %v1249
    %v1251 = vrot.slane %v1169, 6
    %v1252 = vsel %vm1227, %v1249, %v1251
    %v1253 = vrot.slane %v1170, 6
    %v1254 = vsel %vm1227, %v1251, %v1253
    %v1255 = vrot.slane %v1171, 6
    %v1256 = vsel %vm1227, %v1253, %v1255
    %v1257 = vrot.slane %v1172, 6
    %v1258 = vsel %vm1227, %v1255, %v1257
    %v1259 = vrot.slane %v1173, 6
    %v1260 = vrot.slane %v1174, 6
    %v1261 = vsel %vm1227, %v1259, %v1260
    %v1262 = vrot.slane %v1175, 6
    %v1263 = vsel %vm1227, %v1260, %v1262
    %v1264 = vrot.slane %v1176, 6
    %v1265 = vsel %vm1227, %v1262, %v1264
    %v1266 = vrot.slane %v1177, 6
    %v1267 = vsel %vm1227, %v1264, %v1266
    %v1268 = vrot.slane %v1178, 6
    %v1269 = vsel %vm1227, %v1266, %v1268
    %v1270 = vrot.slane %v1179, 6
    %v1271 = vsel %vm1227, %v1268, %v1270
    %v1272 = vrot.slane %v1180, 6
    %v1273 = vsel %vm1227, %v1270, %v1272
    %v1274 = vrot.slane %v1181, 6
    %v1275 = vsel %vm1227, %v1272, %v1274
    %v1276 = vrot.slane %v1182, 6
    %v1277 = vsel %vm1227, %v1274, %v1276
    %v1278 = vrot.slane %v1183, 6
    %v1279 = vsel %vm1227, %v1276, %v1278
    %v1280 = vrot.slane %v1184, 6
    %v1281 = vsel %vm1227, %v1278, %v1280
    %v1282 = vrot.slane %v1185, 6
    %v1283 = vsel %vm1227, %v1280, %v1282
    %v1284 = vrot.slane %v1186, 6
    %v1285 = vsel %vm1227, %v1282, %v1284
    %v1286 = vrot.slane %v1187, 6
    %v1287 = vsel %vm1227, %v1284, %v1286
    %v1288 = vrot.slane %v1188, 6
    %v1289 = vsel %vm1227, %v1286, %v1288
    %vm1322 = vcmask 130050
    %1323 = vst.msk [vmem:[#allocation2] sm:$0xfc] %vm1322, %v1228
    %vm1324 = vcmask 130048
    %1325 = vst.msk [vmem:[#allocation2 + $0x10] sm:$0xff] %vm1324, %v1230
    %1326 = vst.msk [vmem:[#allocation2 + $0x20] sm:$0xff] %vm1324, %v1232
    %1327 = vst.msk [vmem:[#allocation2 + $0x30] sm:$0xff] %vm1324, %v1234
    %1328 = vst.msk [vmem:[#allocation2 + $0x40] sm:$0xff] %vm1324, %v1236
    %1329 = vst.msk [vmem:[#allocation2 + $0x50] sm:$0xff] %vm1324, %v1238
    %1330 = vst.msk [vmem:[#allocation2 + $0x60] sm:$0xff] %vm1324, %v1240
    %1331 = vst.msk [vmem:[#allocation2 + $0x70] sm:$0xff] %vm1324, %v1242
    %1332 = vst.msk [vmem:[#allocation2 + $0x80] sm:$0xff] %vm1324, %v1244
    %1333 = vst.msk [vmem:[#allocation2 + $0x90] sm:$0xff] %vm1324, %v1246
    %1334 = vst.msk [vmem:[#allocation2 + $0xa0] sm:$0xff] %vm1324, %v1248
    %1335 = vst.msk [vmem:[#allocation2 + $0xb0] sm:$0xff] %vm1324, %v1250
    %1336 = vst.msk [vmem:[#allocation2 + $0xc0] sm:$0xff] %vm1324, %v1252
    %1337 = vst.msk [vmem:[#allocation2 + $0xd0] sm:$0xff] %vm1324, %v1254
    %1338 = vst.msk [vmem:[#allocation2 + $0xe0] sm:$0xff] %vm1324, %v1256
    %1339 = vst.msk [vmem:[#allocation2 + $0xf0] sm:$0xff] %vm1324, %v1258
    %1340 = vst.msk [vmem:[#allocation2 + $0x100] sm:$0xfc] %vm1322, %v1259
    %1341 = vst.msk [vmem:[#allocation2 + $0x110] sm:$0xff] %vm1324, %v1261
    %1342 = vst.msk [vmem:[#allocation2 + $0x120] sm:$0xff] %vm1324, %v1263
    %1343 = vst.msk [vmem:[#allocation2 + $0x130] sm:$0xff] %vm1324, %v1265
    %1344 = vst.msk [vmem:[#allocation2 + $0x140] sm:$0xff] %vm1324, %v1267
    %1345 = vst.msk [vmem:[#allocation2 + $0x150] sm:$0xff] %vm1324, %v1269
    %1346 = vst.msk [vmem:[#allocation2 + $0x160] sm:$0xff] %vm1324, %v1271
    %1347 = vst.msk [vmem:[#allocation2 + $0x170] sm:$0xff] %vm1324, %v1273
    %1348 = vst.msk [vmem:[#allocation2 + $0x180] sm:$0xff] %vm1324, %v1275
    %1349 = vst.msk [vmem:[#allocation2 + $0x190] sm:$0xff] %vm1324, %v1277
    %1350 = vst.msk [vmem:[#allocation2 + $0x1a0] sm:$0xff] %vm1324, %v1279
    %1351 = vst.msk [vmem:[#allocation2 + $0x1b0] sm:$0xff] %vm1324, %v1281
    %1352 = vst.msk [vmem:[#allocation2 + $0x1c0] sm:$0xff] %vm1324, %v1283
    %1353 = vst.msk [vmem:[#allocation2 + $0x1d0] sm:$0xff] %vm1324, %v1285
    %1354 = vst.msk [vmem:[#allocation2 + $0x1e0] sm:$0xff] %vm1324, %v1287
    %1355 = vst.msk [vmem:[#allocation2 + $0x1f0] sm:$0xff] %vm1324, %v1289
    %vm1356 = vcmask 1040384
    %v1357 = vrot.slane %v1157, 7
    %v1358 = vrot.slane %v1158, 7
    %v1359 = vsel %vm1356, %v1357, %v1358
    %v1360 = vrot.slane %v1159, 7
    %v1361 = vsel %vm1356, %v1358, %v1360
    %v1362 = vrot.slane %v1160, 7
    %v1363 = vsel %vm1356, %v1360, %v1362
    %v1364 = vrot.slane %v1161, 7
    %v1365 = vsel %vm1356, %v1362, %v1364
    %v1366 = vrot.slane %v1162, 7
    %v1367 = vsel %vm1356, %v1364, %v1366
    %v1368 = vrot.slane %v1163, 7
    %v1369 = vsel %vm1356, %v1366, %v1368
    %v1370 = vrot.slane %v1164, 7
    %v1371 = vsel %vm1356, %v1368, %v1370
    %v1372 = vrot.slane %v1165, 7
    %v1373 = vsel %vm1356, %v1370, %v1372
    %v1374 = vrot.slane %v1166, 7
    %v1375 = vsel %vm1356, %v1372, %v1374
    %v1376 = vrot.slane %v1167, 7
    %v1377 = vsel %vm1356, %v1374, %v1376
    %v1378 = vrot.slane %v1168, 7
    %v1379 = vsel %vm1356, %v1376, %v1378
    %v1380 = vrot.slane %v1169, 7
    %v1381 = vsel %vm1356, %v1378, %v1380
    %v1382 = vrot.slane %v1170, 7
    %v1383 = vsel %vm1356, %v1380, %v1382
    %v1384 = vrot.slane %v1171, 7
    %v1385 = vsel %vm1356, %v1382, %v1384
    %v1386 = vrot.slane %v1172, 7
    %v1387 = vsel %vm1356, %v1384, %v1386
    %v1388 = vrot.slane %v1173, 7
    %v1389 = vrot.slane %v1174, 7
    %v1390 = vsel %vm1356, %v1388, %v1389
    %v1391 = vrot.slane %v1175, 7
    %v1392 = vsel %vm1356, %v1389, %v1391
    %v1393 = vrot.slane %v1176, 7
    %v1394 = vsel %vm1356, %v1391, %v1393
    %v1395 = vrot.slane %v1177, 7
    %v1396 = vsel %vm1356, %v1393, %v1395
    %v1397 = vrot.slane %v1178, 7
    %v1398 = vsel %vm1356, %v1395, %v1397
    %v1399 = vrot.slane %v1179, 7
    %v1400 = vsel %vm1356, %v1397, %v1399
    %v1401 = vrot.slane %v1180, 7
    %v1402 = vsel %vm1356, %v1399, %v1401
    %v1403 = vrot.slane %v1181, 7
    %v1404 = vsel %vm1356, %v1401, %v1403
    %v1405 = vrot.slane %v1182, 7
    %v1406 = vsel %vm1356, %v1403, %v1405
    %v1407 = vrot.slane %v1183, 7
    %v1408 = vsel %vm1356, %v1405, %v1407
    %v1409 = vrot.slane %v1184, 7
    %v1410 = vsel %vm1356, %v1407, %v1409
    %v1411 = vrot.slane %v1185, 7
    %v1412 = vsel %vm1356, %v1409, %v1411
    %v1413 = vrot.slane %v1186, 7
    %v1414 = vsel %vm1356, %v1411, %v1413
    %v1415 = vrot.slane %v1187, 7
    %v1416 = vsel %vm1356, %v1413, %v1415
    %v1417 = vrot.slane %v1188, 7
    %v1418 = vsel %vm1356, %v1415, %v1417
    %1419 = vrot.lane.b32.xlu0 %v1357, 16
    %v1420 = vpop.permute.xlu0 %1419
    %1421 = vrot.lane.b32.xlu0 %v1359, 16
    %v1422 = vpop.permute.xlu0 %1421
    %1423 = vrot.lane.b32.xlu0 %v1361, 16
    %v1424 = vpop.permute.xlu0 %1423
    %1425 = vrot.lane.b32.xlu0 %v1363, 16
    %v1426 = vpop.permute.xlu0 %1425
    %1427 = vrot.lane.b32.xlu0 %v1365, 16
    %v1428 = vpop.permute.xlu0 %1427
    %1429 = vrot.lane.b32.xlu0 %v1367, 16
    %v1430 = vpop.permute.xlu0 %1429
    %1431 = vrot.lane.b32.xlu0 %v1369, 16
    %v1432 = vpop.permute.xlu0 %1431
    %1433 = vrot.lane.b32.xlu0 %v1371, 16
    %v1434 = vpop.permute.xlu0 %1433
    %1435 = vrot.lane.b32.xlu0 %v1373, 16
    %v1436 = vpop.permute.xlu0 %1435
    %1437 = vrot.lane.b32.xlu0 %v1375, 16
    %v1438 = vpop.permute.xlu0 %1437
    %1439 = vrot.lane.b32.xlu0 %v1377, 16
    %v1440 = vpop.permute.xlu0 %1439
    %1441 = vrot.lane.b32.xlu0 %v1379, 16
    %v1442 = vpop.permute.xlu0 %1441
    %1443 = vrot.lane.b32.xlu0 %v1381, 16
    %v1444 = vpop.permute.xlu0 %1443
    %1445 = vrot.lane.b32.xlu0 %v1383, 16
    %v1446 = vpop.permute.xlu0 %1445
    %1447 = vrot.lane.b32.xlu0 %v1385, 16
    %v1448 = vpop.permute.xlu0 %1447
    %1449 = vrot.lane.b32.xlu0 %v1387, 16
    %v1450 = vpop.permute.xlu0 %1449
    %1451 = vrot.lane.b32.xlu0 %v1388, 16
    %v1452 = vpop.permute.xlu0 %1451
    %1453 = vrot.lane.b32.xlu0 %v1390, 16
    %v1454 = vpop.permute.xlu0 %1453
    %1455 = vrot.lane.b32.xlu0 %v1392, 16
    %v1456 = vpop.permute.xlu0 %1455
    %1457 = vrot.lane.b32.xlu0 %v1394, 16
    %v1458 = vpop.permute.xlu0 %1457
    %1459 = vrot.lane.b32.xlu0 %v1396, 16
    %v1460 = vpop.permute.xlu0 %1459
    %1461 = vrot.lane.b32.xlu0 %v1398, 16
    %v1462 = vpop.permute.xlu0 %1461
    %1463 = vrot.lane.b32.xlu0 %v1400, 16
    %v1464 = vpop.permute.xlu0 %1463
    %1465 = vrot.lane.b32.xlu0 %v1402, 16
    %v1466 = vpop.permute.xlu0 %1465
    %1467 = vrot.lane.b32.xlu0 %v1404, 16
    %v1468 = vpop.permute.xlu0 %1467
    %1469 = vrot.lane.b32.xlu0 %v1406, 16
    %v1470 = vpop.permute.xlu0 %1469
    %1471 = vrot.lane.b32.xlu0 %v1408, 16
    %v1472 = vpop.permute.xlu0 %1471
    %1473 = vrot.lane.b32.xlu0 %v1410, 16
    %v1474 = vpop.permute.xlu0 %1473
    %1475 = vrot.lane.b32.xlu0 %v1412, 16
    %v1476 = vpop.permute.xlu0 %1475
    %1477 = vrot.lane.b32.xlu0 %v1414, 16
    %v1478 = vpop.permute.xlu0 %1477
    %1479 = vrot.lane.b32.xlu0 %v1416, 16
    %v1480 = vpop.permute.xlu0 %1479
    %1481 = vrot.lane.b32.xlu0 %v1418, 16
    %v1482 = vpop.permute.xlu0 %1481
    %vm1515 = vcmask 261249
    %1516 = vst.msk [vmem:[#allocation2] sm:$0xfe] %vm1515, %v1420
    %vm1517 = vcmask 261248
    %1518 = vst.msk [vmem:[#allocation2 + $0x10] sm:$0xff] %vm1517, %v1422
    %1519 = vst.msk [vmem:[#allocation2 + $0x20] sm:$0xff] %vm1517, %v1424
    %1520 = vst.msk [vmem:[#allocation2 + $0x30] sm:$0xff] %vm1517, %v1426
    %1521 = vst.msk [vmem:[#allocation2 + $0x40] sm:$0xff] %vm1517, %v1428
    %1522 = vst.msk [vmem:[#allocation2 + $0x50] sm:$0xff] %vm1517, %v1430
    %1523 = vst.msk [vmem:[#allocation2 + $0x60] sm:$0xff] %vm1517, %v1432
    %1524 = vst.msk [vmem:[#allocation2 + $0x70] sm:$0xff] %vm1517, %v1434
    %1525 = vst.msk [vmem:[#allocation2 + $0x80] sm:$0xff] %vm1517, %v1436
    %1526 = vst.msk [vmem:[#allocation2 + $0x90] sm:$0xff] %vm1517, %v1438
    %1527 = vst.msk [vmem:[#allocation2 + $0xa0] sm:$0xff] %vm1517, %v1440
    %1528 = vst.msk [vmem:[#allocation2 + $0xb0] sm:$0xff] %vm1517, %v1442
    %1529 = vst.msk [vmem:[#allocation2 + $0xc0] sm:$0xff] %vm1517, %v1444
    %1530 = vst.msk [vmem:[#allocation2 + $0xd0] sm:$0xff] %vm1517, %v1446
    %1531 = vst.msk [vmem:[#allocation2 + $0xe0] sm:$0xff] %vm1517, %v1448
    %1532 = vst.msk [vmem:[#allocation2 + $0xf0] sm:$0xff] %vm1517, %v1450
    %1533 = vst.msk [vmem:[#allocation2 + $0x100] sm:$0xfe] %vm1515, %v1452
    %1534 = vst.msk [vmem:[#allocation2 + $0x110] sm:$0xff] %vm1517, %v1454
    %1535 = vst.msk [vmem:[#allocation2 + $0x120] sm:$0xff] %vm1517, %v1456
    %1536 = vst.msk [vmem:[#allocation2 + $0x130] sm:$0xff] %vm1517, %v1458
    %1537 = vst.msk [vmem:[#allocation2 + $0x140] sm:$0xff] %vm1517, %v1460
    %1538 = vst.msk [vmem:[#allocation2 + $0x150] sm:$0xff] %vm1517, %v1462
    %1539 = vst.msk [vmem:[#allocation2 + $0x160] sm:$0xff] %vm1517, %v1464
    %1540 = vst.msk [vmem:[#allocation2 + $0x170] sm:$0xff] %vm1517, %v1466
    %1541 = vst.msk [vmem:[#allocation2 + $0x180] sm:$0xff] %vm1517, %v1468
    %1542 = vst.msk [vmem:[#allocation2 + $0x190] sm:$0xff] %vm1517, %v1470
    %1543 = vst.msk [vmem:[#allocation2 + $0x1a0] sm:$0xff] %vm1517, %v1472
    %1544 = vst.msk [vmem:[#allocation2 + $0x1b0] sm:$0xff] %vm1517, %v1474
    %1545 = vst.msk [vmem:[#allocation2 + $0x1c0] sm:$0xff] %vm1517, %v1476
    %1546 = vst.msk [vmem:[#allocation2 + $0x1d0] sm:$0xff] %vm1517, %v1478
    %1547 = vst.msk [vmem:[#allocation2 + $0x1e0] sm:$0xff] %vm1517, %v1480
    %1548 = vst.msk [vmem:[#allocation2 + $0x1f0] sm:$0xff] %vm1517, %v1482
    %1549 = vrot.lane.b32.xlu0 %v1157, 32
    %v1550 = vpop.permute.xlu0 %1549
    %1551 = vrot.lane.b32.xlu0 %v1158, 32
    %v1552 = vpop.permute.xlu0 %1551
    %1553 = vrot.lane.b32.xlu0 %v1159, 32
    %v1554 = vpop.permute.xlu0 %1553
    %1555 = vrot.lane.b32.xlu0 %v1160, 32
    %v1556 = vpop.permute.xlu0 %1555
    %1557 = vrot.lane.b32.xlu0 %v1161, 32
    %v1558 = vpop.permute.xlu0 %1557
    %1559 = vrot.lane.b32.xlu0 %v1162, 32
    %v1560 = vpop.permute.xlu0 %1559
    %1561 = vrot.lane.b32.xlu0 %v1163, 32
    %v1562 = vpop.permute.xlu0 %1561
    %1563 = vrot.lane.b32.xlu0 %v1164, 32
    %v1564 = vpop.permute.xlu0 %1563
    %1565 = vrot.lane.b32.xlu0 %v1165, 32
    %v1566 = vpop.permute.xlu0 %1565
    %1567 = vrot.lane.b32.xlu0 %v1166, 32
    %v1568 = vpop.permute.xlu0 %1567
    %1569 = vrot.lane.b32.xlu0 %v1167, 32
    %v1570 = vpop.permute.xlu0 %1569
    %1571 = vrot.lane.b32.xlu0 %v1168, 32
    %v1572 = vpop.permute.xlu0 %1571
    %1573 = vrot.lane.b32.xlu0 %v1169, 32
    %v1574 = vpop.permute.xlu0 %1573
    %1575 = vrot.lane.b32.xlu0 %v1170, 32
    %v1576 = vpop.permute.xlu0 %1575
    %1577 = vrot.lane.b32.xlu0 %v1171, 32
    %v1578 = vpop.permute.xlu0 %1577
    %1579 = vrot.lane.b32.xlu0 %v1172, 32
    %v1580 = vpop.permute.xlu0 %1579
    %1581 = vrot.lane.b32.xlu0 %v1173, 32
    %v1582 = vpop.permute.xlu0 %1581
    %1583 = vrot.lane.b32.xlu0 %v1174, 32
    %v1584 = vpop.permute.xlu0 %1583
    %1585 = vrot.lane.b32.xlu0 %v1175, 32
    %v1586 = vpop.permute.xlu0 %1585
    %1587 = vrot.lane.b32.xlu0 %v1176, 32
    %v1588 = vpop.permute.xlu0 %1587
    %1589 = vrot.lane.b32.xlu0 %v1177, 32
    %v1590 = vpop.permute.xlu0 %1589
    %1591 = vrot.lane.b32.xlu0 %v1178, 32
    %v1592 = vpop.permute.xlu0 %1591
    %1593 = vrot.lane.b32.xlu0 %v1179, 32
    %v1594 = vpop.permute.xlu0 %1593
    %1595 = vrot.lane.b32.xlu0 %v1180, 32
    %v1596 = vpop.permute.xlu0 %1595
    %1597 = vrot.lane.b32.xlu0 %v1181, 32
    %v1598 = vpop.permute.xlu0 %1597
    %1599 = vrot.lane.b32.xlu0 %v1182, 32
    %v1600 = vpop.permute.xlu0 %1599
    %1601 = vrot.lane.b32.xlu0 %v1183, 32
    %v1602 = vpop.permute.xlu0 %1601
    %1603 = vrot.lane.b32.xlu0 %v1184, 32
    %v1604 = vpop.permute.xlu0 %1603
    %1605 = vrot.lane.b32.xlu0 %v1185, 32
    %v1606 = vpop.permute.xlu0 %1605
    %1607 = vrot.lane.b32.xlu0 %v1186, 32
    %v1608 = vpop.permute.xlu0 %1607
    %1609 = vrot.lane.b32.xlu0 %v1187, 32
    %v1610 = vpop.permute.xlu0 %1609
    %1611 = vrot.lane.b32.xlu0 %v1188, 32
    %v1612 = vpop.permute.xlu0 %1611
    %vm1645 = vcmask 392448
    %1646 = vst.msk [vmem:[#allocation2] sm:$0xff] %vm1645, %v1550
    %1647 = vst.msk [vmem:[#allocation2 + $0x10] sm:$0xff] %vm1645, %v1552
    %1648 = vst.msk [vmem:[#allocation2 + $0x20] sm:$0xff] %vm1645, %v1554
    %1649 = vst.msk [vmem:[#allocation2 + $0x30] sm:$0xff] %vm1645, %v1556
    %1650 = vst.msk [vmem:[#allocation2 + $0x40] sm:$0xff] %vm1645, %v1558
    %1651 = vst.msk [vmem:[#allocation2 + $0x50] sm:$0xff] %vm1645, %v1560
    %1652 = vst.msk [vmem:[#allocation2 + $0x60] sm:$0xff] %vm1645, %v1562
    %1653 = vst.msk [vmem:[#allocation2 + $0x70] sm:$0xff] %vm1645, %v1564
    %1654 = vst.msk [vmem:[#allocation2 + $0x80] sm:$0xff] %vm1645, %v1566
    %1655 = vst.msk [vmem:[#allocation2 + $0x90] sm:$0xff] %vm1645, %v1568
    %1656 = vst.msk [vmem:[#allocation2 + $0xa0] sm:$0xff] %vm1645, %v1570
    %1657 = vst.msk [vmem:[#allocation2 + $0xb0] sm:$0xff] %vm1645, %v1572
    %1658 = vst.msk [vmem:[#allocation2 + $0xc0] sm:$0xff] %vm1645, %v1574
    %1659 = vst.msk [vmem:[#allocation2 + $0xd0] sm:$0xff] %vm1645, %v1576
    %1660 = vst.msk [vmem:[#allocation2 + $0xe0] sm:$0xff] %vm1645, %v1578
    %1661 = vst.msk [vmem:[#allocation2 + $0xf0] sm:$0xff] %vm1645, %v1580
    %1662 = vst.msk [vmem:[#allocation2 + $0x100] sm:$0xff] %vm1645, %v1582
    %1663 = vst.msk [vmem:[#allocation2 + $0x110] sm:$0xff] %vm1645, %v1584
    %1664 = vst.msk [vmem:[#allocation2 + $0x120] sm:$0xff] %vm1645, %v1586
    %1665 = vst.msk [vmem:[#allocation2 + $0x130] sm:$0xff] %vm1645, %v1588
    %1666 = vst.msk [vmem:[#allocation2 + $0x140] sm:$0xff] %vm1645, %v1590
    %1667 = vst.msk [vmem:[#allocation2 + $0x150] sm:$0xff] %vm1645, %v1592
    %1668 = vst.msk [vmem:[#allocation2 + $0x160] sm:$0xff] %vm1645, %v1594
    %1669 = vst.msk [vmem:[#allocation2 + $0x170] sm:$0xff] %vm1645, %v1596
    %1670 = vst.msk [vmem:[#allocation2 + $0x180] sm:$0xff] %vm1645, %v1598
    %1671 = vst.msk [vmem:[#allocation2 + $0x190] sm:$0xff] %vm1645, %v1600
    %1672 = vst.msk [vmem:[#allocation2 + $0x1a0] sm:$0xff] %vm1645, %v1602
    %1673 = vst.msk [vmem:[#allocation2 + $0x1b0] sm:$0xff] %vm1645, %v1604
    %1674 = vst.msk [vmem:[#allocation2 + $0x1c0] sm:$0xff] %vm1645, %v1606
    %1675 = vst.msk [vmem:[#allocation2 + $0x1d0] sm:$0xff] %vm1645, %v1608
    %1676 = vst.msk [vmem:[#allocation2 + $0x1e0] sm:$0xff] %vm1645, %v1610
    %1677 = vst.msk [vmem:[#allocation2 + $0x1f0] sm:$0xff] %vm1645, %v1612
    %v1678 = vrot.slane %v1157, 1
    %v1679 = vrot.slane %v1158, 1
    %v1680 = vsel %vm380, %v1678, %v1679
    %v1681 = vrot.slane %v1159, 1
    %v1682 = vsel %vm380, %v1679, %v1681
    %v1683 = vrot.slane %v1160, 1
    %v1684 = vsel %vm380, %v1681, %v1683
    %v1685 = vrot.slane %v1161, 1
    %v1686 = vsel %vm380, %v1683, %v1685
    %v1687 = vrot.slane %v1162, 1
    %v1688 = vsel %vm380, %v1685, %v1687
    %v1689 = vrot.slane %v1163, 1
    %v1690 = vsel %vm380, %v1687, %v1689
    %v1691 = vrot.slane %v1164, 1
    %v1692 = vsel %vm380, %v1689, %v1691
    %v1693 = vrot.slane %v1165, 1
    %v1694 = vsel %vm380, %v1691, %v1693
    %v1695 = vrot.slane %v1166, 1
    %v1696 = vsel %vm380, %v1693, %v1695
    %v1697 = vrot.slane %v1167, 1
    %v1698 = vsel %vm380, %v1695, %v1697
    %v1699 = vrot.slane %v1168, 1
    %v1700 = vsel %vm380, %v1697, %v1699
    %v1701 = vrot.slane %v1169, 1
    %v1702 = vsel %vm380, %v1699, %v1701
    %v1703 = vrot.slane %v1170, 1
    %v1704 = vsel %vm380, %v1701, %v1703
    %v1705 = vrot.slane %v1171, 1
    %v1706 = vsel %vm380, %v1703, %v1705
    %v1707 = vrot.slane %v1172, 1
    %v1708 = vsel %vm380, %v1705, %v1707
    %v1709 = vrot.slane %v1173, 1
    %v1710 = vrot.slane %v1174, 1
    %v1711 = vsel %vm380, %v1709, %v1710
    %v1712 = vrot.slane %v1175, 1
    %v1713 = vsel %vm380, %v1710, %v1712
    %v1714 = vrot.slane %v1176, 1
    %v1715 = vsel %vm380, %v1712, %v1714
    %v1716 = vrot.slane %v1177, 1
    %v1717 = vsel %vm380, %v1714, %v1716
    %v1718 = vrot.slane %v1178, 1
    %v1719 = vsel %vm380, %v1716, %v1718
    %v1720 = vrot.slane %v1179, 1
    %v1721 = vsel %vm380, %v1718, %v1720
    %v1722 = vrot.slane %v1180, 1
    %v1723 = vsel %vm380, %v1720, %v1722
    %v1724 = vrot.slane %v1181, 1
    %v1725 = vsel %vm380, %v1722, %v1724
    %v1726 = vrot.slane %v1182, 1
    %v1727 = vsel %vm380, %v1724, %v1726
    %v1728 = vrot.slane %v1183, 1
    %v1729 = vsel %vm380, %v1726, %v1728
    %v1730 = vrot.slane %v1184, 1
    %v1731 = vsel %vm380, %v1728, %v1730
    %v1732 = vrot.slane %v1185, 1
    %v1733 = vsel %vm380, %v1730, %v1732
    %v1734 = vrot.slane %v1186, 1
    %v1735 = vsel %vm380, %v1732, %v1734
    %v1736 = vrot.slane %v1187, 1
    %v1737 = vsel %vm380, %v1734, %v1736
    %v1738 = vrot.slane %v1188, 1
    %v1739 = vsel %vm380, %v1736, %v1738
    %1740 = vrot.lane.b32.xlu0 %v1680, 48
    %v1741 = vpop.permute.xlu0 %1740
    %1742 = vrot.lane.b32.xlu0 %v1682, 48
    %v1743 = vpop.permute.xlu0 %1742
    %1744 = vrot.lane.b32.xlu0 %v1684, 48
    %v1745 = vpop.permute.xlu0 %1744
    %1746 = vrot.lane.b32.xlu0 %v1686, 48
    %v1747 = vpop.permute.xlu0 %1746
    %1748 = vrot.lane.b32.xlu0 %v1688, 48
    %v1749 = vpop.permute.xlu0 %1748
    %1750 = vrot.lane.b32.xlu0 %v1690, 48
    %v1751 = vpop.permute.xlu0 %1750
    %1752 = vrot.lane.b32.xlu0 %v1692, 48
    %v1753 = vpop.permute.xlu0 %1752
    %1754 = vrot.lane.b32.xlu0 %v1694, 48
    %v1755 = vpop.permute.xlu0 %1754
    %1756 = vrot.lane.b32.xlu0 %v1696, 48
    %v1757 = vpop.permute.xlu0 %1756
    %1758 = vrot.lane.b32.xlu0 %v1698, 48
    %v1759 = vpop.permute.xlu0 %1758
    %1760 = vrot.lane.b32.xlu0 %v1700, 48
    %v1761 = vpop.permute.xlu0 %1760
    %1762 = vrot.lane.b32.xlu0 %v1702, 48
    %v1763 = vpop.permute.xlu0 %1762
    %1764 = vrot.lane.b32.xlu0 %v1704, 48
    %v1765 = vpop.permute.xlu0 %1764
    %1766 = vrot.lane.b32.xlu0 %v1706, 48
    %v1767 = vpop.permute.xlu0 %1766
    %1768 = vrot.lane.b32.xlu0 %v1708, 48
    %v1769 = vpop.permute.xlu0 %1768
    %1770 = vrot.lane.b32.xlu0 %v1707, 48
    %v1771 = vpop.permute.xlu0 %1770
    %1772 = vrot.lane.b32.xlu0 %v1711, 48
    %v1773 = vpop.permute.xlu0 %1772
    %1774 = vrot.lane.b32.xlu0 %v1713, 48
    %v1775 = vpop.permute.xlu0 %1774
    %1776 = vrot.lane.b32.xlu0 %v1715, 48
    %v1777 = vpop.permute.xlu0 %1776
    %1778 = vrot.lane.b32.xlu0 %v1717, 48
    %v1779 = vpop.permute.xlu0 %1778
    %1780 = vrot.lane.b32.xlu0 %v1719, 48
    %v1781 = vpop.permute.xlu0 %1780
    %1782 = vrot.lane.b32.xlu0 %v1721, 48
    %v1783 = vpop.permute.xlu0 %1782
    %1784 = vrot.lane.b32.xlu0 %v1723, 48
    %v1785 = vpop.permute.xlu0 %1784
    %1786 = vrot.lane.b32.xlu0 %v1725, 48
    %v1787 = vpop.permute.xlu0 %1786
    %1788 = vrot.lane.b32.xlu0 %v1727, 48
    %v1789 = vpop.permute.xlu0 %1788
    %1790 = vrot.lane.b32.xlu0 %v1729, 48
    %v1791 = vpop.permute.xlu0 %1790
    %1792 = vrot.lane.b32.xlu0 %v1731, 48
    %v1793 = vpop.permute.xlu0 %1792
    %1794 = vrot.lane.b32.xlu0 %v1733, 48
    %v1795 = vpop.permute.xlu0 %1794
    %1796 = vrot.lane.b32.xlu0 %v1735, 48
    %v1797 = vpop.permute.xlu0 %1796
    %1798 = vrot.lane.b32.xlu0 %v1737, 48
    %v1799 = vpop.permute.xlu0 %1798
    %1800 = vrot.lane.b32.xlu0 %v1739, 48
    %v1801 = vpop.permute.xlu0 %1800
    %1802 = vrot.lane.b32.xlu0 %v1738, 48
    %v1803 = vpop.permute.xlu0 %1802
    %vm1836 = vcmask 523648
    %1837 = vst.msk [vmem:[#allocation2] sm:$0xff] %vm1836, %v1741
    %1838 = vst.msk [vmem:[#allocation2 + $0x10] sm:$0xff] %vm1836, %v1743
    %1839 = vst.msk [vmem:[#allocation2 + $0x20] sm:$0xff] %vm1836, %v1745
    %1840 = vst.msk [vmem:[#allocation2 + $0x30] sm:$0xff] %vm1836, %v1747
    %1841 = vst.msk [vmem:[#allocation2 + $0x40] sm:$0xff] %vm1836, %v1749
    %1842 = vst.msk [vmem:[#allocation2 + $0x50] sm:$0xff] %vm1836, %v1751
    %1843 = vst.msk [vmem:[#allocation2 + $0x60] sm:$0xff] %vm1836, %v1753
    %1844 = vst.msk [vmem:[#allocation2 + $0x70] sm:$0xff] %vm1836, %v1755
    %1845 = vst.msk [vmem:[#allocation2 + $0x80] sm:$0xff] %vm1836, %v1757
    %1846 = vst.msk [vmem:[#allocation2 + $0x90] sm:$0xff] %vm1836, %v1759
    %1847 = vst.msk [vmem:[#allocation2 + $0xa0] sm:$0xff] %vm1836, %v1761
    %1848 = vst.msk [vmem:[#allocation2 + $0xb0] sm:$0xff] %vm1836, %v1763
    %1849 = vst.msk [vmem:[#allocation2 + $0xc0] sm:$0xff] %vm1836, %v1765
    %1850 = vst.msk [vmem:[#allocation2 + $0xd0] sm:$0xff] %vm1836, %v1767
    %1851 = vst.msk [vmem:[#allocation2 + $0xe0] sm:$0xff] %vm1836, %v1769
    %vm1852 = vcmask 522624
    %1853 = vst.msk [vmem:[#allocation2 + $0xf0] sm:$0x7f] %vm1852, %v1771
    %1854 = vst.msk [vmem:[#allocation2 + $0x100] sm:$0xff] %vm1836, %v1773
    %1855 = vst.msk [vmem:[#allocation2 + $0x110] sm:$0xff] %vm1836, %v1775
    %1856 = vst.msk [vmem:[#allocation2 + $0x120] sm:$0xff] %vm1836, %v1777
    %1857 = vst.msk [vmem:[#allocation2 + $0x130] sm:$0xff] %vm1836, %v1779
    %1858 = vst.msk [vmem:[#allocation2 + $0x140] sm:$0xff] %vm1836, %v1781
    %1859 = vst.msk [vmem:[#allocation2 + $0x150] sm:$0xff] %vm1836, %v1783
    %1860 = vst.msk [vmem:[#allocation2 + $0x160] sm:$0xff] %vm1836, %v1785
    %1861 = vst.msk [vmem:[#allocation2 + $0x170] sm:$0xff] %vm1836, %v1787
    %1862 = vst.msk [vmem:[#allocation2 + $0x180] sm:$0xff] %vm1836, %v1789
    %1863 = vst.msk [vmem:[#allocation2 + $0x190] sm:$0xff] %vm1836, %v1791
    %1864 = vst.msk [vmem:[#allocation2 + $0x1a0] sm:$0xff] %vm1836, %v1793
    %1865 = vst.msk [vmem:[#allocation2 + $0x1b0] sm:$0xff] %vm1836, %v1795
    %1866 = vst.msk [vmem:[#allocation2 + $0x1c0] sm:$0xff] %vm1836, %v1797
    %1867 = vst.msk [vmem:[#allocation2 + $0x1d0] sm:$0xff] %vm1836, %v1799
    %1868 = vst.msk [vmem:[#allocation2 + $0x1e0] sm:$0xff] %vm1836, %v1801
    %1869 = vst.msk [vmem:[#allocation2 + $0x1f0] sm:$0x7f] %vm1852, %v1803
    %v1870 = vrot.slane %v1157, 2
    %v1871 = vrot.slane %v1158, 2
    %v1872 = vsel %vm583, %v1870, %v1871
    %v1873 = vrot.slane %v1159, 2
    %v1874 = vsel %vm583, %v1871, %v1873
    %v1875 = vrot.slane %v1160, 2
    %v1876 = vsel %vm583, %v1873, %v1875
    %v1877 = vrot.slane %v1161, 2
    %v1878 = vsel %vm583, %v1875, %v1877
    %v1879 = vrot.slane %v1162, 2
    %v1880 = vsel %vm583, %v1877, %v1879
    %v1881 = vrot.slane %v1163, 2
    %v1882 = vsel %vm583, %v1879, %v1881
    %v1883 = vrot.slane %v1164, 2
    %v1884 = vsel %vm583, %v1881, %v1883
    %v1885 = vrot.slane %v1165, 2
    %v1886 = vsel %vm583, %v1883, %v1885
    %v1887 = vrot.slane %v1166, 2
    %v1888 = vsel %vm583, %v1885, %v1887
    %v1889 = vrot.slane %v1167, 2
    %v1890 = vsel %vm583, %v1887, %v1889
    %v1891 = vrot.slane %v1168, 2
    %v1892 = vsel %vm583, %v1889, %v1891
    %v1893 = vrot.slane %v1169, 2
    %v1894 = vsel %vm583, %v1891, %v1893
    %v1895 = vrot.slane %v1170, 2
    %v1896 = vsel %vm583, %v1893, %v1895
    %v1897 = vrot.slane %v1171, 2
    %v1898 = vsel %vm583, %v1895, %v1897
    %v1899 = vrot.slane %v1172, 2
    %v1900 = vsel %vm583, %v1897, %v1899
    %v1901 = vrot.slane %v1173, 2
    %v1902 = vrot.slane %v1174, 2
    %v1903 = vsel %vm583, %v1901, %v1902
    %v1904 = vrot.slane %v1175, 2
    %v1905 = vsel %vm583, %v1902, %v1904
    %v1906 = vrot.slane %v1176, 2
    %v1907 = vsel %vm583, %v1904, %v1906
    %v1908 = vrot.slane %v1177, 2
    %v1909 = vsel %vm583, %v1906, %v1908
    %v1910 = vrot.slane %v1178, 2
    %v1911 = vsel %vm583, %v1908, %v1910
    %v1912 = vrot.slane %v1179, 2
    %v1913 = vsel %vm583, %v1910, %v1912
    %v1914 = vrot.slane %v1180, 2
    %v1915 = vsel %vm583, %v1912, %v1914
    %v1916 = vrot.slane %v1181, 2
    %v1917 = vsel %vm583, %v1914, %v1916
    %v1918 = vrot.slane %v1182, 2
    %v1919 = vsel %vm583, %v1916, %v1918
    %v1920 = vrot.slane %v1183, 2
    %v1921 = vsel %vm583, %v1918, %v1920
    %v1922 = vrot.slane %v1184, 2
    %v1923 = vsel %vm583, %v1920, %v1922
    %v1924 = vrot.slane %v1185, 2
    %v1925 = vsel %vm583, %v1922, %v1924
    %v1926 = vrot.slane %v1186, 2
    %v1927 = vsel %vm583, %v1924, %v1926
    %v1928 = vrot.slane %v1187, 2
    %v1929 = vsel %vm583, %v1926, %v1928
    %v1930 = vrot.slane %v1188, 2
    %v1931 = vsel %vm583, %v1928, %v1930
    %1932 = vrot.lane.b32.xlu0 %v1872, 64
    %v1933 = vpop.permute.xlu0 %1932
    %1934 = vrot.lane.b32.xlu0 %v1874, 64
    %v1935 = vpop.permute.xlu0 %1934
    %1936 = vrot.lane.b32.xlu0 %v1876, 64
    %v1937 = vpop.permute.xlu0 %1936
    %1938 = vrot.lane.b32.xlu0 %v1878, 64
    %v1939 = vpop.permute.xlu0 %1938
    %1940 = vrot.lane.b32.xlu0 %v1880, 64
    %v1941 = vpop.permute.xlu0 %1940
    %1942 = vrot.lane.b32.xlu0 %v1882, 64
    %v1943 = vpop.permute.xlu0 %1942
    %1944 = vrot.lane.b32.xlu0 %v1884, 64
    %v1945 = vpop.permute.xlu0 %1944
    %1946 = vrot.lane.b32.xlu0 %v1886, 64
    %v1947 = vpop.permute.xlu0 %1946
    %1948 = vrot.lane.b32.xlu0 %v1888, 64
    %v1949 = vpop.permute.xlu0 %1948
    %1950 = vrot.lane.b32.xlu0 %v1890, 64
    %v1951 = vpop.permute.xlu0 %1950
    %1952 = vrot.lane.b32.xlu0 %v1892, 64
    %v1953 = vpop.permute.xlu0 %1952
    %1954 = vrot.lane.b32.xlu0 %v1894, 64
    %v1955 = vpop.permute.xlu0 %1954
    %1956 = vrot.lane.b32.xlu0 %v1896, 64
    %v1957 = vpop.permute.xlu0 %1956
    %1958 = vrot.lane.b32.xlu0 %v1898, 64
    %v1959 = vpop.permute.xlu0 %1958
    %1960 = vrot.lane.b32.xlu0 %v1900, 64
    %v1961 = vpop.permute.xlu0 %1960
    %1962 = vrot.lane.b32.xlu0 %v1899, 64
    %v1963 = vpop.permute.xlu0 %1962
    %1964 = vrot.lane.b32.xlu0 %v1903, 64
    %v1965 = vpop.permute.xlu0 %1964
    %1966 = vrot.lane.b32.xlu0 %v1905, 64
    %v1967 = vpop.permute.xlu0 %1966
    %1968 = vrot.lane.b32.xlu0 %v1907, 64
    %v1969 = vpop.permute.xlu0 %1968
    %1970 = vrot.lane.b32.xlu0 %v1909, 64
    %v1971 = vpop.permute.xlu0 %1970
    %1972 = vrot.lane.b32.xlu0 %v1911, 64
    %v1973 = vpop.permute.xlu0 %1972
    %1974 = vrot.lane.b32.xlu0 %v1913, 64
    %v1975 = vpop.permute.xlu0 %1974
    %1976 = vrot.lane.b32.xlu0 %v1915, 64
    %v1977 = vpop.permute.xlu0 %1976
    %1978 = vrot.lane.b32.xlu0 %v1917, 64
    %v1979 = vpop.permute.xlu0 %1978
    %1980 = vrot.lane.b32.xlu0 %v1919, 64
    %v1981 = vpop.permute.xlu0 %1980
    %1982 = vrot.lane.b32.xlu0 %v1921, 64
    %v1983 = vpop.permute.xlu0 %1982
    %1984 = vrot.lane.b32.xlu0 %v1923, 64
    %v1985 = vpop.permute.xlu0 %1984
    %1986 = vrot.lane.b32.xlu0 %v1925, 64
    %v1987 = vpop.permute.xlu0 %1986
    %1988 = vrot.lane.b32.xlu0 %v1927, 64
    %v1989 = vpop.permute.xlu0 %1988
    %1990 = vrot.lane.b32.xlu0 %v1929, 64
    %v1991 = vpop.permute.xlu0 %1990
    %1992 = vrot.lane.b32.xlu0 %v1931, 64
    %v1993 = vpop.permute.xlu0 %1992
    %1994 = vrot.lane.b32.xlu0 %v1930, 64
    %v1995 = vpop.permute.xlu0 %1994
    %vm2028 = vcmask 654848
    %2029 = vst.msk [vmem:[#allocation2] sm:$0xff] %vm2028, %v1933
    %2030 = vst.msk [vmem:[#allocation2 + $0x10] sm:$0xff] %vm2028, %v1935
    %2031 = vst.msk [vmem:[#allocation2 + $0x20] sm:$0xff] %vm2028, %v1937
    %2032 = vst.msk [vmem:[#allocation2 + $0x30] sm:$0xff] %vm2028, %v1939
    %2033 = vst.msk [vmem:[#allocation2 + $0x40] sm:$0xff] %vm2028, %v1941
    %2034 = vst.msk [vmem:[#allocation2 + $0x50] sm:$0xff] %vm2028, %v1943
    %2035 = vst.msk [vmem:[#allocation2 + $0x60] sm:$0xff] %vm2028, %v1945
    %2036 = vst.msk [vmem:[#allocation2 + $0x70] sm:$0xff] %vm2028, %v1947
    %2037 = vst.msk [vmem:[#allocation2 + $0x80] sm:$0xff] %vm2028, %v1949
    %2038 = vst.msk [vmem:[#allocation2 + $0x90] sm:$0xff] %vm2028, %v1951
    %2039 = vst.msk [vmem:[#allocation2 + $0xa0] sm:$0xff] %vm2028, %v1953
    %2040 = vst.msk [vmem:[#allocation2 + $0xb0] sm:$0xff] %vm2028, %v1955
    %2041 = vst.msk [vmem:[#allocation2 + $0xc0] sm:$0xff] %vm2028, %v1957
    %2042 = vst.msk [vmem:[#allocation2 + $0xd0] sm:$0xff] %vm2028, %v1959
    %2043 = vst.msk [vmem:[#allocation2 + $0xe0] sm:$0xff] %vm2028, %v1961
    %vm2044 = vcmask 652800
    %2045 = vst.msk [vmem:[#allocation2 + $0xf0] sm:$0x3f] %vm2044, %v1963
    %2046 = vst.msk [vmem:[#allocation2 + $0x100] sm:$0xff] %vm2028, %v1965
    %2047 = vst.msk [vmem:[#allocation2 + $0x110] sm:$0xff] %vm2028, %v1967
    %2048 = vst.msk [vmem:[#allocation2 + $0x120] sm:$0xff] %vm2028, %v1969
    %2049 = vst.msk [vmem:[#allocation2 + $0x130] sm:$0xff] %vm2028, %v1971
    %2050 = vst.msk [vmem:[#allocation2 + $0x140] sm:$0xff] %vm2028, %v1973
    %2051 = vst.msk [vmem:[#allocation2 + $0x150] sm:$0xff] %vm2028, %v1975
    %2052 = vst.msk [vmem:[#allocation2 + $0x160] sm:$0xff] %vm2028, %v1977
    %2053 = vst.msk [vmem:[#allocation2 + $0x170] sm:$0xff] %vm2028, %v1979
    %2054 = vst.msk [vmem:[#allocation2 + $0x180] sm:$0xff] %vm2028, %v1981
    %2055 = vst.msk [vmem:[#allocation2 + $0x190] sm:$0xff] %vm2028, %v1983
    %2056 = vst.msk [vmem:[#allocation2 + $0x1a0] sm:$0xff] %vm2028, %v1985
    %2057 = vst.msk [vmem:[#allocation2 + $0x1b0] sm:$0xff] %vm2028, %v1987
    %2058 = vst.msk [vmem:[#allocation2 + $0x1c0] sm:$0xff] %vm2028, %v1989
    %2059 = vst.msk [vmem:[#allocation2 + $0x1d0] sm:$0xff] %vm2028, %v1991
    %2060 = vst.msk [vmem:[#allocation2 + $0x1e0] sm:$0xff] %vm2028, %v1993
    %2061 = vst.msk [vmem:[#allocation2 + $0x1f0] sm:$0x3f] %vm2044, %v1995
    %v2062 = vld [vmem:[#allocation2] sm:$0xff]
    %v2063 = vld [vmem:[#allocation2 + $0x10] sm:$0xff]
    %v2064 = vld [vmem:[#allocation2 + $0x20] sm:$0xff]
    %v2065 = vld [vmem:[#allocation2 + $0x30] sm:$0xff]
    %v2066 = vld [vmem:[#allocation2 + $0x40] sm:$0xff]
    %v2067 = vld [vmem:[#allocation2 + $0x50] sm:$0xff]
    %v2068 = vld [vmem:[#allocation2 + $0x60] sm:$0xff]
    %v2069 = vld [vmem:[#allocation2 + $0x70] sm:$0xff]
    %v2070 = vld [vmem:[#allocation2 + $0x80] sm:$0xff]
    %v2071 = vld [vmem:[#allocation2 + $0x90] sm:$0xff]
    %v2072 = vld [vmem:[#allocation2 + $0xa0] sm:$0xff]
    %v2073 = vld [vmem:[#allocation2 + $0xb0] sm:$0xff]
    %v2074 = vld [vmem:[#allocation2 + $0xc0] sm:$0xff]
    %v2075 = vld [vmem:[#allocation2 + $0xd0] sm:$0xff]
    %v2076 = vld [vmem:[#allocation2 + $0xe0] sm:$0xff]
    %v2077 = vld [vmem:[#allocation2 + $0xf0] sm:$0xff]
    %v2078 = vld [vmem:[#allocation2 + $0x100] sm:$0xff]
    %v2079 = vld [vmem:[#allocation2 + $0x110] sm:$0xff]
    %v2080 = vld [vmem:[#allocation2 + $0x120] sm:$0xff]
    %v2081 = vld [vmem:[#allocation2 + $0x130] sm:$0xff]
    %v2082 = vld [vmem:[#allocation2 + $0x140] sm:$0xff]
    %v2083 = vld [vmem:[#allocation2 + $0x150] sm:$0xff]
    %v2084 = vld [vmem:[#allocation2 + $0x160] sm:$0xff]
    %v2085 = vld [vmem:[#allocation2 + $0x170] sm:$0xff]
    %v2086 = vld [vmem:[#allocation2 + $0x180] sm:$0xff]
    %v2087 = vld [vmem:[#allocation2 + $0x190] sm:$0xff]
    %v2088 = vld [vmem:[#allocation2 + $0x1a0] sm:$0xff]
    %v2089 = vld [vmem:[#allocation2 + $0x1b0] sm:$0xff]
    %v2090 = vld [vmem:[#allocation2 + $0x1c0] sm:$0xff]
    %v2091 = vld [vmem:[#allocation2 + $0x1d0] sm:$0xff]
    %v2092 = vld [vmem:[#allocation2 + $0x1e0] sm:$0xff]
    %v2093 = vld [vmem:[#allocation2 + $0x1f0] sm:$0xff]
    %v2094 = vld [vmem:[#allocation8 + $0x10] sm:$0xff]
    %v2095 = vld [vmem:[#allocation8 + $0x18] sm:$0xff]
    %v2096 = vld [vmem:[#allocation8 + $0x20] sm:$0xff]
    %v2097 = vld [vmem:[#allocation8 + $0x28] sm:$0xff]
    %v2098 = vld [vmem:[#allocation8 + $0x30] sm:$0xff]
    %v2099 = vld [vmem:[#allocation8 + $0x38] sm:$0xff]
    %v2100 = vld [vmem:[#allocation8 + $0x40] sm:$0xff]
    %v2101 = vld [vmem:[#allocation8 + $0x48] sm:$0xff]
    %v2102 = vld [vmem:[#allocation8 + $0x50] sm:$0xff]
    %v2103 = vld [vmem:[#allocation8 + $0x58] sm:$0xff]
    %v2104 = vld [vmem:[#allocation8 + $0x60] sm:$0x1]
    %v2105 = vlaneseq
    %v2106 = vshrl.u32 %v2105, 7
    %v2107 = vsub.s32 0, %v2106
    %v2108 = vrot.slane %v2104, %v2107
    %vm2109 = vcmask 654336
    %v2111 = vsel %vm2109, %v2062, 0
    %v2114 = vsel %vm2109, %v2063, 0
    %v2117 = vsel %vm2109, %v2064, 0
    %v2120 = vsel %vm2109, %v2065, 0
    %v2123 = vsel %vm2109, %v2066, 0
    %v2126 = vsel %vm2109, %v2067, 0
    %v2129 = vsel %vm2109, %v2068, 0
    %v2132 = vsel %vm2109, %v2069, 0
    %v2135 = vsel %vm2109, %v2070, 0
    %v2138 = vsel %vm2109, %v2071, 0
    %v2141 = vsel %vm2109, %v2072, 0
    %v2144 = vsel %vm2109, %v2073, 0
    %v2147 = vsel %vm2109, %v2074, 0
    %v2150 = vsel %vm2109, %v2075, 0
    %v2153 = vsel %vm2109, %v2076, 0
    %v2156 = vsel %vm2109, %v2077, 0
    %v2159 = vsel %vm2109, %v2078, 0
    %v2162 = vsel %vm2109, %v2079, 0
    %v2165 = vsel %vm2109, %v2080, 0
    %v2168 = vsel %vm2109, %v2081, 0
    %v2171 = vsel %vm2109, %v2082, 0
    %v2174 = vsel %vm2109, %v2083, 0
    %v2177 = vsel %vm2109, %v2084, 0
    %v2180 = vsel %vm2109, %v2085, 0
    %v2183 = vsel %vm2109, %v2086, 0
    %v2186 = vsel %vm2109, %v2087, 0
    %v2189 = vsel %vm2109, %v2088, 0
    %v2192 = vsel %vm2109, %v2089, 0
    %v2195 = vsel %vm2109, %v2090, 0
    %v2198 = vsel %vm2109, %v2091, 0
    %v2201 = vsel %vm2109, %v2092, 0
    %v2204 = vsel %vm2109, %v2093, 0
    %2206 = vmatprep.subr.mxu0 0.0
    %2207 = vmatpush1.msra.mxu0 %v2094
    %2208 = vmatprep.subr.mxu0 0.0
    %2209 = vmatpush1.msra.mxu0 %v2095
    %2210 = vmatprep.subr.mxu0 0.0
    %2211 = vmatpush1.msra.mxu0 %v2096
    %2212 = vmatprep.subr.mxu0 0.0
    %2213 = vmatpush1.msra.mxu0 %v2097
    %2214 = vmatprep.subr.mxu0 0.0
    %2215 = vmatpush1.msra.mxu0 %v2098
    %2216 = vmatprep.subr.mxu0 0.0
    %2217 = vmatpush1.msra.mxu0 %v2099
    %2218 = vmatprep.subr.mxu0 0.0
    %2219 = vmatpush1.msra.mxu0 %v2100
    %2220 = vmatprep.subr.mxu0 0.0
    %2221 = vmatpush1.msra.mxu0 %v2101
    %2222 = vmatprep.subr.mxu0 0.0
    %2223 = vmatpush1.msra.mxu0 %v2102
    %2224 = vmatprep.subr.mxu0 0.0
    %2225 = vmatpush1.msra.mxu0 %v2103
    %2226 = vmatprep.subr.mxu0 0.0
    %2227 = vmatpush1.msra.mxu0 0.0
    %2228 = vmatprep.subr.mxu0 0.0
    %2229 = vmatpush1.msra.mxu0 0.0
    %2230 = vmatprep.subr.mxu0 0.0
    %2231 = vmatpush1.msra.mxu0 0.0
    %2232 = vmatprep.subr.mxu0 0.0
    %2233 = vmatpush1.msra.mxu0 0.0
    %2234 = vmatprep.subr.mxu0 0.0
    %2235 = vmatpush1.msra.mxu0 0.0
    %2236 = vmatprep.subr.mxu0 0.0
    %2237 = vmatpush1.msra.mxu0 0.0
    %2238 = vmatprep.subr.mxu0 0.0
    %2239 = vmatpush1.msra.mxu0 0.0
    %2240 = vmatprep.subr.mxu0 0.0
    %2241 = vmatpush1.msra.mxu0 0.0
    %2242 = vmatprep.subr.mxu0 0.0
    %2243 = vmatpush1.msra.mxu0 0.0
    %2244 = vmatprep.subr.mxu0 0.0
    %2245 = vmatpush1.msra.mxu0 0.0
    %2246 = vmatprep.subr.mxu0 0.0
    %2247 = vmatpush1.msra.mxu0 0.0
    %2248 = vmatprep.subr.mxu0 0.0
    %2249 = vmatpush1.msra.mxu0 0.0
    %2250 = vmatprep.subr.mxu0 0.0
    %2251 = vmatpush1.msra.mxu0 0.0
    %2252 = vmatprep.subr.mxu0 0.0
    %2253 = vmatpush1.msra.mxu0 0.0
    %2254 = vmatprep.subr.mxu0 0.0
    %2255 = vmatpush1.msra.mxu0 0.0
    %2256 = vmatprep.subr.mxu0 0.0
    %2257 = vmatpush1.msra.mxu0 0.0
    %2258 = vmatprep.subr.mxu0 0.0
    %2259 = vmatpush1.msra.mxu0 0.0
    %2260 = vmatprep.subr.mxu0 0.0
    %2261 = vmatpush1.msra.mxu0 0.0
    %2262 = vmatprep.subr.mxu0 0.0
    %2263 = vmatpush1.msra.mxu0 0.0
    %2264 = vmatprep.subr.mxu0 0.0
    %2265 = vmatpush1.msra.mxu0 0.0
    %2266 = vmatprep.subr.mxu0 0.0
    %2267 = vmatpush1.msra.mxu0 0.0
    %2268 = vmatprep.subr.mxu0 0.0
    %2269 = vmatpush1.msra.mxu0 0.0
    %2270 = vmatprep.mubr.f32.mxu0 0.0
    %2271 = vmatmul.mubr.f32.gmra.mrb[0].mxu0 %v2111
    %v2272 = vpop.f32.mrb[0].mxu0
    %v2273 = vadd.f32 %v2108, %v2272
    %v2274 = vpop.f32.mrb[0].mxu0
    %2275 = vmatprep.mubr.f32.mxu0 0.0
    %2276 = vmatmul.mubr.f32.gmra.mrb[0].mxu0 %v2114
    %v2277 = vpop.f32.mrb[0].mxu0
    %v2278 = vadd.f32 %v2108, %v2277
    %v2279 = vpop.f32.mrb[0].mxu0
    %2280 = vmatprep.mubr.f32.mxu0 0.0
    %2281 = vmatmul.mubr.f32.gmra.mrb[0].mxu0 %v2117
    %v2282 = vpop.f32.mrb[0].mxu0
    %v2283 = vadd.f32 %v2108, %v2282
    %v2284 = vpop.f32.mrb[0].mxu0
    %2285 = vmatprep.mubr.f32.mxu0 0.0
    %2286 = vmatmul.mubr.f32.gmra.mrb[0].mxu0 %v2120
    %v2287 = vpop.f32.mrb[0].mxu0
    %v2288 = vadd.f32 %v2108, %v2287
    %v2289 = vpop.f32.mrb[0].mxu0
    %2290 = vmatprep.mubr.f32.mxu0 0.0
    %2291 = vmatmul.mubr.f32.gmra.mrb[0].mxu0 %v2123
    %v2292 = vpop.f32.mrb[0].mxu0
    %v2293 = vadd.f32 %v2108, %v2292
    %v2294 = vpop.f32.mrb[0].mxu0
    %2295 = vmatprep.mubr.f32.mxu0 0.0
    %2296 = vmatmul.mubr.f32.gmra.mrb[0].mxu0 %v2126
    %v2297 = vpop.f32.mrb[0].mxu0
    %v2298 = vadd.f32 %v2108, %v2297
    %v2299 = vpop.f32.mrb[0].mxu0
    %2300 = vmatprep.mubr.f32.mxu0 0.0
    %2301 = vmatmul.mubr.f32.gmra.mrb[0].mxu0 %v2129
    %v2302 = vpop.f32.mrb[0].mxu0
    %v2303 = vadd.f32 %v2108, %v2302
    %v2304 = vpop.f32.mrb[0].mxu0
    %2305 = vmatprep.mubr.f32.mxu0 0.0
    %2306 = vmatmul.mubr.f32.gmra.mrb[0].mxu0 %v2132
    %v2307 = vpop.f32.mrb[0].mxu0
    %v2308 = vadd.f32 %v2108, %v2307
    %v2309 = vpop.f32.mrb[0].mxu0
    %2310 = vmatprep.mubr.f32.mxu0 0.0
    %2311 = vmatmul.mubr.f32.gmra.mrb[0].mxu0 %v2135
    %v2312 = vpop.f32.mrb[0].mxu0
    %v2313 = vadd.f32 %v2108, %v2312
    %v2314 = vpop.f32.mrb[0].mxu0
    %2315 = vmatprep.mubr.f32.mxu0 0.0
    %2316 = vmatmul.mubr.f32.gmra.mrb[0].mxu0 %v2138
    %v2317 = vpop.f32.mrb[0].mxu0
    %v2318 = vadd.f32 %v2108, %v2317
    %v2319 = vpop.f32.mrb[0].mxu0
    %2320 = vmatprep.mubr.f32.mxu0 0.0
    %2321 = vmatmul.mubr.f32.gmra.mrb[0].mxu0 %v2141
    %v2322 = vpop.f32.mrb[0].mxu0
    %v2323 = vadd.f32 %v2108, %v2322
    %v2324 = vpop.f32.mrb[0].mxu0
    %2325 = vmatprep.mubr.f32.mxu0 0.0
    %2326 = vmatmul.mubr.f32.gmra.mrb[0].mxu0 %v2144
    %v2327 = vpop.f32.mrb[0].mxu0
    %v2328 = vadd.f32 %v2108, %v2327
    %v2329 = vpop.f32.mrb[0].mxu0
    %2330 = vmatprep.mubr.f32.mxu0 0.0
    %2331 = vmatmul.mubr.f32.gmra.mrb[0].mxu0 %v2147
    %v2332 = vpop.f32.mrb[0].mxu0
    %v2333 = vadd.f32 %v2108, %v2332
    %v2334 = vpop.f32.mrb[0].mxu0
    %2335 = vmatprep.mubr.f32.mxu0 0.0
    %2336 = vmatmul.mubr.f32.gmra.mrb[0].mxu0 %v2150
    %v2337 = vpop.f32.mrb[0].mxu0
    %v2338 = vadd.f32 %v2108, %v2337
    %v2339 = vpop.f32.mrb[0].mxu0
    %2340 = vmatprep.mubr.f32.mxu0 0.0
    %2341 = vmatmul.mubr.f32.gmra.mrb[0].mxu0 %v2153
    %v2342 = vpop.f32.mrb[0].mxu0
    %v2343 = vadd.f32 %v2108, %v2342
    %v2344 = vpop.f32.mrb[0].mxu0
    %2345 = vmatprep.mubr.f32.mxu0 0.0
    %2346 = vmatmul.mubr.f32.gmra.mrb[0].mxu0 %v2156
    %v2347 = vpop.f32.mrb[0].mxu0
    %v2348 = vadd.f32 %v2108, %v2347
    %v2349 = vpop.f32.mrb[0].mxu0
    %2350 = vmatprep.mubr.f32.mxu0 0.0
    %2351 = vmatmul.mubr.f32.gmra.mrb[0].mxu0 %v2159
    %v2352 = vpop.f32.mrb[0].mxu0
    %v2353 = vadd.f32 %v2108, %v2352
    %v2354 = vpop.f32.mrb[0].mxu0
    %2355 = vmatprep.mubr.f32.mxu0 0.0
    %2356 = vmatmul.mubr.f32.gmra.mrb[0].mxu0 %v2162
    %v2357 = vpop.f32.mrb[0].mxu0
    %v2358 = vadd.f32 %v2108, %v2357
    %v2359 = vpop.f32.mrb[0].mxu0
    %2360 = vmatprep.mubr.f32.mxu0 0.0
    %2361 = vmatmul.mubr.f32.gmra.mrb[0].mxu0 %v2165
    %v2362 = vpop.f32.mrb[0].mxu0
    %v2363 = vadd.f32 %v2108, %v2362
    %v2364 = vpop.f32.mrb[0].mxu0
    %2365 = vmatprep.mubr.f32.mxu0 0.0
    %2366 = vmatmul.mubr.f32.gmra.mrb[0].mxu0 %v2168
    %v2367 = vpop.f32.mrb[0].mxu0
    %v2368 = vadd.f32 %v2108, %v2367
    %v2369 = vpop.f32.mrb[0].mxu0
    %2370 = vmatprep.mubr.f32.mxu0 0.0
    %2371 = vmatmul.mubr.f32.gmra.mrb[0].mxu0 %v2171
    %v2372 = vpop.f32.mrb[0].mxu0
    %v2373 = vadd.f32 %v2108, %v2372
    %v2374 = vpop.f32.mrb[0].mxu0
    %2375 = vmatprep.mubr.f32.mxu0 0.0
    %2376 = vmatmul.mubr.f32.gmra.mrb[0].mxu0 %v2174
    %v2377 = vpop.f32.mrb[0].mxu0
    %v2378 = vadd.f32 %v2108, %v2377
    %v2379 = vpop.f32.mrb[0].mxu0
    %2380 = vmatprep.mubr.f32.mxu0 0.0
    %2381 = vmatmul.mubr.f32.gmra.mrb[0].mxu0 %v2177
    %v2382 = vpop.f32.mrb[0].mxu0
    %v2383 = vadd.f32 %v2108, %v2382
    %v2384 = vpop.f32.mrb[0].mxu0
    %2385 = vmatprep.mubr.f32.mxu0 0.0
    %2386 = vmatmul.mubr.f32.gmra.mrb[0].mxu0 %v2180
    %v2387 = vpop.f32.mrb[0].mxu0
    %v2388 = vadd.f32 %v2108, %v2387
    %v2389 = vpop.f32.mrb[0].mxu0
    %2390 = vmatprep.mubr.f32.mxu0 0.0
    %2391 = vmatmul.mubr.f32.gmra.mrb[0].mxu0 %v2183
    %v2392 = vpop.f32.mrb[0].mxu0
    %v2393 = vadd.f32 %v2108, %v2392
    %v2394 = vpop.f32.mrb[0].mxu0
    %2395 = vmatprep.mubr.f32.mxu0 0.0
    %2396 = vmatmul.mubr.f32.gmra.mrb[0].mxu0 %v2186
    %v2397 = vpop.f32.mrb[0].mxu0
    %v2398 = vadd.f32 %v2108, %v2397
    %v2399 = vpop.f32.mrb[0].mxu0
    %2400 = vmatprep.mubr.f32.mxu0 0.0
    %2401 = vmatmul.mubr.f32.gmra.mrb[0].mxu0 %v2189
    %v2402 = vpop.f32.mrb[0].mxu0
    %v2403 = vadd.f32 %v2108, %v2402
    %v2404 = vpop.f32.mrb[0].mxu0
    %2405 = vmatprep.mubr.f32.mxu0 0.0
    %2406 = vmatmul.mubr.f32.gmra.mrb[0].mxu0 %v2192
    %v2407 = vpop.f32.mrb[0].mxu0
    %v2408 = vadd.f32 %v2108, %v2407
    %v2409 = vpop.f32.mrb[0].mxu0
    %2410 = vmatprep.mubr.f32.mxu0 0.0
    %2411 = vmatmul.mubr.f32.gmra.mrb[0].mxu0 %v2195
    %v2412 = vpop.f32.mrb[0].mxu0
    %v2413 = vadd.f32 %v2108, %v2412
    %v2414 = vpop.f32.mrb[0].mxu0
    %2415 = vmatprep.mubr.f32.mxu0 0.0
    %2416 = vmatmul.mubr.f32.gmra.mrb[0].mxu0 %v2198
    %v2417 = vpop.f32.mrb[0].mxu0
    %v2418 = vadd.f32 %v2108, %v2417
    %v2419 = vpop.f32.mrb[0].mxu0
    %2420 = vmatprep.mubr.f32.mxu0 0.0
    %2421 = vmatmul.mubr.f32.gmra.mrb[0].mxu0 %v2201
    %v2422 = vpop.f32.mrb[0].mxu0
    %v2423 = vadd.f32 %v2108, %v2422
    %v2424 = vpop.f32.mrb[0].mxu0
    %2425 = vmatprep.mubr.f32.mxu0 0.0
    %2426 = vmatmul.mubr.f32.gmra.mrb[0].mxu0 %v2204
    %v2427 = vpop.f32.mrb[0].mxu0
    %v2428 = vadd.f32 %v2108, %v2427
    %v2429 = vpop.f32.mrb[0].mxu0
    %2430 = vdwg.mxu0
    %v2431 = vmax.f32 %v2273, 0.0
    %v2432 = vmax.f32 %v2278, 0.0
    %v2433 = vmax.f32 %v2283, 0.0
    %v2434 = vmax.f32 %v2288, 0.0
    %v2435 = vmax.f32 %v2293, 0.0
    %v2436 = vmax.f32 %v2298, 0.0
    %v2437 = vmax.f32 %v2303, 0.0
    %v2438 = vmax.f32 %v2308, 0.0
    %v2439 = vmax.f32 %v2313, 0.0
    %v2440 = vmax.f32 %v2318, 0.0
    %v2441 = vmax.f32 %v2323, 0.0
    %v2442 = vmax.f32 %v2328, 0.0
    %v2443 = vmax.f32 %v2333, 0.0
    %v2444 = vmax.f32 %v2338, 0.0
    %v2445 = vmax.f32 %v2343, 0.0
    %v2446 = vmax.f32 %v2348, 0.0
    %v2447 = vmax.f32 %v2353, 0.0
    %v2448 = vmax.f32 %v2358, 0.0
    %v2449 = vmax.f32 %v2363, 0.0
    %v2450 = vmax.f32 %v2368, 0.0
    %v2451 = vmax.f32 %v2373, 0.0
    %v2452 = vmax.f32 %v2378, 0.0
    %v2453 = vmax.f32 %v2383, 0.0
    %v2454 = vmax.f32 %v2388, 0.0
    %v2455 = vmax.f32 %v2393, 0.0
    %v2456 = vmax.f32 %v2398, 0.0
    %v2457 = vmax.f32 %v2403, 0.0
    %v2458 = vmax.f32 %v2408, 0.0
    %v2459 = vmax.f32 %v2413, 0.0
    %v2460 = vmax.f32 %v2418, 0.0
    %v2461 = vmax.f32 %v2423, 0.0
    %v2462 = vmax.f32 %v2428, 0.0
    %2463 = vst [vmem:[#allocation2] sm:$0x3] 0.0
    %vm2464 = vcmask 254976
    %2465 = vst.msk [vmem:[#allocation2 + $0x8] sm:$0x3] %vm2464, 0.0
    %2466 = vst [vmem:[#allocation2 + $0x100] sm:$0x3] 0.0
    %2467 = vst.msk [vmem:[#allocation2 + $0x108] sm:$0x3] %vm2464, 0.0
    %2468 = vst [vmem:[#allocation2 + $0xf0] sm:$0xc0] 0.0
    %vm2469 = vcmask 261126
    %2470 = vst.msk [vmem:[#allocation2 + $0xf8] sm:$0xc0] %vm2469, 0.0
    %2471 = vst [vmem:[#allocation2 + $0x1f0] sm:$0xc0] 0.0
    %2472 = vst.msk [vmem:[#allocation2 + $0x1f8] sm:$0xc0] %vm2469, 0.0
    %v2505 = vrot.slane %v2431, 6
    %v2506 = vrot.slane %v2432, 6
    %v2507 = vsel %vm1227, %v2505, %v2506
    %v2508 = vrot.slane %v2433, 6
    %v2509 = vsel %vm1227, %v2506, %v2508
    %v2510 = vrot.slane %v2434, 6
    %v2511 = vsel %vm1227, %v2508, %v2510
    %v2512 = vrot.slane %v2435, 6
    %v2513 = vsel %vm1227, %v2510, %v2512
    %v2514 = vrot.slane %v2436, 6
    %v2515 = vsel %vm1227, %v2512, %v2514
    %v2516 = vrot.slane %v2437, 6
    %v2517 = vsel %vm1227, %v2514, %v2516
    %v2518 = vrot.slane %v2438, 6
    %v2519 = vsel %vm1227, %v2516, %v2518
    %v2520 = vrot.slane %v2439, 6
    %v2521 = vsel %vm1227, %v2518, %v2520
    %v2522 = vrot.slane %v2440, 6
    %v2523 = vsel %vm1227, %v2520, %v2522
    %v2524 = vrot.slane %v2441, 6
    %v2525 = vsel %vm1227, %v2522, %v2524
    %v2526 = vrot.slane %v2442, 6
    %v2527 = vsel %vm1227, %v2524, %v2526
    %v2528 = vrot.slane %v2443, 6
    %v2529 = vsel %vm1227, %v2526, %v2528
    %v2530 = vrot.slane %v2444, 6
    %v2531 = vsel %vm1227, %v2528, %v2530
    %v2532 = vrot.slane %v2445, 6
    %v2533 = vsel %vm1227, %v2530, %v2532
    %v2534 = vrot.slane %v2446, 6
    %v2535 = vsel %vm1227, %v2532, %v2534
    %v2536 = vrot.slane %v2447, 6
    %v2537 = vrot.slane %v2448, 6
    %v2538 = vsel %vm1227, %v2536, %v2537
    %v2539 = vrot.slane %v2449, 6
    %v2540 = vsel %vm1227, %v2537, %v2539
    %v2541 = vrot.slane %v2450, 6
    %v2542 = vsel %vm1227, %v2539, %v2541
    %v2543 = vrot.slane %v2451, 6
    %v2544 = vsel %vm1227, %v2541, %v2543
    %v2545 = vrot.slane %v2452, 6
    %v2546 = vsel %vm1227, %v2543, %v2545
    %v2547 = vrot.slane %v2453, 6
    %v2548 = vsel %vm1227, %v2545, %v2547
    %v2549 = vrot.slane %v2454, 6
    %v2550 = vsel %vm1227, %v2547, %v2549
    %v2551 = vrot.slane %v2455, 6
    %v2552 = vsel %vm1227, %v2549, %v2551
    %v2553 = vrot.slane %v2456, 6
    %v2554 = vsel %vm1227, %v2551, %v2553
    %v2555 = vrot.slane %v2457, 6
    %v2556 = vsel %vm1227, %v2553, %v2555
    %v2557 = vrot.slane %v2458, 6
    %v2558 = vsel %vm1227, %v2555, %v2557
    %v2559 = vrot.slane %v2459, 6
    %v2560 = vsel %vm1227, %v2557, %v2559
    %v2561 = vrot.slane %v2460, 6
    %v2562 = vsel %vm1227, %v2559, %v2561
    %v2563 = vrot.slane %v2461, 6
    %v2564 = vsel %vm1227, %v2561, %v2563
    %v2565 = vrot.slane %v2462, 6
    %v2566 = vsel %vm1227, %v2563, %v2565
    %vm2599 = vcmask 261122
    %2600 = vst.msk [vmem:[#allocation2] sm:$0xfc] %vm2599, %v2505
    %vm2601 = vcmask 261120
    %2602 = vst.msk [vmem:[#allocation2 + $0x10] sm:$0xff] %vm2601, %v2507
    %2603 = vst.msk [vmem:[#allocation2 + $0x20] sm:$0xff] %vm2601, %v2509
    %2604 = vst.msk [vmem:[#allocation2 + $0x30] sm:$0xff] %vm2601, %v2511
    %2605 = vst.msk [vmem:[#allocation2 + $0x40] sm:$0xff] %vm2601, %v2513
    %2606 = vst.msk [vmem:[#allocation2 + $0x50] sm:$0xff] %vm2601, %v2515
    %2607 = vst.msk [vmem:[#allocation2 + $0x60] sm:$0xff] %vm2601, %v2517
    %2608 = vst.msk [vmem:[#allocation2 + $0x70] sm:$0xff] %vm2601, %v2519
    %2609 = vst.msk [vmem:[#allocation2 + $0x80] sm:$0xff] %vm2601, %v2521
    %2610 = vst.msk [vmem:[#allocation2 + $0x90] sm:$0xff] %vm2601, %v2523
    %2611 = vst.msk [vmem:[#allocation2 + $0xa0] sm:$0xff] %vm2601, %v2525
    %2612 = vst.msk [vmem:[#allocation2 + $0xb0] sm:$0xff] %vm2601, %v2527
    %2613 = vst.msk [vmem:[#allocation2 + $0xc0] sm:$0xff] %vm2601, %v2529
    %2614 = vst.msk [vmem:[#allocation2 + $0xd0] sm:$0xff] %vm2601, %v2531
    %2615 = vst.msk [vmem:[#allocation2 + $0xe0] sm:$0xff] %vm2601, %v2533
    %2616 = vst.msk [vmem:[#allocation2 + $0xf0] sm:$0xff] %vm2601, %v2535
    %2617 = vst.msk [vmem:[#allocation2 + $0x100] sm:$0xfc] %vm2599, %v2536
    %2618 = vst.msk [vmem:[#allocation2 + $0x110] sm:$0xff] %vm2601, %v2538
    %2619 = vst.msk [vmem:[#allocation2 + $0x120] sm:$0xff] %vm2601, %v2540
    %2620 = vst.msk [vmem:[#allocation2 + $0x130] sm:$0xff] %vm2601, %v2542
    %2621 = vst.msk [vmem:[#allocation2 + $0x140] sm:$0xff] %vm2601, %v2544
    %2622 = vst.msk [vmem:[#allocation2 + $0x150] sm:$0xff] %vm2601, %v2546
    %2623 = vst.msk [vmem:[#allocation2 + $0x160] sm:$0xff] %vm2601, %v2548
    %2624 = vst.msk [vmem:[#allocation2 + $0x170] sm:$0xff] %vm2601, %v2550
    %2625 = vst.msk [vmem:[#allocation2 + $0x180] sm:$0xff] %vm2601, %v2552
    %2626 = vst.msk [vmem:[#allocation2 + $0x190] sm:$0xff] %vm2601, %v2554
    %2627 = vst.msk [vmem:[#allocation2 + $0x1a0] sm:$0xff] %vm2601, %v2556
    %2628 = vst.msk [vmem:[#allocation2 + $0x1b0] sm:$0xff] %vm2601, %v2558
    %2629 = vst.msk [vmem:[#allocation2 + $0x1c0] sm:$0xff] %vm2601, %v2560
    %2630 = vst.msk [vmem:[#allocation2 + $0x1d0] sm:$0xff] %vm2601, %v2562
    %2631 = vst.msk [vmem:[#allocation2 + $0x1e0] sm:$0xff] %vm2601, %v2564
    %2632 = vst.msk [vmem:[#allocation2 + $0x1f0] sm:$0xff] %vm2601, %v2566
    %v2633 = vrot.slane %v2431, 7
    %v2634 = vrot.slane %v2432, 7
    %v2635 = vsel %vm1356, %v2633, %v2634
    %v2636 = vrot.slane %v2433, 7
    %v2637 = vsel %vm1356, %v2634, %v2636
    %v2638 = vrot.slane %v2434, 7
    %v2639 = vsel %vm1356, %v2636, %v2638
    %v2640 = vrot.slane %v2435, 7
    %v2641 = vsel %vm1356, %v2638, %v2640
    %v2642 = vrot.slane %v2436, 7
    %v2643 = vsel %vm1356, %v2640, %v2642
    %v2644 = vrot.slane %v2437, 7
    %v2645 = vsel %vm1356, %v2642, %v2644
    %v2646 = vrot.slane %v2438, 7
    %v2647 = vsel %vm1356, %v2644, %v2646
    %v2648 = vrot.slane %v2439, 7
    %v2649 = vsel %vm1356, %v2646, %v2648
    %v2650 = vrot.slane %v2440, 7
    %v2651 = vsel %vm1356, %v2648, %v2650
    %v2652 = vrot.slane %v2441, 7
    %v2653 = vsel %vm1356, %v2650, %v2652
    %v2654 = vrot.slane %v2442, 7
    %v2655 = vsel %vm1356, %v2652, %v2654
    %v2656 = vrot.slane %v2443, 7
    %v2657 = vsel %vm1356, %v2654, %v2656
    %v2658 = vrot.slane %v2444, 7
    %v2659 = vsel %vm1356, %v2656, %v2658
    %v2660 = vrot.slane %v2445, 7
    %v2661 = vsel %vm1356, %v2658, %v2660
    %v2662 = vrot.slane %v2446, 7
    %v2663 = vsel %vm1356, %v2660, %v2662
    %v2664 = vrot.slane %v2447, 7
    %v2665 = vrot.slane %v2448, 7
    %v2666 = vsel %vm1356, %v2664, %v2665
    %v2667 = vrot.slane %v2449, 7
    %v2668 = vsel %vm1356, %v2665, %v2667
    %v2669 = vrot.slane %v2450, 7
    %v2670 = vsel %vm1356, %v2667, %v2669
    %v2671 = vrot.slane %v2451, 7
    %v2672 = vsel %vm1356, %v2669, %v2671
    %v2673 = vrot.slane %v2452, 7
    %v2674 = vsel %vm1356, %v2671, %v2673
    %v2675 = vrot.slane %v2453, 7
    %v2676 = vsel %vm1356, %v2673, %v2675
    %v2677 = vrot.slane %v2454, 7
    %v2678 = vsel %vm1356, %v2675, %v2677
    %v2679 = vrot.slane %v2455, 7
    %v2680 = vsel %vm1356, %v2677, %v2679
    %v2681 = vrot.slane %v2456, 7
    %v2682 = vsel %vm1356, %v2679, %v2681
    %v2683 = vrot.slane %v2457, 7
    %v2684 = vsel %vm1356, %v2681, %v2683
    %v2685 = vrot.slane %v2458, 7
    %v2686 = vsel %vm1356, %v2683, %v2685
    %v2687 = vrot.slane %v2459, 7
    %v2688 = vsel %vm1356, %v2685, %v2687
    %v2689 = vrot.slane %v2460, 7
    %v2690 = vsel %vm1356, %v2687, %v2689
    %v2691 = vrot.slane %v2461, 7
    %v2692 = vsel %vm1356, %v2689, %v2691
    %v2693 = vrot.slane %v2462, 7
    %v2694 = vsel %vm1356, %v2691, %v2693
    %2695 = vrot.lane.b32.xlu0 %v2633, 32
    %v2696 = vpop.permute.xlu0 %2695
    %2697 = vrot.lane.b32.xlu0 %v2635, 32
    %v2698 = vpop.permute.xlu0 %2697
    %2699 = vrot.lane.b32.xlu0 %v2637, 32
    %v2700 = vpop.permute.xlu0 %2699
    %2701 = vrot.lane.b32.xlu0 %v2639, 32
    %v2702 = vpop.permute.xlu0 %2701
    %2703 = vrot.lane.b32.xlu0 %v2641, 32
    %v2704 = vpop.permute.xlu0 %2703
    %2705 = vrot.lane.b32.xlu0 %v2643, 32
    %v2706 = vpop.permute.xlu0 %2705
    %2707 = vrot.lane.b32.xlu0 %v2645, 32
    %v2708 = vpop.permute.xlu0 %2707
    %2709 = vrot.lane.b32.xlu0 %v2647, 32
    %v2710 = vpop.permute.xlu0 %2709
    %2711 = vrot.lane.b32.xlu0 %v2649, 32
    %v2712 = vpop.permute.xlu0 %2711
    %2713 = vrot.lane.b32.xlu0 %v2651, 32
    %v2714 = vpop.permute.xlu0 %2713
    %2715 = vrot.lane.b32.xlu0 %v2653, 32
    %v2716 = vpop.permute.xlu0 %2715
    %2717 = vrot.lane.b32.xlu0 %v2655, 32
    %v2718 = vpop.permute.xlu0 %2717
    %2719 = vrot.lane.b32.xlu0 %v2657, 32
    %v2720 = vpop.permute.xlu0 %2719
    %2721 = vrot.lane.b32.xlu0 %v2659, 32
    %v2722 = vpop.permute.xlu0 %2721
    %2723 = vrot.lane.b32.xlu0 %v2661, 32
    %v2724 = vpop.permute.xlu0 %2723
    %2725 = vrot.lane.b32.xlu0 %v2663, 32
    %v2726 = vpop.permute.xlu0 %2725
    %2727 = vrot.lane.b32.xlu0 %v2664, 32
    %v2728 = vpop.permute.xlu0 %2727
    %2729 = vrot.lane.b32.xlu0 %v2666, 32
    %v2730 = vpop.permute.xlu0 %2729
    %2731 = vrot.lane.b32.xlu0 %v2668, 32
    %v2732 = vpop.permute.xlu0 %2731
    %2733 = vrot.lane.b32.xlu0 %v2670, 32
    %v2734 = vpop.permute.xlu0 %2733
    %2735 = vrot.lane.b32.xlu0 %v2672, 32
    %v2736 = vpop.permute.xlu0 %2735
    %2737 = vrot.lane.b32.xlu0 %v2674, 32
    %v2738 = vpop.permute.xlu0 %2737
    %2739 = vrot.lane.b32.xlu0 %v2676, 32
    %v2740 = vpop.permute.xlu0 %2739
    %2741 = vrot.lane.b32.xlu0 %v2678, 32
    %v2742 = vpop.permute.xlu0 %2741
    %2743 = vrot.lane.b32.xlu0 %v2680, 32
    %v2744 = vpop.permute.xlu0 %2743
    %2745 = vrot.lane.b32.xlu0 %v2682, 32
    %v2746 = vpop.permute.xlu0 %2745
    %2747 = vrot.lane.b32.xlu0 %v2684, 32
    %v2748 = vpop.permute.xlu0 %2747
    %2749 = vrot.lane.b32.xlu0 %v2686, 32
    %v2750 = vpop.permute.xlu0 %2749
    %2751 = vrot.lane.b32.xlu0 %v2688, 32
    %v2752 = vpop.permute.xlu0 %2751
    %2753 = vrot.lane.b32.xlu0 %v2690, 32
    %v2754 = vpop.permute.xlu0 %2753
    %2755 = vrot.lane.b32.xlu0 %v2692, 32
    %v2756 = vpop.permute.xlu0 %2755
    %2757 = vrot.lane.b32.xlu0 %v2694, 32
    %v2758 = vpop.permute.xlu0 %2757
    %vm2791 = vcmask 523521
    %2792 = vst.msk [vmem:[#allocation2] sm:$0xfe] %vm2791, %v2696
    %vm2793 = vcmask 523520
    %2794 = vst.msk [vmem:[#allocation2 + $0x10] sm:$0xff] %vm2793, %v2698
    %2795 = vst.msk [vmem:[#allocation2 + $0x20] sm:$0xff] %vm2793, %v2700
    %2796 = vst.msk [vmem:[#allocation2 + $0x30] sm:$0xff] %vm2793, %v2702
    %2797 = vst.msk [vmem:[#allocation2 + $0x40] sm:$0xff] %vm2793, %v2704
    %2798 = vst.msk [vmem:[#allocation2 + $0x50] sm:$0xff] %vm2793, %v2706
    %2799 = vst.msk [vmem:[#allocation2 + $0x60] sm:$0xff] %vm2793, %v2708
    %2800 = vst.msk [vmem:[#allocation2 + $0x70] sm:$0xff] %vm2793, %v2710
    %2801 = vst.msk [vmem:[#allocation2 + $0x80] sm:$0xff] %vm2793, %v2712
    %2802 = vst.msk [vmem:[#allocation2 + $0x90] sm:$0xff] %vm2793, %v2714
    %2803 = vst.msk [vmem:[#allocation2 + $0xa0] sm:$0xff] %vm2793, %v2716
    %2804 = vst.msk [vmem:[#allocation2 + $0xb0] sm:$0xff] %vm2793, %v2718
    %2805 = vst.msk [vmem:[#allocation2 + $0xc0] sm:$0xff] %vm2793, %v2720
    %2806 = vst.msk [vmem:[#allocation2 + $0xd0] sm:$0xff] %vm2793, %v2722
    %2807 = vst.msk [vmem:[#allocation2 + $0xe0] sm:$0xff] %vm2793, %v2724
    %2808 = vst.msk [vmem:[#allocation2 + $0xf0] sm:$0xff] %vm2793, %v2726
    %2809 = vst.msk [vmem:[#allocation2 + $0x100] sm:$0xfe] %vm2791, %v2728
    %2810 = vst.msk [vmem:[#allocation2 + $0x110] sm:$0xff] %vm2793, %v2730
    %2811 = vst.msk [vmem:[#allocation2 + $0x120] sm:$0xff] %vm2793, %v2732
    %2812 = vst.msk [vmem:[#allocation2 + $0x130] sm:$0xff] %vm2793, %v2734
    %2813 = vst.msk [vmem:[#allocation2 + $0x140] sm:$0xff] %vm2793, %v2736
    %2814 = vst.msk [vmem:[#allocation2 + $0x150] sm:$0xff] %vm2793, %v2738
    %2815 = vst.msk [vmem:[#allocation2 + $0x160] sm:$0xff] %vm2793, %v2740
    %2816 = vst.msk [vmem:[#allocation2 + $0x170] sm:$0xff] %vm2793, %v2742
    %2817 = vst.msk [vmem:[#allocation2 + $0x180] sm:$0xff] %vm2793, %v2744
    %2818 = vst.msk [vmem:[#allocation2 + $0x190] sm:$0xff] %vm2793, %v2746
    %2819 = vst.msk [vmem:[#allocation2 + $0x1a0] sm:$0xff] %vm2793, %v2748
    %2820 = vst.msk [vmem:[#allocation2 + $0x1b0] sm:$0xff] %vm2793, %v2750
    %2821 = vst.msk [vmem:[#allocation2 + $0x1c0] sm:$0xff] %vm2793, %v2752
    %2822 = vst.msk [vmem:[#allocation2 + $0x1d0] sm:$0xff] %vm2793, %v2754
    %2823 = vst.msk [vmem:[#allocation2 + $0x1e0] sm:$0xff] %vm2793, %v2756
    %2824 = vst.msk [vmem:[#allocation2 + $0x1f0] sm:$0xff] %vm2793, %v2758
    %2825 = vrot.lane.b32.xlu0 %v2431, 64
    %v2826 = vpop.permute.xlu0 %2825
    %2827 = vrot.lane.b32.xlu0 %v2432, 64
    %v2828 = vpop.permute.xlu0 %2827
    %2829 = vrot.lane.b32.xlu0 %v2433, 64
    %v2830 = vpop.permute.xlu0 %2829
    %2831 = vrot.lane.b32.xlu0 %v2434, 64
    %v2832 = vpop.permute.xlu0 %2831
    %2833 = vrot.lane.b32.xlu0 %v2435, 64
    %v2834 = vpop.permute.xlu0 %2833
    %2835 = vrot.lane.b32.xlu0 %v2436, 64
    %v2836 = vpop.permute.xlu0 %2835
    %2837 = vrot.lane.b32.xlu0 %v2437, 64
    %v2838 = vpop.permute.xlu0 %2837
    %2839 = vrot.lane.b32.xlu0 %v2438, 64
    %v2840 = vpop.permute.xlu0 %2839
    %2841 = vrot.lane.b32.xlu0 %v2439, 64
    %v2842 = vpop.permute.xlu0 %2841
    %2843 = vrot.lane.b32.xlu0 %v2440, 64
    %v2844 = vpop.permute.xlu0 %2843
    %2845 = vrot.lane.b32.xlu0 %v2441, 64
    %v2846 = vpop.permute.xlu0 %2845
    %2847 = vrot.lane.b32.xlu0 %v2442, 64
    %v2848 = vpop.permute.xlu0 %2847
    %2849 = vrot.lane.b32.xlu0 %v2443, 64
    %v2850 = vpop.permute.xlu0 %2849
    %2851 = vrot.lane.b32.xlu0 %v2444, 64
    %v2852 = vpop.permute.xlu0 %2851
    %2853 = vrot.lane.b32.xlu0 %v2445, 64
    %v2854 = vpop.permute.xlu0 %2853
    %2855 = vrot.lane.b32.xlu0 %v2446, 64
    %v2856 = vpop.permute.xlu0 %2855
    %2857 = vrot.lane.b32.xlu0 %v2447, 64
    %v2858 = vpop.permute.xlu0 %2857
    %2859 = vrot.lane.b32.xlu0 %v2448, 64
    %v2860 = vpop.permute.xlu0 %2859
    %2861 = vrot.lane.b32.xlu0 %v2449, 64
    %v2862 = vpop.permute.xlu0 %2861
    %2863 = vrot.lane.b32.xlu0 %v2450, 64
    %v2864 = vpop.permute.xlu0 %2863
    %2865 = vrot.lane.b32.xlu0 %v2451, 64
    %v2866 = vpop.permute.xlu0 %2865
    %2867 = vrot.lane.b32.xlu0 %v2452, 64
    %v2868 = vpop.permute.xlu0 %2867
    %2869 = vrot.lane.b32.xlu0 %v2453, 64
    %v2870 = vpop.permute.xlu0 %2869
    %2871 = vrot.lane.b32.xlu0 %v2454, 64
    %v2872 = vpop.permute.xlu0 %2871
    %2873 = vrot.lane.b32.xlu0 %v2455, 64
    %v2874 = vpop.permute.xlu0 %2873
    %2875 = vrot.lane.b32.xlu0 %v2456, 64
    %v2876 = vpop.permute.xlu0 %2875
    %2877 = vrot.lane.b32.xlu0 %v2457, 64
    %v2878 = vpop.permute.xlu0 %2877
    %2879 = vrot.lane.b32.xlu0 %v2458, 64
    %v2880 = vpop.permute.xlu0 %2879
    %2881 = vrot.lane.b32.xlu0 %v2459, 64
    %v2882 = vpop.permute.xlu0 %2881
    %2883 = vrot.lane.b32.xlu0 %v2460, 64
    %v2884 = vpop.permute.xlu0 %2883
    %2885 = vrot.lane.b32.xlu0 %v2461, 64
    %v2886 = vpop.permute.xlu0 %2885
    %2887 = vrot.lane.b32.xlu0 %v2462, 64
    %v2888 = vpop.permute.xlu0 %2887
    %vm2921 = vcmask 785920
    %2922 = vst.msk [vmem:[#allocation2] sm:$0xff] %vm2921, %v2826
    %2923 = vst.msk [vmem:[#allocation2 + $0x10] sm:$0xff] %vm2921, %v2828
    %2924 = vst.msk [vmem:[#allocation2 + $0x20] sm:$0xff] %vm2921, %v2830
    %2925 = vst.msk [vmem:[#allocation2 + $0x30] sm:$0xff] %vm2921, %v2832
    %2926 = vst.msk [vmem:[#allocation2 + $0x40] sm:$0xff] %vm2921, %v2834
    %2927 = vst.msk [vmem:[#allocation2 + $0x50] sm:$0xff] %vm2921, %v2836
    %2928 = vst.msk [vmem:[#allocation2 + $0x60] sm:$0xff] %vm2921, %v2838
    %2929 = vst.msk [vmem:[#allocation2 + $0x70] sm:$0xff] %vm2921, %v2840
    %2930 = vst.msk [vmem:[#allocation2 + $0x80] sm:$0xff] %vm2921, %v2842
    %2931 = vst.msk [vmem:[#allocation2 + $0x90] sm:$0xff] %vm2921, %v2844
    %2932 = vst.msk [vmem:[#allocation2 + $0xa0] sm:$0xff] %vm2921, %v2846
    %2933 = vst.msk [vmem:[#allocation2 + $0xb0] sm:$0xff] %vm2921, %v2848
    %2934 = vst.msk [vmem:[#allocation2 + $0xc0] sm:$0xff] %vm2921, %v2850
    %2935 = vst.msk [vmem:[#allocation2 + $0xd0] sm:$0xff] %vm2921, %v2852
    %2936 = vst.msk [vmem:[#allocation2 + $0xe0] sm:$0xff] %vm2921, %v2854
    %2937 = vst.msk [vmem:[#allocation2 + $0xf0] sm:$0xff] %vm2921, %v2856
    %2938 = vst.msk [vmem:[#allocation2 + $0x100] sm:$0xff] %vm2921, %v2858
    %2939 = vst.msk [vmem:[#allocation2 + $0x110] sm:$0xff] %vm2921, %v2860
    %2940 = vst.msk [vmem:[#allocation2 + $0x120] sm:$0xff] %vm2921, %v2862
    %2941 = vst.msk [vmem:[#allocation2 + $0x130] sm:$0xff] %vm2921, %v2864
    %2942 = vst.msk [vmem:[#allocation2 + $0x140] sm:$0xff] %vm2921, %v2866
    %2943 = vst.msk [vmem:[#allocation2 + $0x150] sm:$0xff] %vm2921, %v2868
    %2944 = vst.msk [vmem:[#allocation2 + $0x160] sm:$0xff] %vm2921, %v2870
    %2945 = vst.msk [vmem:[#allocation2 + $0x170] sm:$0xff] %vm2921, %v2872
    %2946 = vst.msk [vmem:[#allocation2 + $0x180] sm:$0xff] %vm2921, %v2874
    %2947 = vst.msk [vmem:[#allocation2 + $0x190] sm:$0xff] %vm2921, %v2876
    %2948 = vst.msk [vmem:[#allocation2 + $0x1a0] sm:$0xff] %vm2921, %v2878
    %2949 = vst.msk [vmem:[#allocation2 + $0x1b0] sm:$0xff] %vm2921, %v2880
    %2950 = vst.msk [vmem:[#allocation2 + $0x1c0] sm:$0xff] %vm2921, %v2882
    %2951 = vst.msk [vmem:[#allocation2 + $0x1d0] sm:$0xff] %vm2921, %v2884
    %2952 = vst.msk [vmem:[#allocation2 + $0x1e0] sm:$0xff] %vm2921, %v2886
    %2953 = vst.msk [vmem:[#allocation2 + $0x1f0] sm:$0xff] %vm2921, %v2888
    %v2954 = vrot.slane %v2431, 1
    %v2955 = vrot.slane %v2432, 1
    %v2956 = vsel %vm380, %v2954, %v2955
    %v2957 = vrot.slane %v2433, 1
    %v2958 = vsel %vm380, %v2955, %v2957
    %v2959 = vrot.slane %v2434, 1
    %v2960 = vsel %vm380, %v2957, %v2959
    %v2961 = vrot.slane %v2435, 1
    %v2962 = vsel %vm380, %v2959, %v2961
    %v2963 = vrot.slane %v2436, 1
    %v2964 = vsel %vm380, %v2961, %v2963
    %v2965 = vrot.slane %v2437, 1
    %v2966 = vsel %vm380, %v2963, %v2965
    %v2967 = vrot.slane %v2438, 1
    %v2968 = vsel %vm380, %v2965, %v2967
    %v2969 = vrot.slane %v2439, 1
    %v2970 = vsel %vm380, %v2967, %v2969
    %v2971 = vrot.slane %v2440, 1
    %v2972 = vsel %vm380, %v2969, %v2971
    %v2973 = vrot.slane %v2441, 1
    %v2974 = vsel %vm380, %v2971, %v2973
    %v2975 = vrot.slane %v2442, 1
    %v2976 = vsel %vm380, %v2973, %v2975
    %v2977 = vrot.slane %v2443, 1
    %v2978 = vsel %vm380, %v2975, %v2977
    %v2979 = vrot.slane %v2444, 1
    %v2980 = vsel %vm380, %v2977, %v2979
    %v2981 = vrot.slane %v2445, 1
    %v2982 = vsel %vm380, %v2979, %v2981
    %v2983 = vrot.slane %v2446, 1
    %v2984 = vsel %vm380, %v2981, %v2983
    %v2985 = vrot.slane %v2447, 1
    %v2986 = vrot.slane %v2448, 1
    %v2987 = vsel %vm380, %v2985, %v2986
    %v2988 = vrot.slane %v2449, 1
    %v2989 = vsel %vm380, %v2986, %v2988
    %v2990 = vrot.slane %v2450, 1
    %v2991 = vsel %vm380, %v2988, %v2990
    %v2992 = vrot.slane %v2451, 1
    %v2993 = vsel %vm380, %v2990, %v2992
    %v2994 = vrot.slane %v2452, 1
    %v2995 = vsel %vm380, %v2992, %v2994
    %v2996 = vrot.slane %v2453, 1
    %v2997 = vsel %vm380, %v2994, %v2996
    %v2998 = vrot.slane %v2454, 1
    %v2999 = vsel %vm380, %v2996, %v2998
    %v3000 = vrot.slane %v2455, 1
    %v3001 = vsel %vm380, %v2998, %v3000
    %v3002 = vrot.slane %v2456, 1
    %v3003 = vsel %vm380, %v3000, %v3002
    %v3004 = vrot.slane %v2457, 1
    %v3005 = vsel %vm380, %v3002, %v3004
    %v3006 = vrot.slane %v2458, 1
    %v3007 = vsel %vm380, %v3004, %v3006
    %v3008 = vrot.slane %v2459, 1
    %v3009 = vsel %vm380, %v3006, %v3008
    %v3010 = vrot.slane %v2460, 1
    %v3011 = vsel %vm380, %v3008, %v3010
    %v3012 = vrot.slane %v2461, 1
    %v3013 = vsel %vm380, %v3010, %v3012
    %v3014 = vrot.slane %v2462, 1
    %v3015 = vsel %vm380, %v3012, %v3014
    %3016 = vrot.lane.b32.xlu0 %v2956, 96
    %v3017 = vpop.permute.xlu0 %3016
    %3018 = vrot.lane.b32.xlu0 %v2958, 96
    %v3019 = vpop.permute.xlu0 %3018
    %3020 = vrot.lane.b32.xlu0 %v2960, 96
    %v3021 = vpop.permute.xlu0 %3020
    %3022 = vrot.lane.b32.xlu0 %v2962, 96
    %v3023 = vpop.permute.xlu0 %3022
    %3024 = vrot.lane.b32.xlu0 %v2964, 96
    %v3025 = vpop.permute.xlu0 %3024
    %3026 = vrot.lane.b32.xlu0 %v2966, 96
    %v3027 = vpop.permute.xlu0 %3026
    %3028 = vrot.lane.b32.xlu0 %v2968, 96
    %v3029 = vpop.permute.xlu0 %3028
    %3030 = vrot.lane.b32.xlu0 %v2970, 96
    %v3031 = vpop.permute.xlu0 %3030
    %3032 = vrot.lane.b32.xlu0 %v2972, 96
    %v3033 = vpop.permute.xlu0 %3032
    %3034 = vrot.lane.b32.xlu0 %v2974, 96
    %v3035 = vpop.permute.xlu0 %3034
    %3036 = vrot.lane.b32.xlu0 %v2976, 96
    %v3037 = vpop.permute.xlu0 %3036
    %3038 = vrot.lane.b32.xlu0 %v2978, 96
    %v3039 = vpop.permute.xlu0 %3038
    %3040 = vrot.lane.b32.xlu0 %v2980, 96
    %v3041 = vpop.permute.xlu0 %3040
    %3042 = vrot.lane.b32.xlu0 %v2982, 96
    %v3043 = vpop.permute.xlu0 %3042
    %3044 = vrot.lane.b32.xlu0 %v2984, 96
    %v3045 = vpop.permute.xlu0 %3044
    %3046 = vrot.lane.b32.xlu0 %v2983, 96
    %v3047 = vpop.permute.xlu0 %3046
    %3048 = vrot.lane.b32.xlu0 %v2987, 96
    %v3049 = vpop.permute.xlu0 %3048
    %3050 = vrot.lane.b32.xlu0 %v2989, 96
    %v3051 = vpop.permute.xlu0 %3050
    %3052 = vrot.lane.b32.xlu0 %v2991, 96
    %v3053 = vpop.permute.xlu0 %3052
    %3054 = vrot.lane.b32.xlu0 %v2993, 96
    %v3055 = vpop.permute.xlu0 %3054
    %3056 = vrot.lane.b32.xlu0 %v2995, 96
    %v3057 = vpop.permute.xlu0 %3056
    %3058 = vrot.lane.b32.xlu0 %v2997, 96
    %v3059 = vpop.permute.xlu0 %3058
    %3060 = vrot.lane.b32.xlu0 %v2999, 96
    %v3061 = vpop.permute.xlu0 %3060
    %3062 = vrot.lane.b32.xlu0 %v3001, 96
    %v3063 = vpop.permute.xlu0 %3062
    %3064 = vrot.lane.b32.xlu0 %v3003, 96
    %v3065 = vpop.permute.xlu0 %3064
    %3066 = vrot.lane.b32.xlu0 %v3005, 96
    %v3067 = vpop.permute.xlu0 %3066
    %3068 = vrot.lane.b32.xlu0 %v3007, 96
    %v3069 = vpop.permute.xlu0 %3068
    %3070 = vrot.lane.b32.xlu0 %v3009, 96
    %v3071 = vpop.permute.xlu0 %3070
    %3072 = vrot.lane.b32.xlu0 %v3011, 96
    %v3073 = vpop.permute.xlu0 %3072
    %3074 = vrot.lane.b32.xlu0 %v3013, 96
    %v3075 = vpop.permute.xlu0 %3074
    %3076 = vrot.lane.b32.xlu0 %v3015, 96
    %v3077 = vpop.permute.xlu0 %3076
    %3078 = vrot.lane.b32.xlu0 %v3014, 96
    %v3079 = vpop.permute.xlu0 %3078
    %vm3112 = vcmask 1048320
    %3113 = vst.msk [vmem:[#allocation2] sm:$0xff] %vm3112, %v3017
    %3114 = vst.msk [vmem:[#allocation2 + $0x10] sm:$0xff] %vm3112, %v3019
    %3115 = vst.msk [vmem:[#allocation2 + $0x20] sm:$0xff] %vm3112, %v3021
    %3116 = vst.msk [vmem:[#allocation2 + $0x30] sm:$0xff] %vm3112, %v3023
    %3117 = vst.msk [vmem:[#allocation2 + $0x40] sm:$0xff] %vm3112, %v3025
    %3118 = vst.msk [vmem:[#allocation2 + $0x50] sm:$0xff] %vm3112, %v3027
    %3119 = vst.msk [vmem:[#allocation2 + $0x60] sm:$0xff] %vm3112, %v3029
    %3120 = vst.msk [vmem:[#allocation2 + $0x70] sm:$0xff] %vm3112, %v3031
    %3121 = vst.msk [vmem:[#allocation2 + $0x80] sm:$0xff] %vm3112, %v3033
    %3122 = vst.msk [vmem:[#allocation2 + $0x90] sm:$0xff] %vm3112, %v3035
    %3123 = vst.msk [vmem:[#allocation2 + $0xa0] sm:$0xff] %vm3112, %v3037
    %3124 = vst.msk [vmem:[#allocation2 + $0xb0] sm:$0xff] %vm3112, %v3039
    %3125 = vst.msk [vmem:[#allocation2 + $0xc0] sm:$0xff] %vm3112, %v3041
    %3126 = vst.msk [vmem:[#allocation2 + $0xd0] sm:$0xff] %vm3112, %v3043
    %3127 = vst.msk [vmem:[#allocation2 + $0xe0] sm:$0xff] %vm3112, %v3045
    %vm3128 = vcmask 1047296
    %3129 = vst.msk [vmem:[#allocation2 + $0xf0] sm:$0x7f] %vm3128, %v3047
    %3130 = vst.msk [vmem:[#allocation2 + $0x100] sm:$0xff] %vm3112, %v3049
    %3131 = vst.msk [vmem:[#allocation2 + $0x110] sm:$0xff] %vm3112, %v3051
    %3132 = vst.msk [vmem:[#allocation2 + $0x120] sm:$0xff] %vm3112, %v3053
    %3133 = vst.msk [vmem:[#allocation2 + $0x130] sm:$0xff] %vm3112, %v3055
    %3134 = vst.msk [vmem:[#allocation2 + $0x140] sm:$0xff] %vm3112, %v3057
    %3135 = vst.msk [vmem:[#allocation2 + $0x150] sm:$0xff] %vm3112, %v3059
    %3136 = vst.msk [vmem:[#allocation2 + $0x160] sm:$0xff] %vm3112, %v3061
    %3137 = vst.msk [vmem:[#allocation2 + $0x170] sm:$0xff] %vm3112, %v3063
    %3138 = vst.msk [vmem:[#allocation2 + $0x180] sm:$0xff] %vm3112, %v3065
    %3139 = vst.msk [vmem:[#allocation2 + $0x190] sm:$0xff] %vm3112, %v3067
    %3140 = vst.msk [vmem:[#allocation2 + $0x1a0] sm:$0xff] %vm3112, %v3069
    %3141 = vst.msk [vmem:[#allocation2 + $0x1b0] sm:$0xff] %vm3112, %v3071
    %3142 = vst.msk [vmem:[#allocation2 + $0x1c0] sm:$0xff] %vm3112, %v3073
    %3143 = vst.msk [vmem:[#allocation2 + $0x1d0] sm:$0xff] %vm3112, %v3075
    %3144 = vst.msk [vmem:[#allocation2 + $0x1e0] sm:$0xff] %vm3112, %v3077
    %3145 = vst.msk [vmem:[#allocation2 + $0x1f0] sm:$0x7f] %vm3128, %v3079
    %v3146 = vrot.slane %v2431, 2
    %v3147 = vrot.slane %v2432, 2
    %v3148 = vsel %vm583, %v3146, %v3147
    %v3149 = vrot.slane %v2433, 2
    %v3150 = vsel %vm583, %v3147, %v3149
    %v3151 = vrot.slane %v2434, 2
    %v3152 = vsel %vm583, %v3149, %v3151
    %v3153 = vrot.slane %v2435, 2
    %v3154 = vsel %vm583, %v3151, %v3153
    %v3155 = vrot.slane %v2436, 2
    %v3156 = vsel %vm583, %v3153, %v3155
    %v3157 = vrot.slane %v2437, 2
    %v3158 = vsel %vm583, %v3155, %v3157
    %v3159 = vrot.slane %v2438, 2
    %v3160 = vsel %vm583, %v3157, %v3159
    %v3161 = vrot.slane %v2439, 2
    %v3162 = vsel %vm583, %v3159, %v3161
    %v3163 = vrot.slane %v2440, 2
    %v3164 = vsel %vm583, %v3161, %v3163
    %v3165 = vrot.slane %v2441, 2
    %v3166 = vsel %vm583, %v3163, %v3165
    %v3167 = vrot.slane %v2442, 2
    %v3168 = vsel %vm583, %v3165, %v3167
    %v3169 = vrot.slane %v2443, 2
    %v3170 = vsel %vm583, %v3167, %v3169
    %v3171 = vrot.slane %v2444, 2
    %v3172 = vsel %vm583, %v3169, %v3171
    %v3173 = vrot.slane %v2445, 2
    %v3174 = vsel %vm583, %v3171, %v3173
    %v3175 = vrot.slane %v2446, 2
    %v3176 = vsel %vm583, %v3173, %v3175
    %v3177 = vrot.slane %v2447, 2
    %v3178 = vrot.slane %v2448, 2
    %v3179 = vsel %vm583, %v3177, %v3178
    %v3180 = vrot.slane %v2449, 2
    %v3181 = vsel %vm583, %v3178, %v3180
    %v3182 = vrot.slane %v2450, 2
    %v3183 = vsel %vm583, %v3180, %v3182
    %v3184 = vrot.slane %v2451, 2
    %v3185 = vsel %vm583, %v3182, %v3184
    %v3186 = vrot.slane %v2452, 2
    %v3187 = vsel %vm583, %v3184, %v3186
    %v3188 = vrot.slane %v2453, 2
    %v3189 = vsel %vm583, %v3186, %v3188
    %v3190 = vrot.slane %v2454, 2
    %v3191 = vsel %vm583, %v3188, %v3190
    %v3192 = vrot.slane %v2455, 2
    %v3193 = vsel %vm583, %v3190, %v3192
    %v3194 = vrot.slane %v2456, 2
    %v3195 = vsel %vm583, %v3192, %v3194
    %v3196 = vrot.slane %v2457, 2
    %v3197 = vsel %vm583, %v3194, %v3196
    %v3198 = vrot.slane %v2458, 2
    %v3199 = vsel %vm583, %v3196, %v3198
    %v3200 = vrot.slane %v2459, 2
    %v3201 = vsel %vm583, %v3198, %v3200
    %v3202 = vrot.slane %v2460, 2
    %v3203 = vsel %vm583, %v3200, %v3202
    %v3204 = vrot.slane %v2461, 2
    %v3205 = vsel %vm583, %v3202, %v3204
    %v3206 = vrot.slane %v2462, 2
    %v3207 = vsel %vm583, %v3204, %v3206
    %3240 = vst.msk [vmem:[#allocation2 + $0x8] sm:$0xff] %vm2601, %v3148
    %3241 = vst.msk [vmem:[#allocation2 + $0x18] sm:$0xff] %vm2601, %v3150
    %3242 = vst.msk [vmem:[#allocation2 + $0x28] sm:$0xff] %vm2601, %v3152
    %3243 = vst.msk [vmem:[#allocation2 + $0x38] sm:$0xff] %vm2601, %v3154
    %3244 = vst.msk [vmem:[#allocation2 + $0x48] sm:$0xff] %vm2601, %v3156
    %3245 = vst.msk [vmem:[#allocation2 + $0x58] sm:$0xff] %vm2601, %v3158
    %3246 = vst.msk [vmem:[#allocation2 + $0x68] sm:$0xff] %vm2601, %v3160
    %3247 = vst.msk [vmem:[#allocation2 + $0x78] sm:$0xff] %vm2601, %v3162
    %3248 = vst.msk [vmem:[#allocation2 + $0x88] sm:$0xff] %vm2601, %v3164
    %3249 = vst.msk [vmem:[#allocation2 + $0x98] sm:$0xff] %vm2601, %v3166
    %3250 = vst.msk [vmem:[#allocation2 + $0xa8] sm:$0xff] %vm2601, %v3168
    %3251 = vst.msk [vmem:[#allocation2 + $0xb8] sm:$0xff] %vm2601, %v3170
    %3252 = vst.msk [vmem:[#allocation2 + $0xc8] sm:$0xff] %vm2601, %v3172
    %3253 = vst.msk [vmem:[#allocation2 + $0xd8] sm:$0xff] %vm2601, %v3174
    %3254 = vst.msk [vmem:[#allocation2 + $0xe8] sm:$0xff] %vm2601, %v3176
    %vm3255 = vcmask 259072
    %3256 = vst.msk [vmem:[#allocation2 + $0xf8] sm:$0x3f] %vm3255, %v3175
    %3257 = vst.msk [vmem:[#allocation2 + $0x108] sm:$0xff] %vm2601, %v3179
    %3258 = vst.msk [vmem:[#allocation2 + $0x118] sm:$0xff] %vm2601, %v3181
    %3259 = vst.msk [vmem:[#allocation2 + $0x128] sm:$0xff] %vm2601, %v3183
    %3260 = vst.msk [vmem:[#allocation2 + $0x138] sm:$0xff] %vm2601, %v3185
    %3261 = vst.msk [vmem:[#allocation2 + $0x148] sm:$0xff] %vm2601, %v3187
    %3262 = vst.msk [vmem:[#allocation2 + $0x158] sm:$0xff] %vm2601, %v3189
    %3263 = vst.msk [vmem:[#allocation2 + $0x168] sm:$0xff] %vm2601, %v3191
    %3264 = vst.msk [vmem:[#allocation2 + $0x178] sm:$0xff] %vm2601, %v3193
    %3265 = vst.msk [vmem:[#allocation2 + $0x188] sm:$0xff] %vm2601, %v3195
    %3266 = vst.msk [vmem:[#allocation2 + $0x198] sm:$0xff] %vm2601, %v3197
    %3267 = vst.msk [vmem:[#allocation2 + $0x1a8] sm:$0xff] %vm2601, %v3199
    %3268 = vst.msk [vmem:[#allocation2 + $0x1b8] sm:$0xff] %vm2601, %v3201
    %3269 = vst.msk [vmem:[#allocation2 + $0x1c8] sm:$0xff] %vm2601, %v3203
    %3270 = vst.msk [vmem:[#allocation2 + $0x1d8] sm:$0xff] %vm2601, %v3205
    %3271 = vst.msk [vmem:[#allocation2 + $0x1e8] sm:$0xff] %vm2601, %v3207
    %3272 = vst.msk [vmem:[#allocation2 + $0x1f8] sm:$0x3f] %vm3255, %v3206
    %v3273 = vld [vmem:[#allocation2] sm:$0xff]
    %v3274 = vld [vmem:[#allocation2 + $0x8] sm:$0xff]
    %v3275 = vld [vmem:[#allocation2 + $0x10] sm:$0xff]
    %v3276 = vld [vmem:[#allocation2 + $0x18] sm:$0xff]
    %v3277 = vld [vmem:[#allocation2 + $0x20] sm:$0xff]
    %v3278 = vld [vmem:[#allocation2 + $0x28] sm:$0xff]
    %v3279 = vld [vmem:[#allocation2 + $0x30] sm:$0xff]
    %v3280 = vld [vmem:[#allocation2 + $0x38] sm:$0xff]
    %v3281 = vld [vmem:[#allocation2 + $0x40] sm:$0xff]
    %v3282 = vld [vmem:[#allocation2 + $0x48] sm:$0xff]
    %v3283 = vld [vmem:[#allocation2 + $0x50] sm:$0xff]
    %v3284 = vld [vmem:[#allocation2 + $0x58] sm:$0xff]
    %v3285 = vld [vmem:[#allocation2 + $0x60] sm:$0xff]
    %v3286 = vld [vmem:[#allocation2 + $0x68] sm:$0xff]
    %v3287 = vld [vmem:[#allocation2 + $0x70] sm:$0xff]
    %v3288 = vld [vmem:[#allocation2 + $0x78] sm:$0xff]
    %v3289 = vld [vmem:[#allocation2 + $0x80] sm:$0xff]
    %v3290 = vld [vmem:[#allocation2 + $0x88] sm:$0xff]
    %v3291 = vld [vmem:[#allocation2 + $0x90] sm:$0xff]
    %v3292 = vld [vmem:[#allocation2 + $0x98] sm:$0xff]
    %v3293 = vld [vmem:[#allocation2 + $0xa0] sm:$0xff]
    %v3294 = vld [vmem:[#allocation2 + $0xa8] sm:$0xff]
    %v3295 = vld [vmem:[#allocation2 + $0xb0] sm:$0xff]
    %v3296 = vld [vmem:[#allocation2 + $0xb8] sm:$0xff]
    %v3297 = vld [vmem:[#allocation2 + $0xc0] sm:$0xff]
    %v3298 = vld [vmem:[#allocation2 + $0xc8] sm:$0xff]
    %v3299 = vld [vmem:[#allocation2 + $0xd0] sm:$0xff]
    %v3300 = vld [vmem:[#allocation2 + $0xd8] sm:$0xff]
    %v3301 = vld [vmem:[#allocation2 + $0xe0] sm:$0xff]
    %v3302 = vld [vmem:[#allocation2 + $0xe8] sm:$0xff]
    %v3303 = vld [vmem:[#allocation2 + $0xf0] sm:$0xff]
    %v3304 = vld [vmem:[#allocation2 + $0xf8] sm:$0xff]
    %v3305 = vld [vmem:[#allocation2 + $0x100] sm:$0xff]
    %v3306 = vld [vmem:[#allocation2 + $0x108] sm:$0xff]
    %v3307 = vld [vmem:[#allocation2 + $0x110] sm:$0xff]
    %v3308 = vld [vmem:[#allocation2 + $0x118] sm:$0xff]
    %v3309 = vld [vmem:[#allocation2 + $0x120] sm:$0xff]
    %v3310 = vld [vmem:[#allocation2 + $0x128] sm:$0xff]
    %v3311 = vld [vmem:[#allocation2 + $0x130] sm:$0xff]
    %v3312 = vld [vmem:[#allocation2 + $0x138] sm:$0xff]
    %v3313 = vld [vmem:[#allocation2 + $0x140] sm:$0xff]
    %v3314 = vld [vmem:[#allocation2 + $0x148] sm:$0xff]
    %v3315 = vld [vmem:[#allocation2 + $0x150] sm:$0xff]
    %v3316 = vld [vmem:[#allocation2 + $0x158] sm:$0xff]
    %v3317 = vld [vmem:[#allocation2 + $0x160] sm:$0xff]
    %v3318 = vld [vmem:[#allocation2 + $0x168] sm:$0xff]
    %v3319 = vld [vmem:[#allocation2 + $0x170] sm:$0xff]
    %v3320 = vld [vmem:[#allocation2 + $0x178] sm:$0xff]
    %v3321 = vld [vmem:[#allocation2 + $0x180] sm:$0xff]
    %v3322 = vld [vmem:[#allocation2 + $0x188] sm:$0xff]
    %v3323 = vld [vmem:[#allocation2 + $0x190] sm:$0xff]
    %v3324 = vld [vmem:[#allocation2 + $0x198] sm:$0xff]
    %v3325 = vld [vmem:[#allocation2 + $0x1a0] sm:$0xff]
    %v3326 = vld [vmem:[#allocation2 + $0x1a8] sm:$0xff]
    %v3327 = vld [vmem:[#allocation2 + $0x1b0] sm:$0xff]
    %v3328 = vld [vmem:[#allocation2 + $0x1b8] sm:$0xff]
    %v3329 = vld [vmem:[#allocation2 + $0x1c0] sm:$0xff]
    %v3330 = vld [vmem:[#allocation2 + $0x1c8] sm:$0xff]
    %v3331 = vld [vmem:[#allocation2 + $0x1d0] sm:$0xff]
    %v3332 = vld [vmem:[#allocation2 + $0x1d8] sm:$0xff]
    %v3333 = vld [vmem:[#allocation2 + $0x1e0] sm:$0xff]
    %v3334 = vld [vmem:[#allocation2 + $0x1e8] sm:$0xff]
    %v3335 = vld [vmem:[#allocation2 + $0x1f0] sm:$0xff]
    %v3336 = vld [vmem:[#allocation2 + $0x1f8] sm:$0xff]
    %v3337 = vld [vmem:[#allocation8 + $0x68] sm:$0xff]
    %v3338 = vld [vmem:[#allocation8 + $0x70] sm:$0xff]
    %v3339 = vld [vmem:[#allocation8 + $0x78] sm:$0xff]
    %v3340 = vld [vmem:[#allocation8 + $0x80] sm:$0xff]
    %v3341 = vld [vmem:[#allocation8 + $0x88] sm:$0xff]
    %v3342 = vld [vmem:[#allocation8 + $0x90] sm:$0xff]
    %v3343 = vld [vmem:[#allocation8 + $0x98] sm:$0xff]
    %v3344 = vld [vmem:[#allocation8 + $0xa0] sm:$0xff]
    %v3345 = vld [vmem:[#allocation8 + $0xa8] sm:$0xff]
    %v3346 = vld [vmem:[#allocation8 + $0xb0] sm:$0xff]
    %v3347 = vld [vmem:[#allocation8 + $0xb8] sm:$0xff]
    %v3348 = vld [vmem:[#allocation8 + $0xc0] sm:$0xff]
    %v3349 = vld [vmem:[#allocation8 + $0xc8] sm:$0xff]
    %v3350 = vld [vmem:[#allocation8 + $0xd0] sm:$0xff]
    %v3351 = vld [vmem:[#allocation8 + $0xd8] sm:$0xff]
    %v3352 = vld [vmem:[#allocation8 + $0xe0] sm:$0xff]
    %v3353 = vld [vmem:[#allocation8 + $0xe8] sm:$0xff]
    %v3354 = vld [vmem:[#allocation8 + $0xf0] sm:$0xff]
    %v3355 = vld [vmem:[#allocation8 + $0xf8] sm:$0xff]
    %v3356 = vld [vmem:[#allocation8 + $0x100] sm:$0xff]
    %v3357 = vld [vmem:[#allocation8 + $0x108] sm:$0x1]
    %v3358 = vlaneseq
    %v3359 = vshrl.u32 %v3358, 7
    %v3360 = vsub.s32 0, %v3359
    %v3361 = vrot.slane %v3357, %v3360
    %v3363 = vsel %vm2601, %v3274, 0
    %v3366 = vsel %vm2601, %v3276, 0
    %v3369 = vsel %vm2601, %v3278, 0
    %v3372 = vsel %vm2601, %v3280, 0
    %v3375 = vsel %vm2601, %v3282, 0
    %v3378 = vsel %vm2601, %v3284, 0
    %v3381 = vsel %vm2601, %v3286, 0
    %v3384 = vsel %vm2601, %v3288, 0
    %v3387 = vsel %vm2601, %v3290, 0
    %v3390 = vsel %vm2601, %v3292, 0
    %v3393 = vsel %vm2601, %v3294, 0
    %v3396 = vsel %vm2601, %v3296, 0
    %v3399 = vsel %vm2601, %v3298, 0
    %v3402 = vsel %vm2601, %v3300, 0
    %v3405 = vsel %vm2601, %v3302, 0
    %v3408 = vsel %vm2601, %v3304, 0
    %v3411 = vsel %vm2601, %v3306, 0
    %v3414 = vsel %vm2601, %v3308, 0
    %v3417 = vsel %vm2601, %v3310, 0
    %v3420 = vsel %vm2601, %v3312, 0
    %v3423 = vsel %vm2601, %v3314, 0
    %v3426 = vsel %vm2601, %v3316, 0
    %v3429 = vsel %vm2601, %v3318, 0
    %v3432 = vsel %vm2601, %v3320, 0
    %v3435 = vsel %vm2601, %v3322, 0
    %v3438 = vsel %vm2601, %v3324, 0
    %v3441 = vsel %vm2601, %v3326, 0
    %v3444 = vsel %vm2601, %v3328, 0
    %v3447 = vsel %vm2601, %v3330, 0
    %v3450 = vsel %vm2601, %v3332, 0
    %v3453 = vsel %vm2601, %v3334, 0
    %v3456 = vsel %vm2601, %v3336, 0
    %3458 = vmatprep.subr.mxu0 0.0
    %3459 = vmatpush1.msra.mxu0 %v3337
    %3460 = vmatprep.subr.mxu0 0.0
    %3461 = vmatpush1.msra.mxu0 %v3338
    %3462 = vmatprep.subr.mxu0 0.0
    %3463 = vmatpush1.msra.mxu0 %v3339
    %3464 = vmatprep.subr.mxu0 0.0
    %3465 = vmatpush1.msra.mxu0 %v3340
    %3466 = vmatprep.subr.mxu0 0.0
    %3467 = vmatpush1.msra.mxu0 %v3341
    %3468 = vmatprep.subr.mxu0 0.0
    %3469 = vmatpush1.msra.mxu0 %v3342
    %3470 = vmatprep.subr.mxu0 0.0
    %3471 = vmatpush1.msra.mxu0 %v3343
    %3472 = vmatprep.subr.mxu0 0.0
    %3473 = vmatpush1.msra.mxu0 %v3344
    %3474 = vmatprep.subr.mxu0 0.0
    %3475 = vmatpush1.msra.mxu0 %v3345
    %3476 = vmatprep.subr.mxu0 0.0
    %3477 = vmatpush1.msra.mxu0 %v3346
    %3478 = vmatprep.subr.mxu0 0.0
    %3479 = vmatpush1.msra.mxu0 %v3347
    %3480 = vmatprep.subr.mxu0 0.0
    %3481 = vmatpush1.msra.mxu0 %v3348
    %3482 = vmatprep.subr.mxu0 0.0
    %3483 = vmatpush1.msra.mxu0 %v3349
    %3484 = vmatprep.subr.mxu0 0.0
    %3485 = vmatpush1.msra.mxu0 %v3350
    %3486 = vmatprep.subr.mxu0 0.0
    %3487 = vmatpush1.msra.mxu0 %v3351
    %3488 = vmatprep.subr.mxu0 0.0
    %3489 = vmatpush1.msra.mxu0 %v3352
    %3490 = vmatprep.subr.mxu0 0.0
    %3491 = vmatpush1.msra.mxu0 %v3353
    %3492 = vmatprep.subr.mxu0 0.0
    %3493 = vmatpush1.msra.mxu0 %v3354
    %3494 = vmatprep.subr.mxu0 0.0
    %3495 = vmatpush1.msra.mxu0 %v3355
    %3496 = vmatprep.subr.mxu0 0.0
    %3497 = vmatpush1.msra.mxu0 %v3356
    %3498 = vmatprep.subr.mxu0 0.0
    %3499 = vmatpush1.msra.mxu0 0.0
    %3500 = vmatprep.subr.mxu0 0.0
    %3501 = vmatpush1.msra.mxu0 0.0
    %3502 = vmatprep.subr.mxu0 0.0
    %3503 = vmatpush1.msra.mxu0 0.0
    %3504 = vmatprep.subr.mxu0 0.0
    %3505 = vmatpush1.msra.mxu0 0.0
    %3506 = vmatprep.subr.mxu0 0.0
    %3507 = vmatpush1.msra.mxu0 0.0
    %3508 = vmatprep.subr.mxu0 0.0
    %3509 = vmatpush1.msra.mxu0 0.0
    %3510 = vmatprep.subr.mxu0 0.0
    %3511 = vmatpush1.msra.mxu0 0.0
    %3512 = vmatprep.subr.mxu0 0.0
    %3513 = vmatpush1.msra.mxu0 0.0
    %3514 = vmatprep.subr.mxu0 0.0
    %3515 = vmatpush1.msra.mxu0 0.0
    %3516 = vmatprep.subr.mxu0 0.0
    %3517 = vmatpush1.msra.mxu0 0.0
    %3518 = vmatprep.subr.mxu0 0.0
    %3519 = vmatpush1.msra.mxu0 0.0
    %3520 = vmatprep.subr.mxu0 0.0
    %3521 = vmatpush1.msra.mxu0 0.0
    %3522 = vmatprep.mubr.f32.mxu0 %v3363
    %3523 = vmatmul.mubr.f32.gmra.mrb[0].mxu0 %v3273
    %v3524 = vpop.f32.mrb[0].mxu0
    %v3525 = vadd.f32 %v3361, %v3524
    %v3526 = vpop.f32.mrb[0].mxu0
    %3527 = vmatprep.mubr.f32.mxu0 %v3366
    %3528 = vmatmul.mubr.f32.gmra.mrb[0].mxu0 %v3275
    %v3529 = vpop.f32.mrb[0].mxu0
    %v3530 = vadd.f32 %v3361, %v3529
    %v3531 = vpop.f32.mrb[0].mxu0
    %3532 = vmatprep.mubr.f32.mxu0 %v3369
    %3533 = vmatmul.mubr.f32.gmra.mrb[0].mxu0 %v3277
    %v3534 = vpop.f32.mrb[0].mxu0
    %v3535 = vadd.f32 %v3361, %v3534
    %v3536 = vpop.f32.mrb[0].mxu0
    %3537 = vmatprep.mubr.f32.mxu0 %v3372
    %3538 = vmatmul.mubr.f32.gmra.mrb[0].mxu0 %v3279
    %v3539 = vpop.f32.mrb[0].mxu0
    %v3540 = vadd.f32 %v3361, %v3539
    %v3541 = vpop.f32.mrb[0].mxu0
    %3542 = vmatprep.mubr.f32.mxu0 %v3375
    %3543 = vmatmul.mubr.f32.gmra.mrb[0].mxu0 %v3281
    %v3544 = vpop.f32.mrb[0].mxu0
    %v3545 = vadd.f32 %v3361, %v3544
    %v3546 = vpop.f32.mrb[0].mxu0
    %3547 = vmatprep.mubr.f32.mxu0 %v3378
    %3548 = vmatmul.mubr.f32.gmra.mrb[0].mxu0 %v3283
    %v3549 = vpop.f32.mrb[0].mxu0
    %v3550 = vadd.f32 %v3361, %v3549
    %v3551 = vpop.f32.mrb[0].mxu0
    %3552 = vmatprep.mubr.f32.mxu0 %v3381
    %3553 = vmatmul.mubr.f32.gmra.mrb[0].mxu0 %v3285
    %v3554 = vpop.f32.mrb[0].mxu0
    %v3555 = vadd.f32 %v3361, %v3554
    %v3556 = vpop.f32.mrb[0].mxu0
    %3557 = vmatprep.mubr.f32.mxu0 %v3384
    %3558 = vmatmul.mubr.f32.gmra.mrb[0].mxu0 %v3287
    %v3559 = vpop.f32.mrb[0].mxu0
    %v3560 = vadd.f32 %v3361, %v3559
    %v3561 = vpop.f32.mrb[0].mxu0
    %3562 = vmatprep.mubr.f32.mxu0 %v3387
    %3563 = vmatmul.mubr.f32.gmra.mrb[0].mxu0 %v3289
    %v3564 = vpop.f32.mrb[0].mxu0
    %v3565 = vadd.f32 %v3361, %v3564
    %v3566 = vpop.f32.mrb[0].mxu0
    %3567 = vmatprep.mubr.f32.mxu0 %v3390
    %3568 = vmatmul.mubr.f32.gmra.mrb[0].mxu0 %v3291
    %v3569 = vpop.f32.mrb[0].mxu0
    %v3570 = vadd.f32 %v3361, %v3569
    %v3571 = vpop.f32.mrb[0].mxu0
    %3572 = vmatprep.mubr.f32.mxu0 %v3393
    %3573 = vmatmul.mubr.f32.gmra.mrb[0].mxu0 %v3293
    %v3574 = vpop.f32.mrb[0].mxu0
    %v3575 = vadd.f32 %v3361, %v3574
    %v3576 = vpop.f32.mrb[0].mxu0
    %3577 = vmatprep.mubr.f32.mxu0 %v3396
    %3578 = vmatmul.mubr.f32.gmra.mrb[0].mxu0 %v3295
    %v3579 = vpop.f32.mrb[0].mxu0
    %v3580 = vadd.f32 %v3361, %v3579
    %v3581 = vpop.f32.mrb[0].mxu0
    %3582 = vmatprep.mubr.f32.mxu0 %v3399
    %3583 = vmatmul.mubr.f32.gmra.mrb[0].mxu0 %v3297
    %v3584 = vpop.f32.mrb[0].mxu0
    %v3585 = vadd.f32 %v3361, %v3584
    %v3586 = vpop.f32.mrb[0].mxu0
    %3587 = vmatprep.mubr.f32.mxu0 %v3402
    %3588 = vmatmul.mubr.f32.gmra.mrb[0].mxu0 %v3299
    %v3589 = vpop.f32.mrb[0].mxu0
    %v3590 = vadd.f32 %v3361, %v3589
    %v3591 = vpop.f32.mrb[0].mxu0
    %3592 = vmatprep.mubr.f32.mxu0 %v3405
    %3593 = vmatmul.mubr.f32.gmra.mrb[0].mxu0 %v3301
    %v3594 = vpop.f32.mrb[0].mxu0
    %v3595 = vadd.f32 %v3361, %v3594
    %v3596 = vpop.f32.mrb[0].mxu0
    %3597 = vmatprep.mubr.f32.mxu0 %v3408
    %3598 = vmatmul.mubr.f32.gmra.mrb[0].mxu0 %v3303
    %v3599 = vpop.f32.mrb[0].mxu0
    %v3600 = vadd.f32 %v3361, %v3599
    %v3601 = vpop.f32.mrb[0].mxu0
    %3602 = vmatprep.mubr.f32.mxu0 %v3411
    %3603 = vmatmul.mubr.f32.gmra.mrb[0].mxu0 %v3305
    %v3604 = vpop.f32.mrb[0].mxu0
    %v3605 = vadd.f32 %v3361, %v3604
    %v3606 = vpop.f32.mrb[0].mxu0
    %3607 = vmatprep.mubr.f32.mxu0 %v3414
    %3608 = vmatmul.mubr.f32.gmra.mrb[0].mxu0 %v3307
    %v3609 = vpop.f32.mrb[0].mxu0
    %v3610 = vadd.f32 %v3361, %v3609
    %v3611 = vpop.f32.mrb[0].mxu0
    %3612 = vmatprep.mubr.f32.mxu0 %v3417
    %3613 = vmatmul.mubr.f32.gmra.mrb[0].mxu0 %v3309
    %v3614 = vpop.f32.mrb[0].mxu0
    %v3615 = vadd.f32 %v3361, %v3614
    %v3616 = vpop.f32.mrb[0].mxu0
    %3617 = vmatprep.mubr.f32.mxu0 %v3420
    %3618 = vmatmul.mubr.f32.gmra.mrb[0].mxu0 %v3311
    %v3619 = vpop.f32.mrb[0].mxu0
    %v3620 = vadd.f32 %v3361, %v3619
    %v3621 = vpop.f32.mrb[0].mxu0
    %3622 = vmatprep.mubr.f32.mxu0 %v3423
    %3623 = vmatmul.mubr.f32.gmra.mrb[0].mxu0 %v3313
    %v3624 = vpop.f32.mrb[0].mxu0
    %v3625 = vadd.f32 %v3361, %v3624
    %v3626 = vpop.f32.mrb[0].mxu0
    %3627 = vmatprep.mubr.f32.mxu0 %v3426
    %3628 = vmatmul.mubr.f32.gmra.mrb[0].mxu0 %v3315
    %v3629 = vpop.f32.mrb[0].mxu0
    %v3630 = vadd.f32 %v3361, %v3629
    %v3631 = vpop.f32.mrb[0].mxu0
    %3632 = vmatprep.mubr.f32.mxu0 %v3429
    %3633 = vmatmul.mubr.f32.gmra.mrb[0].mxu0 %v3317
    %v3634 = vpop.f32.mrb[0].mxu0
    %v3635 = vadd.f32 %v3361, %v3634
    %v3636 = vpop.f32.mrb[0].mxu0
    %3637 = vmatprep.mubr.f32.mxu0 %v3432
    %3638 = vmatmul.mubr.f32.gmra.mrb[0].mxu0 %v3319
    %v3639 = vpop.f32.mrb[0].mxu0
    %v3640 = vadd.f32 %v3361, %v3639
    %v3641 = vpop.f32.mrb[0].mxu0
    %3642 = vmatprep.mubr.f32.mxu0 %v3435
    %3643 = vmatmul.mubr.f32.gmra.mrb[0].mxu0 %v3321
    %v3644 = vpop.f32.mrb[0].mxu0
    %v3645 = vadd.f32 %v3361, %v3644
    %v3646 = vpop.f32.mrb[0].mxu0
    %3647 = vmatprep.mubr.f32.mxu0 %v3438
    %3648 = vmatmul.mubr.f32.gmra.mrb[0].mxu0 %v3323
    %v3649 = vpop.f32.mrb[0].mxu0
    %v3650 = vadd.f32 %v3361, %v3649
    %v3651 = vpop.f32.mrb[0].mxu0
    %3652 = vmatprep.mubr.f32.mxu0 %v3441
    %3653 = vmatmul.mubr.f32.gmra.mrb[0].mxu0 %v3325
    %v3654 = vpop.f32.mrb[0].mxu0
    %v3655 = vadd.f32 %v3361, %v3654
    %v3656 = vpop.f32.mrb[0].mxu0
    %3657 = vmatprep.mubr.f32.mxu0 %v3444
    %3658 = vmatmul.mubr.f32.gmra.mrb[0].mxu0 %v3327
    %v3659 = vpop.f32.mrb[0].mxu0
    %v3660 = vadd.f32 %v3361, %v3659
    %v3661 = vpop.f32.mrb[0].mxu0
    %3662 = vmatprep.mubr.f32.mxu0 %v3447
    %3663 = vmatmul.mubr.f32.gmra.mrb[0].mxu0 %v3329
    %v3664 = vpop.f32.mrb[0].mxu0
    %v3665 = vadd.f32 %v3361, %v3664
    %v3666 = vpop.f32.mrb[0].mxu0
    %3667 = vmatprep.mubr.f32.mxu0 %v3450
    %3668 = vmatmul.mubr.f32.gmra.mrb[0].mxu0 %v3331
    %v3669 = vpop.f32.mrb[0].mxu0
    %v3670 = vadd.f32 %v3361, %v3669
    %v3671 = vpop.f32.mrb[0].mxu0
    %3672 = vmatprep.mubr.f32.mxu0 %v3453
    %3673 = vmatmul.mubr.f32.gmra.mrb[0].mxu0 %v3333
    %v3674 = vpop.f32.mrb[0].mxu0
    %v3675 = vadd.f32 %v3361, %v3674
    %v3676 = vpop.f32.mrb[0].mxu0
    %3677 = vmatprep.mubr.f32.mxu0 %v3456
    %3678 = vmatmul.mubr.f32.gmra.mrb[0].mxu0 %v3335
    %v3679 = vpop.f32.mrb[0].mxu0
    %v3680 = vadd.f32 %v3361, %v3679
    %v3681 = vpop.f32.mrb[0].mxu0
    %3682 = vdwg.mxu0
    %v3683 = vmax.f32 %v3525, 0.0
    %v3684 = vmax.f32 %v3530, 0.0
    %v3685 = vmax.f32 %v3535, 0.0
    %v3686 = vmax.f32 %v3540, 0.0
    %v3687 = vmax.f32 %v3545, 0.0
    %v3688 = vmax.f32 %v3550, 0.0
    %v3689 = vmax.f32 %v3555, 0.0
    %v3690 = vmax.f32 %v3560, 0.0
    %v3691 = vmax.f32 %v3565, 0.0
    %v3692 = vmax.f32 %v3570, 0.0
    %v3693 = vmax.f32 %v3575, 0.0
    %v3694 = vmax.f32 %v3580, 0.0
    %v3695 = vmax.f32 %v3585, 0.0
    %v3696 = vmax.f32 %v3590, 0.0
    %v3697 = vmax.f32 %v3595, 0.0
    %v3698 = vmax.f32 %v3600, 0.0
    %v3699 = vmax.f32 %v3605, 0.0
    %v3700 = vmax.f32 %v3610, 0.0
    %v3701 = vmax.f32 %v3615, 0.0
    %v3702 = vmax.f32 %v3620, 0.0
    %v3703 = vmax.f32 %v3625, 0.0
    %v3704 = vmax.f32 %v3630, 0.0
    %v3705 = vmax.f32 %v3635, 0.0
    %v3706 = vmax.f32 %v3640, 0.0
    %v3707 = vmax.f32 %v3645, 0.0
    %v3708 = vmax.f32 %v3650, 0.0
    %v3709 = vmax.f32 %v3655, 0.0
    %v3710 = vmax.f32 %v3660, 0.0
    %v3711 = vmax.f32 %v3665, 0.0
    %v3712 = vmax.f32 %v3670, 0.0
    %v3713 = vmax.f32 %v3675, 0.0
    %v3714 = vmax.f32 %v3680, 0.0
    %v3718 = vunpack.c.l.s4 1983009808
    %v3719 = vunpack.c.0.s8 %v3718
    %v3720 = vlaneseq
    %v3721 = vshrl.u32 %v3720, 7
    %v3722 = vsub.s32 %v3719, %v3721
    %v3723 = vrot.slane %v3683, %v3722
    %v3725 = vunpack.c.l.s4 1983009808
    %v3726 = vunpack.c.0.s8 %v3725
    %v3727 = vlaneseq
    %v3728 = vshrl.u32 %v3727, 7
    %v3729 = vsub.s32 %v3726, %v3728
    %v3730 = vrot.slane %v3699, %v3729
    %vm3731 = vcmask 1044484
    %v3732 = vsel %vm3731, %v3723, %v3723
    %vm3733 = vcmask 1046534
    %v3734 = vsel %vm3733, %v3723, %v3732
    %v3735 = vrot.slane %v3730, 7
    %vm3736 = vcmask 1041409
    %v3737 = vsel %vm3736, %v3735, %v3734
    %vm3738 = vcmask 1043459
    %v3739 = vsel %vm3738, %v3735, %v3737
    %vm3740 = vcmask 1045509
    %v3741 = vsel %vm3740, %v3735, %v3739
    %vm3742 = vcmask 1047559
    %v3743 = vsel %vm3742, %v3735, %v3741
    %vm3745 = vcmask 517120
    %3746 = vst.msk [vmem:[#allocation3] sm:$0x3] %vm3745, %v3743
    %v3747 = vrot.slane %v3723, 1
    %v3748 = vsel %vm3731, %v3747, %v3747
    %v3749 = vsel %vm3733, %v3747, %v3748
    %v3750 = vsel %vm3736, %v3730, %v3749
    %v3751 = vsel %vm3738, %v3730, %v3750
    %v3752 = vsel %vm3740, %v3730, %v3751
    %v3753 = vsel %vm3742, %v3730, %v3752
    %3754 = vrot.lane.b32.xlu0 %v3753, 64
    %v3755 = vpop.permute.xlu0 %3754
    %vm3757 = vcmask 1041920
    %3758 = vst.msk [vmem:[#allocation3] sm:$0x3] %vm3757, %v3755
    %v3759 = vcombine.high %v3723, %v3723
    %v3760 = vcombine.high %v3730, %v3730
    %v3761 = vsel %vm3731, %v3759, %v3759
    %v3762 = vsel %vm3733, %v3759, %v3761
    %v3763 = vrot.slane %v3760, 7
    %v3764 = vsel %vm3736, %v3763, %v3762
    %v3765 = vsel %vm3738, %v3763, %v3764
    %v3766 = vsel %vm3740, %v3763, %v3765
    %v3767 = vsel %vm3742, %v3763, %v3766
    %3769 = vst.msk [vmem:[#allocation3 + $0x2] sm:$0x3] %vm3745, %v3767
    %v3770 = vrot.slane %v3759, 1
    %v3771 = vsel %vm3731, %v3770, %v3770
    %v3772 = vsel %vm3733, %v3770, %v3771
    %v3773 = vsel %vm3736, %v3760, %v3772
    %v3774 = vsel %vm3738, %v3760, %v3773
    %v3775 = vsel %vm3740, %v3760, %v3774
    %v3776 = vsel %vm3742, %v3760, %v3775
    %3777 = vrot.lane.b32.xlu0 %v3776, 64
    %v3778 = vpop.permute.xlu0 %3777
    %3780 = vst.msk [vmem:[#allocation3 + $0x2] sm:$0x3] %vm3757, %v3778
    %v3781 = vcombine.high %v3683, %v3683
    %v3783 = vunpack.c.l.s4 1983009808
    %v3784 = vunpack.c.0.s8 %v3783
    %v3785 = vlaneseq
    %v3786 = vshrl.u32 %v3785, 7
    %v3787 = vsub.s32 %v3784, %v3786
    %v3788 = vrot.slane %v3781, %v3787
    %v3789 = vcombine.high %v3699, %v3699
    %v3791 = vunpack.c.l.s4 1983009808
    %v3792 = vunpack.c.0.s8 %v3791
    %v3793 = vlaneseq
    %v3794 = vshrl.u32 %v3793, 7
    %v3795 = vsub.s32 %v3792, %v3794
    %v3796 = vrot.slane %v3789, %v3795
    %v3797 = vsel %vm3731, %v3788, %v3788
    %v3798 = vsel %vm3733, %v3788, %v3797
    %v3799 = vrot.slane %v3796, 7
    %v3800 = vsel %vm3736, %v3799, %v3798
    %v3801 = vsel %vm3738, %v3799, %v3800
    %v3802 = vsel %vm3740, %v3799, %v3801
    %v3803 = vsel %vm3742, %v3799, %v3802
    %3805 = vst.msk [vmem:[#allocation3 + $0x4] sm:$0x3] %vm3745, %v3803
    %v3806 = vrot.slane %v3788, 1
    %v3807 = vsel %vm3731, %v3806, %v3806
    %v3808 = vsel %vm3733, %v3806, %v3807
    %v3809 = vsel %vm3736, %v3796, %v3808
    %v3810 = vsel %vm3738, %v3796, %v3809
    %v3811 = vsel %vm3740, %v3796, %v3810
    %v3812 = vsel %vm3742, %v3796, %v3811
    %3813 = vrot.lane.b32.xlu0 %v3812, 64
    %v3814 = vpop.permute.xlu0 %3813
    %3816 = vst.msk [vmem:[#allocation3 + $0x4] sm:$0x3] %vm3757, %v3814
    %v3817 = vcombine.high %v3788, %v3788
    %v3818 = vcombine.high %v3796, %v3796
    %v3819 = vsel %vm3731, %v3817, %v3817
    %v3820 = vsel %vm3733, %v3817, %v3819
    %v3821 = vrot.slane %v3818, 7
    %v3822 = vsel %vm3736, %v3821, %v3820
    %v3823 = vsel %vm3738, %v3821, %v3822
    %v3824 = vsel %vm3740, %v3821, %v3823
    %v3825 = vsel %vm3742, %v3821, %v3824
    %3827 = vst.msk [vmem:[#allocation3 + $0x6] sm:$0x3] %vm3745, %v3825
    %v3828 = vrot.slane %v3817, 1
    %v3829 = vsel %vm3731, %v3828, %v3828
    %v3830 = vsel %vm3733, %v3828, %v3829
    %v3831 = vsel %vm3736, %v3818, %v3830
    %v3832 = vsel %vm3738, %v3818, %v3831
    %v3833 = vsel %vm3740, %v3818, %v3832
    %v3834 = vsel %vm3742, %v3818, %v3833
    %3835 = vrot.lane.b32.xlu0 %v3834, 64
    %v3836 = vpop.permute.xlu0 %3835
    %3838 = vst.msk [vmem:[#allocation3 + $0x6] sm:$0x3] %vm3757, %v3836
    %v3842 = vunpack.c.l.s4 1983009808
    %v3843 = vunpack.c.0.s8 %v3842
    %v3844 = vlaneseq
    %v3845 = vshrl.u32 %v3844, 7
    %v3846 = vsub.s32 %v3843, %v3845
    %v3847 = vrot.slane %v3684, %v3846
    %v3849 = vunpack.c.l.s4 1983009808
    %v3850 = vunpack.c.0.s8 %v3849
    %v3851 = vlaneseq
    %v3852 = vshrl.u32 %v3851, 7
    %v3853 = vsub.s32 %v3850, %v3852
    %v3854 = vrot.slane %v3700, %v3853
    %v3855 = vsel %vm3731, %v3847, %v3847
    %v3856 = vsel %vm3733, %v3847, %v3855
    %v3857 = vrot.slane %v3854, 7
    %v3858 = vsel %vm3736, %v3857, %v3856
    %v3859 = vsel %vm3738, %v3857, %v3858
    %v3860 = vsel %vm3740, %v3857, %v3859
    %v3861 = vsel %vm3742, %v3857, %v3860
    %3863 = vst.msk [vmem:[#allocation3 + $0x8] sm:$0x3] %vm3745, %v3861
    %v3864 = vrot.slane %v3847, 1
    %v3865 = vsel %vm3731, %v3864, %v3864
    %v3866 = vsel %vm3733, %v3864, %v3865
    %v3867 = vsel %vm3736, %v3854, %v3866
    %v3868 = vsel %vm3738, %v3854, %v3867
    %v3869 = vsel %vm3740, %v3854, %v3868
    %v3870 = vsel %vm3742, %v3854, %v3869
    %3871 = vrot.lane.b32.xlu0 %v3870, 64
    %v3872 = vpop.permute.xlu0 %3871
    %3874 = vst.msk [vmem:[#allocation3 + $0x8] sm:$0x3] %vm3757, %v3872
    %v3875 = vcombine.high %v3847, %v3847
    %v3876 = vcombine.high %v3854, %v3854
    %v3877 = vsel %vm3731, %v3875, %v3875
    %v3878 = vsel %vm3733, %v3875, %v3877
    %v3879 = vrot.slane %v3876, 7
    %v3880 = vsel %vm3736, %v3879, %v3878
    %v3881 = vsel %vm3738, %v3879, %v3880
    %v3882 = vsel %vm3740, %v3879, %v3881
    %v3883 = vsel %vm3742, %v3879, %v3882
    %3885 = vst.msk [vmem:[#allocation3 + $0xa] sm:$0x3] %vm3745, %v3883
    %v3886 = vrot.slane %v3875, 1
    %v3887 = vsel %vm3731, %v3886, %v3886
    %v3888 = vsel %vm3733, %v3886, %v3887
    %v3889 = vsel %vm3736, %v3876, %v3888
    %v3890 = vsel %vm3738, %v3876, %v3889
    %v3891 = vsel %vm3740, %v3876, %v3890
    %v3892 = vsel %vm3742, %v3876, %v3891
    %3893 = vrot.lane.b32.xlu0 %v3892, 64
    %v3894 = vpop.permute.xlu0 %3893
    %3896 = vst.msk [vmem:[#allocation3 + $0xa] sm:$0x3] %vm3757, %v3894
    %v3897 = vcombine.high %v3684, %v3684
    %v3899 = vunpack.c.l.s4 1983009808
    %v3900 = vunpack.c.0.s8 %v3899
    %v3901 = vlaneseq
    %v3902 = vshrl.u32 %v3901, 7
    %v3903 = vsub.s32 %v3900, %v3902
    %v3904 = vrot.slane %v3897, %v3903
    %v3905 = vcombine.high %v3700, %v3700
    %v3907 = vunpack.c.l.s4 1983009808
    %v3908 = vunpack.c.0.s8 %v3907
    %v3909 = vlaneseq
    %v3910 = vshrl.u32 %v3909, 7
    %v3911 = vsub.s32 %v3908, %v3910
    %v3912 = vrot.slane %v3905, %v3911
    %v3913 = vsel %vm3731, %v3904, %v3904
    %v3914 = vsel %vm3733, %v3904, %v3913
    %v3915 = vrot.slane %v3912, 7
    %v3916 = vsel %vm3736, %v3915, %v3914
    %v3917 = vsel %vm3738, %v3915, %v3916
    %v3918 = vsel %vm3740, %v3915, %v3917
    %v3919 = vsel %vm3742, %v3915, %v3918
    %3921 = vst.msk [vmem:[#allocation3 + $0xc] sm:$0x3] %vm3745, %v3919
    %v3922 = vrot.slane %v3904, 1
    %v3923 = vsel %vm3731, %v3922, %v3922
    %v3924 = vsel %vm3733, %v3922, %v3923
    %v3925 = vsel %vm3736, %v3912, %v3924
    %v3926 = vsel %vm3738, %v3912, %v3925
    %v3927 = vsel %vm3740, %v3912, %v3926
    %v3928 = vsel %vm3742, %v3912, %v3927
    %3929 = vrot.lane.b32.xlu0 %v3928, 64
    %v3930 = vpop.permute.xlu0 %3929
    %3932 = vst.msk [vmem:[#allocation3 + $0xc] sm:$0x3] %vm3757, %v3930
    %v3933 = vcombine.high %v3904, %v3904
    %v3934 = vcombine.high %v3912, %v3912
    %v3935 = vsel %vm3731, %v3933, %v3933
    %v3936 = vsel %vm3733, %v3933, %v3935
    %v3937 = vrot.slane %v3934, 7
    %v3938 = vsel %vm3736, %v3937, %v3936
    %v3939 = vsel %vm3738, %v3937, %v3938
    %v3940 = vsel %vm3740, %v3937, %v3939
    %v3941 = vsel %vm3742, %v3937, %v3940
    %3943 = vst.msk [vmem:[#allocation3 + $0xe] sm:$0x3] %vm3745, %v3941
    %v3944 = vrot.slane %v3933, 1
    %v3945 = vsel %vm3731, %v3944, %v3944
    %v3946 = vsel %vm3733, %v3944, %v3945
    %v3947 = vsel %vm3736, %v3934, %v3946
    %v3948 = vsel %vm3738, %v3934, %v3947
    %v3949 = vsel %vm3740, %v3934, %v3948
    %v3950 = vsel %vm3742, %v3934, %v3949
    %3951 = vrot.lane.b32.xlu0 %v3950, 64
    %v3952 = vpop.permute.xlu0 %3951
    %3954 = vst.msk [vmem:[#allocation3 + $0xe] sm:$0x3] %vm3757, %v3952
    %v3958 = vunpack.c.l.s4 1983009808
    %v3959 = vunpack.c.0.s8 %v3958
    %v3960 = vlaneseq
    %v3961 = vshrl.u32 %v3960, 7
    %v3962 = vsub.s32 %v3959, %v3961
    %v3963 = vrot.slane %v3685, %v3962
    %v3965 = vunpack.c.l.s4 1983009808
    %v3966 = vunpack.c.0.s8 %v3965
    %v3967 = vlaneseq
    %v3968 = vshrl.u32 %v3967, 7
    %v3969 = vsub.s32 %v3966, %v3968
    %v3970 = vrot.slane %v3701, %v3969
    %v3971 = vsel %vm3731, %v3963, %v3963
    %v3972 = vsel %vm3733, %v3963, %v3971
    %v3973 = vrot.slane %v3970, 7
    %v3974 = vsel %vm3736, %v3973, %v3972
    %v3975 = vsel %vm3738, %v3973, %v3974
    %v3976 = vsel %vm3740, %v3973, %v3975
    %v3977 = vsel %vm3742, %v3973, %v3976
    %3979 = vst.msk [vmem:[#allocation3 + $0x10] sm:$0x3] %vm3745, %v3977
    %v3980 = vrot.slane %v3963, 1
    %v3981 = vsel %vm3731, %v3980, %v3980
    %v3982 = vsel %vm3733, %v3980, %v3981
    %v3983 = vsel %vm3736, %v3970, %v3982
    %v3984 = vsel %vm3738, %v3970, %v3983
    %v3985 = vsel %vm3740, %v3970, %v3984
    %v3986 = vsel %vm3742, %v3970, %v3985
    %3987 = vrot.lane.b32.xlu0 %v3986, 64
    %v3988 = vpop.permute.xlu0 %3987
    %3990 = vst.msk [vmem:[#allocation3 + $0x10] sm:$0x3] %vm3757, %v3988
    %v3991 = vcombine.high %v3963, %v3963
    %v3992 = vcombine.high %v3970, %v3970
    %v3993 = vsel %vm3731, %v3991, %v3991
    %v3994 = vsel %vm3733, %v3991, %v3993
    %v3995 = vrot.slane %v3992, 7
    %v3996 = vsel %vm3736, %v3995, %v3994
    %v3997 = vsel %vm3738, %v3995, %v3996
    %v3998 = vsel %vm3740, %v3995, %v3997
    %v3999 = vsel %vm3742, %v3995, %v3998
    %4001 = vst.msk [vmem:[#allocation3 + $0x12] sm:$0x3] %vm3745, %v3999
    %v4002 = vrot.slane %v3991, 1
    %v4003 = vsel %vm3731, %v4002, %v4002
    %v4004 = vsel %vm3733, %v4002, %v4003
    %v4005 = vsel %vm3736, %v3992, %v4004
    %v4006 = vsel %vm3738, %v3992, %v4005
    %v4007 = vsel %vm3740, %v3992, %v4006
    %v4008 = vsel %vm3742, %v3992, %v4007
    %4009 = vrot.lane.b32.xlu0 %v4008, 64
    %v4010 = vpop.permute.xlu0 %4009
    %4012 = vst.msk [vmem:[#allocation3 + $0x12] sm:$0x3] %vm3757, %v4010
    %v4013 = vcombine.high %v3685, %v3685
    %v4015 = vunpack.c.l.s4 1983009808
    %v4016 = vunpack.c.0.s8 %v4015
    %v4017 = vlaneseq
    %v4018 = vshrl.u32 %v4017, 7
    %v4019 = vsub.s32 %v4016, %v4018
    %v4020 = vrot.slane %v4013, %v4019
    %v4021 = vcombine.high %v3701, %v3701
    %v4023 = vunpack.c.l.s4 1983009808
    %v4024 = vunpack.c.0.s8 %v4023
    %v4025 = vlaneseq
    %v4026 = vshrl.u32 %v4025, 7
    %v4027 = vsub.s32 %v4024, %v4026
    %v4028 = vrot.slane %v4021, %v4027
    %v4029 = vsel %vm3731, %v4020, %v4020
    %v4030 = vsel %vm3733, %v4020, %v4029
    %v4031 = vrot.slane %v4028, 7
    %v4032 = vsel %vm3736, %v4031, %v4030
    %v4033 = vsel %vm3738, %v4031, %v4032
    %v4034 = vsel %vm3740, %v4031, %v4033
    %v4035 = vsel %vm3742, %v4031, %v4034
    %4037 = vst.msk [vmem:[#allocation3 + $0x14] sm:$0x3] %vm3745, %v4035
    %v4038 = vrot.slane %v4020, 1
    %v4039 = vsel %vm3731, %v4038, %v4038
    %v4040 = vsel %vm3733, %v4038, %v4039
    %v4041 = vsel %vm3736, %v4028, %v4040
    %v4042 = vsel %vm3738, %v4028, %v4041
    %v4043 = vsel %vm3740, %v4028, %v4042
    %v4044 = vsel %vm3742, %v4028, %v4043
    %4045 = vrot.lane.b32.xlu0 %v4044, 64
    %v4046 = vpop.permute.xlu0 %4045
    %4048 = vst.msk [vmem:[#allocation3 + $0x14] sm:$0x3] %vm3757, %v4046
    %v4049 = vcombine.high %v4020, %v4020
    %v4050 = vcombine.high %v4028, %v4028
    %v4051 = vsel %vm3731, %v4049, %v4049
    %v4052 = vsel %vm3733, %v4049, %v4051
    %v4053 = vrot.slane %v4050, 7
    %v4054 = vsel %vm3736, %v4053, %v4052
    %v4055 = vsel %vm3738, %v4053, %v4054
    %v4056 = vsel %vm3740, %v4053, %v4055
    %v4057 = vsel %vm3742, %v4053, %v4056
    %4059 = vst.msk [vmem:[#allocation3 + $0x16] sm:$0x3] %vm3745, %v4057
    %v4060 = vrot.slane %v4049, 1
    %v4061 = vsel %vm3731, %v4060, %v4060
    %v4062 = vsel %vm3733, %v4060, %v4061
    %v4063 = vsel %vm3736, %v4050, %v4062
    %v4064 = vsel %vm3738, %v4050, %v4063
    %v4065 = vsel %vm3740, %v4050, %v4064
    %v4066 = vsel %vm3742, %v4050, %v4065
    %4067 = vrot.lane.b32.xlu0 %v4066, 64
    %v4068 = vpop.permute.xlu0 %4067
    %4070 = vst.msk [vmem:[#allocation3 + $0x16] sm:$0x3] %vm3757, %v4068
    %v4074 = vunpack.c.l.s4 1983009808
    %v4075 = vunpack.c.0.s8 %v4074
    %v4076 = vlaneseq
    %v4077 = vshrl.u32 %v4076, 7
    %v4078 = vsub.s32 %v4075, %v4077
    %v4079 = vrot.slane %v3686, %v4078
    %v4081 = vunpack.c.l.s4 1983009808
    %v4082 = vunpack.c.0.s8 %v4081
    %v4083 = vlaneseq
    %v4084 = vshrl.u32 %v4083, 7
    %v4085 = vsub.s32 %v4082, %v4084
    %v4086 = vrot.slane %v3702, %v4085
    %v4087 = vsel %vm3731, %v4079, %v4079
    %v4088 = vsel %vm3733, %v4079, %v4087
    %v4089 = vrot.slane %v4086, 7
    %v4090 = vsel %vm3736, %v4089, %v4088
    %v4091 = vsel %vm3738, %v4089, %v4090
    %v4092 = vsel %vm3740, %v4089, %v4091
    %v4093 = vsel %vm3742, %v4089, %v4092
    %4095 = vst.msk [vmem:[#allocation3 + $0x18] sm:$0x3] %vm3745, %v4093
    %v4096 = vrot.slane %v4079, 1
    %v4097 = vsel %vm3731, %v4096, %v4096
    %v4098 = vsel %vm3733, %v4096, %v4097
    %v4099 = vsel %vm3736, %v4086, %v4098
    %v4100 = vsel %vm3738, %v4086, %v4099
    %v4101 = vsel %vm3740, %v4086, %v4100
    %v4102 = vsel %vm3742, %v4086, %v4101
    %4103 = vrot.lane.b32.xlu0 %v4102, 64
    %v4104 = vpop.permute.xlu0 %4103
    %4106 = vst.msk [vmem:[#allocation3 + $0x18] sm:$0x3] %vm3757, %v4104
    %v4107 = vcombine.high %v4079, %v4079
    %v4108 = vcombine.high %v4086, %v4086
    %v4109 = vsel %vm3731, %v4107, %v4107
    %v4110 = vsel %vm3733, %v4107, %v4109
    %v4111 = vrot.slane %v4108, 7
    %v4112 = vsel %vm3736, %v4111, %v4110
    %v4113 = vsel %vm3738, %v4111, %v4112
    %v4114 = vsel %vm3740, %v4111, %v4113
    %v4115 = vsel %vm3742, %v4111, %v4114
    %4117 = vst.msk [vmem:[#allocation3 + $0x1a] sm:$0x3] %vm3745, %v4115
    %v4118 = vrot.slane %v4107, 1
    %v4119 = vsel %vm3731, %v4118, %v4118
    %v4120 = vsel %vm3733, %v4118, %v4119
    %v4121 = vsel %vm3736, %v4108, %v4120
    %v4122 = vsel %vm3738, %v4108, %v4121
    %v4123 = vsel %vm3740, %v4108, %v4122
    %v4124 = vsel %vm3742, %v4108, %v4123
    %4125 = vrot.lane.b32.xlu0 %v4124, 64
    %v4126 = vpop.permute.xlu0 %4125
    %4128 = vst.msk [vmem:[#allocation3 + $0x1a] sm:$0x3] %vm3757, %v4126
    %v4129 = vcombine.high %v3686, %v3686
    %v4131 = vunpack.c.l.s4 1983009808
    %v4132 = vunpack.c.0.s8 %v4131
    %v4133 = vlaneseq
    %v4134 = vshrl.u32 %v4133, 7
    %v4135 = vsub.s32 %v4132, %v4134
    %v4136 = vrot.slane %v4129, %v4135
    %v4137 = vcombine.high %v3702, %v3702
    %v4139 = vunpack.c.l.s4 1983009808
    %v4140 = vunpack.c.0.s8 %v4139
    %v4141 = vlaneseq
    %v4142 = vshrl.u32 %v4141, 7
    %v4143 = vsub.s32 %v4140, %v4142
    %v4144 = vrot.slane %v4137, %v4143
    %v4145 = vsel %vm3731, %v4136, %v4136
    %v4146 = vsel %vm3733, %v4136, %v4145
    %v4147 = vrot.slane %v4144, 7
    %v4148 = vsel %vm3736, %v4147, %v4146
    %v4149 = vsel %vm3738, %v4147, %v4148
    %v4150 = vsel %vm3740, %v4147, %v4149
    %v4151 = vsel %vm3742, %v4147, %v4150
    %4153 = vst.msk [vmem:[#allocation3 + $0x1c] sm:$0x3] %vm3745, %v4151
    %v4154 = vrot.slane %v4136, 1
    %v4155 = vsel %vm3731, %v4154, %v4154
    %v4156 = vsel %vm3733, %v4154, %v4155
    %v4157 = vsel %vm3736, %v4144, %v4156
    %v4158 = vsel %vm3738, %v4144, %v4157
    %v4159 = vsel %vm3740, %v4144, %v4158
    %v4160 = vsel %vm3742, %v4144, %v4159
    %4161 = vrot.lane.b32.xlu0 %v4160, 64
    %v4162 = vpop.permute.xlu0 %4161
    %4164 = vst.msk [vmem:[#allocation3 + $0x1c] sm:$0x3] %vm3757, %v4162
    %v4165 = vcombine.high %v4136, %v4136
    %v4166 = vcombine.high %v4144, %v4144
    %v4167 = vsel %vm3731, %v4165, %v4165
    %v4168 = vsel %vm3733, %v4165, %v4167
    %v4169 = vrot.slane %v4166, 7
    %v4170 = vsel %vm3736, %v4169, %v4168
    %v4171 = vsel %vm3738, %v4169, %v4170
    %v4172 = vsel %vm3740, %v4169, %v4171
    %v4173 = vsel %vm3742, %v4169, %v4172
    %4175 = vst.msk [vmem:[#allocation3 + $0x1e] sm:$0x3] %vm3745, %v4173
    %v4176 = vrot.slane %v4165, 1
    %v4177 = vsel %vm3731, %v4176, %v4176
    %v4178 = vsel %vm3733, %v4176, %v4177
    %v4179 = vsel %vm3736, %v4166, %v4178
    %v4180 = vsel %vm3738, %v4166, %v4179
    %v4181 = vsel %vm3740, %v4166, %v4180
    %v4182 = vsel %vm3742, %v4166, %v4181
    %4183 = vrot.lane.b32.xlu0 %v4182, 64
    %v4184 = vpop.permute.xlu0 %4183
    %4186 = vst.msk [vmem:[#allocation3 + $0x1e] sm:$0x3] %vm3757, %v4184
    %v4190 = vunpack.c.l.s4 1983009808
    %v4191 = vunpack.c.0.s8 %v4190
    %v4192 = vlaneseq
    %v4193 = vshrl.u32 %v4192, 7
    %v4194 = vsub.s32 %v4191, %v4193
    %v4195 = vrot.slane %v3687, %v4194
    %v4197 = vunpack.c.l.s4 1983009808
    %v4198 = vunpack.c.0.s8 %v4197
    %v4199 = vlaneseq
    %v4200 = vshrl.u32 %v4199, 7
    %v4201 = vsub.s32 %v4198, %v4200
    %v4202 = vrot.slane %v3703, %v4201
    %v4203 = vsel %vm3731, %v4195, %v4195
    %v4204 = vsel %vm3733, %v4195, %v4203
    %v4205 = vrot.slane %v4202, 7
    %v4206 = vsel %vm3736, %v4205, %v4204
    %v4207 = vsel %vm3738, %v4205, %v4206
    %v4208 = vsel %vm3740, %v4205, %v4207
    %v4209 = vsel %vm3742, %v4205, %v4208
    %4211 = vst.msk [vmem:[#allocation3 + $0x20] sm:$0x3] %vm3745, %v4209
    %v4212 = vrot.slane %v4195, 1
    %v4213 = vsel %vm3731, %v4212, %v4212
    %v4214 = vsel %vm3733, %v4212, %v4213
    %v4215 = vsel %vm3736, %v4202, %v4214
    %v4216 = vsel %vm3738, %v4202, %v4215
    %v4217 = vsel %vm3740, %v4202, %v4216
    %v4218 = vsel %vm3742, %v4202, %v4217
    %4219 = vrot.lane.b32.xlu0 %v4218, 64
    %v4220 = vpop.permute.xlu0 %4219
    %4222 = vst.msk [vmem:[#allocation3 + $0x20] sm:$0x3] %vm3757, %v4220
    %v4223 = vcombine.high %v4195, %v4195
    %v4224 = vcombine.high %v4202, %v4202
    %v4225 = vsel %vm3731, %v4223, %v4223
    %v4226 = vsel %vm3733, %v4223, %v4225
    %v4227 = vrot.slane %v4224, 7
    %v4228 = vsel %vm3736, %v4227, %v4226
    %v4229 = vsel %vm3738, %v4227, %v4228
    %v4230 = vsel %vm3740, %v4227, %v4229
    %v4231 = vsel %vm3742, %v4227, %v4230
    %4233 = vst.msk [vmem:[#allocation3 + $0x22] sm:$0x3] %vm3745, %v4231
    %v4234 = vrot.slane %v4223, 1
    %v4235 = vsel %vm3731, %v4234, %v4234
    %v4236 = vsel %vm3733, %v4234, %v4235
    %v4237 = vsel %vm3736, %v4224, %v4236
    %v4238 = vsel %vm3738, %v4224, %v4237
    %v4239 = vsel %vm3740, %v4224, %v4238
    %v4240 = vsel %vm3742, %v4224, %v4239
    %4241 = vrot.lane.b32.xlu0 %v4240, 64
    %v4242 = vpop.permute.xlu0 %4241
    %4244 = vst.msk [vmem:[#allocation3 + $0x22] sm:$0x3] %vm3757, %v4242
    %v4245 = vcombine.high %v3687, %v3687
    %v4247 = vunpack.c.l.s4 1983009808
    %v4248 = vunpack.c.0.s8 %v4247
    %v4249 = vlaneseq
    %v4250 = vshrl.u32 %v4249, 7
    %v4251 = vsub.s32 %v4248, %v4250
    %v4252 = vrot.slane %v4245, %v4251
    %v4253 = vcombine.high %v3703, %v3703
    %v4255 = vunpack.c.l.s4 1983009808
    %v4256 = vunpack.c.0.s8 %v4255
    %v4257 = vlaneseq
    %v4258 = vshrl.u32 %v4257, 7
    %v4259 = vsub.s32 %v4256, %v4258
    %v4260 = vrot.slane %v4253, %v4259
    %v4261 = vsel %vm3731, %v4252, %v4252
    %v4262 = vsel %vm3733, %v4252, %v4261
    %v4263 = vrot.slane %v4260, 7
    %v4264 = vsel %vm3736, %v4263, %v4262
    %v4265 = vsel %vm3738, %v4263, %v4264
    %v4266 = vsel %vm3740, %v4263, %v4265
    %v4267 = vsel %vm3742, %v4263, %v4266
    %4269 = vst.msk [vmem:[#allocation3 + $0x24] sm:$0x3] %vm3745, %v4267
    %v4270 = vrot.slane %v4252, 1
    %v4271 = vsel %vm3731, %v4270, %v4270
    %v4272 = vsel %vm3733, %v4270, %v4271
    %v4273 = vsel %vm3736, %v4260, %v4272
    %v4274 = vsel %vm3738, %v4260, %v4273
    %v4275 = vsel %vm3740, %v4260, %v4274
    %v4276 = vsel %vm3742, %v4260, %v4275
    %4277 = vrot.lane.b32.xlu0 %v4276, 64
    %v4278 = vpop.permute.xlu0 %4277
    %4280 = vst.msk [vmem:[#allocation3 + $0x24] sm:$0x3] %vm3757, %v4278
    %v4281 = vcombine.high %v4252, %v4252
    %v4282 = vcombine.high %v4260, %v4260
    %v4283 = vsel %vm3731, %v4281, %v4281
    %v4284 = vsel %vm3733, %v4281, %v4283
    %v4285 = vrot.slane %v4282, 7
    %v4286 = vsel %vm3736, %v4285, %v4284
    %v4287 = vsel %vm3738, %v4285, %v4286
    %v4288 = vsel %vm3740, %v4285, %v4287
    %v4289 = vsel %vm3742, %v4285, %v4288
    %4291 = vst.msk [vmem:[#allocation3 + $0x26] sm:$0x3] %vm3745, %v4289
    %v4292 = vrot.slane %v4281, 1
    %v4293 = vsel %vm3731, %v4292, %v4292
    %v4294 = vsel %vm3733, %v4292, %v4293
    %v4295 = vsel %vm3736, %v4282, %v4294
    %v4296 = vsel %vm3738, %v4282, %v4295
    %v4297 = vsel %vm3740, %v4282, %v4296
    %v4298 = vsel %vm3742, %v4282, %v4297
    %4299 = vrot.lane.b32.xlu0 %v4298, 64
    %v4300 = vpop.permute.xlu0 %4299
    %4302 = vst.msk [vmem:[#allocation3 + $0x26] sm:$0x3] %vm3757, %v4300
    %v4306 = vunpack.c.l.s4 1983009808
    %v4307 = vunpack.c.0.s8 %v4306
    %v4308 = vlaneseq
    %v4309 = vshrl.u32 %v4308, 7
    %v4310 = vsub.s32 %v4307, %v4309
    %v4311 = vrot.slane %v3688, %v4310
    %v4313 = vunpack.c.l.s4 1983009808
    %v4314 = vunpack.c.0.s8 %v4313
    %v4315 = vlaneseq
    %v4316 = vshrl.u32 %v4315, 7
    %v4317 = vsub.s32 %v4314, %v4316
    %v4318 = vrot.slane %v3704, %v4317
    %v4319 = vsel %vm3731, %v4311, %v4311
    %v4320 = vsel %vm3733, %v4311, %v4319
    %v4321 = vrot.slane %v4318, 7
    %v4322 = vsel %vm3736, %v4321, %v4320
    %v4323 = vsel %vm3738, %v4321, %v4322
    %v4324 = vsel %vm3740, %v4321, %v4323
    %v4325 = vsel %vm3742, %v4321, %v4324
    %4327 = vst.msk [vmem:[#allocation3 + $0x28] sm:$0x3] %vm3745, %v4325
    %v4328 = vrot.slane %v4311, 1
    %v4329 = vsel %vm3731, %v4328, %v4328
    %v4330 = vsel %vm3733, %v4328, %v4329
    %v4331 = vsel %vm3736, %v4318, %v4330
    %v4332 = vsel %vm3738, %v4318, %v4331
    %v4333 = vsel %vm3740, %v4318, %v4332
    %v4334 = vsel %vm3742, %v4318, %v4333
    %4335 = vrot.lane.b32.xlu0 %v4334, 64
    %v4336 = vpop.permute.xlu0 %4335
    %4338 = vst.msk [vmem:[#allocation3 + $0x28] sm:$0x3] %vm3757, %v4336
    %v4339 = vcombine.high %v4311, %v4311
    %v4340 = vcombine.high %v4318, %v4318
    %v4341 = vsel %vm3731, %v4339, %v4339
    %v4342 = vsel %vm3733, %v4339, %v4341
    %v4343 = vrot.slane %v4340, 7
    %v4344 = vsel %vm3736, %v4343, %v4342
    %v4345 = vsel %vm3738, %v4343, %v4344
    %v4346 = vsel %vm3740, %v4343, %v4345
    %v4347 = vsel %vm3742, %v4343, %v4346
    %4349 = vst.msk [vmem:[#allocation3 + $0x2a] sm:$0x3] %vm3745, %v4347
    %v4350 = vrot.slane %v4339, 1
    %v4351 = vsel %vm3731, %v4350, %v4350
    %v4352 = vsel %vm3733, %v4350, %v4351
    %v4353 = vsel %vm3736, %v4340, %v4352
    %v4354 = vsel %vm3738, %v4340, %v4353
    %v4355 = vsel %vm3740, %v4340, %v4354
    %v4356 = vsel %vm3742, %v4340, %v4355
    %4357 = vrot.lane.b32.xlu0 %v4356, 64
    %v4358 = vpop.permute.xlu0 %4357
    %4360 = vst.msk [vmem:[#allocation3 + $0x2a] sm:$0x3] %vm3757, %v4358
    %v4361 = vcombine.high %v3688, %v3688
    %v4363 = vunpack.c.l.s4 1983009808
    %v4364 = vunpack.c.0.s8 %v4363
    %v4365 = vlaneseq
    %v4366 = vshrl.u32 %v4365, 7
    %v4367 = vsub.s32 %v4364, %v4366
    %v4368 = vrot.slane %v4361, %v4367
    %v4369 = vcombine.high %v3704, %v3704
    %v4371 = vunpack.c.l.s4 1983009808
    %v4372 = vunpack.c.0.s8 %v4371
    %v4373 = vlaneseq
    %v4374 = vshrl.u32 %v4373, 7
    %v4375 = vsub.s32 %v4372, %v4374
    %v4376 = vrot.slane %v4369, %v4375
    %v4377 = vsel %vm3731, %v4368, %v4368
    %v4378 = vsel %vm3733, %v4368, %v4377
    %v4379 = vrot.slane %v4376, 7
    %v4380 = vsel %vm3736, %v4379, %v4378
    %v4381 = vsel %vm3738, %v4379, %v4380
    %v4382 = vsel %vm3740, %v4379, %v4381
    %v4383 = vsel %vm3742, %v4379, %v4382
    %4385 = vst.msk [vmem:[#allocation3 + $0x2c] sm:$0x3] %vm3745, %v4383
    %v4386 = vrot.slane %v4368, 1
    %v4387 = vsel %vm3731, %v4386, %v4386
    %v4388 = vsel %vm3733, %v4386, %v4387
    %v4389 = vsel %vm3736, %v4376, %v4388
    %v4390 = vsel %vm3738, %v4376, %v4389
    %v4391 = vsel %vm3740, %v4376, %v4390
    %v4392 = vsel %vm3742, %v4376, %v4391
    %4393 = vrot.lane.b32.xlu0 %v4392, 64
    %v4394 = vpop.permute.xlu0 %4393
    %4396 = vst.msk [vmem:[#allocation3 + $0x2c] sm:$0x3] %vm3757, %v4394
    %v4397 = vcombine.high %v4368, %v4368
    %v4398 = vcombine.high %v4376, %v4376
    %v4399 = vsel %vm3731, %v4397, %v4397
    %v4400 = vsel %vm3733, %v4397, %v4399
    %v4401 = vrot.slane %v4398, 7
    %v4402 = vsel %vm3736, %v4401, %v4400
    %v4403 = vsel %vm3738, %v4401, %v4402
    %v4404 = vsel %vm3740, %v4401, %v4403
    %v4405 = vsel %vm3742, %v4401, %v4404
    %4407 = vst.msk [vmem:[#allocation3 + $0x2e] sm:$0x3] %vm3745, %v4405
    %v4408 = vrot.slane %v4397, 1
    %v4409 = vsel %vm3731, %v4408, %v4408
    %v4410 = vsel %vm3733, %v4408, %v4409
    %v4411 = vsel %vm3736, %v4398, %v4410
    %v4412 = vsel %vm3738, %v4398, %v4411
    %v4413 = vsel %vm3740, %v4398, %v4412
    %v4414 = vsel %vm3742, %v4398, %v4413
    %4415 = vrot.lane.b32.xlu0 %v4414, 64
    %v4416 = vpop.permute.xlu0 %4415
    %4418 = vst.msk [vmem:[#allocation3 + $0x2e] sm:$0x3] %vm3757, %v4416
    %v4422 = vunpack.c.l.s4 1983009808
    %v4423 = vunpack.c.0.s8 %v4422
    %v4424 = vlaneseq
    %v4425 = vshrl.u32 %v4424, 7
    %v4426 = vsub.s32 %v4423, %v4425
    %v4427 = vrot.slane %v3689, %v4426
    %v4429 = vunpack.c.l.s4 1983009808
    %v4430 = vunpack.c.0.s8 %v4429
    %v4431 = vlaneseq
    %v4432 = vshrl.u32 %v4431, 7
    %v4433 = vsub.s32 %v4430, %v4432
    %v4434 = vrot.slane %v3705, %v4433
    %v4435 = vsel %vm3731, %v4427, %v4427
    %v4436 = vsel %vm3733, %v4427, %v4435
    %v4437 = vrot.slane %v4434, 7
    %v4438 = vsel %vm3736, %v4437, %v4436
    %v4439 = vsel %vm3738, %v4437, %v4438
    %v4440 = vsel %vm3740, %v4437, %v4439
    %v4441 = vsel %vm3742, %v4437, %v4440
    %4443 = vst.msk [vmem:[#allocation3 + $0x30] sm:$0x3] %vm3745, %v4441
    %v4444 = vrot.slane %v4427, 1
    %v4445 = vsel %vm3731, %v4444, %v4444
    %v4446 = vsel %vm3733, %v4444, %v4445
    %v4447 = vsel %vm3736, %v4434, %v4446
    %v4448 = vsel %vm3738, %v4434, %v4447
    %v4449 = vsel %vm3740, %v4434, %v4448
    %v4450 = vsel %vm3742, %v4434, %v4449
    %4451 = vrot.lane.b32.xlu0 %v4450, 64
    %v4452 = vpop.permute.xlu0 %4451
    %4454 = vst.msk [vmem:[#allocation3 + $0x30] sm:$0x3] %vm3757, %v4452
    %v4455 = vcombine.high %v4427, %v4427
    %v4456 = vcombine.high %v4434, %v4434
    %v4457 = vsel %vm3731, %v4455, %v4455
    %v4458 = vsel %vm3733, %v4455, %v4457
    %v4459 = vrot.slane %v4456, 7
    %v4460 = vsel %vm3736, %v4459, %v4458
    %v4461 = vsel %vm3738, %v4459, %v4460
    %v4462 = vsel %vm3740, %v4459, %v4461
    %v4463 = vsel %vm3742, %v4459, %v4462
    %4465 = vst.msk [vmem:[#allocation3 + $0x32] sm:$0x3] %vm3745, %v4463
    %v4466 = vrot.slane %v4455, 1
    %v4467 = vsel %vm3731, %v4466, %v4466
    %v4468 = vsel %vm3733, %v4466, %v4467
    %v4469 = vsel %vm3736, %v4456, %v4468
    %v4470 = vsel %vm3738, %v4456, %v4469
    %v4471 = vsel %vm3740, %v4456, %v4470
    %v4472 = vsel %vm3742, %v4456, %v4471
    %4473 = vrot.lane.b32.xlu0 %v4472, 64
    %v4474 = vpop.permute.xlu0 %4473
    %4476 = vst.msk [vmem:[#allocation3 + $0x32] sm:$0x3] %vm3757, %v4474
    %v4477 = vcombine.high %v3689, %v3689
    %v4479 = vunpack.c.l.s4 1983009808
    %v4480 = vunpack.c.0.s8 %v4479
    %v4481 = vlaneseq
    %v4482 = vshrl.u32 %v4481, 7
    %v4483 = vsub.s32 %v4480, %v4482
    %v4484 = vrot.slane %v4477, %v4483
    %v4485 = vcombine.high %v3705, %v3705
    %v4487 = vunpack.c.l.s4 1983009808
    %v4488 = vunpack.c.0.s8 %v4487
    %v4489 = vlaneseq
    %v4490 = vshrl.u32 %v4489, 7
    %v4491 = vsub.s32 %v4488, %v4490
    %v4492 = vrot.slane %v4485, %v4491
    %v4493 = vsel %vm3731, %v4484, %v4484
    %v4494 = vsel %vm3733, %v4484, %v4493
    %v4495 = vrot.slane %v4492, 7
    %v4496 = vsel %vm3736, %v4495, %v4494
    %v4497 = vsel %vm3738, %v4495, %v4496
    %v4498 = vsel %vm3740, %v4495, %v4497
    %v4499 = vsel %vm3742, %v4495, %v4498
    %4501 = vst.msk [vmem:[#allocation3 + $0x34] sm:$0x3] %vm3745, %v4499
    %v4502 = vrot.slane %v4484, 1
    %v4503 = vsel %vm3731, %v4502, %v4502
    %v4504 = vsel %vm3733, %v4502, %v4503
    %v4505 = vsel %vm3736, %v4492, %v4504
    %v4506 = vsel %vm3738, %v4492, %v4505
    %v4507 = vsel %vm3740, %v4492, %v4506
    %v4508 = vsel %vm3742, %v4492, %v4507
    %4509 = vrot.lane.b32.xlu0 %v4508, 64
    %v4510 = vpop.permute.xlu0 %4509
    %4512 = vst.msk [vmem:[#allocation3 + $0x34] sm:$0x3] %vm3757, %v4510
    %v4513 = vcombine.high %v4484, %v4484
    %v4514 = vcombine.high %v4492, %v4492
    %v4515 = vsel %vm3731, %v4513, %v4513
    %v4516 = vsel %vm3733, %v4513, %v4515
    %v4517 = vrot.slane %v4514, 7
    %v4518 = vsel %vm3736, %v4517, %v4516
    %v4519 = vsel %vm3738, %v4517, %v4518
    %v4520 = vsel %vm3740, %v4517, %v4519
    %v4521 = vsel %vm3742, %v4517, %v4520
    %4523 = vst.msk [vmem:[#allocation3 + $0x36] sm:$0x3] %vm3745, %v4521
    %v4524 = vrot.slane %v4513, 1
    %v4525 = vsel %vm3731, %v4524, %v4524
    %v4526 = vsel %vm3733, %v4524, %v4525
    %v4527 = vsel %vm3736, %v4514, %v4526
    %v4528 = vsel %vm3738, %v4514, %v4527
    %v4529 = vsel %vm3740, %v4514, %v4528
    %v4530 = vsel %vm3742, %v4514, %v4529
    %4531 = vrot.lane.b32.xlu0 %v4530, 64
    %v4532 = vpop.permute.xlu0 %4531
    %4534 = vst.msk [vmem:[#allocation3 + $0x36] sm:$0x3] %vm3757, %v4532
    %v4538 = vunpack.c.l.s4 1983009808
    %v4539 = vunpack.c.0.s8 %v4538
    %v4540 = vlaneseq
    %v4541 = vshrl.u32 %v4540, 7
    %v4542 = vsub.s32 %v4539, %v4541
    %v4543 = vrot.slane %v3690, %v4542
    %v4545 = vunpack.c.l.s4 1983009808
    %v4546 = vunpack.c.0.s8 %v4545
    %v4547 = vlaneseq
    %v4548 = vshrl.u32 %v4547, 7
    %v4549 = vsub.s32 %v4546, %v4548
    %v4550 = vrot.slane %v3706, %v4549
    %v4551 = vsel %vm3731, %v4543, %v4543
    %v4552 = vsel %vm3733, %v4543, %v4551
    %v4553 = vrot.slane %v4550, 7
    %v4554 = vsel %vm3736, %v4553, %v4552
    %v4555 = vsel %vm3738, %v4553, %v4554
    %v4556 = vsel %vm3740, %v4553, %v4555
    %v4557 = vsel %vm3742, %v4553, %v4556
    %4559 = vst.msk [vmem:[#allocation3 + $0x38] sm:$0x3] %vm3745, %v4557
    %v4560 = vrot.slane %v4543, 1
    %v4561 = vsel %vm3731, %v4560, %v4560
    %v4562 = vsel %vm3733, %v4560, %v4561
    %v4563 = vsel %vm3736, %v4550, %v4562
    %v4564 = vsel %vm3738, %v4550, %v4563
    %v4565 = vsel %vm3740, %v4550, %v4564
    %v4566 = vsel %vm3742, %v4550, %v4565
    %4567 = vrot.lane.b32.xlu0 %v4566, 64
    %v4568 = vpop.permute.xlu0 %4567
    %4570 = vst.msk [vmem:[#allocation3 + $0x38] sm:$0x3] %vm3757, %v4568
    %v4571 = vcombine.high %v4543, %v4543
    %v4572 = vcombine.high %v4550, %v4550
    %v4573 = vsel %vm3731, %v4571, %v4571
    %v4574 = vsel %vm3733, %v4571, %v4573
    %v4575 = vrot.slane %v4572, 7
    %v4576 = vsel %vm3736, %v4575, %v4574
    %v4577 = vsel %vm3738, %v4575, %v4576
    %v4578 = vsel %vm3740, %v4575, %v4577
    %v4579 = vsel %vm3742, %v4575, %v4578
    %4581 = vst.msk [vmem:[#allocation3 + $0x3a] sm:$0x3] %vm3745, %v4579
    %v4582 = vrot.slane %v4571, 1
    %v4583 = vsel %vm3731, %v4582, %v4582
    %v4584 = vsel %vm3733, %v4582, %v4583
    %v4585 = vsel %vm3736, %v4572, %v4584
    %v4586 = vsel %vm3738, %v4572, %v4585
    %v4587 = vsel %vm3740, %v4572, %v4586
    %v4588 = vsel %vm3742, %v4572, %v4587
    %4589 = vrot.lane.b32.xlu0 %v4588, 64
    %v4590 = vpop.permute.xlu0 %4589
    %4592 = vst.msk [vmem:[#allocation3 + $0x3a] sm:$0x3] %vm3757, %v4590
    %v4593 = vcombine.high %v3690, %v3690
    %v4595 = vunpack.c.l.s4 1983009808
    %v4596 = vunpack.c.0.s8 %v4595
    %v4597 = vlaneseq
    %v4598 = vshrl.u32 %v4597, 7
    %v4599 = vsub.s32 %v4596, %v4598
    %v4600 = vrot.slane %v4593, %v4599
    %v4601 = vcombine.high %v3706, %v3706
    %v4603 = vunpack.c.l.s4 1983009808
    %v4604 = vunpack.c.0.s8 %v4603
    %v4605 = vlaneseq
    %v4606 = vshrl.u32 %v4605, 7
    %v4607 = vsub.s32 %v4604, %v4606
    %v4608 = vrot.slane %v4601, %v4607
    %v4609 = vsel %vm3731, %v4600, %v4600
    %v4610 = vsel %vm3733, %v4600, %v4609
    %v4611 = vrot.slane %v4608, 7
    %v4612 = vsel %vm3736, %v4611, %v4610
    %v4613 = vsel %vm3738, %v4611, %v4612
    %v4614 = vsel %vm3740, %v4611, %v4613
    %v4615 = vsel %vm3742, %v4611, %v4614
    %4617 = vst.msk [vmem:[#allocation3 + $0x3c] sm:$0x3] %vm3745, %v4615
    %v4618 = vrot.slane %v4600, 1
    %v4619 = vsel %vm3731, %v4618, %v4618
    %v4620 = vsel %vm3733, %v4618, %v4619
    %v4621 = vsel %vm3736, %v4608, %v4620
    %v4622 = vsel %vm3738, %v4608, %v4621
    %v4623 = vsel %vm3740, %v4608, %v4622
    %v4624 = vsel %vm3742, %v4608, %v4623
    %4625 = vrot.lane.b32.xlu0 %v4624, 64
    %v4626 = vpop.permute.xlu0 %4625
    %4628 = vst.msk [vmem:[#allocation3 + $0x3c] sm:$0x3] %vm3757, %v4626
    %v4629 = vcombine.high %v4600, %v4600
    %v4630 = vcombine.high %v4608, %v4608
    %v4631 = vsel %vm3731, %v4629, %v4629
    %v4632 = vsel %vm3733, %v4629, %v4631
    %v4633 = vrot.slane %v4630, 7
    %v4634 = vsel %vm3736, %v4633, %v4632
    %v4635 = vsel %vm3738, %v4633, %v4634
    %v4636 = vsel %vm3740, %v4633, %v4635
    %v4637 = vsel %vm3742, %v4633, %v4636
    %4639 = vst.msk [vmem:[#allocation3 + $0x3e] sm:$0x3] %vm3745, %v4637
    %v4640 = vrot.slane %v4629, 1
    %v4641 = vsel %vm3731, %v4640, %v4640
    %v4642 = vsel %vm3733, %v4640, %v4641
    %v4643 = vsel %vm3736, %v4630, %v4642
    %v4644 = vsel %vm3738, %v4630, %v4643
    %v4645 = vsel %vm3740, %v4630, %v4644
    %v4646 = vsel %vm3742, %v4630, %v4645
    %4647 = vrot.lane.b32.xlu0 %v4646, 64
    %v4648 = vpop.permute.xlu0 %4647
    %4650 = vst.msk [vmem:[#allocation3 + $0x3e] sm:$0x3] %vm3757, %v4648
    %v4654 = vunpack.c.l.s4 1983009808
    %v4655 = vunpack.c.0.s8 %v4654
    %v4656 = vlaneseq
    %v4657 = vshrl.u32 %v4656, 7
    %v4658 = vsub.s32 %v4655, %v4657
    %v4659 = vrot.slane %v3691, %v4658
    %v4661 = vunpack.c.l.s4 1983009808
    %v4662 = vunpack.c.0.s8 %v4661
    %v4663 = vlaneseq
    %v4664 = vshrl.u32 %v4663, 7
    %v4665 = vsub.s32 %v4662, %v4664
    %v4666 = vrot.slane %v3707, %v4665
    %v4667 = vsel %vm3731, %v4659, %v4659
    %v4668 = vsel %vm3733, %v4659, %v4667
    %v4669 = vrot.slane %v4666, 7
    %v4670 = vsel %vm3736, %v4669, %v4668
    %v4671 = vsel %vm3738, %v4669, %v4670
    %v4672 = vsel %vm3740, %v4669, %v4671
    %v4673 = vsel %vm3742, %v4669, %v4672
    %4675 = vst.msk [vmem:[#allocation3 + $0x40] sm:$0x3] %vm3745, %v4673
    %v4676 = vrot.slane %v4659, 1
    %v4677 = vsel %vm3731, %v4676, %v4676
    %v4678 = vsel %vm3733, %v4676, %v4677
    %v4679 = vsel %vm3736, %v4666, %v4678
    %v4680 = vsel %vm3738, %v4666, %v4679
    %v4681 = vsel %vm3740, %v4666, %v4680
    %v4682 = vsel %vm3742, %v4666, %v4681
    %4683 = vrot.lane.b32.xlu0 %v4682, 64
    %v4684 = vpop.permute.xlu0 %4683
    %4686 = vst.msk [vmem:[#allocation3 + $0x40] sm:$0x3] %vm3757, %v4684
    %v4687 = vcombine.high %v4659, %v4659
    %v4688 = vcombine.high %v4666, %v4666
    %v4689 = vsel %vm3731, %v4687, %v4687
    %v4690 = vsel %vm3733, %v4687, %v4689
    %v4691 = vrot.slane %v4688, 7
    %v4692 = vsel %vm3736, %v4691, %v4690
    %v4693 = vsel %vm3738, %v4691, %v4692
    %v4694 = vsel %vm3740, %v4691, %v4693
    %v4695 = vsel %vm3742, %v4691, %v4694
    %4697 = vst.msk [vmem:[#allocation3 + $0x42] sm:$0x3] %vm3745, %v4695
    %v4698 = vrot.slane %v4687, 1
    %v4699 = vsel %vm3731, %v4698, %v4698
    %v4700 = vsel %vm3733, %v4698, %v4699
    %v4701 = vsel %vm3736, %v4688, %v4700
    %v4702 = vsel %vm3738, %v4688, %v4701
    %v4703 = vsel %vm3740, %v4688, %v4702
    %v4704 = vsel %vm3742, %v4688, %v4703
    %4705 = vrot.lane.b32.xlu0 %v4704, 64
    %v4706 = vpop.permute.xlu0 %4705
    %4708 = vst.msk [vmem:[#allocation3 + $0x42] sm:$0x3] %vm3757, %v4706
    %v4709 = vcombine.high %v3691, %v3691
    %v4711 = vunpack.c.l.s4 1983009808
    %v4712 = vunpack.c.0.s8 %v4711
    %v4713 = vlaneseq
    %v4714 = vshrl.u32 %v4713, 7
    %v4715 = vsub.s32 %v4712, %v4714
    %v4716 = vrot.slane %v4709, %v4715
    %v4717 = vcombine.high %v3707, %v3707
    %v4719 = vunpack.c.l.s4 1983009808
    %v4720 = vunpack.c.0.s8 %v4719
    %v4721 = vlaneseq
    %v4722 = vshrl.u32 %v4721, 7
    %v4723 = vsub.s32 %v4720, %v4722
    %v4724 = vrot.slane %v4717, %v4723
    %v4725 = vsel %vm3731, %v4716, %v4716
    %v4726 = vsel %vm3733, %v4716, %v4725
    %v4727 = vrot.slane %v4724, 7
    %v4728 = vsel %vm3736, %v4727, %v4726
    %v4729 = vsel %vm3738, %v4727, %v4728
    %v4730 = vsel %vm3740, %v4727, %v4729
    %v4731 = vsel %vm3742, %v4727, %v4730
    %4733 = vst.msk [vmem:[#allocation3 + $0x44] sm:$0x3] %vm3745, %v4731
    %v4734 = vrot.slane %v4716, 1
    %v4735 = vsel %vm3731, %v4734, %v4734
    %v4736 = vsel %vm3733, %v4734, %v4735
    %v4737 = vsel %vm3736, %v4724, %v4736
    %v4738 = vsel %vm3738, %v4724, %v4737
    %v4739 = vsel %vm3740, %v4724, %v4738
    %v4740 = vsel %vm3742, %v4724, %v4739
    %4741 = vrot.lane.b32.xlu0 %v4740, 64
    %v4742 = vpop.permute.xlu0 %4741
    %4744 = vst.msk [vmem:[#allocation3 + $0x44] sm:$0x3] %vm3757, %v4742
    %v4745 = vcombine.high %v4716, %v4716
    %v4746 = vcombine.high %v4724, %v4724
    %v4747 = vsel %vm3731, %v4745, %v4745
    %v4748 = vsel %vm3733, %v4745, %v4747
    %v4749 = vrot.slane %v4746, 7
    %v4750 = vsel %vm3736, %v4749, %v4748
    %v4751 = vsel %vm3738, %v4749, %v4750
    %v4752 = vsel %vm3740, %v4749, %v4751
    %v4753 = vsel %vm3742, %v4749, %v4752
    %4755 = vst.msk [vmem:[#allocation3 + $0x46] sm:$0x3] %vm3745, %v4753
    %v4756 = vrot.slane %v4745, 1
    %v4757 = vsel %vm3731, %v4756, %v4756
    %v4758 = vsel %vm3733, %v4756, %v4757
    %v4759 = vsel %vm3736, %v4746, %v4758
    %v4760 = vsel %vm3738, %v4746, %v4759
    %v4761 = vsel %vm3740, %v4746, %v4760
    %v4762 = vsel %vm3742, %v4746, %v4761
    %4763 = vrot.lane.b32.xlu0 %v4762, 64
    %v4764 = vpop.permute.xlu0 %4763
    %4766 = vst.msk [vmem:[#allocation3 + $0x46] sm:$0x3] %vm3757, %v4764
    %v4770 = vunpack.c.l.s4 1983009808
    %v4771 = vunpack.c.0.s8 %v4770
    %v4772 = vlaneseq
    %v4773 = vshrl.u32 %v4772, 7
    %v4774 = vsub.s32 %v4771, %v4773
    %v4775 = vrot.slane %v3692, %v4774
    %v4777 = vunpack.c.l.s4 1983009808
    %v4778 = vunpack.c.0.s8 %v4777
    %v4779 = vlaneseq
    %v4780 = vshrl.u32 %v4779, 7
    %v4781 = vsub.s32 %v4778, %v4780
    %v4782 = vrot.slane %v3708, %v4781
    %v4783 = vsel %vm3731, %v4775, %v4775
    %v4784 = vsel %vm3733, %v4775, %v4783
    %v4785 = vrot.slane %v4782, 7
    %v4786 = vsel %vm3736, %v4785, %v4784
    %v4787 = vsel %vm3738, %v4785, %v4786
    %v4788 = vsel %vm3740, %v4785, %v4787
    %v4789 = vsel %vm3742, %v4785, %v4788
    %4791 = vst.msk [vmem:[#allocation3 + $0x48] sm:$0x3] %vm3745, %v4789
    %v4792 = vrot.slane %v4775, 1
    %v4793 = vsel %vm3731, %v4792, %v4792
    %v4794 = vsel %vm3733, %v4792, %v4793
    %v4795 = vsel %vm3736, %v4782, %v4794
    %v4796 = vsel %vm3738, %v4782, %v4795
    %v4797 = vsel %vm3740, %v4782, %v4796
    %v4798 = vsel %vm3742, %v4782, %v4797
    %4799 = vrot.lane.b32.xlu0 %v4798, 64
    %v4800 = vpop.permute.xlu0 %4799
    %4802 = vst.msk [vmem:[#allocation3 + $0x48] sm:$0x3] %vm3757, %v4800
    %v4803 = vcombine.high %v4775, %v4775
    %v4804 = vcombine.high %v4782, %v4782
    %v4805 = vsel %vm3731, %v4803, %v4803
    %v4806 = vsel %vm3733, %v4803, %v4805
    %v4807 = vrot.slane %v4804, 7
    %v4808 = vsel %vm3736, %v4807, %v4806
    %v4809 = vsel %vm3738, %v4807, %v4808
    %v4810 = vsel %vm3740, %v4807, %v4809
    %v4811 = vsel %vm3742, %v4807, %v4810
    %4813 = vst.msk [vmem:[#allocation3 + $0x4a] sm:$0x3] %vm3745, %v4811
    %v4814 = vrot.slane %v4803, 1
    %v4815 = vsel %vm3731, %v4814, %v4814
    %v4816 = vsel %vm3733, %v4814, %v4815
    %v4817 = vsel %vm3736, %v4804, %v4816
    %v4818 = vsel %vm3738, %v4804, %v4817
    %v4819 = vsel %vm3740, %v4804, %v4818
    %v4820 = vsel %vm3742, %v4804, %v4819
    %4821 = vrot.lane.b32.xlu0 %v4820, 64
    %v4822 = vpop.permute.xlu0 %4821
    %4824 = vst.msk [vmem:[#allocation3 + $0x4a] sm:$0x3] %vm3757, %v4822
    %v4825 = vcombine.high %v3692, %v3692
    %v4827 = vunpack.c.l.s4 1983009808
    %v4828 = vunpack.c.0.s8 %v4827
    %v4829 = vlaneseq
    %v4830 = vshrl.u32 %v4829, 7
    %v4831 = vsub.s32 %v4828, %v4830
    %v4832 = vrot.slane %v4825, %v4831
    %v4833 = vcombine.high %v3708, %v3708
    %v4835 = vunpack.c.l.s4 1983009808
    %v4836 = vunpack.c.0.s8 %v4835
    %v4837 = vlaneseq
    %v4838 = vshrl.u32 %v4837, 7
    %v4839 = vsub.s32 %v4836, %v4838
    %v4840 = vrot.slane %v4833, %v4839
    %v4841 = vsel %vm3731, %v4832, %v4832
    %v4842 = vsel %vm3733, %v4832, %v4841
    %v4843 = vrot.slane %v4840, 7
    %v4844 = vsel %vm3736, %v4843, %v4842
    %v4845 = vsel %vm3738, %v4843, %v4844
    %v4846 = vsel %vm3740, %v4843, %v4845
    %v4847 = vsel %vm3742, %v4843, %v4846
    %4849 = vst.msk [vmem:[#allocation3 + $0x4c] sm:$0x3] %vm3745, %v4847
    %v4850 = vrot.slane %v4832, 1
    %v4851 = vsel %vm3731, %v4850, %v4850
    %v4852 = vsel %vm3733, %v4850, %v4851
    %v4853 = vsel %vm3736, %v4840, %v4852
    %v4854 = vsel %vm3738, %v4840, %v4853
    %v4855 = vsel %vm3740, %v4840, %v4854
    %v4856 = vsel %vm3742, %v4840, %v4855
    %4857 = vrot.lane.b32.xlu0 %v4856, 64
    %v4858 = vpop.permute.xlu0 %4857
    %4860 = vst.msk [vmem:[#allocation3 + $0x4c] sm:$0x3] %vm3757, %v4858
    %v4861 = vcombine.high %v4832, %v4832
    %v4862 = vcombine.high %v4840, %v4840
    %v4863 = vsel %vm3731, %v4861, %v4861
    %v4864 = vsel %vm3733, %v4861, %v4863
    %v4865 = vrot.slane %v4862, 7
    %v4866 = vsel %vm3736, %v4865, %v4864
    %v4867 = vsel %vm3738, %v4865, %v4866
    %v4868 = vsel %vm3740, %v4865, %v4867
    %v4869 = vsel %vm3742, %v4865, %v4868
    %4871 = vst.msk [vmem:[#allocation3 + $0x4e] sm:$0x3] %vm3745, %v4869
    %v4872 = vrot.slane %v4861, 1
    %v4873 = vsel %vm3731, %v4872, %v4872
    %v4874 = vsel %vm3733, %v4872, %v4873
    %v4875 = vsel %vm3736, %v4862, %v4874
    %v4876 = vsel %vm3738, %v4862, %v4875
    %v4877 = vsel %vm3740, %v4862, %v4876
    %v4878 = vsel %vm3742, %v4862, %v4877
    %4879 = vrot.lane.b32.xlu0 %v4878, 64
    %v4880 = vpop.permute.xlu0 %4879
    %4882 = vst.msk [vmem:[#allocation3 + $0x4e] sm:$0x3] %vm3757, %v4880
    %v4886 = vunpack.c.l.s4 1983009808
    %v4887 = vunpack.c.0.s8 %v4886
    %v4888 = vlaneseq
    %v4889 = vshrl.u32 %v4888, 7
    %v4890 = vsub.s32 %v4887, %v4889
    %v4891 = vrot.slane %v3693, %v4890
    %v4893 = vunpack.c.l.s4 1983009808
    %v4894 = vunpack.c.0.s8 %v4893
    %v4895 = vlaneseq
    %v4896 = vshrl.u32 %v4895, 7
    %v4897 = vsub.s32 %v4894, %v4896
    %v4898 = vrot.slane %v3709, %v4897
    %v4899 = vsel %vm3731, %v4891, %v4891
    %v4900 = vsel %vm3733, %v4891, %v4899
    %v4901 = vrot.slane %v4898, 7
    %v4902 = vsel %vm3736, %v4901, %v4900
    %v4903 = vsel %vm3738, %v4901, %v4902
    %v4904 = vsel %vm3740, %v4901, %v4903
    %v4905 = vsel %vm3742, %v4901, %v4904
    %4907 = vst.msk [vmem:[#allocation3 + $0x50] sm:$0x3] %vm3745, %v4905
    %v4908 = vrot.slane %v4891, 1
    %v4909 = vsel %vm3731, %v4908, %v4908
    %v4910 = vsel %vm3733, %v4908, %v4909
    %v4911 = vsel %vm3736, %v4898, %v4910
    %v4912 = vsel %vm3738, %v4898, %v4911
    %v4913 = vsel %vm3740, %v4898, %v4912
    %v4914 = vsel %vm3742, %v4898, %v4913
    %4915 = vrot.lane.b32.xlu0 %v4914, 64
    %v4916 = vpop.permute.xlu0 %4915
    %4918 = vst.msk [vmem:[#allocation3 + $0x50] sm:$0x3] %vm3757, %v4916
    %v4919 = vcombine.high %v4891, %v4891
    %v4920 = vcombine.high %v4898, %v4898
    %v4921 = vsel %vm3731, %v4919, %v4919
    %v4922 = vsel %vm3733, %v4919, %v4921
    %v4923 = vrot.slane %v4920, 7
    %v4924 = vsel %vm3736, %v4923, %v4922
    %v4925 = vsel %vm3738, %v4923, %v4924
    %v4926 = vsel %vm3740, %v4923, %v4925
    %v4927 = vsel %vm3742, %v4923, %v4926
    %4929 = vst.msk [vmem:[#allocation3 + $0x52] sm:$0x3] %vm3745, %v4927
    %v4930 = vrot.slane %v4919, 1
    %v4931 = vsel %vm3731, %v4930, %v4930
    %v4932 = vsel %vm3733, %v4930, %v4931
    %v4933 = vsel %vm3736, %v4920, %v4932
    %v4934 = vsel %vm3738, %v4920, %v4933
    %v4935 = vsel %vm3740, %v4920, %v4934
    %v4936 = vsel %vm3742, %v4920, %v4935
    %4937 = vrot.lane.b32.xlu0 %v4936, 64
    %v4938 = vpop.permute.xlu0 %4937
    %4940 = vst.msk [vmem:[#allocation3 + $0x52] sm:$0x3] %vm3757, %v4938
    %v4941 = vcombine.high %v3693, %v3693
    %v4943 = vunpack.c.l.s4 1983009808
    %v4944 = vunpack.c.0.s8 %v4943
    %v4945 = vlaneseq
    %v4946 = vshrl.u32 %v4945, 7
    %v4947 = vsub.s32 %v4944, %v4946
    %v4948 = vrot.slane %v4941, %v4947
    %v4949 = vcombine.high %v3709, %v3709
    %v4951 = vunpack.c.l.s4 1983009808
    %v4952 = vunpack.c.0.s8 %v4951
    %v4953 = vlaneseq
    %v4954 = vshrl.u32 %v4953, 7
    %v4955 = vsub.s32 %v4952, %v4954
    %v4956 = vrot.slane %v4949, %v4955
    %v4957 = vsel %vm3731, %v4948, %v4948
    %v4958 = vsel %vm3733, %v4948, %v4957
    %v4959 = vrot.slane %v4956, 7
    %v4960 = vsel %vm3736, %v4959, %v4958
    %v4961 = vsel %vm3738, %v4959, %v4960
    %v4962 = vsel %vm3740, %v4959, %v4961
    %v4963 = vsel %vm3742, %v4959, %v4962
    %4965 = vst.msk [vmem:[#allocation3 + $0x54] sm:$0x3] %vm3745, %v4963
    %v4966 = vrot.slane %v4948, 1
    %v4967 = vsel %vm3731, %v4966, %v4966
    %v4968 = vsel %vm3733, %v4966, %v4967
    %v4969 = vsel %vm3736, %v4956, %v4968
    %v4970 = vsel %vm3738, %v4956, %v4969
    %v4971 = vsel %vm3740, %v4956, %v4970
    %v4972 = vsel %vm3742, %v4956, %v4971
    %4973 = vrot.lane.b32.xlu0 %v4972, 64
    %v4974 = vpop.permute.xlu0 %4973
    %4976 = vst.msk [vmem:[#allocation3 + $0x54] sm:$0x3] %vm3757, %v4974
    %v4977 = vcombine.high %v4948, %v4948
    %v4978 = vcombine.high %v4956, %v4956
    %v4979 = vsel %vm3731, %v4977, %v4977
    %v4980 = vsel %vm3733, %v4977, %v4979
    %v4981 = vrot.slane %v4978, 7
    %v4982 = vsel %vm3736, %v4981, %v4980
    %v4983 = vsel %vm3738, %v4981, %v4982
    %v4984 = vsel %vm3740, %v4981, %v4983
    %v4985 = vsel %vm3742, %v4981, %v4984
    %4987 = vst.msk [vmem:[#allocation3 + $0x56] sm:$0x3] %vm3745, %v4985
    %v4988 = vrot.slane %v4977, 1
    %v4989 = vsel %vm3731, %v4988, %v4988
    %v4990 = vsel %vm3733, %v4988, %v4989
    %v4991 = vsel %vm3736, %v4978, %v4990
    %v4992 = vsel %vm3738, %v4978, %v4991
    %v4993 = vsel %vm3740, %v4978, %v4992
    %v4994 = vsel %vm3742, %v4978, %v4993
    %4995 = vrot.lane.b32.xlu0 %v4994, 64
    %v4996 = vpop.permute.xlu0 %4995
    %4998 = vst.msk [vmem:[#allocation3 + $0x56] sm:$0x3] %vm3757, %v4996
    %v5002 = vunpack.c.l.s4 1983009808
    %v5003 = vunpack.c.0.s8 %v5002
    %v5004 = vlaneseq
    %v5005 = vshrl.u32 %v5004, 7
    %v5006 = vsub.s32 %v5003, %v5005
    %v5007 = vrot.slane %v3694, %v5006
    %v5009 = vunpack.c.l.s4 1983009808
    %v5010 = vunpack.c.0.s8 %v5009
    %v5011 = vlaneseq
    %v5012 = vshrl.u32 %v5011, 7
    %v5013 = vsub.s32 %v5010, %v5012
    %v5014 = vrot.slane %v3710, %v5013
    %v5015 = vsel %vm3731, %v5007, %v5007
    %v5016 = vsel %vm3733, %v5007, %v5015
    %v5017 = vrot.slane %v5014, 7
    %v5018 = vsel %vm3736, %v5017, %v5016
    %v5019 = vsel %vm3738, %v5017, %v5018
    %v5020 = vsel %vm3740, %v5017, %v5019
    %v5021 = vsel %vm3742, %v5017, %v5020
    %5023 = vst.msk [vmem:[#allocation3 + $0x58] sm:$0x3] %vm3745, %v5021
    %v5024 = vrot.slane %v5007, 1
    %v5025 = vsel %vm3731, %v5024, %v5024
    %v5026 = vsel %vm3733, %v5024, %v5025
    %v5027 = vsel %vm3736, %v5014, %v5026
    %v5028 = vsel %vm3738, %v5014, %v5027
    %v5029 = vsel %vm3740, %v5014, %v5028
    %v5030 = vsel %vm3742, %v5014, %v5029
    %5031 = vrot.lane.b32.xlu0 %v5030, 64
    %v5032 = vpop.permute.xlu0 %5031
    %5034 = vst.msk [vmem:[#allocation3 + $0x58] sm:$0x3] %vm3757, %v5032
    %v5035 = vcombine.high %v5007, %v5007
    %v5036 = vcombine.high %v5014, %v5014
    %v5037 = vsel %vm3731, %v5035, %v5035
    %v5038 = vsel %vm3733, %v5035, %v5037
    %v5039 = vrot.slane %v5036, 7
    %v5040 = vsel %vm3736, %v5039, %v5038
    %v5041 = vsel %vm3738, %v5039, %v5040
    %v5042 = vsel %vm3740, %v5039, %v5041
    %v5043 = vsel %vm3742, %v5039, %v5042
    %5045 = vst.msk [vmem:[#allocation3 + $0x5a] sm:$0x3] %vm3745, %v5043
    %v5046 = vrot.slane %v5035, 1
    %v5047 = vsel %vm3731, %v5046, %v5046
    %v5048 = vsel %vm3733, %v5046, %v5047
    %v5049 = vsel %vm3736, %v5036, %v5048
    %v5050 = vsel %vm3738, %v5036, %v5049
    %v5051 = vsel %vm3740, %v5036, %v5050
    %v5052 = vsel %vm3742, %v5036, %v5051
    %5053 = vrot.lane.b32.xlu0 %v5052, 64
    %v5054 = vpop.permute.xlu0 %5053
    %5056 = vst.msk [vmem:[#allocation3 + $0x5a] sm:$0x3] %vm3757, %v5054
    %v5057 = vcombine.high %v3694, %v3694
    %v5059 = vunpack.c.l.s4 1983009808
    %v5060 = vunpack.c.0.s8 %v5059
    %v5061 = vlaneseq
    %v5062 = vshrl.u32 %v5061, 7
    %v5063 = vsub.s32 %v5060, %v5062
    %v5064 = vrot.slane %v5057, %v5063
    %v5065 = vcombine.high %v3710, %v3710
    %v5067 = vunpack.c.l.s4 1983009808
    %v5068 = vunpack.c.0.s8 %v5067
    %v5069 = vlaneseq
    %v5070 = vshrl.u32 %v5069, 7
    %v5071 = vsub.s32 %v5068, %v5070
    %v5072 = vrot.slane %v5065, %v5071
    %v5073 = vsel %vm3731, %v5064, %v5064
    %v5074 = vsel %vm3733, %v5064, %v5073
    %v5075 = vrot.slane %v5072, 7
    %v5076 = vsel %vm3736, %v5075, %v5074
    %v5077 = vsel %vm3738, %v5075, %v5076
    %v5078 = vsel %vm3740, %v5075, %v5077
    %v5079 = vsel %vm3742, %v5075, %v5078
    %5081 = vst.msk [vmem:[#allocation3 + $0x5c] sm:$0x3] %vm3745, %v5079
    %v5082 = vrot.slane %v5064, 1
    %v5083 = vsel %vm3731, %v5082, %v5082
    %v5084 = vsel %vm3733, %v5082, %v5083
    %v5085 = vsel %vm3736, %v5072, %v5084
    %v5086 = vsel %vm3738, %v5072, %v5085
    %v5087 = vsel %vm3740, %v5072, %v5086
    %v5088 = vsel %vm3742, %v5072, %v5087
    %5089 = vrot.lane.b32.xlu0 %v5088, 64
    %v5090 = vpop.permute.xlu0 %5089
    %5092 = vst.msk [vmem:[#allocation3 + $0x5c] sm:$0x3] %vm3757, %v5090
    %v5093 = vcombine.high %v5064, %v5064
    %v5094 = vcombine.high %v5072, %v5072
    %v5095 = vsel %vm3731, %v5093, %v5093
    %v5096 = vsel %vm3733, %v5093, %v5095
    %v5097 = vrot.slane %v5094, 7
    %v5098 = vsel %vm3736, %v5097, %v5096
    %v5099 = vsel %vm3738, %v5097, %v5098
    %v5100 = vsel %vm3740, %v5097, %v5099
    %v5101 = vsel %vm3742, %v5097, %v5100
    %5103 = vst.msk [vmem:[#allocation3 + $0x5e] sm:$0x3] %vm3745, %v5101
    %v5104 = vrot.slane %v5093, 1
    %v5105 = vsel %vm3731, %v5104, %v5104
    %v5106 = vsel %vm3733, %v5104, %v5105
    %v5107 = vsel %vm3736, %v5094, %v5106
    %v5108 = vsel %vm3738, %v5094, %v5107
    %v5109 = vsel %vm3740, %v5094, %v5108
    %v5110 = vsel %vm3742, %v5094, %v5109
    %5111 = vrot.lane.b32.xlu0 %v5110, 64
    %v5112 = vpop.permute.xlu0 %5111
    %5114 = vst.msk [vmem:[#allocation3 + $0x5e] sm:$0x3] %vm3757, %v5112
    %v5118 = vunpack.c.l.s4 1983009808
    %v5119 = vunpack.c.0.s8 %v5118
    %v5120 = vlaneseq
    %v5121 = vshrl.u32 %v5120, 7
    %v5122 = vsub.s32 %v5119, %v5121
    %v5123 = vrot.slane %v3695, %v5122
    %v5125 = vunpack.c.l.s4 1983009808
    %v5126 = vunpack.c.0.s8 %v5125
    %v5127 = vlaneseq
    %v5128 = vshrl.u32 %v5127, 7
    %v5129 = vsub.s32 %v5126, %v5128
    %v5130 = vrot.slane %v3711, %v5129
    %v5131 = vsel %vm3731, %v5123, %v5123
    %v5132 = vsel %vm3733, %v5123, %v5131
    %v5133 = vrot.slane %v5130, 7
    %v5134 = vsel %vm3736, %v5133, %v5132
    %v5135 = vsel %vm3738, %v5133, %v5134
    %v5136 = vsel %vm3740, %v5133, %v5135
    %v5137 = vsel %vm3742, %v5133, %v5136
    %5139 = vst.msk [vmem:[#allocation3 + $0x60] sm:$0x3] %vm3745, %v5137
    %v5140 = vrot.slane %v5123, 1
    %v5141 = vsel %vm3731, %v5140, %v5140
    %v5142 = vsel %vm3733, %v5140, %v5141
    %v5143 = vsel %vm3736, %v5130, %v5142
    %v5144 = vsel %vm3738, %v5130, %v5143
    %v5145 = vsel %vm3740, %v5130, %v5144
    %v5146 = vsel %vm3742, %v5130, %v5145
    %5147 = vrot.lane.b32.xlu0 %v5146, 64
    %v5148 = vpop.permute.xlu0 %5147
    %5150 = vst.msk [vmem:[#allocation3 + $0x60] sm:$0x3] %vm3757, %v5148
    %v5151 = vcombine.high %v5123, %v5123
    %v5152 = vcombine.high %v5130, %v5130
    %v5153 = vsel %vm3731, %v5151, %v5151
    %v5154 = vsel %vm3733, %v5151, %v5153
    %v5155 = vrot.slane %v5152, 7
    %v5156 = vsel %vm3736, %v5155, %v5154
    %v5157 = vsel %vm3738, %v5155, %v5156
    %v5158 = vsel %vm3740, %v5155, %v5157
    %v5159 = vsel %vm3742, %v5155, %v5158
    %5161 = vst.msk [vmem:[#allocation3 + $0x62] sm:$0x3] %vm3745, %v5159
    %v5162 = vrot.slane %v5151, 1
    %v5163 = vsel %vm3731, %v5162, %v5162
    %v5164 = vsel %vm3733, %v5162, %v5163
    %v5165 = vsel %vm3736, %v5152, %v5164
    %v5166 = vsel %vm3738, %v5152, %v5165
    %v5167 = vsel %vm3740, %v5152, %v5166
    %v5168 = vsel %vm3742, %v5152, %v5167
    %5169 = vrot.lane.b32.xlu0 %v5168, 64
    %v5170 = vpop.permute.xlu0 %5169
    %5172 = vst.msk [vmem:[#allocation3 + $0x62] sm:$0x3] %vm3757, %v5170
    %v5173 = vcombine.high %v3695, %v3695
    %v5175 = vunpack.c.l.s4 1983009808
    %v5176 = vunpack.c.0.s8 %v5175
    %v5177 = vlaneseq
    %v5178 = vshrl.u32 %v5177, 7
    %v5179 = vsub.s32 %v5176, %v5178
    %v5180 = vrot.slane %v5173, %v5179
    %v5181 = vcombine.high %v3711, %v3711
    %v5183 = vunpack.c.l.s4 1983009808
    %v5184 = vunpack.c.0.s8 %v5183
    %v5185 = vlaneseq
    %v5186 = vshrl.u32 %v5185, 7
    %v5187 = vsub.s32 %v5184, %v5186
    %v5188 = vrot.slane %v5181, %v5187
    %v5189 = vsel %vm3731, %v5180, %v5180
    %v5190 = vsel %vm3733, %v5180, %v5189
    %v5191 = vrot.slane %v5188, 7
    %v5192 = vsel %vm3736, %v5191, %v5190
    %v5193 = vsel %vm3738, %v5191, %v5192
    %v5194 = vsel %vm3740, %v5191, %v5193
    %v5195 = vsel %vm3742, %v5191, %v5194
    %5197 = vst.msk [vmem:[#allocation3 + $0x64] sm:$0x3] %vm3745, %v5195
    %v5198 = vrot.slane %v5180, 1
    %v5199 = vsel %vm3731, %v5198, %v5198
    %v5200 = vsel %vm3733, %v5198, %v5199
    %v5201 = vsel %vm3736, %v5188, %v5200
    %v5202 = vsel %vm3738, %v5188, %v5201
    %v5203 = vsel %vm3740, %v5188, %v5202
    %v5204 = vsel %vm3742, %v5188, %v5203
    %5205 = vrot.lane.b32.xlu0 %v5204, 64
    %v5206 = vpop.permute.xlu0 %5205
    %5208 = vst.msk [vmem:[#allocation3 + $0x64] sm:$0x3] %vm3757, %v5206
    %v5209 = vcombine.high %v5180, %v5180
    %v5210 = vcombine.high %v5188, %v5188
    %v5211 = vsel %vm3731, %v5209, %v5209
    %v5212 = vsel %vm3733, %v5209, %v5211
    %v5213 = vrot.slane %v5210, 7
    %v5214 = vsel %vm3736, %v5213, %v5212
    %v5215 = vsel %vm3738, %v5213, %v5214
    %v5216 = vsel %vm3740, %v5213, %v5215
    %v5217 = vsel %vm3742, %v5213, %v5216
    %5219 = vst.msk [vmem:[#allocation3 + $0x66] sm:$0x3] %vm3745, %v5217
    %v5220 = vrot.slane %v5209, 1
    %v5221 = vsel %vm3731, %v5220, %v5220
    %v5222 = vsel %vm3733, %v5220, %v5221
    %v5223 = vsel %vm3736, %v5210, %v5222
    %v5224 = vsel %vm3738, %v5210, %v5223
    %v5225 = vsel %vm3740, %v5210, %v5224
    %v5226 = vsel %vm3742, %v5210, %v5225
    %5227 = vrot.lane.b32.xlu0 %v5226, 64
    %v5228 = vpop.permute.xlu0 %5227
    %5230 = vst.msk [vmem:[#allocation3 + $0x66] sm:$0x3] %vm3757, %v5228
    %v5234 = vunpack.c.l.s4 1983009808
    %v5235 = vunpack.c.0.s8 %v5234
    %v5236 = vlaneseq
    %v5237 = vshrl.u32 %v5236, 7
    %v5238 = vsub.s32 %v5235, %v5237
    %v5239 = vrot.slane %v3696, %v5238
    %v5241 = vunpack.c.l.s4 1983009808
    %v5242 = vunpack.c.0.s8 %v5241
    %v5243 = vlaneseq
    %v5244 = vshrl.u32 %v5243, 7
    %v5245 = vsub.s32 %v5242, %v5244
    %v5246 = vrot.slane %v3712, %v5245
    %v5247 = vsel %vm3731, %v5239, %v5239
    %v5248 = vsel %vm3733, %v5239, %v5247
    %v5249 = vrot.slane %v5246, 7
    %v5250 = vsel %vm3736, %v5249, %v5248
    %v5251 = vsel %vm3738, %v5249, %v5250
    %v5252 = vsel %vm3740, %v5249, %v5251
    %v5253 = vsel %vm3742, %v5249, %v5252
    %5255 = vst.msk [vmem:[#allocation3 + $0x68] sm:$0x3] %vm3745, %v5253
    %v5256 = vrot.slane %v5239, 1
    %v5257 = vsel %vm3731, %v5256, %v5256
    %v5258 = vsel %vm3733, %v5256, %v5257
    %v5259 = vsel %vm3736, %v5246, %v5258
    %v5260 = vsel %vm3738, %v5246, %v5259
    %v5261 = vsel %vm3740, %v5246, %v5260
    %v5262 = vsel %vm3742, %v5246, %v5261
    %5263 = vrot.lane.b32.xlu0 %v5262, 64
    %v5264 = vpop.permute.xlu0 %5263
    %5266 = vst.msk [vmem:[#allocation3 + $0x68] sm:$0x3] %vm3757, %v5264
    %v5267 = vcombine.high %v5239, %v5239
    %v5268 = vcombine.high %v5246, %v5246
    %v5269 = vsel %vm3731, %v5267, %v5267
    %v5270 = vsel %vm3733, %v5267, %v5269
    %v5271 = vrot.slane %v5268, 7
    %v5272 = vsel %vm3736, %v5271, %v5270
    %v5273 = vsel %vm3738, %v5271, %v5272
    %v5274 = vsel %vm3740, %v5271, %v5273
    %v5275 = vsel %vm3742, %v5271, %v5274
    %5277 = vst.msk [vmem:[#allocation3 + $0x6a] sm:$0x3] %vm3745, %v5275
    %v5278 = vrot.slane %v5267, 1
    %v5279 = vsel %vm3731, %v5278, %v5278
    %v5280 = vsel %vm3733, %v5278, %v5279
    %v5281 = vsel %vm3736, %v5268, %v5280
    %v5282 = vsel %vm3738, %v5268, %v5281
    %v5283 = vsel %vm3740, %v5268, %v5282
    %v5284 = vsel %vm3742, %v5268, %v5283
    %5285 = vrot.lane.b32.xlu0 %v5284, 64
    %v5286 = vpop.permute.xlu0 %5285
    %5288 = vst.msk [vmem:[#allocation3 + $0x6a] sm:$0x3] %vm3757, %v5286
    %v5289 = vcombine.high %v3696, %v3696
    %v5291 = vunpack.c.l.s4 1983009808
    %v5292 = vunpack.c.0.s8 %v5291
    %v5293 = vlaneseq
    %v5294 = vshrl.u32 %v5293, 7
    %v5295 = vsub.s32 %v5292, %v5294
    %v5296 = vrot.slane %v5289, %v5295
    %v5297 = vcombine.high %v3712, %v3712
    %v5299 = vunpack.c.l.s4 1983009808
    %v5300 = vunpack.c.0.s8 %v5299
    %v5301 = vlaneseq
    %v5302 = vshrl.u32 %v5301, 7
    %v5303 = vsub.s32 %v5300, %v5302
    %v5304 = vrot.slane %v5297, %v5303
    %v5305 = vsel %vm3731, %v5296, %v5296
    %v5306 = vsel %vm3733, %v5296, %v5305
    %v5307 = vrot.slane %v5304, 7
    %v5308 = vsel %vm3736, %v5307, %v5306
    %v5309 = vsel %vm3738, %v5307, %v5308
    %v5310 = vsel %vm3740, %v5307, %v5309
    %v5311 = vsel %vm3742, %v5307, %v5310
    %5313 = vst.msk [vmem:[#allocation3 + $0x6c] sm:$0x3] %vm3745, %v5311
    %v5314 = vrot.slane %v5296, 1
    %v5315 = vsel %vm3731, %v5314, %v5314
    %v5316 = vsel %vm3733, %v5314, %v5315
    %v5317 = vsel %vm3736, %v5304, %v5316
    %v5318 = vsel %vm3738, %v5304, %v5317
    %v5319 = vsel %vm3740, %v5304, %v5318
    %v5320 = vsel %vm3742, %v5304, %v5319
    %5321 = vrot.lane.b32.xlu0 %v5320, 64
    %v5322 = vpop.permute.xlu0 %5321
    %5324 = vst.msk [vmem:[#allocation3 + $0x6c] sm:$0x3] %vm3757, %v5322
    %v5325 = vcombine.high %v5296, %v5296
    %v5326 = vcombine.high %v5304, %v5304
    %v5327 = vsel %vm3731, %v5325, %v5325
    %v5328 = vsel %vm3733, %v5325, %v5327
    %v5329 = vrot.slane %v5326, 7
    %v5330 = vsel %vm3736, %v5329, %v5328
    %v5331 = vsel %vm3738, %v5329, %v5330
    %v5332 = vsel %vm3740, %v5329, %v5331
    %v5333 = vsel %vm3742, %v5329, %v5332
    %5335 = vst.msk [vmem:[#allocation3 + $0x6e] sm:$0x3] %vm3745, %v5333
    %v5336 = vrot.slane %v5325, 1
    %v5337 = vsel %vm3731, %v5336, %v5336
    %v5338 = vsel %vm3733, %v5336, %v5337
    %v5339 = vsel %vm3736, %v5326, %v5338
    %v5340 = vsel %vm3738, %v5326, %v5339
    %v5341 = vsel %vm3740, %v5326, %v5340
    %v5342 = vsel %vm3742, %v5326, %v5341
    %5343 = vrot.lane.b32.xlu0 %v5342, 64
    %v5344 = vpop.permute.xlu0 %5343
    %5346 = vst.msk [vmem:[#allocation3 + $0x6e] sm:$0x3] %vm3757, %v5344
    %v5350 = vunpack.c.l.s4 1983009808
    %v5351 = vunpack.c.0.s8 %v5350
    %v5352 = vlaneseq
    %v5353 = vshrl.u32 %v5352, 7
    %v5354 = vsub.s32 %v5351, %v5353
    %v5355 = vrot.slane %v3697, %v5354
    %v5357 = vunpack.c.l.s4 1983009808
    %v5358 = vunpack.c.0.s8 %v5357
    %v5359 = vlaneseq
    %v5360 = vshrl.u32 %v5359, 7
    %v5361 = vsub.s32 %v5358, %v5360
    %v5362 = vrot.slane %v3713, %v5361
    %v5363 = vsel %vm3731, %v5355, %v5355
    %v5364 = vsel %vm3733, %v5355, %v5363
    %v5365 = vrot.slane %v5362, 7
    %v5366 = vsel %vm3736, %v5365, %v5364
    %v5367 = vsel %vm3738, %v5365, %v5366
    %v5368 = vsel %vm3740, %v5365, %v5367
    %v5369 = vsel %vm3742, %v5365, %v5368
    %5371 = vst.msk [vmem:[#allocation3 + $0x70] sm:$0x3] %vm3745, %v5369
    %v5372 = vrot.slane %v5355, 1
    %v5373 = vsel %vm3731, %v5372, %v5372
    %v5374 = vsel %vm3733, %v5372, %v5373
    %v5375 = vsel %vm3736, %v5362, %v5374
    %v5376 = vsel %vm3738, %v5362, %v5375
    %v5377 = vsel %vm3740, %v5362, %v5376
    %v5378 = vsel %vm3742, %v5362, %v5377
    %5379 = vrot.lane.b32.xlu0 %v5378, 64
    %v5380 = vpop.permute.xlu0 %5379
    %5382 = vst.msk [vmem:[#allocation3 + $0x70] sm:$0x3] %vm3757, %v5380
    %v5383 = vcombine.high %v5355, %v5355
    %v5384 = vcombine.high %v5362, %v5362
    %v5385 = vsel %vm3731, %v5383, %v5383
    %v5386 = vsel %vm3733, %v5383, %v5385
    %v5387 = vrot.slane %v5384, 7
    %v5388 = vsel %vm3736, %v5387, %v5386
    %v5389 = vsel %vm3738, %v5387, %v5388
    %v5390 = vsel %vm3740, %v5387, %v5389
    %v5391 = vsel %vm3742, %v5387, %v5390
    %5393 = vst.msk [vmem:[#allocation3 + $0x72] sm:$0x3] %vm3745, %v5391
    %v5394 = vrot.slane %v5383, 1
    %v5395 = vsel %vm3731, %v5394, %v5394
    %v5396 = vsel %vm3733, %v5394, %v5395
    %v5397 = vsel %vm3736, %v5384, %v5396
    %v5398 = vsel %vm3738, %v5384, %v5397
    %v5399 = vsel %vm3740, %v5384, %v5398
    %v5400 = vsel %vm3742, %v5384, %v5399
    %5401 = vrot.lane.b32.xlu0 %v5400, 64
    %v5402 = vpop.permute.xlu0 %5401
    %5404 = vst.msk [vmem:[#allocation3 + $0x72] sm:$0x3] %vm3757, %v5402
    %v5405 = vcombine.high %v3697, %v3697
    %v5407 = vunpack.c.l.s4 1983009808
    %v5408 = vunpack.c.0.s8 %v5407
    %v5409 = vlaneseq
    %v5410 = vshrl.u32 %v5409, 7
    %v5411 = vsub.s32 %v5408, %v5410
    %v5412 = vrot.slane %v5405, %v5411
    %v5413 = vcombine.high %v3713, %v3713
    %v5415 = vunpack.c.l.s4 1983009808
    %v5416 = vunpack.c.0.s8 %v5415
    %v5417 = vlaneseq
    %v5418 = vshrl.u32 %v5417, 7
    %v5419 = vsub.s32 %v5416, %v5418
    %v5420 = vrot.slane %v5413, %v5419
    %v5421 = vsel %vm3731, %v5412, %v5412
    %v5422 = vsel %vm3733, %v5412, %v5421
    %v5423 = vrot.slane %v5420, 7
    %v5424 = vsel %vm3736, %v5423, %v5422
    %v5425 = vsel %vm3738, %v5423, %v5424
    %v5426 = vsel %vm3740, %v5423, %v5425
    %v5427 = vsel %vm3742, %v5423, %v5426
    %5429 = vst.msk [vmem:[#allocation3 + $0x74] sm:$0x3] %vm3745, %v5427
    %v5430 = vrot.slane %v5412, 1
    %v5431 = vsel %vm3731, %v5430, %v5430
    %v5432 = vsel %vm3733, %v5430, %v5431
    %v5433 = vsel %vm3736, %v5420, %v5432
    %v5434 = vsel %vm3738, %v5420, %v5433
    %v5435 = vsel %vm3740, %v5420, %v5434
    %v5436 = vsel %vm3742, %v5420, %v5435
    %5437 = vrot.lane.b32.xlu0 %v5436, 64
    %v5438 = vpop.permute.xlu0 %5437
    %5440 = vst.msk [vmem:[#allocation3 + $0x74] sm:$0x3] %vm3757, %v5438
    %v5441 = vcombine.high %v5412, %v5412
    %v5442 = vcombine.high %v5420, %v5420
    %v5443 = vsel %vm3731, %v5441, %v5441
    %v5444 = vsel %vm3733, %v5441, %v5443
    %v5445 = vrot.slane %v5442, 7
    %v5446 = vsel %vm3736, %v5445, %v5444
    %v5447 = vsel %vm3738, %v5445, %v5446
    %v5448 = vsel %vm3740, %v5445, %v5447
    %v5449 = vsel %vm3742, %v5445, %v5448
    %5451 = vst.msk [vmem:[#allocation3 + $0x76] sm:$0x3] %vm3745, %v5449
    %v5452 = vrot.slane %v5441, 1
    %v5453 = vsel %vm3731, %v5452, %v5452
    %v5454 = vsel %vm3733, %v5452, %v5453
    %v5455 = vsel %vm3736, %v5442, %v5454
    %v5456 = vsel %vm3738, %v5442, %v5455
    %v5457 = vsel %vm3740, %v5442, %v5456
    %v5458 = vsel %vm3742, %v5442, %v5457
    %5459 = vrot.lane.b32.xlu0 %v5458, 64
    %v5460 = vpop.permute.xlu0 %5459
    %5462 = vst.msk [vmem:[#allocation3 + $0x76] sm:$0x3] %vm3757, %v5460
    %v5466 = vunpack.c.l.s4 1983009808
    %v5467 = vunpack.c.0.s8 %v5466
    %v5468 = vlaneseq
    %v5469 = vshrl.u32 %v5468, 7
    %v5470 = vsub.s32 %v5467, %v5469
    %v5471 = vrot.slane %v3698, %v5470
    %v5473 = vunpack.c.l.s4 1983009808
    %v5474 = vunpack.c.0.s8 %v5473
    %v5475 = vlaneseq
    %v5476 = vshrl.u32 %v5475, 7
    %v5477 = vsub.s32 %v5474, %v5476
    %v5478 = vrot.slane %v3714, %v5477
    %v5479 = vsel %vm3731, %v5471, %v5471
    %v5480 = vsel %vm3733, %v5471, %v5479
    %v5481 = vrot.slane %v5478, 7
    %v5482 = vsel %vm3736, %v5481, %v5480
    %v5483 = vsel %vm3738, %v5481, %v5482
    %v5484 = vsel %vm3740, %v5481, %v5483
    %v5485 = vsel %vm3742, %v5481, %v5484
    %5487 = vst.msk [vmem:[#allocation3 + $0x78] sm:$0x3] %vm3745, %v5485
    %v5488 = vrot.slane %v5471, 1
    %v5489 = vsel %vm3731, %v5488, %v5488
    %v5490 = vsel %vm3733, %v5488, %v5489
    %v5491 = vsel %vm3736, %v5478, %v5490
    %v5492 = vsel %vm3738, %v5478, %v5491
    %v5493 = vsel %vm3740, %v5478, %v5492
    %v5494 = vsel %vm3742, %v5478, %v5493
    %5495 = vrot.lane.b32.xlu0 %v5494, 64
    %v5496 = vpop.permute.xlu0 %5495
    %5498 = vst.msk [vmem:[#allocation3 + $0x78] sm:$0x3] %vm3757, %v5496
    %v5499 = vcombine.high %v5471, %v5471
    %v5500 = vcombine.high %v5478, %v5478
    %v5501 = vsel %vm3731, %v5499, %v5499
    %v5502 = vsel %vm3733, %v5499, %v5501
    %v5503 = vrot.slane %v5500, 7
    %v5504 = vsel %vm3736, %v5503, %v5502
    %v5505 = vsel %vm3738, %v5503, %v5504
    %v5506 = vsel %vm3740, %v5503, %v5505
    %v5507 = vsel %vm3742, %v5503, %v5506
    %5509 = vst.msk [vmem:[#allocation3 + $0x7a] sm:$0x3] %vm3745, %v5507
    %v5510 = vrot.slane %v5499, 1
    %v5511 = vsel %vm3731, %v5510, %v5510
    %v5512 = vsel %vm3733, %v5510, %v5511
    %v5513 = vsel %vm3736, %v5500, %v5512
    %v5514 = vsel %vm3738, %v5500, %v5513
    %v5515 = vsel %vm3740, %v5500, %v5514
    %v5516 = vsel %vm3742, %v5500, %v5515
    %5517 = vrot.lane.b32.xlu0 %v5516, 64
    %v5518 = vpop.permute.xlu0 %5517
    %5520 = vst.msk [vmem:[#allocation3 + $0x7a] sm:$0x3] %vm3757, %v5518
    %v5521 = vcombine.high %v3698, %v3698
    %v5523 = vunpack.c.l.s4 1983009808
    %v5524 = vunpack.c.0.s8 %v5523
    %v5525 = vlaneseq
    %v5526 = vshrl.u32 %v5525, 7
    %v5527 = vsub.s32 %v5524, %v5526
    %v5528 = vrot.slane %v5521, %v5527
    %v5529 = vcombine.high %v3714, %v3714
    %v5531 = vunpack.c.l.s4 1983009808
    %v5532 = vunpack.c.0.s8 %v5531
    %v5533 = vlaneseq
    %v5534 = vshrl.u32 %v5533, 7
    %v5535 = vsub.s32 %v5532, %v5534
    %v5536 = vrot.slane %v5529, %v5535
    %v5537 = vsel %vm3731, %v5528, %v5528
    %v5538 = vsel %vm3733, %v5528, %v5537
    %v5539 = vrot.slane %v5536, 7
    %v5540 = vsel %vm3736, %v5539, %v5538
    %v5541 = vsel %vm3738, %v5539, %v5540
    %v5542 = vsel %vm3740, %v5539, %v5541
    %v5543 = vsel %vm3742, %v5539, %v5542
    %5545 = vst.msk [vmem:[#allocation3 + $0x7c] sm:$0x3] %vm3745, %v5543
    %v5546 = vrot.slane %v5528, 1
    %v5547 = vsel %vm3731, %v5546, %v5546
    %v5548 = vsel %vm3733, %v5546, %v5547
    %v5549 = vsel %vm3736, %v5536, %v5548
    %v5550 = vsel %vm3738, %v5536, %v5549
    %v5551 = vsel %vm3740, %v5536, %v5550
    %v5552 = vsel %vm3742, %v5536, %v5551
    %5553 = vrot.lane.b32.xlu0 %v5552, 64
    %v5554 = vpop.permute.xlu0 %5553
    %5556 = vst.msk [vmem:[#allocation3 + $0x7c] sm:$0x3] %vm3757, %v5554
    %v5557 = vcombine.high %v5528, %v5528
    %v5558 = vcombine.high %v5536, %v5536
    %v5559 = vsel %vm3731, %v5557, %v5557
    %v5560 = vsel %vm3733, %v5557, %v5559
    %v5561 = vrot.slane %v5558, 7
    %v5562 = vsel %vm3736, %v5561, %v5560
    %v5563 = vsel %vm3738, %v5561, %v5562
    %v5564 = vsel %vm3740, %v5561, %v5563
    %v5565 = vsel %vm3742, %v5561, %v5564
    %5567 = vst.msk [vmem:[#allocation3 + $0x7e] sm:$0x3] %vm3745, %v5565
    %v5568 = vrot.slane %v5557, 1
    %v5569 = vsel %vm3731, %v5568, %v5568
    %v5570 = vsel %vm3733, %v5568, %v5569
    %v5571 = vsel %vm3736, %v5558, %v5570
    %v5572 = vsel %vm3738, %v5558, %v5571
    %v5573 = vsel %vm3740, %v5558, %v5572
    %v5574 = vsel %vm3742, %v5558, %v5573
    %5575 = vrot.lane.b32.xlu0 %v5574, 64
    %v5576 = vpop.permute.xlu0 %5575
    %5578 = vst.msk [vmem:[#allocation3 + $0x7e] sm:$0x3] %vm3757, %v5576
    %v5579 = vld [vmem:[#allocation6] sm:$0x3]
    %v5580 = vld [vmem:[#allocation8 + $0x118] sm:$0x7]
    %v5581 = vld [vmem:[#allocation8 + $0x120] sm:$0x1]
    %v5582 = vlaneseq
    %v5583 = vshrl.u32 %v5582, 7
    %v5584 = vsub.s32 0, %v5583
    %v5585 = vrot.slane %v5581, %v5584
    %vm5586 = vcmask 23552
    %v5588 = vsel %vm5586, %v5579, 0
    %vm5590 = vcmask 1042432
    %v5592 = vsel %vm5590, %v5580, 0
    %5594 = vmatprep.subr.mxu0 0.0
    %5595 = vmatpush1.msra.mxu0 %v5592
    %5596 = vmatprep.subr.mxu0 0.0
    %5597 = vmatpush1.msra.mxu0 0.0
    %5598 = vmatprep.subr.mxu0 0.0
    %5599 = vmatpush1.msra.mxu0 0.0
    %5600 = vmatprep.subr.mxu0 0.0
    %5601 = vmatpush1.msra.mxu0 0.0
    %5602 = vmatprep.subr.mxu0 0.0
    %5603 = vmatpush1.msra.mxu0 0.0
    %5604 = vmatprep.subr.mxu0 0.0
    %5605 = vmatpush1.msra.mxu0 0.0
    %5606 = vmatprep.subr.mxu0 0.0
    %5607 = vmatpush1.msra.mxu0 0.0
    %5608 = vmatprep.subr.mxu0 0.0
    %5609 = vmatpush1.msra.mxu0 0.0
    %5610 = vmatprep.subr.mxu0 0.0
    %5611 = vmatpush1.msra.mxu0 0.0
    %5612 = vmatprep.subr.mxu0 0.0
    %5613 = vmatpush1.msra.mxu0 0.0
    %5614 = vmatprep.subr.mxu0 0.0
    %5615 = vmatpush1.msra.mxu0 0.0
    %5616 = vmatprep.subr.mxu0 0.0
    %5617 = vmatpush1.msra.mxu0 0.0
    %5618 = vmatprep.subr.mxu0 0.0
    %5619 = vmatpush1.msra.mxu0 0.0
    %5620 = vmatprep.subr.mxu0 0.0
    %5621 = vmatpush1.msra.mxu0 0.0
    %5622 = vmatprep.subr.mxu0 0.0
    %5623 = vmatpush1.msra.mxu0 0.0
    %5624 = vmatprep.subr.mxu0 0.0
    %5625 = vmatpush1.msra.mxu0 0.0
    %5626 = vmatprep.subr.mxu0 0.0
    %5627 = vmatpush1.msra.mxu0 0.0
    %5628 = vmatprep.subr.mxu0 0.0
    %5629 = vmatpush1.msra.mxu0 0.0
    %5630 = vmatprep.subr.mxu0 0.0
    %5631 = vmatpush1.msra.mxu0 0.0
    %5632 = vmatprep.subr.mxu0 0.0
    %5633 = vmatpush1.msra.mxu0 0.0
    %5634 = vmatprep.subr.mxu0 0.0
    %5635 = vmatpush1.msra.mxu0 0.0
    %5636 = vmatprep.subr.mxu0 0.0
    %5637 = vmatpush1.msra.mxu0 0.0
    %5638 = vmatprep.subr.mxu0 0.0
    %5639 = vmatpush1.msra.mxu0 0.0
    %5640 = vmatprep.subr.mxu0 0.0
    %5641 = vmatpush1.msra.mxu0 0.0
    %5642 = vmatprep.subr.mxu0 0.0
    %5643 = vmatpush1.msra.mxu0 0.0
    %5644 = vmatprep.subr.mxu0 0.0
    %5645 = vmatpush1.msra.mxu0 0.0
    %5646 = vmatprep.subr.mxu0 0.0
    %5647 = vmatpush1.msra.mxu0 0.0
    %5648 = vmatprep.subr.mxu0 0.0
    %5649 = vmatpush1.msra.mxu0 0.0
    %5650 = vmatprep.subr.mxu0 0.0
    %5651 = vmatpush1.msra.mxu0 0.0
    %5652 = vmatprep.subr.mxu0 0.0
    %5653 = vmatpush1.msra.mxu0 0.0
    %5654 = vmatprep.subr.mxu0 0.0
    %5655 = vmatpush1.msra.mxu0 0.0
    %5656 = vmatprep.subr.mxu0 0.0
    %5657 = vmatpush1.msra.mxu0 0.0
    %5658 = vmatprep.mubr.f32.mxu0 0.0
    %5659 = vmatmul.mubr.f32.gmra.mrb[0].mxu0 %v5588
    %v5660 = vpop.f32.mrb[0].mxu0
    %v5661 = vadd.f32 %v5585, %v5660
    %v5662 = vpop.f32.mrb[0].mxu0
    %5663 = vdwg.mxu0
    %v5664 = vmax.f32 %v5661, 0.0
    %v5665 = vld [vmem:[#allocation8 + $0x128] sm:$0xff]
    %v5666 = vld [vmem:[#allocation8 + $0x130] sm:$0xff]
    %v5667 = vld [vmem:[#allocation8 + $0x138] sm:$0xff]
    %v5668 = vld [vmem:[#allocation8 + $0x140] sm:$0xff]
    %v5669 = vld [vmem:[#allocation8 + $0x148] sm:$0xff]
    %v5670 = vld [vmem:[#allocation8 + $0x150] sm:$0xff]
    %v5671 = vld [vmem:[#allocation8 + $0x158] sm:$0xff]
    %v5672 = vld [vmem:[#allocation8 + $0x160] sm:$0xff]
    %v5673 = vld [vmem:[#allocation8 + $0x168] sm:$0x1]
    %v5674 = vlaneseq
    %v5675 = vshrl.u32 %v5674, 7
    %v5676 = vsub.s32 0, %v5675
    %v5677 = vrot.slane %v5673, %v5676
    %vm5678 = vcmask 523264
    %v5680 = vsel %vm5678, %v5664, 0
    %5682 = vmatprep.subr.mxu0 0.0
    %5683 = vmatpush1.msra.mxu0 %v5665
    %5684 = vmatprep.subr.mxu0 0.0
    %5685 = vmatpush1.msra.mxu0 %v5666
    %5686 = vmatprep.subr.mxu0 0.0
    %5687 = vmatpush1.msra.mxu0 %v5667
    %5688 = vmatprep.subr.mxu0 0.0
    %5689 = vmatpush1.msra.mxu0 %v5668
    %5690 = vmatprep.subr.mxu0 0.0
    %5691 = vmatpush1.msra.mxu0 %v5669
    %5692 = vmatprep.subr.mxu0 0.0
    %5693 = vmatpush1.msra.mxu0 %v5670
    %5694 = vmatprep.subr.mxu0 0.0
    %5695 = vmatpush1.msra.mxu0 %v5671
    %5696 = vmatprep.subr.mxu0 0.0
    %5697 = vmatpush1.msra.mxu0 %v5672
    %5698 = vmatprep.subr.mxu0 0.0
    %5699 = vmatpush1.msra.mxu0 0.0
    %5700 = vmatprep.subr.mxu0 0.0
    %5701 = vmatpush1.msra.mxu0 0.0
    %5702 = vmatprep.subr.mxu0 0.0
    %5703 = vmatpush1.msra.mxu0 0.0
    %5704 = vmatprep.subr.mxu0 0.0
    %5705 = vmatpush1.msra.mxu0 0.0
    %5706 = vmatprep.subr.mxu0 0.0
    %5707 = vmatpush1.msra.mxu0 0.0
    %5708 = vmatprep.subr.mxu0 0.0
    %5709 = vmatpush1.msra.mxu0 0.0
    %5710 = vmatprep.subr.mxu0 0.0
    %5711 = vmatpush1.msra.mxu0 0.0
    %5712 = vmatprep.subr.mxu0 0.0
    %5713 = vmatpush1.msra.mxu0 0.0
    %5714 = vmatprep.subr.mxu0 0.0
    %5715 = vmatpush1.msra.mxu0 0.0
    %5716 = vmatprep.subr.mxu0 0.0
    %5717 = vmatpush1.msra.mxu0 0.0
    %5718 = vmatprep.subr.mxu0 0.0
    %5719 = vmatpush1.msra.mxu0 0.0
    %5720 = vmatprep.subr.mxu0 0.0
    %5721 = vmatpush1.msra.mxu0 0.0
    %5722 = vmatprep.subr.mxu0 0.0
    %5723 = vmatpush1.msra.mxu0 0.0
    %5724 = vmatprep.subr.mxu0 0.0
    %5725 = vmatpush1.msra.mxu0 0.0
    %5726 = vmatprep.subr.mxu0 0.0
    %5727 = vmatpush1.msra.mxu0 0.0
    %5728 = vmatprep.subr.mxu0 0.0
    %5729 = vmatpush1.msra.mxu0 0.0
    %5730 = vmatprep.subr.mxu0 0.0
    %5731 = vmatpush1.msra.mxu0 0.0
    %5732 = vmatprep.subr.mxu0 0.0
    %5733 = vmatpush1.msra.mxu0 0.0
    %5734 = vmatprep.subr.mxu0 0.0
    %5735 = vmatpush1.msra.mxu0 0.0
    %5736 = vmatprep.subr.mxu0 0.0
    %5737 = vmatpush1.msra.mxu0 0.0
    %5738 = vmatprep.subr.mxu0 0.0
    %5739 = vmatpush1.msra.mxu0 0.0
    %5740 = vmatprep.subr.mxu0 0.0
    %5741 = vmatpush1.msra.mxu0 0.0
    %5742 = vmatprep.subr.mxu0 0.0
    %5743 = vmatpush1.msra.mxu0 0.0
    %5744 = vmatprep.subr.mxu0 0.0
    %5745 = vmatpush1.msra.mxu0 0.0
    %5746 = vmatprep.mubr.f32.mxu0 0.0
    %5747 = vmatmul.mubr.f32.gmra.mrb[0].mxu0 %v5680
    %v5748 = vpop.f32.mrb[0].mxu0
    %v5749 = vadd.f32 %v5677, %v5748
    %v5750 = vpop.f32.mrb[0].mxu0
    %5751 = vdwg.mxu0
    %v5752 = vmax.f32 %v5749, 0.0
    %s5753 = smul.u32 4, 256
    %s5754 = smul.u32 %s5753, 1
    %s5755 = sshll.u32 %s5754, 4
    %5756 = dma.done [#allocation5], %s5755
    %v5757 = vld [vmem:[#allocation3] sm:$0xff]
    %v5758 = vld [vmem:[#allocation3 + $0x8] sm:$0xff]
    %v5759 = vld [vmem:[#allocation3 + $0x10] sm:$0xff]
    %v5760 = vld [vmem:[#allocation3 + $0x18] sm:$0xff]
    %v5765 = vcombine.high %v5757, %v5757
    %v5767 = vunpack.c.l.s4 1983009808
    %v5768 = vunpack.c.0.s8 %v5767
    %v5769 = vlaneseq
    %v5770 = vshrl.u32 %v5769, 7
    %v5771 = vsub.s32 %v5768, %v5770
    %v5772 = vrot.slane %v5757, %v5771
    %v5774 = vunpack.c.l.s4 1983009808
    %v5775 = vunpack.c.0.s8 %v5774
    %v5776 = vlaneseq
    %v5777 = vshrl.u32 %v5776, 7
    %v5778 = vsub.s32 %v5775, %v5777
    %v5779 = vrot.slane %v5765, %v5778
    %v5780 = vcombine.high %v5772, %v5772
    %v5781 = vcombine.high %v5779, %v5779
    %v5782 = vcombine.high %v5758, %v5758
    %v5784 = vunpack.c.l.s4 1983009808
    %v5785 = vunpack.c.0.s8 %v5784
    %v5786 = vlaneseq
    %v5787 = vshrl.u32 %v5786, 7
    %v5788 = vsub.s32 %v5785, %v5787
    %v5789 = vrot.slane %v5758, %v5788
    %v5791 = vunpack.c.l.s4 1983009808
    %v5792 = vunpack.c.0.s8 %v5791
    %v5793 = vlaneseq
    %v5794 = vshrl.u32 %v5793, 7
    %v5795 = vsub.s32 %v5792, %v5794
    %v5796 = vrot.slane %v5782, %v5795
    %v5797 = vcombine.high %v5789, %v5789
    %v5798 = vcombine.high %v5796, %v5796
    %v5799 = vcombine.high %v5759, %v5759
    %v5801 = vunpack.c.l.s4 1983009808
    %v5802 = vunpack.c.0.s8 %v5801
    %v5803 = vlaneseq
    %v5804 = vshrl.u32 %v5803, 7
    %v5805 = vsub.s32 %v5802, %v5804
    %v5806 = vrot.slane %v5759, %v5805
    %v5808 = vunpack.c.l.s4 1983009808
    %v5809 = vunpack.c.0.s8 %v5808
    %v5810 = vlaneseq
    %v5811 = vshrl.u32 %v5810, 7
    %v5812 = vsub.s32 %v5809, %v5811
    %v5813 = vrot.slane %v5799, %v5812
    %v5814 = vcombine.high %v5806, %v5806
    %v5815 = vcombine.high %v5813, %v5813
    %v5816 = vcombine.high %v5760, %v5760
    %v5818 = vunpack.c.l.s4 1983009808
    %v5819 = vunpack.c.0.s8 %v5818
    %v5820 = vlaneseq
    %v5821 = vshrl.u32 %v5820, 7
    %v5822 = vsub.s32 %v5819, %v5821
    %v5823 = vrot.slane %v5760, %v5822
    %v5825 = vunpack.c.l.s4 1983009808
    %v5826 = vunpack.c.0.s8 %v5825
    %v5827 = vlaneseq
    %v5828 = vshrl.u32 %v5827, 7
    %v5829 = vsub.s32 %v5826, %v5828
    %v5830 = vrot.slane %v5816, %v5829
    %v5831 = vcombine.high %v5823, %v5823
    %v5832 = vcombine.high %v5830, %v5830
    %v5849 = vpack.c.bf16 %v5772, %v5772
    %v5850 = vpack.c.bf16 %v5780, %v5780
    %v5851 = vpack.c.bf16 %v5779, %v5779
    %v5852 = vpack.c.bf16 %v5781, %v5781
    %v5853 = vpack.c.bf16 %v5789, %v5789
    %v5854 = vpack.c.bf16 %v5797, %v5797
    %v5855 = vpack.c.bf16 %v5796, %v5796
    %v5856 = vpack.c.bf16 %v5798, %v5798
    %v5857 = vpack.c.bf16 %v5806, %v5806
    %v5858 = vpack.c.bf16 %v5814, %v5814
    %v5859 = vpack.c.bf16 %v5813, %v5813
    %v5860 = vpack.c.bf16 %v5815, %v5815
    %v5861 = vpack.c.bf16 %v5823, %v5823
    %v5862 = vpack.c.bf16 %v5831, %v5831
    %v5863 = vpack.c.bf16 %v5830, %v5830
    %v5864 = vpack.c.bf16 %v5832, %v5832
    %v5865 = vld [vmem:[#allocation4] sm:$0xff]
    %v5866 = vld [vmem:[#allocation4 + $0x8] sm:$0xff]
    %v5867 = vld [vmem:[#allocation4 + $0x10] sm:$0xff]
    %v5868 = vld [vmem:[#allocation4 + $0x18] sm:$0xff]
    %v5869 = vld [vmem:[#allocation4 + $0x20] sm:$0xff]
    %v5870 = vld [vmem:[#allocation4 + $0x28] sm:$0xff]
    %v5871 = vld [vmem:[#allocation4 + $0x30] sm:$0xff]
    %v5872 = vld [vmem:[#allocation4 + $0x38] sm:$0xff]
    %v5873 = vld [vmem:[#allocation4 + $0x40] sm:$0xff]
    %v5874 = vld [vmem:[#allocation4 + $0x48] sm:$0xff]
    %v5875 = vld [vmem:[#allocation4 + $0x50] sm:$0xff]
    %v5876 = vld [vmem:[#allocation4 + $0x58] sm:$0xff]
    %v5877 = vld [vmem:[#allocation4 + $0x60] sm:$0xff]
    %v5878 = vld [vmem:[#allocation4 + $0x68] sm:$0xff]
    %v5879 = vld [vmem:[#allocation4 + $0x70] sm:$0xff]
    %v5880 = vld [vmem:[#allocation4 + $0x78] sm:$0xff]
    %v5881 = vld [vmem:[#allocation4 + $0x80] sm:$0xff]
    %v5882 = vld [vmem:[#allocation4 + $0x88] sm:$0xff]
    %v5883 = vld [vmem:[#allocation4 + $0x90] sm:$0xff]
    %v5884 = vld [vmem:[#allocation4 + $0x98] sm:$0xff]
    %v5885 = vld [vmem:[#allocation4 + $0xa0] sm:$0xff]
    %v5886 = vld [vmem:[#allocation4 + $0xa8] sm:$0xff]
    %v5887 = vld [vmem:[#allocation4 + $0xb0] sm:$0xff]
    %v5888 = vld [vmem:[#allocation4 + $0xb8] sm:$0xff]
    %v5889 = vld [vmem:[#allocation4 + $0xc0] sm:$0xff]
    %v5890 = vld [vmem:[#allocation4 + $0xc8] sm:$0xff]
    %v5891 = vld [vmem:[#allocation4 + $0xd0] sm:$0xff]
    %v5892 = vld [vmem:[#allocation4 + $0xd8] sm:$0xff]
    %v5893 = vld [vmem:[#allocation4 + $0xe0] sm:$0xff]
    %v5894 = vld [vmem:[#allocation4 + $0xe8] sm:$0xff]
    %v5895 = vld [vmem:[#allocation4 + $0xf0] sm:$0xff]
    %v5896 = vld [vmem:[#allocation4 + $0xf8] sm:$0xff]
    %v5897 = vld [vmem:[#allocation4 + $0x100] sm:$0xff]
    %v5898 = vld [vmem:[#allocation4 + $0x108] sm:$0xff]
    %v5899 = vld [vmem:[#allocation4 + $0x110] sm:$0xff]
    %v5900 = vld [vmem:[#allocation4 + $0x118] sm:$0xff]
    %v5901 = vld [vmem:[#allocation4 + $0x120] sm:$0xff]
    %v5902 = vld [vmem:[#allocation4 + $0x128] sm:$0xff]
    %v5903 = vld [vmem:[#allocation4 + $0x130] sm:$0xff]
    %v5904 = vld [vmem:[#allocation4 + $0x138] sm:$0xff]
    %v5905 = vld [vmem:[#allocation4 + $0x140] sm:$0xff]
    %v5906 = vld [vmem:[#allocation4 + $0x148] sm:$0xff]
    %v5907 = vld [vmem:[#allocation4 + $0x150] sm:$0xff]
    %v5908 = vld [vmem:[#allocation4 + $0x158] sm:$0xff]
    %v5909 = vld [vmem:[#allocation4 + $0x160] sm:$0xff]
    %v5910 = vld [vmem:[#allocation4 + $0x168] sm:$0xff]
    %v5911 = vld [vmem:[#allocation4 + $0x170] sm:$0xff]
    %v5912 = vld [vmem:[#allocation4 + $0x178] sm:$0xff]
    %v5913 = vld [vmem:[#allocation4 + $0x180] sm:$0xff]
    %v5914 = vld [vmem:[#allocation4 + $0x188] sm:$0xff]
    %v5915 = vld [vmem:[#allocation4 + $0x190] sm:$0xff]
    %v5916 = vld [vmem:[#allocation4 + $0x198] sm:$0xff]
    %v5917 = vld [vmem:[#allocation4 + $0x1a0] sm:$0xff]
    %v5918 = vld [vmem:[#allocation4 + $0x1a8] sm:$0xff]
    %v5919 = vld [vmem:[#allocation4 + $0x1b0] sm:$0xff]
    %v5920 = vld [vmem:[#allocation4 + $0x1b8] sm:$0xff]
    %v5921 = vld [vmem:[#allocation4 + $0x1c0] sm:$0xff]
    %v5922 = vld [vmem:[#allocation4 + $0x1c8] sm:$0xff]
    %v5923 = vld [vmem:[#allocation4 + $0x1d0] sm:$0xff]
    %v5924 = vld [vmem:[#allocation4 + $0x1d8] sm:$0xff]
    %v5925 = vld [vmem:[#allocation4 + $0x1e0] sm:$0xff]
    %v5926 = vld [vmem:[#allocation4 + $0x1e8] sm:$0xff]
    %v5927 = vld [vmem:[#allocation4 + $0x1f0] sm:$0xff]
    %v5928 = vld [vmem:[#allocation4 + $0x1f8] sm:$0xff]
    %v5929 = vld [vmem:[#allocation4 + $0x200] sm:$0xff]
    %v5930 = vld [vmem:[#allocation4 + $0x208] sm:$0xff]
    %v5931 = vld [vmem:[#allocation4 + $0x210] sm:$0xff]
    %v5932 = vld [vmem:[#allocation4 + $0x218] sm:$0xff]
    %v5933 = vld [vmem:[#allocation4 + $0x220] sm:$0xff]
    %v5934 = vld [vmem:[#allocation4 + $0x228] sm:$0xff]
    %v5935 = vld [vmem:[#allocation4 + $0x230] sm:$0xff]
    %v5936 = vld [vmem:[#allocation4 + $0x238] sm:$0xff]
    %v5937 = vld [vmem:[#allocation4 + $0x240] sm:$0xff]
    %v5938 = vld [vmem:[#allocation4 + $0x248] sm:$0xff]
    %v5939 = vld [vmem:[#allocation4 + $0x250] sm:$0xff]
    %v5940 = vld [vmem:[#allocation4 + $0x258] sm:$0xff]
    %v5941 = vld [vmem:[#allocation4 + $0x260] sm:$0xff]
    %v5942 = vld [vmem:[#allocation4 + $0x268] sm:$0xff]
    %v5943 = vld [vmem:[#allocation4 + $0x270] sm:$0xff]
    %v5944 = vld [vmem:[#allocation4 + $0x278] sm:$0xff]
    %v5945 = vld [vmem:[#allocation4 + $0x280] sm:$0xff]
    %v5946 = vld [vmem:[#allocation4 + $0x288] sm:$0xff]
    %v5947 = vld [vmem:[#allocation4 + $0x290] sm:$0xff]
    %v5948 = vld [vmem:[#allocation4 + $0x298] sm:$0xff]
    %v5949 = vld [vmem:[#allocation4 + $0x2a0] sm:$0xff]
    %v5950 = vld [vmem:[#allocation4 + $0x2a8] sm:$0xff]
    %v5951 = vld [vmem:[#allocation4 + $0x2b0] sm:$0xff]
    %v5952 = vld [vmem:[#allocation4 + $0x2b8] sm:$0xff]
    %v5953 = vld [vmem:[#allocation4 + $0x2c0] sm:$0xff]
    %v5954 = vld [vmem:[#allocation4 + $0x2c8] sm:$0xff]
    %v5955 = vld [vmem:[#allocation4 + $0x2d0] sm:$0xff]
    %v5956 = vld [vmem:[#allocation4 + $0x2d8] sm:$0xff]
    %v5957 = vld [vmem:[#allocation4 + $0x2e0] sm:$0xff]
    %v5958 = vld [vmem:[#allocation4 + $0x2e8] sm:$0xff]
    %v5959 = vld [vmem:[#allocation4 + $0x2f0] sm:$0xff]
    %v5960 = vld [vmem:[#allocation4 + $0x2f8] sm:$0xff]
    %v5961 = vld [vmem:[#allocation4 + $0x300] sm:$0xff]
    %v5962 = vld [vmem:[#allocation4 + $0x308] sm:$0xff]
    %v5963 = vld [vmem:[#allocation4 + $0x310] sm:$0xff]
    %v5964 = vld [vmem:[#allocation4 + $0x318] sm:$0xff]
    %v5965 = vld [vmem:[#allocation4 + $0x320] sm:$0xff]
    %v5966 = vld [vmem:[#allocation4 + $0x328] sm:$0xff]
    %v5967 = vld [vmem:[#allocation4 + $0x330] sm:$0xff]
    %v5968 = vld [vmem:[#allocation4 + $0x338] sm:$0xff]
    %v5969 = vld [vmem:[#allocation4 + $0x340] sm:$0xff]
    %v5970 = vld [vmem:[#allocation4 + $0x348] sm:$0xff]
    %v5971 = vld [vmem:[#allocation4 + $0x350] sm:$0xff]
    %v5972 = vld [vmem:[#allocation4 + $0x358] sm:$0xff]
    %v5973 = vld [vmem:[#allocation4 + $0x360] sm:$0xff]
    %v5974 = vld [vmem:[#allocation4 + $0x368] sm:$0xff]
    %v5975 = vld [vmem:[#allocation4 + $0x370] sm:$0xff]
    %v5976 = vld [vmem:[#allocation4 + $0x378] sm:$0xff]
    %v5977 = vld [vmem:[#allocation4 + $0x380] sm:$0xff]
    %v5978 = vld [vmem:[#allocation4 + $0x388] sm:$0xff]
    %v5979 = vld [vmem:[#allocation4 + $0x390] sm:$0xff]
    %v5980 = vld [vmem:[#allocation4 + $0x398] sm:$0xff]
    %v5981 = vld [vmem:[#allocation4 + $0x3a0] sm:$0xff]
    %v5982 = vld [vmem:[#allocation4 + $0x3a8] sm:$0xff]
    %v5983 = vld [vmem:[#allocation4 + $0x3b0] sm:$0xff]
    %v5984 = vld [vmem:[#allocation4 + $0x3b8] sm:$0xff]
    %v5985 = vld [vmem:[#allocation4 + $0x3c0] sm:$0xff]
    %v5986 = vld [vmem:[#allocation4 + $0x3c8] sm:$0xff]
    %v5987 = vld [vmem:[#allocation4 + $0x3d0] sm:$0xff]
    %v5988 = vld [vmem:[#allocation4 + $0x3d8] sm:$0xff]
    %v5989 = vld [vmem:[#allocation4 + $0x3e0] sm:$0xff]
    %v5990 = vld [vmem:[#allocation4 + $0x3e8] sm:$0xff]
    %v5991 = vld [vmem:[#allocation4 + $0x3f0] sm:$0xff]
    %v5992 = vld [vmem:[#allocation4 + $0x3f8] sm:$0xff]
    %s5993 = scalar_lea.hbm %s3, 32768
    // Predicated region
    $region30: #{forward.1} parent=1 // pred_check
      _
    $region31: #{forward.1} parent=1 // pred_check_branch
      %5995 = sbr.rel target = $region33
    $region32: #{forward.1} parent=1 // pred_region
      %5996 = sst [smem:[#allocation12]] [#allocation17]
      %5997 = sst [smem:[#allocation13]] [#allocation16]
    $region33: #{forward.1} parent=1 // pred_fallthru
      _
    %5999 = shalt.err (0)
    %s6001 = sshll.u32 [#allocation4], 4
    %s6002 = int_to_ptr.vmem [resolvable:$true] %s6001
    %6004 = dma.hbm_to_vmem [thread:$0]  %s5993, 16384, %s6002, [#allocation5]
    %s6005 = sshll.u32 %s5754, 4
    %6006 = dma.done %s55, %s6005
    %v6007 = vld [vmem:[#allocation3 + $0x20] sm:$0xff]
    %v6008 = vld [vmem:[#allocation3 + $0x28] sm:$0xff]
    %v6009 = vld [vmem:[#allocation3 + $0x30] sm:$0xff]
    %v6010 = vld [vmem:[#allocation3 + $0x38] sm:$0xff]
    %v6015 = vcombine.high %v6007, %v6007
    %v6017 = vunpack.c.l.s4 1983009808
    %v6018 = vunpack.c.0.s8 %v6017
    %v6019 = vlaneseq
    %v6020 = vshrl.u32 %v6019, 7
    %v6021 = vsub.s32 %v6018, %v6020
    %v6022 = vrot.slane %v6007, %v6021
    %v6024 = vunpack.c.l.s4 1983009808
    %v6025 = vunpack.c.0.s8 %v6024
    %v6026 = vlaneseq
    %v6027 = vshrl.u32 %v6026, 7
    %v6028 = vsub.s32 %v6025, %v6027
    %v6029 = vrot.slane %v6015, %v6028
    %v6030 = vcombine.high %v6022, %v6022
    %v6031 = vcombine.high %v6029, %v6029
    %v6032 = vcombine.high %v6008, %v6008
    %v6034 = vunpack.c.l.s4 1983009808
    %v6035 = vunpack.c.0.s8 %v6034
    %v6036 = vlaneseq
    %v6037 = vshrl.u32 %v6036, 7
    %v6038 = vsub.s32 %v6035, %v6037
    %v6039 = vrot.slane %v6008, %v6038
    %v6041 = vunpack.c.l.s4 1983009808
    %v6042 = vunpack.c.0.s8 %v6041
    %v6043 = vlaneseq
    %v6044 = vshrl.u32 %v6043, 7
    %v6045 = vsub.s32 %v6042, %v6044
    %v6046 = vrot.slane %v6032, %v6045
    %v6047 = vcombine.high %v6039, %v6039
    %v6048 = vcombine.high %v6046, %v6046
    %v6049 = vcombine.high %v6009, %v6009
    %v6051 = vunpack.c.l.s4 1983009808
    %v6052 = vunpack.c.0.s8 %v6051
    %v6053 = vlaneseq
    %v6054 = vshrl.u32 %v6053, 7
    %v6055 = vsub.s32 %v6052, %v6054
    %v6056 = vrot.slane %v6009, %v6055
    %v6058 = vunpack.c.l.s4 1983009808
    %v6059 = vunpack.c.0.s8 %v6058
    %v6060 = vlaneseq
    %v6061 = vshrl.u32 %v6060, 7
    %v6062 = vsub.s32 %v6059, %v6061
    %v6063 = vrot.slane %v6049, %v6062
    %v6064 = vcombine.high %v6056, %v6056
    %v6065 = vcombine.high %v6063, %v6063
    %v6066 = vcombine.high %v6010, %v6010
    %v6068 = vunpack.c.l.s4 1983009808
    %v6069 = vunpack.c.0.s8 %v6068
    %v6070 = vlaneseq
    %v6071 = vshrl.u32 %v6070, 7
    %v6072 = vsub.s32 %v6069, %v6071
    %v6073 = vrot.slane %v6010, %v6072
    %v6075 = vunpack.c.l.s4 1983009808
    %v6076 = vunpack.c.0.s8 %v6075
    %v6077 = vlaneseq
    %v6078 = vshrl.u32 %v6077, 7
    %v6079 = vsub.s32 %v6076, %v6078
    %v6080 = vrot.slane %v6066, %v6079
    %v6081 = vcombine.high %v6073, %v6073
    %v6082 = vcombine.high %v6080, %v6080
    %v6099 = vpack.c.bf16 %v6022, %v6022
    %v6100 = vpack.c.bf16 %v6030, %v6030
    %v6101 = vpack.c.bf16 %v6029, %v6029
    %v6102 = vpack.c.bf16 %v6031, %v6031
    %v6103 = vpack.c.bf16 %v6039, %v6039
    %v6104 = vpack.c.bf16 %v6047, %v6047
    %v6105 = vpack.c.bf16 %v6046, %v6046
    %v6106 = vpack.c.bf16 %v6048, %v6048
    %v6107 = vpack.c.bf16 %v6056, %v6056
    %v6108 = vpack.c.bf16 %v6064, %v6064
    %v6109 = vpack.c.bf16 %v6063, %v6063
    %v6110 = vpack.c.bf16 %v6065, %v6065
    %v6111 = vpack.c.bf16 %v6073, %v6073
    %v6112 = vpack.c.bf16 %v6081, %v6081
    %v6113 = vpack.c.bf16 %v6080, %v6080
    %v6114 = vpack.c.bf16 %v6082, %v6082
    %v6115 = vld [vmem:[%s54] sm:$0xff]
    %v6116 = vld [vmem:[%s54 + $0x8] sm:$0xff]
    %v6117 = vld [vmem:[%s54 + $0x10] sm:$0xff]
    %v6118 = vld [vmem:[%s54 + $0x18] sm:$0xff]
    %v6119 = vld [vmem:[%s54 + $0x20] sm:$0xff]
    %v6120 = vld [vmem:[%s54 + $0x28] sm:$0xff]
    %v6121 = vld [vmem:[%s54 + $0x30] sm:$0xff]
    %v6122 = vld [vmem:[%s54 + $0x38] sm:$0xff]
    %v6123 = vld [vmem:[%s54 + $0x40] sm:$0xff]
    %v6124 = vld [vmem:[%s54 + $0x48] sm:$0xff]
    %v6125 = vld [vmem:[%s54 + $0x50] sm:$0xff]
    %v6126 = vld [vmem:[%s54 + $0x58] sm:$0xff]
    %v6127 = vld [vmem:[%s54 + $0x60] sm:$0xff]
    %v6128 = vld [vmem:[%s54 + $0x68] sm:$0xff]
    %v6129 = vld [vmem:[%s54 + $0x70] sm:$0xff]
    %v6130 = vld [vmem:[%s54 + $0x78] sm:$0xff]
    %v6131 = vld [vmem:[%s54 + $0x80] sm:$0xff]
    %v6132 = vld [vmem:[%s54 + $0x88] sm:$0xff]
    %v6133 = vld [vmem:[%s54 + $0x90] sm:$0xff]
    %v6134 = vld [vmem:[%s54 + $0x98] sm:$0xff]
    %v6135 = vld [vmem:[%s54 + $0xa0] sm:$0xff]
    %v6136 = vld [vmem:[%s54 + $0xa8] sm:$0xff]
    %v6137 = vld [vmem:[%s54 + $0xb0] sm:$0xff]
    %v6138 = vld [vmem:[%s54 + $0xb8] sm:$0xff]
    %v6139 = vld [vmem:[%s54 + $0xc0] sm:$0xff]
    %v6140 = vld [vmem:[%s54 + $0xc8] sm:$0xff]
    %v6141 = vld [vmem:[%s54 + $0xd0] sm:$0xff]
    %v6142 = vld [vmem:[%s54 + $0xd8] sm:$0xff]
    %v6143 = vld [vmem:[%s54 + $0xe0] sm:$0xff]
    %v6144 = vld [vmem:[%s54 + $0xe8] sm:$0xff]
    %v6145 = vld [vmem:[%s54 + $0xf0] sm:$0xff]
    %v6146 = vld [vmem:[%s54 + $0xf8] sm:$0xff]
    %v6147 = vld [vmem:[%s54 + $0x100] sm:$0xff]
    %v6148 = vld [vmem:[%s54 + $0x108] sm:$0xff]
    %v6149 = vld [vmem:[%s54 + $0x110] sm:$0xff]
    %v6150 = vld [vmem:[%s54 + $0x118] sm:$0xff]
    %v6151 = vld [vmem:[%s54 + $0x120] sm:$0xff]
    %v6152 = vld [vmem:[%s54 + $0x128] sm:$0xff]
    %v6153 = vld [vmem:[%s54 + $0x130] sm:$0xff]
    %v6154 = vld [vmem:[%s54 + $0x138] sm:$0xff]
    %v6155 = vld [vmem:[%s54 + $0x140] sm:$0xff]
    %v6156 = vld [vmem:[%s54 + $0x148] sm:$0xff]
    %v6157 = vld [vmem:[%s54 + $0x150] sm:$0xff]
    %v6158 = vld [vmem:[%s54 + $0x158] sm:$0xff]
    %v6159 = vld [vmem:[%s54 + $0x160] sm:$0xff]
    %v6160 = vld [vmem:[%s54 + $0x168] sm:$0xff]
    %v6161 = vld [vmem:[%s54 + $0x170] sm:$0xff]
    %v6162 = vld [vmem:[%s54 + $0x178] sm:$0xff]
    %v6163 = vld [vmem:[%s54 + $0x180] sm:$0xff]
    %v6164 = vld [vmem:[%s54 + $0x188] sm:$0xff]
    %v6165 = vld [vmem:[%s54 + $0x190] sm:$0xff]
    %v6166 = vld [vmem:[%s54 + $0x198] sm:$0xff]
    %v6167 = vld [vmem:[%s54 + $0x1a0] sm:$0xff]
    %v6168 = vld [vmem:[%s54 + $0x1a8] sm:$0xff]
    %v6169 = vld [vmem:[%s54 + $0x1b0] sm:$0xff]
    %v6170 = vld [vmem:[%s54 + $0x1b8] sm:$0xff]
    %v6171 = vld [vmem:[%s54 + $0x1c0] sm:$0xff]
    %v6172 = vld [vmem:[%s54 + $0x1c8] sm:$0xff]
    %v6173 = vld [vmem:[%s54 + $0x1d0] sm:$0xff]
    %v6174 = vld [vmem:[%s54 + $0x1d8] sm:$0xff]
    %v6175 = vld [vmem:[%s54 + $0x1e0] sm:$0xff]
    %v6176 = vld [vmem:[%s54 + $0x1e8] sm:$0xff]
    %v6177 = vld [vmem:[%s54 + $0x1f0] sm:$0xff]
    %v6178 = vld [vmem:[%s54 + $0x1f8] sm:$0xff]
    %v6179 = vld [vmem:[%s54 + $0x200] sm:$0xff]
    %v6180 = vld [vmem:[%s54 + $0x208] sm:$0xff]
    %v6181 = vld [vmem:[%s54 + $0x210] sm:$0xff]
    %v6182 = vld [vmem:[%s54 + $0x218] sm:$0xff]
    %v6183 = vld [vmem:[%s54 + $0x220] sm:$0xff]
    %v6184 = vld [vmem:[%s54 + $0x228] sm:$0xff]
    %v6185 = vld [vmem:[%s54 + $0x230] sm:$0xff]
    %v6186 = vld [vmem:[%s54 + $0x238] sm:$0xff]
    %v6187 = vld [vmem:[%s54 + $0x240] sm:$0xff]
    %v6188 = vld [vmem:[%s54 + $0x248] sm:$0xff]
    %v6189 = vld [vmem:[%s54 + $0x250] sm:$0xff]
    %v6190 = vld [vmem:[%s54 + $0x258] sm:$0xff]
    %v6191 = vld [vmem:[%s54 + $0x260] sm:$0xff]
    %v6192 = vld [vmem:[%s54 + $0x268] sm:$0xff]
    %v6193 = vld [vmem:[%s54 + $0x270] sm:$0xff]
    %v6194 = vld [vmem:[%s54 + $0x278] sm:$0xff]
    %v6195 = vld [vmem:[%s54 + $0x280] sm:$0xff]
    %v6196 = vld [vmem:[%s54 + $0x288] sm:$0xff]
    %v6197 = vld [vmem:[%s54 + $0x290] sm:$0xff]
    %v6198 = vld [vmem:[%s54 + $0x298] sm:$0xff]
    %v6199 = vld [vmem:[%s54 + $0x2a0] sm:$0xff]
    %v6200 = vld [vmem:[%s54 + $0x2a8] sm:$0xff]
    %v6201 = vld [vmem:[%s54 + $0x2b0] sm:$0xff]
    %v6202 = vld [vmem:[%s54 + $0x2b8] sm:$0xff]
    %v6203 = vld [vmem:[%s54 + $0x2c0] sm:$0xff]
    %v6204 = vld [vmem:[%s54 + $0x2c8] sm:$0xff]
    %v6205 = vld [vmem:[%s54 + $0x2d0] sm:$0xff]
    %v6206 = vld [vmem:[%s54 + $0x2d8] sm:$0xff]
    %v6207 = vld [vmem:[%s54 + $0x2e0] sm:$0xff]
    %v6208 = vld [vmem:[%s54 + $0x2e8] sm:$0xff]
    %v6209 = vld [vmem:[%s54 + $0x2f0] sm:$0xff]
    %v6210 = vld [vmem:[%s54 + $0x2f8] sm:$0xff]
    %v6211 = vld [vmem:[%s54 + $0x300] sm:$0xff]
    %v6212 = vld [vmem:[%s54 + $0x308] sm:$0xff]
    %v6213 = vld [vmem:[%s54 + $0x310] sm:$0xff]
    %v6214 = vld [vmem:[%s54 + $0x318] sm:$0xff]
    %v6215 = vld [vmem:[%s54 + $0x320] sm:$0xff]
    %v6216 = vld [vmem:[%s54 + $0x328] sm:$0xff]
    %v6217 = vld [vmem:[%s54 + $0x330] sm:$0xff]
    %v6218 = vld [vmem:[%s54 + $0x338] sm:$0xff]
    %v6219 = vld [vmem:[%s54 + $0x340] sm:$0xff]
    %v6220 = vld [vmem:[%s54 + $0x348] sm:$0xff]
    %v6221 = vld [vmem:[%s54 + $0x350] sm:$0xff]
    %v6222 = vld [vmem:[%s54 + $0x358] sm:$0xff]
    %v6223 = vld [vmem:[%s54 + $0x360] sm:$0xff]
    %v6224 = vld [vmem:[%s54 + $0x368] sm:$0xff]
    %v6225 = vld [vmem:[%s54 + $0x370] sm:$0xff]
    %v6226 = vld [vmem:[%s54 + $0x378] sm:$0xff]
    %v6227 = vld [vmem:[%s54 + $0x380] sm:$0xff]
    %v6228 = vld [vmem:[%s54 + $0x388] sm:$0xff]
    %v6229 = vld [vmem:[%s54 + $0x390] sm:$0xff]
    %v6230 = vld [vmem:[%s54 + $0x398] sm:$0xff]
    %v6231 = vld [vmem:[%s54 + $0x3a0] sm:$0xff]
    %v6232 = vld [vmem:[%s54 + $0x3a8] sm:$0xff]
    %v6233 = vld [vmem:[%s54 + $0x3b0] sm:$0xff]
    %v6234 = vld [vmem:[%s54 + $0x3b8] sm:$0xff]
    %v6235 = vld [vmem:[%s54 + $0x3c0] sm:$0xff]
    %v6236 = vld [vmem:[%s54 + $0x3c8] sm:$0xff]
    %v6237 = vld [vmem:[%s54 + $0x3d0] sm:$0xff]
    %v6238 = vld [vmem:[%s54 + $0x3d8] sm:$0xff]
    %v6239 = vld [vmem:[%s54 + $0x3e0] sm:$0xff]
    %v6240 = vld [vmem:[%s54 + $0x3e8] sm:$0xff]
    %v6241 = vld [vmem:[%s54 + $0x3f0] sm:$0xff]
    %v6242 = vld [vmem:[%s54 + $0x3f8] sm:$0xff]
    %6243 = vmatprep.subr.bf16.mxu0 0
    %6244 = vmatpush1.bf16.msra.mxu0 %v6115
    %6245 = vmatprep.subr.bf16.mxu0 0
    %6246 = vmatpush1.bf16.msra.mxu0 %v6116
    %6247 = vmatprep.subr.bf16.mxu0 0
    %6248 = vmatpush1.bf16.msra.mxu0 %v6117
    %6249 = vmatprep.subr.bf16.mxu0 0
    %6250 = vmatpush1.bf16.msra.mxu0 %v6118
    %6251 = vmatprep.subr.bf16.mxu0 0
    %6252 = vmatpush1.bf16.msra.mxu0 %v6119
    %6253 = vmatprep.subr.bf16.mxu0 0
    %6254 = vmatpush1.bf16.msra.mxu0 %v6120
    %6255 = vmatprep.subr.bf16.mxu0 0
    %6256 = vmatpush1.bf16.msra.mxu0 %v6121
    %6257 = vmatprep.subr.bf16.mxu0 0
    %6258 = vmatpush1.bf16.msra.mxu0 %v6122
    %6259 = vmatprep.subr.bf16.mxu0 0
    %6260 = vmatpush1.bf16.msra.mxu0 %v6123
    %6261 = vmatprep.subr.bf16.mxu0 0
    %6262 = vmatpush1.bf16.msra.mxu0 %v6124
    %6263 = vmatprep.subr.bf16.mxu0 0
    %6264 = vmatpush1.bf16.msra.mxu0 %v6125
    %6265 = vmatprep.subr.bf16.mxu0 0
    %6266 = vmatpush1.bf16.msra.mxu0 %v6126
    %6267 = vmatprep.subr.bf16.mxu0 0
    %6268 = vmatpush1.bf16.msra.mxu0 %v6127
    %6269 = vmatprep.subr.bf16.mxu0 0
    %6270 = vmatpush1.bf16.msra.mxu0 %v6128
    %6271 = vmatprep.subr.bf16.mxu0 0
    %6272 = vmatpush1.bf16.msra.mxu0 %v6129
    %6273 = vmatprep.subr.bf16.mxu0 0
    %6274 = vmatpush1.bf16.msra.mxu0 %v6130
    %6275 = vmatprep.mubr.bf16.mxu0 %v6100
    %6276 = vmatmul.mubr.bf16.gmra.mrb[0].mxu0 %v6099
    %v6277 = vpop.f32.mrb[0].mxu0
    %v6278 = vadd.f32 0.0, %v6277
    %v6279 = vpop.f32.mrb[0].mxu0
    %v6280 = vpop.f32.mrb[0].mxu0
    %v6281 = vpop.f32.mrb[0].mxu0
    %6282 = vdwg.mxu0
    %6283 = vmatprep.subr.bf16.mxu0 0
    %6284 = vmatpush1.bf16.msra.mxu0 %v6131
    %6285 = vmatprep.subr.bf16.mxu0 0
    %6286 = vmatpush1.bf16.msra.mxu0 %v6132
    %6287 = vmatprep.subr.bf16.mxu0 0
    %6288 = vmatpush1.bf16.msra.mxu0 %v6133
    %6289 = vmatprep.subr.bf16.mxu0 0
    %6290 = vmatpush1.bf16.msra.mxu0 %v6134
    %6291 = vmatprep.subr.bf16.mxu0 0
    %6292 = vmatpush1.bf16.msra.mxu0 %v6135
    %6293 = vmatprep.subr.bf16.mxu0 0
    %6294 = vmatpush1.bf16.msra.mxu0 %v6136
    %6295 = vmatprep.subr.bf16.mxu0 0
    %6296 = vmatpush1.bf16.msra.mxu0 %v6137
    %6297 = vmatprep.subr.bf16.mxu0 0
    %6298 = vmatpush1.bf16.msra.mxu0 %v6138
    %6299 = vmatprep.subr.bf16.mxu0 0
    %6300 = vmatpush1.bf16.msra.mxu0 %v6139
    %6301 = vmatprep.subr.bf16.mxu0 0
    %6302 = vmatpush1.bf16.msra.mxu0 %v6140
    %6303 = vmatprep.subr.bf16.mxu0 0
    %6304 = vmatpush1.bf16.msra.mxu0 %v6141
    %6305 = vmatprep.subr.bf16.mxu0 0
    %6306 = vmatpush1.bf16.msra.mxu0 %v6142
    %6307 = vmatprep.subr.bf16.mxu0 0
    %6308 = vmatpush1.bf16.msra.mxu0 %v6143
    %6309 = vmatprep.subr.bf16.mxu0 0
    %6310 = vmatpush1.bf16.msra.mxu0 %v6144
    %6311 = vmatprep.subr.bf16.mxu0 0
    %6312 = vmatpush1.bf16.msra.mxu0 %v6145
    %6313 = vmatprep.subr.bf16.mxu0 0
    %6314 = vmatpush1.bf16.msra.mxu0 %v6146
    %6315 = vmatprep.mubr.bf16.mxu0 %v6102
    %6316 = vmatmul.mubr.bf16.gmra.mrb[0].mxu0 %v6101
    %v6317 = vpop.f32.mrb[0].mxu0
    %v6318 = vadd.f32 %v6278, %v6317
    %v6319 = vpop.f32.mrb[0].mxu0
    %v6320 = vpop.f32.mrb[0].mxu0
    %v6321 = vpop.f32.mrb[0].mxu0
    %6322 = vdwg.mxu0
    %6323 = vmatprep.subr.bf16.mxu0 0
    %6324 = vmatpush1.bf16.msra.mxu0 %v6147
    %6325 = vmatprep.subr.bf16.mxu0 0
    %6326 = vmatpush1.bf16.msra.mxu0 %v6148
    %6327 = vmatprep.subr.bf16.mxu0 0
    %6328 = vmatpush1.bf16.msra.mxu0 %v6149
    %6329 = vmatprep.subr.bf16.mxu0 0
    %6330 = vmatpush1.bf16.msra.mxu0 %v6150
    %6331 = vmatprep.subr.bf16.mxu0 0
    %6332 = vmatpush1.bf16.msra.mxu0 %v6151
    %6333 = vmatprep.subr.bf16.mxu0 0
    %6334 = vmatpush1.bf16.msra.mxu0 %v6152
    %6335 = vmatprep.subr.bf16.mxu0 0
    %6336 = vmatpush1.bf16.msra.mxu0 %v6153
    %6337 = vmatprep.subr.bf16.mxu0 0
    %6338 = vmatpush1.bf16.msra.mxu0 %v6154
    %6339 = vmatprep.subr.bf16.mxu0 0
    %6340 = vmatpush1.bf16.msra.mxu0 %v6155
    %6341 = vmatprep.subr.bf16.mxu0 0
    %6342 = vmatpush1.bf16.msra.mxu0 %v6156
    %6343 = vmatprep.subr.bf16.mxu0 0
    %6344 = vmatpush1.bf16.msra.mxu0 %v6157
    %6345 = vmatprep.subr.bf16.mxu0 0
    %6346 = vmatpush1.bf16.msra.mxu0 %v6158
    %6347 = vmatprep.subr.bf16.mxu0 0
    %6348 = vmatpush1.bf16.msra.mxu0 %v6159
    %6349 = vmatprep.subr.bf16.mxu0 0
    %6350 = vmatpush1.bf16.msra.mxu0 %v6160
    %6351 = vmatprep.subr.bf16.mxu0 0
    %6352 = vmatpush1.bf16.msra.mxu0 %v6161
    %6353 = vmatprep.subr.bf16.mxu0 0
    %6354 = vmatpush1.bf16.msra.mxu0 %v6162
    %6355 = vmatprep.mubr.bf16.mxu0 %v6104
    %6356 = vmatmul.mubr.bf16.gmra.mrb[0].mxu0 %v6103
    %v6357 = vpop.f32.mrb[0].mxu0
    %v6358 = vadd.f32 %v6318, %v6357
    %v6359 = vpop.f32.mrb[0].mxu0
    %v6360 = vpop.f32.mrb[0].mxu0
    %v6361 = vpop.f32.mrb[0].mxu0
    %6362 = vdwg.mxu0
    %6363 = vmatprep.subr.bf16.mxu0 0
    %6364 = vmatpush1.bf16.msra.mxu0 %v6163
    %6365 = vmatprep.subr.bf16.mxu0 0
    %6366 = vmatpush1.bf16.msra.mxu0 %v6164
    %6367 = vmatprep.subr.bf16.mxu0 0
    %6368 = vmatpush1.bf16.msra.mxu0 %v6165
    %6369 = vmatprep.subr.bf16.mxu0 0
    %6370 = vmatpush1.bf16.msra.mxu0 %v6166
    %6371 = vmatprep.subr.bf16.mxu0 0
    %6372 = vmatpush1.bf16.msra.mxu0 %v6167
    %6373 = vmatprep.subr.bf16.mxu0 0
    %6374 = vmatpush1.bf16.msra.mxu0 %v6168
    %6375 = vmatprep.subr.bf16.mxu0 0
    %6376 = vmatpush1.bf16.msra.mxu0 %v6169
    %6377 = vmatprep.subr.bf16.mxu0 0
    %6378 = vmatpush1.bf16.msra.mxu0 %v6170
    %6379 = vmatprep.subr.bf16.mxu0 0
    %6380 = vmatpush1.bf16.msra.mxu0 %v6171
    %6381 = vmatprep.subr.bf16.mxu0 0
    %6382 = vmatpush1.bf16.msra.mxu0 %v6172
    %6383 = vmatprep.subr.bf16.mxu0 0
    %6384 = vmatpush1.bf16.msra.mxu0 %v6173
    %6385 = vmatprep.subr.bf16.mxu0 0
    %6386 = vmatpush1.bf16.msra.mxu0 %v6174
    %6387 = vmatprep.subr.bf16.mxu0 0
    %6388 = vmatpush1.bf16.msra.mxu0 %v6175
    %6389 = vmatprep.subr.bf16.mxu0 0
    %6390 = vmatpush1.bf16.msra.mxu0 %v6176
    %6391 = vmatprep.subr.bf16.mxu0 0
    %6392 = vmatpush1.bf16.msra.mxu0 %v6177
    %6393 = vmatprep.subr.bf16.mxu0 0
    %6394 = vmatpush1.bf16.msra.mxu0 %v6178
    %6395 = vmatprep.mubr.bf16.mxu0 %v6106
    %6396 = vmatmul.mubr.bf16.gmra.mrb[0].mxu0 %v6105
    %v6397 = vpop.f32.mrb[0].mxu0
    %v6398 = vadd.f32 %v6358, %v6397
    %v6399 = vpop.f32.mrb[0].mxu0
    %v6400 = vpop.f32.mrb[0].mxu0
    %v6401 = vpop.f32.mrb[0].mxu0
    %6402 = vdwg.mxu0
    %6403 = vmatprep.subr.bf16.mxu0 0
    %6404 = vmatpush1.bf16.msra.mxu0 %v6179
    %6405 = vmatprep.subr.bf16.mxu0 0
    %6406 = vmatpush1.bf16.msra.mxu0 %v6180
    %6407 = vmatprep.subr.bf16.mxu0 0
    %6408 = vmatpush1.bf16.msra.mxu0 %v6181
    %6409 = vmatprep.subr.bf16.mxu0 0
    %6410 = vmatpush1.bf16.msra.mxu0 %v6182
    %6411 = vmatprep.subr.bf16.mxu0 0
    %6412 = vmatpush1.bf16.msra.mxu0 %v6183
    %6413 = vmatprep.subr.bf16.mxu0 0
    %6414 = vmatpush1.bf16.msra.mxu0 %v6184
    %6415 = vmatprep.subr.bf16.mxu0 0
    %6416 = vmatpush1.bf16.msra.mxu0 %v6185
    %6417 = vmatprep.subr.bf16.mxu0 0
    %6418 = vmatpush1.bf16.msra.mxu0 %v6186
    %6419 = vmatprep.subr.bf16.mxu0 0
    %6420 = vmatpush1.bf16.msra.mxu0 %v6187
    %6421 = vmatprep.subr.bf16.mxu0 0
    %6422 = vmatpush1.bf16.msra.mxu0 %v6188
    %6423 = vmatprep.subr.bf16.mxu0 0
    %6424 = vmatpush1.bf16.msra.mxu0 %v6189
    %6425 = vmatprep.subr.bf16.mxu0 0
    %6426 = vmatpush1.bf16.msra.mxu0 %v6190
    %6427 = vmatprep.subr.bf16.mxu0 0
    %6428 = vmatpush1.bf16.msra.mxu0 %v6191
    %6429 = vmatprep.subr.bf16.mxu0 0
    %6430 = vmatpush1.bf16.msra.mxu0 %v6192
    %6431 = vmatprep.subr.bf16.mxu0 0
    %6432 = vmatpush1.bf16.msra.mxu0 %v6193
    %6433 = vmatprep.subr.bf16.mxu0 0
    %6434 = vmatpush1.bf16.msra.mxu0 %v6194
    %6435 = vmatprep.mubr.bf16.mxu0 %v6108
    %6436 = vmatmul.mubr.bf16.gmra.mrb[0].mxu0 %v6107
    %v6437 = vpop.f32.mrb[0].mxu0
    %v6438 = vadd.f32 %v6398, %v6437
    %v6439 = vpop.f32.mrb[0].mxu0
    %v6440 = vpop.f32.mrb[0].mxu0
    %v6441 = vpop.f32.mrb[0].mxu0
    %6442 = vdwg.mxu0
    %6443 = vmatprep.subr.bf16.mxu0 0
    %6444 = vmatpush1.bf16.msra.mxu0 %v6195
    %6445 = vmatprep.subr.bf16.mxu0 0
    %6446 = vmatpush1.bf16.msra.mxu0 %v6196
    %6447 = vmatprep.subr.bf16.mxu0 0
    %6448 = vmatpush1.bf16.msra.mxu0 %v6197
    %6449 = vmatprep.subr.bf16.mxu0 0
    %6450 = vmatpush1.bf16.msra.mxu0 %v6198
    %6451 = vmatprep.subr.bf16.mxu0 0
    %6452 = vmatpush1.bf16.msra.mxu0 %v6199
    %6453 = vmatprep.subr.bf16.mxu0 0
    %6454 = vmatpush1.bf16.msra.mxu0 %v6200
    %6455 = vmatprep.subr.bf16.mxu0 0
    %6456 = vmatpush1.bf16.msra.mxu0 %v6201
    %6457 = vmatprep.subr.bf16.mxu0 0
    %6458 = vmatpush1.bf16.msra.mxu0 %v6202
    %6459 = vmatprep.subr.bf16.mxu0 0
    %6460 = vmatpush1.bf16.msra.mxu0 %v6203
    %6461 = vmatprep.subr.bf16.mxu0 0
    %6462 = vmatpush1.bf16.msra.mxu0 %v6204
    %6463 = vmatprep.subr.bf16.mxu0 0
    %6464 = vmatpush1.bf16.msra.mxu0 %v6205
    %6465 = vmatprep.subr.bf16.mxu0 0
    %6466 = vmatpush1.bf16.msra.mxu0 %v6206
    %6467 = vmatprep.subr.bf16.mxu0 0
    %6468 = vmatpush1.bf16.msra.mxu0 %v6207
    %6469 = vmatprep.subr.bf16.mxu0 0
    %6470 = vmatpush1.bf16.msra.mxu0 %v6208
    %6471 = vmatprep.subr.bf16.mxu0 0
    %6472 = vmatpush1.bf16.msra.mxu0 %v6209
    %6473 = vmatprep.subr.bf16.mxu0 0
    %6474 = vmatpush1.bf16.msra.mxu0 %v6210
    %6475 = vmatprep.mubr.bf16.mxu0 %v6110
    %6476 = vmatmul.mubr.bf16.gmra.mrb[0].mxu0 %v6109
    %v6477 = vpop.f32.mrb[0].mxu0
    %v6478 = vadd.f32 %v6438, %v6477
    %v6479 = vpop.f32.mrb[0].mxu0
    %v6480 = vpop.f32.mrb[0].mxu0
    %v6481 = vpop.f32.mrb[0].mxu0
    %6482 = vdwg.mxu0
    %6483 = vmatprep.subr.bf16.mxu0 0
    %6484 = vmatpush1.bf16.msra.mxu0 %v6211
    %6485 = vmatprep.subr.bf16.mxu0 0
    %6486 = vmatpush1.bf16.msra.mxu0 %v6212
    %6487 = vmatprep.subr.bf16.mxu0 0
    %6488 = vmatpush1.bf16.msra.mxu0 %v6213
    %6489 = vmatprep.subr.bf16.mxu0 0
    %6490 = vmatpush1.bf16.msra.mxu0 %v6214
    %6491 = vmatprep.subr.bf16.mxu0 0
    %6492 = vmatpush1.bf16.msra.mxu0 %v6215
    %6493 = vmatprep.subr.bf16.mxu0 0
    %6494 = vmatpush1.bf16.msra.mxu0 %v6216
    %6495 = vmatprep.subr.bf16.mxu0 0
    %6496 = vmatpush1.bf16.msra.mxu0 %v6217
    %6497 = vmatprep.subr.bf16.mxu0 0
    %6498 = vmatpush1.bf16.msra.mxu0 %v6218
    %6499 = vmatprep.subr.bf16.mxu0 0
    %6500 = vmatpush1.bf16.msra.mxu0 %v6219
    %6501 = vmatprep.subr.bf16.mxu0 0
    %6502 = vmatpush1.bf16.msra.mxu0 %v6220
    %6503 = vmatprep.subr.bf16.mxu0 0
    %6504 = vmatpush1.bf16.msra.mxu0 %v6221
    %6505 = vmatprep.subr.bf16.mxu0 0
    %6506 = vmatpush1.bf16.msra.mxu0 %v6222
    %6507 = vmatprep.subr.bf16.mxu0 0
    %6508 = vmatpush1.bf16.msra.mxu0 %v6223
    %6509 = vmatprep.subr.bf16.mxu0 0
    %6510 = vmatpush1.bf16.msra.mxu0 %v6224
    %6511 = vmatprep.subr.bf16.mxu0 0
    %6512 = vmatpush1.bf16.msra.mxu0 %v6225
    %6513 = vmatprep.subr.bf16.mxu0 0
    %6514 = vmatpush1.bf16.msra.mxu0 %v6226
    %6515 = vmatprep.mubr.bf16.mxu0 %v6112
    %6516 = vmatmul.mubr.bf16.gmra.mrb[0].mxu0 %v6111
    %v6517 = vpop.f32.mrb[0].mxu0
    %v6518 = vadd.f32 %v6478, %v6517
    %v6519 = vpop.f32.mrb[0].mxu0
    %v6520 = vpop.f32.mrb[0].mxu0
    %v6521 = vpop.f32.mrb[0].mxu0
    %6522 = vdwg.mxu0
    %6523 = vmatprep.subr.bf16.mxu0 0
    %6524 = vmatpush1.bf16.msra.mxu0 %v6227
    %6525 = vmatprep.subr.bf16.mxu0 0
    %6526 = vmatpush1.bf16.msra.mxu0 %v6228
    %6527 = vmatprep.subr.bf16.mxu0 0
    %6528 = vmatpush1.bf16.msra.mxu0 %v6229
    %6529 = vmatprep.subr.bf16.mxu0 0
    %6530 = vmatpush1.bf16.msra.mxu0 %v6230
    %6531 = vmatprep.subr.bf16.mxu0 0
    %6532 = vmatpush1.bf16.msra.mxu0 %v6231
    %6533 = vmatprep.subr.bf16.mxu0 0
    %6534 = vmatpush1.bf16.msra.mxu0 %v6232
    %6535 = vmatprep.subr.bf16.mxu0 0
    %6536 = vmatpush1.bf16.msra.mxu0 %v6233
    %6537 = vmatprep.subr.bf16.mxu0 0
    %6538 = vmatpush1.bf16.msra.mxu0 %v6234
    %6539 = vmatprep.subr.bf16.mxu0 0
    %6540 = vmatpush1.bf16.msra.mxu0 %v6235
    %6541 = vmatprep.subr.bf16.mxu0 0
    %6542 = vmatpush1.bf16.msra.mxu0 %v6236
    %6543 = vmatprep.subr.bf16.mxu0 0
    %6544 = vmatpush1.bf16.msra.mxu0 %v6237
    %6545 = vmatprep.subr.bf16.mxu0 0
    %6546 = vmatpush1.bf16.msra.mxu0 %v6238
    %6547 = vmatprep.subr.bf16.mxu0 0
    %6548 = vmatpush1.bf16.msra.mxu0 %v6239
    %6549 = vmatprep.subr.bf16.mxu0 0
    %6550 = vmatpush1.bf16.msra.mxu0 %v6240
    %6551 = vmatprep.subr.bf16.mxu0 0
    %6552 = vmatpush1.bf16.msra.mxu0 %v6241
    %6553 = vmatprep.subr.bf16.mxu0 0
    %6554 = vmatpush1.bf16.msra.mxu0 %v6242
    %6555 = vmatprep.mubr.bf16.mxu0 %v6114
    %6556 = vmatmul.mubr.bf16.gmra.mrb[0].mxu0 %v6113
    %v6557 = vpop.f32.mrb[0].mxu0
    %v6558 = vadd.f32 %v6518, %v6557
    %v6559 = vpop.f32.mrb[0].mxu0
    %v6560 = vpop.f32.mrb[0].mxu0
    %v6561 = vpop.f32.mrb[0].mxu0
    %6562 = vdwg.mxu0
    %6563 = vmatprep.subr.bf16.mxu0 0
    %6564 = vmatpush1.bf16.msra.mxu0 %v5865
    %6565 = vmatprep.subr.bf16.mxu0 0
    %6566 = vmatpush1.bf16.msra.mxu0 %v5866
    %6567 = vmatprep.subr.bf16.mxu0 0
    %6568 = vmatpush1.bf16.msra.mxu0 %v5867
    %6569 = vmatprep.subr.bf16.mxu0 0
    %6570 = vmatpush1.bf16.msra.mxu0 %v5868
    %6571 = vmatprep.subr.bf16.mxu0 0
    %6572 = vmatpush1.bf16.msra.mxu0 %v5869
    %6573 = vmatprep.subr.bf16.mxu0 0
    %6574 = vmatpush1.bf16.msra.mxu0 %v5870
    %6575 = vmatprep.subr.bf16.mxu0 0
    %6576 = vmatpush1.bf16.msra.mxu0 %v5871
    %6577 = vmatprep.subr.bf16.mxu0 0
    %6578 = vmatpush1.bf16.msra.mxu0 %v5872
    %6579 = vmatprep.subr.bf16.mxu0 0
    %6580 = vmatpush1.bf16.msra.mxu0 %v5873
    %6581 = vmatprep.subr.bf16.mxu0 0
    %6582 = vmatpush1.bf16.msra.mxu0 %v5874
    %6583 = vmatprep.subr.bf16.mxu0 0
    %6584 = vmatpush1.bf16.msra.mxu0 %v5875
    %6585 = vmatprep.subr.bf16.mxu0 0
    %6586 = vmatpush1.bf16.msra.mxu0 %v5876
    %6587 = vmatprep.subr.bf16.mxu0 0
    %6588 = vmatpush1.bf16.msra.mxu0 %v5877
    %6589 = vmatprep.subr.bf16.mxu0 0
    %6590 = vmatpush1.bf16.msra.mxu0 %v5878
    %6591 = vmatprep.subr.bf16.mxu0 0
    %6592 = vmatpush1.bf16.msra.mxu0 %v5879
    %6593 = vmatprep.subr.bf16.mxu0 0
    %6594 = vmatpush1.bf16.msra.mxu0 %v5880
    %6595 = vmatprep.mubr.bf16.mxu0 %v5850
    %6596 = vmatmul.mubr.bf16.gmra.mrb[0].mxu0 %v5849
    %v6597 = vpop.f32.mrb[0].mxu0
    %v6598 = vadd.f32 %v6558, %v6597
    %v6599 = vpop.f32.mrb[0].mxu0
    %v6600 = vpop.f32.mrb[0].mxu0
    %v6601 = vpop.f32.mrb[0].mxu0
    %6602 = vdwg.mxu0
    %6603 = vmatprep.subr.bf16.mxu0 0
    %6604 = vmatpush1.bf16.msra.mxu0 %v5881
    %6605 = vmatprep.subr.bf16.mxu0 0
    %6606 = vmatpush1.bf16.msra.mxu0 %v5882
    %6607 = vmatprep.subr.bf16.mxu0 0
    %6608 = vmatpush1.bf16.msra.mxu0 %v5883
    %6609 = vmatprep.subr.bf16.mxu0 0
    %6610 = vmatpush1.bf16.msra.mxu0 %v5884
    %6611 = vmatprep.subr.bf16.mxu0 0
    %6612 = vmatpush1.bf16.msra.mxu0 %v5885
    %6613 = vmatprep.subr.bf16.mxu0 0
    %6614 = vmatpush1.bf16.msra.mxu0 %v5886
    %6615 = vmatprep.subr.bf16.mxu0 0
    %6616 = vmatpush1.bf16.msra.mxu0 %v5887
    %6617 = vmatprep.subr.bf16.mxu0 0
    %6618 = vmatpush1.bf16.msra.mxu0 %v5888
    %6619 = vmatprep.subr.bf16.mxu0 0
    %6620 = vmatpush1.bf16.msra.mxu0 %v5889
    %6621 = vmatprep.subr.bf16.mxu0 0
    %6622 = vmatpush1.bf16.msra.mxu0 %v5890
    %6623 = vmatprep.subr.bf16.mxu0 0
    %6624 = vmatpush1.bf16.msra.mxu0 %v5891
    %6625 = vmatprep.subr.bf16.mxu0 0
    %6626 = vmatpush1.bf16.msra.mxu0 %v5892
    %6627 = vmatprep.subr.bf16.mxu0 0
    %6628 = vmatpush1.bf16.msra.mxu0 %v5893
    %6629 = vmatprep.subr.bf16.mxu0 0
    %6630 = vmatpush1.bf16.msra.mxu0 %v5894
    %6631 = vmatprep.subr.bf16.mxu0 0
    %6632 = vmatpush1.bf16.msra.mxu0 %v5895
    %6633 = vmatprep.subr.bf16.mxu0 0
    %6634 = vmatpush1.bf16.msra.mxu0 %v5896
    %6635 = vmatprep.mubr.bf16.mxu0 %v5852
    %6636 = vmatmul.mubr.bf16.gmra.mrb[0].mxu0 %v5851
    %v6637 = vpop.f32.mrb[0].mxu0
    %v6638 = vadd.f32 %v6598, %v6637
    %v6639 = vpop.f32.mrb[0].mxu0
    %v6640 = vpop.f32.mrb[0].mxu0
    %v6641 = vpop.f32.mrb[0].mxu0
    %6642 = vdwg.mxu0
    %6643 = vmatprep.subr.bf16.mxu0 0
    %6644 = vmatpush1.bf16.msra.mxu0 %v5897
    %6645 = vmatprep.subr.bf16.mxu0 0
    %6646 = vmatpush1.bf16.msra.mxu0 %v5898
    %6647 = vmatprep.subr.bf16.mxu0 0
    %6648 = vmatpush1.bf16.msra.mxu0 %v5899
    %6649 = vmatprep.subr.bf16.mxu0 0
    %6650 = vmatpush1.bf16.msra.mxu0 %v5900
    %6651 = vmatprep.subr.bf16.mxu0 0
    %6652 = vmatpush1.bf16.msra.mxu0 %v5901
    %6653 = vmatprep.subr.bf16.mxu0 0
    %6654 = vmatpush1.bf16.msra.mxu0 %v5902
    %6655 = vmatprep.subr.bf16.mxu0 0
    %6656 = vmatpush1.bf16.msra.mxu0 %v5903
    %6657 = vmatprep.subr.bf16.mxu0 0
    %6658 = vmatpush1.bf16.msra.mxu0 %v5904
    %6659 = vmatprep.subr.bf16.mxu0 0
    %6660 = vmatpush1.bf16.msra.mxu0 %v5905
    %6661 = vmatprep.subr.bf16.mxu0 0
    %6662 = vmatpush1.bf16.msra.mxu0 %v5906
    %6663 = vmatprep.subr.bf16.mxu0 0
    %6664 = vmatpush1.bf16.msra.mxu0 %v5907
    %6665 = vmatprep.subr.bf16.mxu0 0
    %6666 = vmatpush1.bf16.msra.mxu0 %v5908
    %6667 = vmatprep.subr.bf16.mxu0 0
    %6668 = vmatpush1.bf16.msra.mxu0 %v5909
    %6669 = vmatprep.subr.bf16.mxu0 0
    %6670 = vmatpush1.bf16.msra.mxu0 %v5910
    %6671 = vmatprep.subr.bf16.mxu0 0
    %6672 = vmatpush1.bf16.msra.mxu0 %v5911
    %6673 = vmatprep.subr.bf16.mxu0 0
    %6674 = vmatpush1.bf16.msra.mxu0 %v5912
    %6675 = vmatprep.mubr.bf16.mxu0 %v5854
    %6676 = vmatmul.mubr.bf16.gmra.mrb[0].mxu0 %v5853
    %v6677 = vpop.f32.mrb[0].mxu0
    %v6678 = vadd.f32 %v6638, %v6677
    %v6679 = vpop.f32.mrb[0].mxu0
    %v6680 = vpop.f32.mrb[0].mxu0
    %v6681 = vpop.f32.mrb[0].mxu0
    %6682 = vdwg.mxu0
    %6683 = vmatprep.subr.bf16.mxu0 0
    %6684 = vmatpush1.bf16.msra.mxu0 %v5913
    %6685 = vmatprep.subr.bf16.mxu0 0
    %6686 = vmatpush1.bf16.msra.mxu0 %v5914
    %6687 = vmatprep.subr.bf16.mxu0 0
    %6688 = vmatpush1.bf16.msra.mxu0 %v5915
    %6689 = vmatprep.subr.bf16.mxu0 0
    %6690 = vmatpush1.bf16.msra.mxu0 %v5916
    %6691 = vmatprep.subr.bf16.mxu0 0
    %6692 = vmatpush1.bf16.msra.mxu0 %v5917
    %6693 = vmatprep.subr.bf16.mxu0 0
    %6694 = vmatpush1.bf16.msra.mxu0 %v5918
    %6695 = vmatprep.subr.bf16.mxu0 0
    %6696 = vmatpush1.bf16.msra.mxu0 %v5919
    %6697 = vmatprep.subr.bf16.mxu0 0
    %6698 = vmatpush1.bf16.msra.mxu0 %v5920
    %6699 = vmatprep.subr.bf16.mxu0 0
    %6700 = vmatpush1.bf16.msra.mxu0 %v5921
    %6701 = vmatprep.subr.bf16.mxu0 0
    %6702 = vmatpush1.bf16.msra.mxu0 %v5922
    %6703 = vmatprep.subr.bf16.mxu0 0
    %6704 = vmatpush1.bf16.msra.mxu0 %v5923
    %6705 = vmatprep.subr.bf16.mxu0 0
    %6706 = vmatpush1.bf16.msra.mxu0 %v5924
    %6707 = vmatprep.subr.bf16.mxu0 0
    %6708 = vmatpush1.bf16.msra.mxu0 %v5925
    %6709 = vmatprep.subr.bf16.mxu0 0
    %6710 = vmatpush1.bf16.msra.mxu0 %v5926
    %6711 = vmatprep.subr.bf16.mxu0 0
    %6712 = vmatpush1.bf16.msra.mxu0 %v5927
    %6713 = vmatprep.subr.bf16.mxu0 0
    %6714 = vmatpush1.bf16.msra.mxu0 %v5928
    %6715 = vmatprep.mubr.bf16.mxu0 %v5856
    %6716 = vmatmul.mubr.bf16.gmra.mrb[0].mxu0 %v5855
    %v6717 = vpop.f32.mrb[0].mxu0
    %v6718 = vadd.f32 %v6678, %v6717
    %v6719 = vpop.f32.mrb[0].mxu0
    %v6720 = vpop.f32.mrb[0].mxu0
    %v6721 = vpop.f32.mrb[0].mxu0
    %6722 = vdwg.mxu0
    %6723 = vmatprep.subr.bf16.mxu0 0
    %6724 = vmatpush1.bf16.msra.mxu0 %v5929
    %6725 = vmatprep.subr.bf16.mxu0 0
    %6726 = vmatpush1.bf16.msra.mxu0 %v5930
    %6727 = vmatprep.subr.bf16.mxu0 0
    %6728 = vmatpush1.bf16.msra.mxu0 %v5931
    %6729 = vmatprep.subr.bf16.mxu0 0
    %6730 = vmatpush1.bf16.msra.mxu0 %v5932
    %6731 = vmatprep.subr.bf16.mxu0 0
    %6732 = vmatpush1.bf16.msra.mxu0 %v5933
    %6733 = vmatprep.subr.bf16.mxu0 0
    %6734 = vmatpush1.bf16.msra.mxu0 %v5934
    %6735 = vmatprep.subr.bf16.mxu0 0
    %6736 = vmatpush1.bf16.msra.mxu0 %v5935
    %6737 = vmatprep.subr.bf16.mxu0 0
    %6738 = vmatpush1.bf16.msra.mxu0 %v5936
    %6739 = vmatprep.subr.bf16.mxu0 0
    %6740 = vmatpush1.bf16.msra.mxu0 %v5937
    %6741 = vmatprep.subr.bf16.mxu0 0
    %6742 = vmatpush1.bf16.msra.mxu0 %v5938
    %6743 = vmatprep.subr.bf16.mxu0 0
    %6744 = vmatpush1.bf16.msra.mxu0 %v5939
    %6745 = vmatprep.subr.bf16.mxu0 0
    %6746 = vmatpush1.bf16.msra.mxu0 %v5940
    %6747 = vmatprep.subr.bf16.mxu0 0
    %6748 = vmatpush1.bf16.msra.mxu0 %v5941
    %6749 = vmatprep.subr.bf16.mxu0 0
    %6750 = vmatpush1.bf16.msra.mxu0 %v5942
    %6751 = vmatprep.subr.bf16.mxu0 0
    %6752 = vmatpush1.bf16.msra.mxu0 %v5943
    %6753 = vmatprep.subr.bf16.mxu0 0
    %6754 = vmatpush1.bf16.msra.mxu0 %v5944
    %6755 = vmatprep.mubr.bf16.mxu0 %v5858
    %6756 = vmatmul.mubr.bf16.gmra.mrb[0].mxu0 %v5857
    %v6757 = vpop.f32.mrb[0].mxu0
    %v6758 = vadd.f32 %v6718, %v6757
    %v6759 = vpop.f32.mrb[0].mxu0
    %v6760 = vpop.f32.mrb[0].mxu0
    %v6761 = vpop.f32.mrb[0].mxu0
    %6762 = vdwg.mxu0
    %6763 = vmatprep.subr.bf16.mxu0 0
    %6764 = vmatpush1.bf16.msra.mxu0 %v5945
    %6765 = vmatprep.subr.bf16.mxu0 0
    %6766 = vmatpush1.bf16.msra.mxu0 %v5946
    %6767 = vmatprep.subr.bf16.mxu0 0
    %6768 = vmatpush1.bf16.msra.mxu0 %v5947
    %6769 = vmatprep.subr.bf16.mxu0 0
    %6770 = vmatpush1.bf16.msra.mxu0 %v5948
    %6771 = vmatprep.subr.bf16.mxu0 0
    %6772 = vmatpush1.bf16.msra.mxu0 %v5949
    %6773 = vmatprep.subr.bf16.mxu0 0
    %6774 = vmatpush1.bf16.msra.mxu0 %v5950
    %6775 = vmatprep.subr.bf16.mxu0 0
    %6776 = vmatpush1.bf16.msra.mxu0 %v5951
    %6777 = vmatprep.subr.bf16.mxu0 0
    %6778 = vmatpush1.bf16.msra.mxu0 %v5952
    %6779 = vmatprep.subr.bf16.mxu0 0
    %6780 = vmatpush1.bf16.msra.mxu0 %v5953
    %6781 = vmatprep.subr.bf16.mxu0 0
    %6782 = vmatpush1.bf16.msra.mxu0 %v5954
    %6783 = vmatprep.subr.bf16.mxu0 0
    %6784 = vmatpush1.bf16.msra.mxu0 %v5955
    %6785 = vmatprep.subr.bf16.mxu0 0
    %6786 = vmatpush1.bf16.msra.mxu0 %v5956
    %6787 = vmatprep.subr.bf16.mxu0 0
    %6788 = vmatpush1.bf16.msra.mxu0 %v5957
    %6789 = vmatprep.subr.bf16.mxu0 0
    %6790 = vmatpush1.bf16.msra.mxu0 %v5958
    %6791 = vmatprep.subr.bf16.mxu0 0
    %6792 = vmatpush1.bf16.msra.mxu0 %v5959
    %6793 = vmatprep.subr.bf16.mxu0 0
    %6794 = vmatpush1.bf16.msra.mxu0 %v5960
    %6795 = vmatprep.mubr.bf16.mxu0 %v5860
    %6796 = vmatmul.mubr.bf16.gmra.mrb[0].mxu0 %v5859
    %v6797 = vpop.f32.mrb[0].mxu0
    %v6798 = vadd.f32 %v6758, %v6797
    %v6799 = vpop.f32.mrb[0].mxu0
    %v6800 = vpop.f32.mrb[0].mxu0
    %v6801 = vpop.f32.mrb[0].mxu0
    %6802 = vdwg.mxu0
    %6803 = vmatprep.subr.bf16.mxu0 0
    %6804 = vmatpush1.bf16.msra.mxu0 %v5961
    %6805 = vmatprep.subr.bf16.mxu0 0
    %6806 = vmatpush1.bf16.msra.mxu0 %v5962
    %6807 = vmatprep.subr.bf16.mxu0 0
    %6808 = vmatpush1.bf16.msra.mxu0 %v5963
    %6809 = vmatprep.subr.bf16.mxu0 0
    %6810 = vmatpush1.bf16.msra.mxu0 %v5964
    %6811 = vmatprep.subr.bf16.mxu0 0
    %6812 = vmatpush1.bf16.msra.mxu0 %v5965
    %6813 = vmatprep.subr.bf16.mxu0 0
    %6814 = vmatpush1.bf16.msra.mxu0 %v5966
    %6815 = vmatprep.subr.bf16.mxu0 0
    %6816 = vmatpush1.bf16.msra.mxu0 %v5967
    %6817 = vmatprep.subr.bf16.mxu0 0
    %6818 = vmatpush1.bf16.msra.mxu0 %v5968
    %6819 = vmatprep.subr.bf16.mxu0 0
    %6820 = vmatpush1.bf16.msra.mxu0 %v5969
    %6821 = vmatprep.subr.bf16.mxu0 0
    %6822 = vmatpush1.bf16.msra.mxu0 %v5970
    %6823 = vmatprep.subr.bf16.mxu0 0
    %6824 = vmatpush1.bf16.msra.mxu0 %v5971
    %6825 = vmatprep.subr.bf16.mxu0 0
    %6826 = vmatpush1.bf16.msra.mxu0 %v5972
    %6827 = vmatprep.subr.bf16.mxu0 0
    %6828 = vmatpush1.bf16.msra.mxu0 %v5973
    %6829 = vmatprep.subr.bf16.mxu0 0
    %6830 = vmatpush1.bf16.msra.mxu0 %v5974
    %6831 = vmatprep.subr.bf16.mxu0 0
    %6832 = vmatpush1.bf16.msra.mxu0 %v5975
    %6833 = vmatprep.subr.bf16.mxu0 0
    %6834 = vmatpush1.bf16.msra.mxu0 %v5976
    %6835 = vmatprep.mubr.bf16.mxu0 %v5862
    %6836 = vmatmul.mubr.bf16.gmra.mrb[0].mxu0 %v5861
    %v6837 = vpop.f32.mrb[0].mxu0
    %v6838 = vadd.f32 %v6798, %v6837
    %v6839 = vpop.f32.mrb[0].mxu0
    %v6840 = vpop.f32.mrb[0].mxu0
    %v6841 = vpop.f32.mrb[0].mxu0
    %6842 = vdwg.mxu0
    %6843 = vmatprep.subr.bf16.mxu0 0
    %6844 = vmatpush1.bf16.msra.mxu0 %v5977
    %6845 = vmatprep.subr.bf16.mxu0 0
    %6846 = vmatpush1.bf16.msra.mxu0 %v5978
    %6847 = vmatprep.subr.bf16.mxu0 0
    %6848 = vmatpush1.bf16.msra.mxu0 %v5979
    %6849 = vmatprep.subr.bf16.mxu0 0
    %6850 = vmatpush1.bf16.msra.mxu0 %v5980
    %6851 = vmatprep.subr.bf16.mxu0 0
    %6852 = vmatpush1.bf16.msra.mxu0 %v5981
    %6853 = vmatprep.subr.bf16.mxu0 0
    %6854 = vmatpush1.bf16.msra.mxu0 %v5982
    %6855 = vmatprep.subr.bf16.mxu0 0
    %6856 = vmatpush1.bf16.msra.mxu0 %v5983
    %6857 = vmatprep.subr.bf16.mxu0 0
    %6858 = vmatpush1.bf16.msra.mxu0 %v5984
    %6859 = vmatprep.subr.bf16.mxu0 0
    %6860 = vmatpush1.bf16.msra.mxu0 %v5985
    %6861 = vmatprep.subr.bf16.mxu0 0
    %6862 = vmatpush1.bf16.msra.mxu0 %v5986
    %6863 = vmatprep.subr.bf16.mxu0 0
    %6864 = vmatpush1.bf16.msra.mxu0 %v5987
    %6865 = vmatprep.subr.bf16.mxu0 0
    %6866 = vmatpush1.bf16.msra.mxu0 %v5988
    %6867 = vmatprep.subr.bf16.mxu0 0
    %6868 = vmatpush1.bf16.msra.mxu0 %v5989
    %6869 = vmatprep.subr.bf16.mxu0 0
    %6870 = vmatpush1.bf16.msra.mxu0 %v5990
    %6871 = vmatprep.subr.bf16.mxu0 0
    %6872 = vmatpush1.bf16.msra.mxu0 %v5991
    %6873 = vmatprep.subr.bf16.mxu0 0
    %6874 = vmatpush1.bf16.msra.mxu0 %v5992
    %6875 = vmatprep.mubr.bf16.mxu0 %v5864
    %6876 = vmatmul.mubr.bf16.gmra.mrb[0].mxu0 %v5863
    %v6877 = vpop.f32.mrb[0].mxu0
    %v6878 = vadd.f32 %v6838, %v6877
    %v6879 = vpop.f32.mrb[0].mxu0
    %v6880 = vpop.f32.mrb[0].mxu0
    %v6881 = vpop.f32.mrb[0].mxu0
    %6882 = vdwg.mxu0
    %s6883 = scalar_lea.hbm %s3, 49152
    // Predicated region
    $region34: #{forward.1} parent=1 // pred_check
      _
    $region35: #{forward.1} parent=1 // pred_check_branch
      %6885 = sbr.rel target = $region37
    $region36: #{forward.1} parent=1 // pred_region
      %6886 = sst [smem:[#allocation12]] [#allocation19]
      %6887 = sst [smem:[#allocation13]] [#allocation18]
    $region37: #{forward.1} parent=1 // pred_fallthru
      _
    %6889 = shalt.err (0)
    %s6891 = sshll.u32 %s54, 4
    %s6892 = int_to_ptr.vmem [resolvable:$true] %s6891
    %6894 = dma.hbm_to_vmem [thread:$0]  %s6883, 16384, %s6892, %s55
    %s6895 = sshll.u32 %s5754, 4
    %6896 = dma.done [#allocation5], %s6895
    %v6897 = vld [vmem:[#allocation3 + $0x40] sm:$0xff]
    %v6898 = vld [vmem:[#allocation3 + $0x48] sm:$0xff]
    %v6899 = vld [vmem:[#allocation3 + $0x50] sm:$0xff]
    %v6900 = vld [vmem:[#allocation3 + $0x58] sm:$0xff]
    %v6905 = vcombine.high %v6897, %v6897
    %v6907 = vunpack.c.l.s4 1983009808
    %v6908 = vunpack.c.0.s8 %v6907
    %v6909 = vlaneseq
    %v6910 = vshrl.u32 %v6909, 7
    %v6911 = vsub.s32 %v6908, %v6910
    %v6912 = vrot.slane %v6897, %v6911
    %v6914 = vunpack.c.l.s4 1983009808
    %v6915 = vunpack.c.0.s8 %v6914
    %v6916 = vlaneseq
    %v6917 = vshrl.u32 %v6916, 7
    %v6918 = vsub.s32 %v6915, %v6917
    %v6919 = vrot.slane %v6905, %v6918
    %v6920 = vcombine.high %v6912, %v6912
    %v6921 = vcombine.high %v6919, %v6919
    %v6922 = vcombine.high %v6898, %v6898
    %v6924 = vunpack.c.l.s4 1983009808
    %v6925 = vunpack.c.0.s8 %v6924
    %v6926 = vlaneseq
    %v6927 = vshrl.u32 %v6926, 7
    %v6928 = vsub.s32 %v6925, %v6927
    %v6929 = vrot.slane %v6898, %v6928
    %v6931 = vunpack.c.l.s4 1983009808
    %v6932 = vunpack.c.0.s8 %v6931
    %v6933 = vlaneseq
    %v6934 = vshrl.u32 %v6933, 7
    %v6935 = vsub.s32 %v6932, %v6934
    %v6936 = vrot.slane %v6922, %v6935
    %v6937 = vcombine.high %v6929, %v6929
    %v6938 = vcombine.high %v6936, %v6936
    %v6939 = vcombine.high %v6899, %v6899
    %v6941 = vunpack.c.l.s4 1983009808
    %v6942 = vunpack.c.0.s8 %v6941
    %v6943 = vlaneseq
    %v6944 = vshrl.u32 %v6943, 7
    %v6945 = vsub.s32 %v6942, %v6944
    %v6946 = vrot.slane %v6899, %v6945
    %v6948 = vunpack.c.l.s4 1983009808
    %v6949 = vunpack.c.0.s8 %v6948
    %v6950 = vlaneseq
    %v6951 = vshrl.u32 %v6950, 7
    %v6952 = vsub.s32 %v6949, %v6951
    %v6953 = vrot.slane %v6939, %v6952
    %v6954 = vcombine.high %v6946, %v6946
    %v6955 = vcombine.high %v6953, %v6953
    %v6956 = vcombine.high %v6900, %v6900
    %v6958 = vunpack.c.l.s4 1983009808
    %v6959 = vunpack.c.0.s8 %v6958
    %v6960 = vlaneseq
    %v6961 = vshrl.u32 %v6960, 7
    %v6962 = vsub.s32 %v6959, %v6961
    %v6963 = vrot.slane %v6900, %v6962
    %v6965 = vunpack.c.l.s4 1983009808
    %v6966 = vunpack.c.0.s8 %v6965
    %v6967 = vlaneseq
    %v6968 = vshrl.u32 %v6967, 7
    %v6969 = vsub.s32 %v6966, %v6968
    %v6970 = vrot.slane %v6956, %v6969
    %v6971 = vcombine.high %v6963, %v6963
    %v6972 = vcombine.high %v6970, %v6970
    %v6989 = vpack.c.bf16 %v6912, %v6912
    %v6990 = vpack.c.bf16 %v6920, %v6920
    %v6991 = vpack.c.bf16 %v6919, %v6919
    %v6992 = vpack.c.bf16 %v6921, %v6921
    %v6993 = vpack.c.bf16 %v6929, %v6929
    %v6994 = vpack.c.bf16 %v6937, %v6937
    %v6995 = vpack.c.bf16 %v6936, %v6936
    %v6996 = vpack.c.bf16 %v6938, %v6938
    %v6997 = vpack.c.bf16 %v6946, %v6946
    %v6998 = vpack.c.bf16 %v6954, %v6954
    %v6999 = vpack.c.bf16 %v6953, %v6953
    %v7000 = vpack.c.bf16 %v6955, %v6955
    %v7001 = vpack.c.bf16 %v6963, %v6963
    %v7002 = vpack.c.bf16 %v6971, %v6971
    %v7003 = vpack.c.bf16 %v6970, %v6970
    %v7004 = vpack.c.bf16 %v6972, %v6972
    %v7005 = vld [vmem:[#allocation4] sm:$0xff]
    %v7006 = vld [vmem:[#allocation4 + $0x8] sm:$0xff]
    %v7007 = vld [vmem:[#allocation4 + $0x10] sm:$0xff]
    %v7008 = vld [vmem:[#allocation4 + $0x18] sm:$0xff]
    %v7009 = vld [vmem:[#allocation4 + $0x20] sm:$0xff]
    %v7010 = vld [vmem:[#allocation4 + $0x28] sm:$0xff]
    %v7011 = vld [vmem:[#allocation4 + $0x30] sm:$0xff]
    %v7012 = vld [vmem:[#allocation4 + $0x38] sm:$0xff]
    %v7013 = vld [vmem:[#allocation4 + $0x40] sm:$0xff]
    %v7014 = vld [vmem:[#allocation4 + $0x48] sm:$0xff]
    %v7015 = vld [vmem:[#allocation4 + $0x50] sm:$0xff]
    %v7016 = vld [vmem:[#allocation4 + $0x58] sm:$0xff]
    %v7017 = vld [vmem:[#allocation4 + $0x60] sm:$0xff]
    %v7018 = vld [vmem:[#allocation4 + $0x68] sm:$0xff]
    %v7019 = vld [vmem:[#allocation4 + $0x70] sm:$0xff]
    %v7020 = vld [vmem:[#allocation4 + $0x78] sm:$0xff]
    %v7021 = vld [vmem:[#allocation4 + $0x80] sm:$0xff]
    %v7022 = vld [vmem:[#allocation4 + $0x88] sm:$0xff]
    %v7023 = vld [vmem:[#allocation4 + $0x90] sm:$0xff]
    %v7024 = vld [vmem:[#allocation4 + $0x98] sm:$0xff]
    %v7025 = vld [vmem:[#allocation4 + $0xa0] sm:$0xff]
    %v7026 = vld [vmem:[#allocation4 + $0xa8] sm:$0xff]
    %v7027 = vld [vmem:[#allocation4 + $0xb0] sm:$0xff]
    %v7028 = vld [vmem:[#allocation4 + $0xb8] sm:$0xff]
    %v7029 = vld [vmem:[#allocation4 + $0xc0] sm:$0xff]
    %v7030 = vld [vmem:[#allocation4 + $0xc8] sm:$0xff]
    %v7031 = vld [vmem:[#allocation4 + $0xd0] sm:$0xff]
    %v7032 = vld [vmem:[#allocation4 + $0xd8] sm:$0xff]
    %v7033 = vld [vmem:[#allocation4 + $0xe0] sm:$0xff]
    %v7034 = vld [vmem:[#allocation4 + $0xe8] sm:$0xff]
    %v7035 = vld [vmem:[#allocation4 + $0xf0] sm:$0xff]
    %v7036 = vld [vmem:[#allocation4 + $0xf8] sm:$0xff]
    %v7037 = vld [vmem:[#allocation4 + $0x100] sm:$0xff]
    %v7038 = vld [vmem:[#allocation4 + $0x108] sm:$0xff]
    %v7039 = vld [vmem:[#allocation4 + $0x110] sm:$0xff]
    %v7040 = vld [vmem:[#allocation4 + $0x118] sm:$0xff]
    %v7041 = vld [vmem:[#allocation4 + $0x120] sm:$0xff]
    %v7042 = vld [vmem:[#allocation4 + $0x128] sm:$0xff]
    %v7043 = vld [vmem:[#allocation4 + $0x130] sm:$0xff]
    %v7044 = vld [vmem:[#allocation4 + $0x138] sm:$0xff]
    %v7045 = vld [vmem:[#allocation4 + $0x140] sm:$0xff]
    %v7046 = vld [vmem:[#allocation4 + $0x148] sm:$0xff]
    %v7047 = vld [vmem:[#allocation4 + $0x150] sm:$0xff]
    %v7048 = vld [vmem:[#allocation4 + $0x158] sm:$0xff]
    %v7049 = vld [vmem:[#allocation4 + $0x160] sm:$0xff]
    %v7050 = vld [vmem:[#allocation4 + $0x168] sm:$0xff]
    %v7051 = vld [vmem:[#allocation4 + $0x170] sm:$0xff]
    %v7052 = vld [vmem:[#allocation4 + $0x178] sm:$0xff]
    %v7053 = vld [vmem:[#allocation4 + $0x180] sm:$0xff]
    %v7054 = vld [vmem:[#allocation4 + $0x188] sm:$0xff]
    %v7055 = vld [vmem:[#allocation4 + $0x190] sm:$0xff]
    %v7056 = vld [vmem:[#allocation4 + $0x198] sm:$0xff]
    %v7057 = vld [vmem:[#allocation4 + $0x1a0] sm:$0xff]
    %v7058 = vld [vmem:[#allocation4 + $0x1a8] sm:$0xff]
    %v7059 = vld [vmem:[#allocation4 + $0x1b0] sm:$0xff]
    %v7060 = vld [vmem:[#allocation4 + $0x1b8] sm:$0xff]
    %v7061 = vld [vmem:[#allocation4 + $0x1c0] sm:$0xff]
    %v7062 = vld [vmem:[#allocation4 + $0x1c8] sm:$0xff]
    %v7063 = vld [vmem:[#allocation4 + $0x1d0] sm:$0xff]
    %v7064 = vld [vmem:[#allocation4 + $0x1d8] sm:$0xff]
    %v7065 = vld [vmem:[#allocation4 + $0x1e0] sm:$0xff]
    %v7066 = vld [vmem:[#allocation4 + $0x1e8] sm:$0xff]
    %v7067 = vld [vmem:[#allocation4 + $0x1f0] sm:$0xff]
    %v7068 = vld [vmem:[#allocation4 + $0x1f8] sm:$0xff]
    %v7069 = vld [vmem:[#allocation4 + $0x200] sm:$0xff]
    %v7070 = vld [vmem:[#allocation4 + $0x208] sm:$0xff]
    %v7071 = vld [vmem:[#allocation4 + $0x210] sm:$0xff]
    %v7072 = vld [vmem:[#allocation4 + $0x218] sm:$0xff]
    %v7073 = vld [vmem:[#allocation4 + $0x220] sm:$0xff]
    %v7074 = vld [vmem:[#allocation4 + $0x228] sm:$0xff]
    %v7075 = vld [vmem:[#allocation4 + $0x230] sm:$0xff]
    %v7076 = vld [vmem:[#allocation4 + $0x238] sm:$0xff]
    %v7077 = vld [vmem:[#allocation4 + $0x240] sm:$0xff]
    %v7078 = vld [vmem:[#allocation4 + $0x248] sm:$0xff]
    %v7079 = vld [vmem:[#allocation4 + $0x250] sm:$0xff]
    %v7080 = vld [vmem:[#allocation4 + $0x258] sm:$0xff]
    %v7081 = vld [vmem:[#allocation4 + $0x260] sm:$0xff]
    %v7082 = vld [vmem:[#allocation4 + $0x268] sm:$0xff]
    %v7083 = vld [vmem:[#allocation4 + $0x270] sm:$0xff]
    %v7084 = vld [vmem:[#allocation4 + $0x278] sm:$0xff]
    %v7085 = vld [vmem:[#allocation4 + $0x280] sm:$0xff]
    %v7086 = vld [vmem:[#allocation4 + $0x288] sm:$0xff]
    %v7087 = vld [vmem:[#allocation4 + $0x290] sm:$0xff]
    %v7088 = vld [vmem:[#allocation4 + $0x298] sm:$0xff]
    %v7089 = vld [vmem:[#allocation4 + $0x2a0] sm:$0xff]
    %v7090 = vld [vmem:[#allocation4 + $0x2a8] sm:$0xff]
    %v7091 = vld [vmem:[#allocation4 + $0x2b0] sm:$0xff]
    %v7092 = vld [vmem:[#allocation4 + $0x2b8] sm:$0xff]
    %v7093 = vld [vmem:[#allocation4 + $0x2c0] sm:$0xff]
    %v7094 = vld [vmem:[#allocation4 + $0x2c8] sm:$0xff]
    %v7095 = vld [vmem:[#allocation4 + $0x2d0] sm:$0xff]
    %v7096 = vld [vmem:[#allocation4 + $0x2d8] sm:$0xff]
    %v7097 = vld [vmem:[#allocation4 + $0x2e0] sm:$0xff]
    %v7098 = vld [vmem:[#allocation4 + $0x2e8] sm:$0xff]
    %v7099 = vld [vmem:[#allocation4 + $0x2f0] sm:$0xff]
    %v7100 = vld [vmem:[#allocation4 + $0x2f8] sm:$0xff]
    %v7101 = vld [vmem:[#allocation4 + $0x300] sm:$0xff]
    %v7102 = vld [vmem:[#allocation4 + $0x308] sm:$0xff]
    %v7103 = vld [vmem:[#allocation4 + $0x310] sm:$0xff]
    %v7104 = vld [vmem:[#allocation4 + $0x318] sm:$0xff]
    %v7105 = vld [vmem:[#allocation4 + $0x320] sm:$0xff]
    %v7106 = vld [vmem:[#allocation4 + $0x328] sm:$0xff]
    %v7107 = vld [vmem:[#allocation4 + $0x330] sm:$0xff]
    %v7108 = vld [vmem:[#allocation4 + $0x338] sm:$0xff]
    %v7109 = vld [vmem:[#allocation4 + $0x340] sm:$0xff]
    %v7110 = vld [vmem:[#allocation4 + $0x348] sm:$0xff]
    %v7111 = vld [vmem:[#allocation4 + $0x350] sm:$0xff]
    %v7112 = vld [vmem:[#allocation4 + $0x358] sm:$0xff]
    %v7113 = vld [vmem:[#allocation4 + $0x360] sm:$0xff]
    %v7114 = vld [vmem:[#allocation4 + $0x368] sm:$0xff]
    %v7115 = vld [vmem:[#allocation4 + $0x370] sm:$0xff]
    %v7116 = vld [vmem:[#allocation4 + $0x378] sm:$0xff]
    %v7117 = vld [vmem:[#allocation4 + $0x380] sm:$0xff]
    %v7118 = vld [vmem:[#allocation4 + $0x388] sm:$0xff]
    %v7119 = vld [vmem:[#allocation4 + $0x390] sm:$0xff]
    %v7120 = vld [vmem:[#allocation4 + $0x398] sm:$0xff]
    %v7121 = vld [vmem:[#allocation4 + $0x3a0] sm:$0xff]
    %v7122 = vld [vmem:[#allocation4 + $0x3a8] sm:$0xff]
    %v7123 = vld [vmem:[#allocation4 + $0x3b0] sm:$0xff]
    %v7124 = vld [vmem:[#allocation4 + $0x3b8] sm:$0xff]
    %v7125 = vld [vmem:[#allocation4 + $0x3c0] sm:$0xff]
    %v7126 = vld [vmem:[#allocation4 + $0x3c8] sm:$0xff]
    %v7127 = vld [vmem:[#allocation4 + $0x3d0] sm:$0xff]
    %v7128 = vld [vmem:[#allocation4 + $0x3d8] sm:$0xff]
    %v7129 = vld [vmem:[#allocation4 + $0x3e0] sm:$0xff]
    %v7130 = vld [vmem:[#allocation4 + $0x3e8] sm:$0xff]
    %v7131 = vld [vmem:[#allocation4 + $0x3f0] sm:$0xff]
    %v7132 = vld [vmem:[#allocation4 + $0x3f8] sm:$0xff]
    %7133 = vmatprep.subr.bf16.mxu0 0
    %7134 = vmatpush1.bf16.msra.mxu0 %v7005
    %7135 = vmatprep.subr.bf16.mxu0 0
    %7136 = vmatpush1.bf16.msra.mxu0 %v7006
    %7137 = vmatprep.subr.bf16.mxu0 0
    %7138 = vmatpush1.bf16.msra.mxu0 %v7007
    %7139 = vmatprep.subr.bf16.mxu0 0
    %7140 = vmatpush1.bf16.msra.mxu0 %v7008
    %7141 = vmatprep.subr.bf16.mxu0 0
    %7142 = vmatpush1.bf16.msra.mxu0 %v7009
    %7143 = vmatprep.subr.bf16.mxu0 0
    %7144 = vmatpush1.bf16.msra.mxu0 %v7010
    %7145 = vmatprep.subr.bf16.mxu0 0
    %7146 = vmatpush1.bf16.msra.mxu0 %v7011
    %7147 = vmatprep.subr.bf16.mxu0 0
    %7148 = vmatpush1.bf16.msra.mxu0 %v7012
    %7149 = vmatprep.subr.bf16.mxu0 0
    %7150 = vmatpush1.bf16.msra.mxu0 %v7013
    %7151 = vmatprep.subr.bf16.mxu0 0
    %7152 = vmatpush1.bf16.msra.mxu0 %v7014
    %7153 = vmatprep.subr.bf16.mxu0 0
    %7154 = vmatpush1.bf16.msra.mxu0 %v7015
    %7155 = vmatprep.subr.bf16.mxu0 0
    %7156 = vmatpush1.bf16.msra.mxu0 %v7016
    %7157 = vmatprep.subr.bf16.mxu0 0
    %7158 = vmatpush1.bf16.msra.mxu0 %v7017
    %7159 = vmatprep.subr.bf16.mxu0 0
    %7160 = vmatpush1.bf16.msra.mxu0 %v7018
    %7161 = vmatprep.subr.bf16.mxu0 0
    %7162 = vmatpush1.bf16.msra.mxu0 %v7019
    %7163 = vmatprep.subr.bf16.mxu0 0
    %7164 = vmatpush1.bf16.msra.mxu0 %v7020
    %7165 = vmatprep.mubr.bf16.mxu0 %v6990
    %7166 = vmatmul.mubr.bf16.gmra.mrb[0].mxu0 %v6989
    %v7167 = vpop.f32.mrb[0].mxu0
    %v7168 = vadd.f32 0.0, %v7167
    %v7169 = vpop.f32.mrb[0].mxu0
    %v7170 = vpop.f32.mrb[0].mxu0
    %v7171 = vpop.f32.mrb[0].mxu0
    %7172 = vdwg.mxu0
    %7173 = vmatprep.subr.bf16.mxu0 0
    %7174 = vmatpush1.bf16.msra.mxu0 %v7021
    %7175 = vmatprep.subr.bf16.mxu0 0
    %7176 = vmatpush1.bf16.msra.mxu0 %v7022
    %7177 = vmatprep.subr.bf16.mxu0 0
    %7178 = vmatpush1.bf16.msra.mxu0 %v7023
    %7179 = vmatprep.subr.bf16.mxu0 0
    %7180 = vmatpush1.bf16.msra.mxu0 %v7024
    %7181 = vmatprep.subr.bf16.mxu0 0
    %7182 = vmatpush1.bf16.msra.mxu0 %v7025
    %7183 = vmatprep.subr.bf16.mxu0 0
    %7184 = vmatpush1.bf16.msra.mxu0 %v7026
    %7185 = vmatprep.subr.bf16.mxu0 0
    %7186 = vmatpush1.bf16.msra.mxu0 %v7027
    %7187 = vmatprep.subr.bf16.mxu0 0
    %7188 = vmatpush1.bf16.msra.mxu0 %v7028
    %7189 = vmatprep.subr.bf16.mxu0 0
    %7190 = vmatpush1.bf16.msra.mxu0 %v7029
    %7191 = vmatprep.subr.bf16.mxu0 0
    %7192 = vmatpush1.bf16.msra.mxu0 %v7030
    %7193 = vmatprep.subr.bf16.mxu0 0
    %7194 = vmatpush1.bf16.msra.mxu0 %v7031
    %7195 = vmatprep.subr.bf16.mxu0 0
    %7196 = vmatpush1.bf16.msra.mxu0 %v7032
    %7197 = vmatprep.subr.bf16.mxu0 0
    %7198 = vmatpush1.bf16.msra.mxu0 %v7033
    %7199 = vmatprep.subr.bf16.mxu0 0
    %7200 = vmatpush1.bf16.msra.mxu0 %v7034
    %7201 = vmatprep.subr.bf16.mxu0 0
    %7202 = vmatpush1.bf16.msra.mxu0 %v7035
    %7203 = vmatprep.subr.bf16.mxu0 0
    %7204 = vmatpush1.bf16.msra.mxu0 %v7036
    %7205 = vmatprep.mubr.bf16.mxu0 %v6992
    %7206 = vmatmul.mubr.bf16.gmra.mrb[0].mxu0 %v6991
    %v7207 = vpop.f32.mrb[0].mxu0
    %v7208 = vadd.f32 %v7168, %v7207
    %v7209 = vpop.f32.mrb[0].mxu0
    %v7210 = vpop.f32.mrb[0].mxu0
    %v7211 = vpop.f32.mrb[0].mxu0
    %7212 = vdwg.mxu0
    %7213 = vmatprep.subr.bf16.mxu0 0
    %7214 = vmatpush1.bf16.msra.mxu0 %v7037
    %7215 = vmatprep.subr.bf16.mxu0 0
    %7216 = vmatpush1.bf16.msra.mxu0 %v7038
    %7217 = vmatprep.subr.bf16.mxu0 0
    %7218 = vmatpush1.bf16.msra.mxu0 %v7039
    %7219 = vmatprep.subr.bf16.mxu0 0
    %7220 = vmatpush1.bf16.msra.mxu0 %v7040
    %7221 = vmatprep.subr.bf16.mxu0 0
    %7222 = vmatpush1.bf16.msra.mxu0 %v7041
    %7223 = vmatprep.subr.bf16.mxu0 0
    %7224 = vmatpush1.bf16.msra.mxu0 %v7042
    %7225 = vmatprep.subr.bf16.mxu0 0
    %7226 = vmatpush1.bf16.msra.mxu0 %v7043
    %7227 = vmatprep.subr.bf16.mxu0 0
    %7228 = vmatpush1.bf16.msra.mxu0 %v7044
    %7229 = vmatprep.subr.bf16.mxu0 0
    %7230 = vmatpush1.bf16.msra.mxu0 %v7045
    %7231 = vmatprep.subr.bf16.mxu0 0
    %7232 = vmatpush1.bf16.msra.mxu0 %v7046
    %7233 = vmatprep.subr.bf16.mxu0 0
    %7234 = vmatpush1.bf16.msra.mxu0 %v7047
    %7235 = vmatprep.subr.bf16.mxu0 0
    %7236 = vmatpush1.bf16.msra.mxu0 %v7048
    %7237 = vmatprep.subr.bf16.mxu0 0
    %7238 = vmatpush1.bf16.msra.mxu0 %v7049
    %7239 = vmatprep.subr.bf16.mxu0 0
    %7240 = vmatpush1.bf16.msra.mxu0 %v7050
    %7241 = vmatprep.subr.bf16.mxu0 0
    %7242 = vmatpush1.bf16.msra.mxu0 %v7051
    %7243 = vmatprep.subr.bf16.mxu0 0
    %7244 = vmatpush1.bf16.msra.mxu0 %v7052
    %7245 = vmatprep.mubr.bf16.mxu0 %v6994
    %7246 = vmatmul.mubr.bf16.gmra.mrb[0].mxu0 %v6993
    %v7247 = vpop.f32.mrb[0].mxu0
    %v7248 = vadd.f32 %v7208, %v7247
    %v7249 = vpop.f32.mrb[0].mxu0
    %v7250 = vpop.f32.mrb[0].mxu0
    %v7251 = vpop.f32.mrb[0].mxu0
    %7252 = vdwg.mxu0
    %7253 = vmatprep.subr.bf16.mxu0 0
    %7254 = vmatpush1.bf16.msra.mxu0 %v7053
    %7255 = vmatprep.subr.bf16.mxu0 0
    %7256 = vmatpush1.bf16.msra.mxu0 %v7054
    %7257 = vmatprep.subr.bf16.mxu0 0
    %7258 = vmatpush1.bf16.msra.mxu0 %v7055
    %7259 = vmatprep.subr.bf16.mxu0 0
    %7260 = vmatpush1.bf16.msra.mxu0 %v7056
    %7261 = vmatprep.subr.bf16.mxu0 0
    %7262 = vmatpush1.bf16.msra.mxu0 %v7057
    %7263 = vmatprep.subr.bf16.mxu0 0
    %7264 = vmatpush1.bf16.msra.mxu0 %v7058
    %7265 = vmatprep.subr.bf16.mxu0 0
    %7266 = vmatpush1.bf16.msra.mxu0 %v7059
    %7267 = vmatprep.subr.bf16.mxu0 0
    %7268 = vmatpush1.bf16.msra.mxu0 %v7060
    %7269 = vmatprep.subr.bf16.mxu0 0
    %7270 = vmatpush1.bf16.msra.mxu0 %v7061
    %7271 = vmatprep.subr.bf16.mxu0 0
    %7272 = vmatpush1.bf16.msra.mxu0 %v7062
    %7273 = vmatprep.subr.bf16.mxu0 0
    %7274 = vmatpush1.bf16.msra.mxu0 %v7063
    %7275 = vmatprep.subr.bf16.mxu0 0
    %7276 = vmatpush1.bf16.msra.mxu0 %v7064
    %7277 = vmatprep.subr.bf16.mxu0 0
    %7278 = vmatpush1.bf16.msra.mxu0 %v7065
    %7279 = vmatprep.subr.bf16.mxu0 0
    %7280 = vmatpush1.bf16.msra.mxu0 %v7066
    %7281 = vmatprep.subr.bf16.mxu0 0
    %7282 = vmatpush1.bf16.msra.mxu0 %v7067
    %7283 = vmatprep.subr.bf16.mxu0 0
    %7284 = vmatpush1.bf16.msra.mxu0 %v7068
    %7285 = vmatprep.mubr.bf16.mxu0 %v6996
    %7286 = vmatmul.mubr.bf16.gmra.mrb[0].mxu0 %v6995
    %v7287 = vpop.f32.mrb[0].mxu0
    %v7288 = vadd.f32 %v7248, %v7287
    %v7289 = vpop.f32.mrb[0].mxu0
    %v7290 = vpop.f32.mrb[0].mxu0
    %v7291 = vpop.f32.mrb[0].mxu0
    %7292 = vdwg.mxu0
    %7293 = vmatprep.subr.bf16.mxu0 0
    %7294 = vmatpush1.bf16.msra.mxu0 %v7069
    %7295 = vmatprep.subr.bf16.mxu0 0
    %7296 = vmatpush1.bf16.msra.mxu0 %v7070
    %7297 = vmatprep.subr.bf16.mxu0 0
    %7298 = vmatpush1.bf16.msra.mxu0 %v7071
    %7299 = vmatprep.subr.bf16.mxu0 0
    %7300 = vmatpush1.bf16.msra.mxu0 %v7072
    %7301 = vmatprep.subr.bf16.mxu0 0
    %7302 = vmatpush1.bf16.msra.mxu0 %v7073
    %7303 = vmatprep.subr.bf16.mxu0 0
    %7304 = vmatpush1.bf16.msra.mxu0 %v7074
    %7305 = vmatprep.subr.bf16.mxu0 0
    %7306 = vmatpush1.bf16.msra.mxu0 %v7075
    %7307 = vmatprep.subr.bf16.mxu0 0
    %7308 = vmatpush1.bf16.msra.mxu0 %v7076
    %7309 = vmatprep.subr.bf16.mxu0 0
    %7310 = vmatpush1.bf16.msra.mxu0 %v7077
    %7311 = vmatprep.subr.bf16.mxu0 0
    %7312 = vmatpush1.bf16.msra.mxu0 %v7078
    %7313 = vmatprep.subr.bf16.mxu0 0
    %7314 = vmatpush1.bf16.msra.mxu0 %v7079
    %7315 = vmatprep.subr.bf16.mxu0 0
    %7316 = vmatpush1.bf16.msra.mxu0 %v7080
    %7317 = vmatprep.subr.bf16.mxu0 0
    %7318 = vmatpush1.bf16.msra.mxu0 %v7081
    %7319 = vmatprep.subr.bf16.mxu0 0
    %7320 = vmatpush1.bf16.msra.mxu0 %v7082
    %7321 = vmatprep.subr.bf16.mxu0 0
    %7322 = vmatpush1.bf16.msra.mxu0 %v7083
    %7323 = vmatprep.subr.bf16.mxu0 0
    %7324 = vmatpush1.bf16.msra.mxu0 %v7084
    %7325 = vmatprep.mubr.bf16.mxu0 %v6998
    %7326 = vmatmul.mubr.bf16.gmra.mrb[0].mxu0 %v6997
    %v7327 = vpop.f32.mrb[0].mxu0
    %v7328 = vadd.f32 %v7288, %v7327
    %v7329 = vpop.f32.mrb[0].mxu0
    %v7330 = vpop.f32.mrb[0].mxu0
    %v7331 = vpop.f32.mrb[0].mxu0
    %7332 = vdwg.mxu0
    %7333 = vmatprep.subr.bf16.mxu0 0
    %7334 = vmatpush1.bf16.msra.mxu0 %v7085
    %7335 = vmatprep.subr.bf16.mxu0 0
    %7336 = vmatpush1.bf16.msra.mxu0 %v7086
    %7337 = vmatprep.subr.bf16.mxu0 0
    %7338 = vmatpush1.bf16.msra.mxu0 %v7087
    %7339 = vmatprep.subr.bf16.mxu0 0
    %7340 = vmatpush1.bf16.msra.mxu0 %v7088
    %7341 = vmatprep.subr.bf16.mxu0 0
    %7342 = vmatpush1.bf16.msra.mxu0 %v7089
    %7343 = vmatprep.subr.bf16.mxu0 0
    %7344 = vmatpush1.bf16.msra.mxu0 %v7090
    %7345 = vmatprep.subr.bf16.mxu0 0
    %7346 = vmatpush1.bf16.msra.mxu0 %v7091
    %7347 = vmatprep.subr.bf16.mxu0 0
    %7348 = vmatpush1.bf16.msra.mxu0 %v7092
    %7349 = vmatprep.subr.bf16.mxu0 0
    %7350 = vmatpush1.bf16.msra.mxu0 %v7093
    %7351 = vmatprep.subr.bf16.mxu0 0
    %7352 = vmatpush1.bf16.msra.mxu0 %v7094
    %7353 = vmatprep.subr.bf16.mxu0 0
    %7354 = vmatpush1.bf16.msra.mxu0 %v7095
    %7355 = vmatprep.subr.bf16.mxu0 0
    %7356 = vmatpush1.bf16.msra.mxu0 %v7096
    %7357 = vmatprep.subr.bf16.mxu0 0
    %7358 = vmatpush1.bf16.msra.mxu0 %v7097
    %7359 = vmatprep.subr.bf16.mxu0 0
    %7360 = vmatpush1.bf16.msra.mxu0 %v7098
    %7361 = vmatprep.subr.bf16.mxu0 0
    %7362 = vmatpush1.bf16.msra.mxu0 %v7099
    %7363 = vmatprep.subr.bf16.mxu0 0
    %7364 = vmatpush1.bf16.msra.mxu0 %v7100
    %7365 = vmatprep.mubr.bf16.mxu0 %v7000
    %7366 = vmatmul.mubr.bf16.gmra.mrb[0].mxu0 %v6999
    %v7367 = vpop.f32.mrb[0].mxu0
    %v7368 = vadd.f32 %v7328, %v7367
    %v7369 = vpop.f32.mrb[0].mxu0
    %v7370 = vpop.f32.mrb[0].mxu0
    %v7371 = vpop.f32.mrb[0].mxu0
    %7372 = vdwg.mxu0
    %7373 = vmatprep.subr.bf16.mxu0 0
    %7374 = vmatpush1.bf16.msra.mxu0 %v7101
    %7375 = vmatprep.subr.bf16.mxu0 0
    %7376 = vmatpush1.bf16.msra.mxu0 %v7102
    %7377 = vmatprep.subr.bf16.mxu0 0
    %7378 = vmatpush1.bf16.msra.mxu0 %v7103
    %7379 = vmatprep.subr.bf16.mxu0 0
    %7380 = vmatpush1.bf16.msra.mxu0 %v7104
    %7381 = vmatprep.subr.bf16.mxu0 0
    %7382 = vmatpush1.bf16.msra.mxu0 %v7105
    %7383 = vmatprep.subr.bf16.mxu0 0
    %7384 = vmatpush1.bf16.msra.mxu0 %v7106
    %7385 = vmatprep.subr.bf16.mxu0 0
    %7386 = vmatpush1.bf16.msra.mxu0 %v7107
    %7387 = vmatprep.subr.bf16.mxu0 0
    %7388 = vmatpush1.bf16.msra.mxu0 %v7108
    %7389 = vmatprep.subr.bf16.mxu0 0
    %7390 = vmatpush1.bf16.msra.mxu0 %v7109
    %7391 = vmatprep.subr.bf16.mxu0 0
    %7392 = vmatpush1.bf16.msra.mxu0 %v7110
    %7393 = vmatprep.subr.bf16.mxu0 0
    %7394 = vmatpush1.bf16.msra.mxu0 %v7111
    %7395 = vmatprep.subr.bf16.mxu0 0
    %7396 = vmatpush1.bf16.msra.mxu0 %v7112
    %7397 = vmatprep.subr.bf16.mxu0 0
    %7398 = vmatpush1.bf16.msra.mxu0 %v7113
    %7399 = vmatprep.subr.bf16.mxu0 0
    %7400 = vmatpush1.bf16.msra.mxu0 %v7114
    %7401 = vmatprep.subr.bf16.mxu0 0
    %7402 = vmatpush1.bf16.msra.mxu0 %v7115
    %7403 = vmatprep.subr.bf16.mxu0 0
    %7404 = vmatpush1.bf16.msra.mxu0 %v7116
    %7405 = vmatprep.mubr.bf16.mxu0 %v7002
    %7406 = vmatmul.mubr.bf16.gmra.mrb[0].mxu0 %v7001
    %v7407 = vpop.f32.mrb[0].mxu0
    %v7408 = vadd.f32 %v7368, %v7407
    %v7409 = vpop.f32.mrb[0].mxu0
    %v7410 = vpop.f32.mrb[0].mxu0
    %v7411 = vpop.f32.mrb[0].mxu0
    %7412 = vdwg.mxu0
    %7413 = vmatprep.subr.bf16.mxu0 0
    %7414 = vmatpush1.bf16.msra.mxu0 %v7117
    %7415 = vmatprep.subr.bf16.mxu0 0
    %7416 = vmatpush1.bf16.msra.mxu0 %v7118
    %7417 = vmatprep.subr.bf16.mxu0 0
    %7418 = vmatpush1.bf16.msra.mxu0 %v7119
    %7419 = vmatprep.subr.bf16.mxu0 0
    %7420 = vmatpush1.bf16.msra.mxu0 %v7120
    %7421 = vmatprep.subr.bf16.mxu0 0
    %7422 = vmatpush1.bf16.msra.mxu0 %v7121
    %7423 = vmatprep.subr.bf16.mxu0 0
    %7424 = vmatpush1.bf16.msra.mxu0 %v7122
    %7425 = vmatprep.subr.bf16.mxu0 0
    %7426 = vmatpush1.bf16.msra.mxu0 %v7123
    %7427 = vmatprep.subr.bf16.mxu0 0
    %7428 = vmatpush1.bf16.msra.mxu0 %v7124
    %7429 = vmatprep.subr.bf16.mxu0 0
    %7430 = vmatpush1.bf16.msra.mxu0 %v7125
    %7431 = vmatprep.subr.bf16.mxu0 0
    %7432 = vmatpush1.bf16.msra.mxu0 %v7126
    %7433 = vmatprep.subr.bf16.mxu0 0
    %7434 = vmatpush1.bf16.msra.mxu0 %v7127
    %7435 = vmatprep.subr.bf16.mxu0 0
    %7436 = vmatpush1.bf16.msra.mxu0 %v7128
    %7437 = vmatprep.subr.bf16.mxu0 0
    %7438 = vmatpush1.bf16.msra.mxu0 %v7129
    %7439 = vmatprep.subr.bf16.mxu0 0
    %7440 = vmatpush1.bf16.msra.mxu0 %v7130
    %7441 = vmatprep.subr.bf16.mxu0 0
    %7442 = vmatpush1.bf16.msra.mxu0 %v7131
    %7443 = vmatprep.subr.bf16.mxu0 0
    %7444 = vmatpush1.bf16.msra.mxu0 %v7132
    %7445 = vmatprep.mubr.bf16.mxu0 %v7004
    %7446 = vmatmul.mubr.bf16.gmra.mrb[0].mxu0 %v7003
    %v7447 = vpop.f32.mrb[0].mxu0
    %v7448 = vadd.f32 %v7408, %v7447
    %v7449 = vpop.f32.mrb[0].mxu0
    %v7450 = vpop.f32.mrb[0].mxu0
    %v7451 = vpop.f32.mrb[0].mxu0
    %7452 = vdwg.mxu0
    %v7453 = vadd.f32 %v6878, %v7448
    %s7454 = sshll.u32 %s5754, 4
    %7455 = dma.done %s55, %s7454
    %v7456 = vld [vmem:[#allocation3 + $0x60] sm:$0xff]
    %v7457 = vld [vmem:[#allocation3 + $0x68] sm:$0xff]
    %v7458 = vld [vmem:[#allocation3 + $0x70] sm:$0xff]
    %v7459 = vld [vmem:[#allocation3 + $0x78] sm:$0xff]
    %v7464 = vcombine.high %v7456, %v7456
    %v7466 = vunpack.c.l.s4 1983009808
    %v7467 = vunpack.c.0.s8 %v7466
    %v7468 = vlaneseq
    %v7469 = vshrl.u32 %v7468, 7
    %v7470 = vsub.s32 %v7467, %v7469
    %v7471 = vrot.slane %v7456, %v7470
    %v7473 = vunpack.c.l.s4 1983009808
    %v7474 = vunpack.c.0.s8 %v7473
    %v7475 = vlaneseq
    %v7476 = vshrl.u32 %v7475, 7
    %v7477 = vsub.s32 %v7474, %v7476
    %v7478 = vrot.slane %v7464, %v7477
    %v7479 = vcombine.high %v7471, %v7471
    %v7480 = vcombine.high %v7478, %v7478
    %v7481 = vcombine.high %v7457, %v7457
    %v7483 = vunpack.c.l.s4 1983009808
    %v7484 = vunpack.c.0.s8 %v7483
    %v7485 = vlaneseq
    %v7486 = vshrl.u32 %v7485, 7
    %v7487 = vsub.s32 %v7484, %v7486
    %v7488 = vrot.slane %v7457, %v7487
    %v7490 = vunpack.c.l.s4 1983009808
    %v7491 = vunpack.c.0.s8 %v7490
    %v7492 = vlaneseq
    %v7493 = vshrl.u32 %v7492, 7
    %v7494 = vsub.s32 %v7491, %v7493
    %v7495 = vrot.slane %v7481, %v7494
    %v7496 = vcombine.high %v7488, %v7488
    %v7497 = vcombine.high %v7495, %v7495
    %v7498 = vcombine.high %v7458, %v7458
    %v7500 = vunpack.c.l.s4 1983009808
    %v7501 = vunpack.c.0.s8 %v7500
    %v7502 = vlaneseq
    %v7503 = vshrl.u32 %v7502, 7
    %v7504 = vsub.s32 %v7501, %v7503
    %v7505 = vrot.slane %v7458, %v7504
    %v7507 = vunpack.c.l.s4 1983009808
    %v7508 = vunpack.c.0.s8 %v7507
    %v7509 = vlaneseq
    %v7510 = vshrl.u32 %v7509, 7
    %v7511 = vsub.s32 %v7508, %v7510
    %v7512 = vrot.slane %v7498, %v7511
    %v7513 = vcombine.high %v7505, %v7505
    %v7514 = vcombine.high %v7512, %v7512
    %v7515 = vcombine.high %v7459, %v7459
    %v7517 = vunpack.c.l.s4 1983009808
    %v7518 = vunpack.c.0.s8 %v7517
    %v7519 = vlaneseq
    %v7520 = vshrl.u32 %v7519, 7
    %v7521 = vsub.s32 %v7518, %v7520
    %v7522 = vrot.slane %v7459, %v7521
    %v7524 = vunpack.c.l.s4 1983009808
    %v7525 = vunpack.c.0.s8 %v7524
    %v7526 = vlaneseq
    %v7527 = vshrl.u32 %v7526, 7
    %v7528 = vsub.s32 %v7525, %v7527
    %v7529 = vrot.slane %v7515, %v7528
    %v7530 = vcombine.high %v7522, %v7522
    %v7531 = vcombine.high %v7529, %v7529
    %v7548 = vpack.c.bf16 %v7471, %v7471
    %v7549 = vpack.c.bf16 %v7479, %v7479
    %v7550 = vpack.c.bf16 %v7478, %v7478
    %v7551 = vpack.c.bf16 %v7480, %v7480
    %v7552 = vpack.c.bf16 %v7488, %v7488
    %v7553 = vpack.c.bf16 %v7496, %v7496
    %v7554 = vpack.c.bf16 %v7495, %v7495
    %v7555 = vpack.c.bf16 %v7497, %v7497
    %v7556 = vpack.c.bf16 %v7505, %v7505
    %v7557 = vpack.c.bf16 %v7513, %v7513
    %v7558 = vpack.c.bf16 %v7512, %v7512
    %v7559 = vpack.c.bf16 %v7514, %v7514
    %v7560 = vpack.c.bf16 %v7522, %v7522
    %v7561 = vpack.c.bf16 %v7530, %v7530
    %v7562 = vpack.c.bf16 %v7529, %v7529
    %v7563 = vpack.c.bf16 %v7531, %v7531
    %v7564 = vld [vmem:[%s54] sm:$0xff]
    %v7565 = vld [vmem:[%s54 + $0x8] sm:$0xff]
    %v7566 = vld [vmem:[%s54 + $0x10] sm:$0xff]
    %v7567 = vld [vmem:[%s54 + $0x18] sm:$0xff]
    %v7568 = vld [vmem:[%s54 + $0x20] sm:$0xff]
    %v7569 = vld [vmem:[%s54 + $0x28] sm:$0xff]
    %v7570 = vld [vmem:[%s54 + $0x30] sm:$0xff]
    %v7571 = vld [vmem:[%s54 + $0x38] sm:$0xff]
    %v7572 = vld [vmem:[%s54 + $0x40] sm:$0xff]
    %v7573 = vld [vmem:[%s54 + $0x48] sm:$0xff]
    %v7574 = vld [vmem:[%s54 + $0x50] sm:$0xff]
    %v7575 = vld [vmem:[%s54 + $0x58] sm:$0xff]
    %v7576 = vld [vmem:[%s54 + $0x60] sm:$0xff]
    %v7577 = vld [vmem:[%s54 + $0x68] sm:$0xff]
    %v7578 = vld [vmem:[%s54 + $0x70] sm:$0xff]
    %v7579 = vld [vmem:[%s54 + $0x78] sm:$0xff]
    %v7580 = vld [vmem:[%s54 + $0x80] sm:$0xff]
    %v7581 = vld [vmem:[%s54 + $0x88] sm:$0xff]
    %v7582 = vld [vmem:[%s54 + $0x90] sm:$0xff]
    %v7583 = vld [vmem:[%s54 + $0x98] sm:$0xff]
    %v7584 = vld [vmem:[%s54 + $0xa0] sm:$0xff]
    %v7585 = vld [vmem:[%s54 + $0xa8] sm:$0xff]
    %v7586 = vld [vmem:[%s54 + $0xb0] sm:$0xff]
    %v7587 = vld [vmem:[%s54 + $0xb8] sm:$0xff]
    %v7588 = vld [vmem:[%s54 + $0xc0] sm:$0xff]
    %v7589 = vld [vmem:[%s54 + $0xc8] sm:$0xff]
    %v7590 = vld [vmem:[%s54 + $0xd0] sm:$0xff]
    %v7591 = vld [vmem:[%s54 + $0xd8] sm:$0xff]
    %v7592 = vld [vmem:[%s54 + $0xe0] sm:$0xff]
    %v7593 = vld [vmem:[%s54 + $0xe8] sm:$0xff]
    %v7594 = vld [vmem:[%s54 + $0xf0] sm:$0xff]
    %v7595 = vld [vmem:[%s54 + $0xf8] sm:$0xff]
    %v7596 = vld [vmem:[%s54 + $0x100] sm:$0xff]
    %v7597 = vld [vmem:[%s54 + $0x108] sm:$0xff]
    %v7598 = vld [vmem:[%s54 + $0x110] sm:$0xff]
    %v7599 = vld [vmem:[%s54 + $0x118] sm:$0xff]
    %v7600 = vld [vmem:[%s54 + $0x120] sm:$0xff]
    %v7601 = vld [vmem:[%s54 + $0x128] sm:$0xff]
    %v7602 = vld [vmem:[%s54 + $0x130] sm:$0xff]
    %v7603 = vld [vmem:[%s54 + $0x138] sm:$0xff]
    %v7604 = vld [vmem:[%s54 + $0x140] sm:$0xff]
    %v7605 = vld [vmem:[%s54 + $0x148] sm:$0xff]
    %v7606 = vld [vmem:[%s54 + $0x150] sm:$0xff]
    %v7607 = vld [vmem:[%s54 + $0x158] sm:$0xff]
    %v7608 = vld [vmem:[%s54 + $0x160] sm:$0xff]
    %v7609 = vld [vmem:[%s54 + $0x168] sm:$0xff]
    %v7610 = vld [vmem:[%s54 + $0x170] sm:$0xff]
    %v7611 = vld [vmem:[%s54 + $0x178] sm:$0xff]
    %v7612 = vld [vmem:[%s54 + $0x180] sm:$0xff]
    %v7613 = vld [vmem:[%s54 + $0x188] sm:$0xff]
    %v7614 = vld [vmem:[%s54 + $0x190] sm:$0xff]
    %v7615 = vld [vmem:[%s54 + $0x198] sm:$0xff]
    %v7616 = vld [vmem:[%s54 + $0x1a0] sm:$0xff]
    %v7617 = vld [vmem:[%s54 + $0x1a8] sm:$0xff]
    %v7618 = vld [vmem:[%s54 + $0x1b0] sm:$0xff]
    %v7619 = vld [vmem:[%s54 + $0x1b8] sm:$0xff]
    %v7620 = vld [vmem:[%s54 + $0x1c0] sm:$0xff]
    %v7621 = vld [vmem:[%s54 + $0x1c8] sm:$0xff]
    %v7622 = vld [vmem:[%s54 + $0x1d0] sm:$0xff]
    %v7623 = vld [vmem:[%s54 + $0x1d8] sm:$0xff]
    %v7624 = vld [vmem:[%s54 + $0x1e0] sm:$0xff]
    %v7625 = vld [vmem:[%s54 + $0x1e8] sm:$0xff]
    %v7626 = vld [vmem:[%s54 + $0x1f0] sm:$0xff]
    %v7627 = vld [vmem:[%s54 + $0x1f8] sm:$0xff]
    %v7628 = vld [vmem:[%s54 + $0x200] sm:$0xff]
    %v7629 = vld [vmem:[%s54 + $0x208] sm:$0xff]
    %v7630 = vld [vmem:[%s54 + $0x210] sm:$0xff]
    %v7631 = vld [vmem:[%s54 + $0x218] sm:$0xff]
    %v7632 = vld [vmem:[%s54 + $0x220] sm:$0xff]
    %v7633 = vld [vmem:[%s54 + $0x228] sm:$0xff]
    %v7634 = vld [vmem:[%s54 + $0x230] sm:$0xff]
    %v7635 = vld [vmem:[%s54 + $0x238] sm:$0xff]
    %v7636 = vld [vmem:[%s54 + $0x240] sm:$0xff]
    %v7637 = vld [vmem:[%s54 + $0x248] sm:$0xff]
    %v7638 = vld [vmem:[%s54 + $0x250] sm:$0xff]
    %v7639 = vld [vmem:[%s54 + $0x258] sm:$0xff]
    %v7640 = vld [vmem:[%s54 + $0x260] sm:$0xff]
    %v7641 = vld [vmem:[%s54 + $0x268] sm:$0xff]
    %v7642 = vld [vmem:[%s54 + $0x270] sm:$0xff]
    %v7643 = vld [vmem:[%s54 + $0x278] sm:$0xff]
    %v7644 = vld [vmem:[%s54 + $0x280] sm:$0xff]
    %v7645 = vld [vmem:[%s54 + $0x288] sm:$0xff]
    %v7646 = vld [vmem:[%s54 + $0x290] sm:$0xff]
    %v7647 = vld [vmem:[%s54 + $0x298] sm:$0xff]
    %v7648 = vld [vmem:[%s54 + $0x2a0] sm:$0xff]
    %v7649 = vld [vmem:[%s54 + $0x2a8] sm:$0xff]
    %v7650 = vld [vmem:[%s54 + $0x2b0] sm:$0xff]
    %v7651 = vld [vmem:[%s54 + $0x2b8] sm:$0xff]
    %v7652 = vld [vmem:[%s54 + $0x2c0] sm:$0xff]
    %v7653 = vld [vmem:[%s54 + $0x2c8] sm:$0xff]
    %v7654 = vld [vmem:[%s54 + $0x2d0] sm:$0xff]
    %v7655 = vld [vmem:[%s54 + $0x2d8] sm:$0xff]
    %v7656 = vld [vmem:[%s54 + $0x2e0] sm:$0xff]
    %v7657 = vld [vmem:[%s54 + $0x2e8] sm:$0xff]
    %v7658 = vld [vmem:[%s54 + $0x2f0] sm:$0xff]
    %v7659 = vld [vmem:[%s54 + $0x2f8] sm:$0xff]
    %v7660 = vld [vmem:[%s54 + $0x300] sm:$0xff]
    %v7661 = vld [vmem:[%s54 + $0x308] sm:$0xff]
    %v7662 = vld [vmem:[%s54 + $0x310] sm:$0xff]
    %v7663 = vld [vmem:[%s54 + $0x318] sm:$0xff]
    %v7664 = vld [vmem:[%s54 + $0x320] sm:$0xff]
    %v7665 = vld [vmem:[%s54 + $0x328] sm:$0xff]
    %v7666 = vld [vmem:[%s54 + $0x330] sm:$0xff]
    %v7667 = vld [vmem:[%s54 + $0x338] sm:$0xff]
    %v7668 = vld [vmem:[%s54 + $0x340] sm:$0xff]
    %v7669 = vld [vmem:[%s54 + $0x348] sm:$0xff]
    %v7670 = vld [vmem:[%s54 + $0x350] sm:$0xff]
    %v7671 = vld [vmem:[%s54 + $0x358] sm:$0xff]
    %v7672 = vld [vmem:[%s54 + $0x360] sm:$0xff]
    %v7673 = vld [vmem:[%s54 + $0x368] sm:$0xff]
    %v7674 = vld [vmem:[%s54 + $0x370] sm:$0xff]
    %v7675 = vld [vmem:[%s54 + $0x378] sm:$0xff]
    %v7676 = vld [vmem:[%s54 + $0x380] sm:$0xff]
    %v7677 = vld [vmem:[%s54 + $0x388] sm:$0xff]
    %v7678 = vld [vmem:[%s54 + $0x390] sm:$0xff]
    %v7679 = vld [vmem:[%s54 + $0x398] sm:$0xff]
    %v7680 = vld [vmem:[%s54 + $0x3a0] sm:$0xff]
    %v7681 = vld [vmem:[%s54 + $0x3a8] sm:$0xff]
    %v7682 = vld [vmem:[%s54 + $0x3b0] sm:$0xff]
    %v7683 = vld [vmem:[%s54 + $0x3b8] sm:$0xff]
    %v7684 = vld [vmem:[%s54 + $0x3c0] sm:$0xff]
    %v7685 = vld [vmem:[%s54 + $0x3c8] sm:$0xff]
    %v7686 = vld [vmem:[%s54 + $0x3d0] sm:$0xff]
    %v7687 = vld [vmem:[%s54 + $0x3d8] sm:$0xff]
    %v7688 = vld [vmem:[%s54 + $0x3e0] sm:$0xff]
    %v7689 = vld [vmem:[%s54 + $0x3e8] sm:$0xff]
    %v7690 = vld [vmem:[%s54 + $0x3f0] sm:$0xff]
    %v7691 = vld [vmem:[%s54 + $0x3f8] sm:$0xff]
    %7692 = vmatprep.subr.bf16.mxu0 0
    %7693 = vmatpush1.bf16.msra.mxu0 %v7564
    %7694 = vmatprep.subr.bf16.mxu0 0
    %7695 = vmatpush1.bf16.msra.mxu0 %v7565
    %7696 = vmatprep.subr.bf16.mxu0 0
    %7697 = vmatpush1.bf16.msra.mxu0 %v7566
    %7698 = vmatprep.subr.bf16.mxu0 0
    %7699 = vmatpush1.bf16.msra.mxu0 %v7567
    %7700 = vmatprep.subr.bf16.mxu0 0
    %7701 = vmatpush1.bf16.msra.mxu0 %v7568
    %7702 = vmatprep.subr.bf16.mxu0 0
    %7703 = vmatpush1.bf16.msra.mxu0 %v7569
    %7704 = vmatprep.subr.bf16.mxu0 0
    %7705 = vmatpush1.bf16.msra.mxu0 %v7570
    %7706 = vmatprep.subr.bf16.mxu0 0
    %7707 = vmatpush1.bf16.msra.mxu0 %v7571
    %7708 = vmatprep.subr.bf16.mxu0 0
    %7709 = vmatpush1.bf16.msra.mxu0 %v7572
    %7710 = vmatprep.subr.bf16.mxu0 0
    %7711 = vmatpush1.bf16.msra.mxu0 %v7573
    %7712 = vmatprep.subr.bf16.mxu0 0
    %7713 = vmatpush1.bf16.msra.mxu0 %v7574
    %7714 = vmatprep.subr.bf16.mxu0 0
    %7715 = vmatpush1.bf16.msra.mxu0 %v7575
    %7716 = vmatprep.subr.bf16.mxu0 0
    %7717 = vmatpush1.bf16.msra.mxu0 %v7576
    %7718 = vmatprep.subr.bf16.mxu0 0
    %7719 = vmatpush1.bf16.msra.mxu0 %v7577
    %7720 = vmatprep.subr.bf16.mxu0 0
    %7721 = vmatpush1.bf16.msra.mxu0 %v7578
    %7722 = vmatprep.subr.bf16.mxu0 0
    %7723 = vmatpush1.bf16.msra.mxu0 %v7579
    %7724 = vmatprep.mubr.bf16.mxu0 %v7549
    %7725 = vmatmul.mubr.bf16.gmra.mrb[0].mxu0 %v7548
    %v7726 = vpop.f32.mrb[0].mxu0
    %v7727 = vadd.f32 0.0, %v7726
    %v7728 = vpop.f32.mrb[0].mxu0
    %v7729 = vpop.f32.mrb[0].mxu0
    %v7730 = vpop.f32.mrb[0].mxu0
    %7731 = vdwg.mxu0
    %7732 = vmatprep.subr.bf16.mxu0 0
    %7733 = vmatpush1.bf16.msra.mxu0 %v7580
    %7734 = vmatprep.subr.bf16.mxu0 0
    %7735 = vmatpush1.bf16.msra.mxu0 %v7581
    %7736 = vmatprep.subr.bf16.mxu0 0
    %7737 = vmatpush1.bf16.msra.mxu0 %v7582
    %7738 = vmatprep.subr.bf16.mxu0 0
    %7739 = vmatpush1.bf16.msra.mxu0 %v7583
    %7740 = vmatprep.subr.bf16.mxu0 0
    %7741 = vmatpush1.bf16.msra.mxu0 %v7584
    %7742 = vmatprep.subr.bf16.mxu0 0
    %7743 = vmatpush1.bf16.msra.mxu0 %v7585
    %7744 = vmatprep.subr.bf16.mxu0 0
    %7745 = vmatpush1.bf16.msra.mxu0 %v7586
    %7746 = vmatprep.subr.bf16.mxu0 0
    %7747 = vmatpush1.bf16.msra.mxu0 %v7587
    %7748 = vmatprep.subr.bf16.mxu0 0
    %7749 = vmatpush1.bf16.msra.mxu0 %v7588
    %7750 = vmatprep.subr.bf16.mxu0 0
    %7751 = vmatpush1.bf16.msra.mxu0 %v7589
    %7752 = vmatprep.subr.bf16.mxu0 0
    %7753 = vmatpush1.bf16.msra.mxu0 %v7590
    %7754 = vmatprep.subr.bf16.mxu0 0
    %7755 = vmatpush1.bf16.msra.mxu0 %v7591
    %7756 = vmatprep.subr.bf16.mxu0 0
    %7757 = vmatpush1.bf16.msra.mxu0 %v7592
    %7758 = vmatprep.subr.bf16.mxu0 0
    %7759 = vmatpush1.bf16.msra.mxu0 %v7593
    %7760 = vmatprep.subr.bf16.mxu0 0
    %7761 = vmatpush1.bf16.msra.mxu0 %v7594
    %7762 = vmatprep.subr.bf16.mxu0 0
    %7763 = vmatpush1.bf16.msra.mxu0 %v7595
    %7764 = vmatprep.mubr.bf16.mxu0 %v7551
    %7765 = vmatmul.mubr.bf16.gmra.mrb[0].mxu0 %v7550
    %v7766 = vpop.f32.mrb[0].mxu0
    %v7767 = vadd.f32 %v7727, %v7766
    %v7768 = vpop.f32.mrb[0].mxu0
    %v7769 = vpop.f32.mrb[0].mxu0
    %v7770 = vpop.f32.mrb[0].mxu0
    %7771 = vdwg.mxu0
    %7772 = vmatprep.subr.bf16.mxu0 0
    %7773 = vmatpush1.bf16.msra.mxu0 %v7596
    %7774 = vmatprep.subr.bf16.mxu0 0
    %7775 = vmatpush1.bf16.msra.mxu0 %v7597
    %7776 = vmatprep.subr.bf16.mxu0 0
    %7777 = vmatpush1.bf16.msra.mxu0 %v7598
    %7778 = vmatprep.subr.bf16.mxu0 0
    %7779 = vmatpush1.bf16.msra.mxu0 %v7599
    %7780 = vmatprep.subr.bf16.mxu0 0
    %7781 = vmatpush1.bf16.msra.mxu0 %v7600
    %7782 = vmatprep.subr.bf16.mxu0 0
    %7783 = vmatpush1.bf16.msra.mxu0 %v7601
    %7784 = vmatprep.subr.bf16.mxu0 0
    %7785 = vmatpush1.bf16.msra.mxu0 %v7602
    %7786 = vmatprep.subr.bf16.mxu0 0
    %7787 = vmatpush1.bf16.msra.mxu0 %v7603
    %7788 = vmatprep.subr.bf16.mxu0 0
    %7789 = vmatpush1.bf16.msra.mxu0 %v7604
    %7790 = vmatprep.subr.bf16.mxu0 0
    %7791 = vmatpush1.bf16.msra.mxu0 %v7605
    %7792 = vmatprep.subr.bf16.mxu0 0
    %7793 = vmatpush1.bf16.msra.mxu0 %v7606
    %7794 = vmatprep.subr.bf16.mxu0 0
    %7795 = vmatpush1.bf16.msra.mxu0 %v7607
    %7796 = vmatprep.subr.bf16.mxu0 0
    %7797 = vmatpush1.bf16.msra.mxu0 %v7608
    %7798 = vmatprep.subr.bf16.mxu0 0
    %7799 = vmatpush1.bf16.msra.mxu0 %v7609
    %7800 = vmatprep.subr.bf16.mxu0 0
    %7801 = vmatpush1.bf16.msra.mxu0 %v7610
    %7802 = vmatprep.subr.bf16.mxu0 0
    %7803 = vmatpush1.bf16.msra.mxu0 %v7611
    %7804 = vmatprep.mubr.bf16.mxu0 %v7553
    %7805 = vmatmul.mubr.bf16.gmra.mrb[0].mxu0 %v7552
    %v7806 = vpop.f32.mrb[0].mxu0
    %v7807 = vadd.f32 %v7767, %v7806
    %v7808 = vpop.f32.mrb[0].mxu0
    %v7809 = vpop.f32.mrb[0].mxu0
    %v7810 = vpop.f32.mrb[0].mxu0
    %7811 = vdwg.mxu0
    %7812 = vmatprep.subr.bf16.mxu0 0
    %7813 = vmatpush1.bf16.msra.mxu0 %v7612
    %7814 = vmatprep.subr.bf16.mxu0 0
    %7815 = vmatpush1.bf16.msra.mxu0 %v7613
    %7816 = vmatprep.subr.bf16.mxu0 0
    %7817 = vmatpush1.bf16.msra.mxu0 %v7614
    %7818 = vmatprep.subr.bf16.mxu0 0
    %7819 = vmatpush1.bf16.msra.mxu0 %v7615
    %7820 = vmatprep.subr.bf16.mxu0 0
    %7821 = vmatpush1.bf16.msra.mxu0 %v7616
    %7822 = vmatprep.subr.bf16.mxu0 0
    %7823 = vmatpush1.bf16.msra.mxu0 %v7617
    %7824 = vmatprep.subr.bf16.mxu0 0
    %7825 = vmatpush1.bf16.msra.mxu0 %v7618
    %7826 = vmatprep.subr.bf16.mxu0 0
    %7827 = vmatpush1.bf16.msra.mxu0 %v7619
    %7828 = vmatprep.subr.bf16.mxu0 0
    %7829 = vmatpush1.bf16.msra.mxu0 %v7620
    %7830 = vmatprep.subr.bf16.mxu0 0
    %7831 = vmatpush1.bf16.msra.mxu0 %v7621
    %7832 = vmatprep.subr.bf16.mxu0 0
    %7833 = vmatpush1.bf16.msra.mxu0 %v7622
    %7834 = vmatprep.subr.bf16.mxu0 0
    %7835 = vmatpush1.bf16.msra.mxu0 %v7623
    %7836 = vmatprep.subr.bf16.mxu0 0
    %7837 = vmatpush1.bf16.msra.mxu0 %v7624
    %7838 = vmatprep.subr.bf16.mxu0 0
    %7839 = vmatpush1.bf16.msra.mxu0 %v7625
    %7840 = vmatprep.subr.bf16.mxu0 0
    %7841 = vmatpush1.bf16.msra.mxu0 %v7626
    %7842 = vmatprep.subr.bf16.mxu0 0
    %7843 = vmatpush1.bf16.msra.mxu0 %v7627
    %7844 = vmatprep.mubr.bf16.mxu0 %v7555
    %7845 = vmatmul.mubr.bf16.gmra.mrb[0].mxu0 %v7554
    %v7846 = vpop.f32.mrb[0].mxu0
    %v7847 = vadd.f32 %v7807, %v7846
    %v7848 = vpop.f32.mrb[0].mxu0
    %v7849 = vpop.f32.mrb[0].mxu0
    %v7850 = vpop.f32.mrb[0].mxu0
    %7851 = vdwg.mxu0
    %7852 = vmatprep.subr.bf16.mxu0 0
    %7853 = vmatpush1.bf16.msra.mxu0 %v7628
    %7854 = vmatprep.subr.bf16.mxu0 0
    %7855 = vmatpush1.bf16.msra.mxu0 %v7629
    %7856 = vmatprep.subr.bf16.mxu0 0
    %7857 = vmatpush1.bf16.msra.mxu0 %v7630
    %7858 = vmatprep.subr.bf16.mxu0 0
    %7859 = vmatpush1.bf16.msra.mxu0 %v7631
    %7860 = vmatprep.subr.bf16.mxu0 0
    %7861 = vmatpush1.bf16.msra.mxu0 %v7632
    %7862 = vmatprep.subr.bf16.mxu0 0
    %7863 = vmatpush1.bf16.msra.mxu0 %v7633
    %7864 = vmatprep.subr.bf16.mxu0 0
    %7865 = vmatpush1.bf16.msra.mxu0 %v7634
    %7866 = vmatprep.subr.bf16.mxu0 0
    %7867 = vmatpush1.bf16.msra.mxu0 %v7635
    %7868 = vmatprep.subr.bf16.mxu0 0
    %7869 = vmatpush1.bf16.msra.mxu0 %v7636
    %7870 = vmatprep.subr.bf16.mxu0 0
    %7871 = vmatpush1.bf16.msra.mxu0 %v7637
    %7872 = vmatprep.subr.bf16.mxu0 0
    %7873 = vmatpush1.bf16.msra.mxu0 %v7638
    %7874 = vmatprep.subr.bf16.mxu0 0
    %7875 = vmatpush1.bf16.msra.mxu0 %v7639
    %7876 = vmatprep.subr.bf16.mxu0 0
    %7877 = vmatpush1.bf16.msra.mxu0 %v7640
    %7878 = vmatprep.subr.bf16.mxu0 0
    %7879 = vmatpush1.bf16.msra.mxu0 %v7641
    %7880 = vmatprep.subr.bf16.mxu0 0
    %7881 = vmatpush1.bf16.msra.mxu0 %v7642
    %7882 = vmatprep.subr.bf16.mxu0 0
    %7883 = vmatpush1.bf16.msra.mxu0 %v7643
    %7884 = vmatprep.mubr.bf16.mxu0 %v7557
    %7885 = vmatmul.mubr.bf16.gmra.mrb[0].mxu0 %v7556
    %v7886 = vpop.f32.mrb[0].mxu0
    %v7887 = vadd.f32 %v7847, %v7886
    %v7888 = vpop.f32.mrb[0].mxu0
    %v7889 = vpop.f32.mrb[0].mxu0
    %v7890 = vpop.f32.mrb[0].mxu0
    %7891 = vdwg.mxu0
    %7892 = vmatprep.subr.bf16.mxu0 0
    %7893 = vmatpush1.bf16.msra.mxu0 %v7644
    %7894 = vmatprep.subr.bf16.mxu0 0
    %7895 = vmatpush1.bf16.msra.mxu0 %v7645
    %7896 = vmatprep.subr.bf16.mxu0 0
    %7897 = vmatpush1.bf16.msra.mxu0 %v7646
    %7898 = vmatprep.subr.bf16.mxu0 0
    %7899 = vmatpush1.bf16.msra.mxu0 %v7647
    %7900 = vmatprep.subr.bf16.mxu0 0
    %7901 = vmatpush1.bf16.msra.mxu0 %v7648
    %7902 = vmatprep.subr.bf16.mxu0 0
    %7903 = vmatpush1.bf16.msra.mxu0 %v7649
    %7904 = vmatprep.subr.bf16.mxu0 0
    %7905 = vmatpush1.bf16.msra.mxu0 %v7650
    %7906 = vmatprep.subr.bf16.mxu0 0
    %7907 = vmatpush1.bf16.msra.mxu0 %v7651
    %7908 = vmatprep.subr.bf16.mxu0 0
    %7909 = vmatpush1.bf16.msra.mxu0 %v7652
    %7910 = vmatprep.subr.bf16.mxu0 0
    %7911 = vmatpush1.bf16.msra.mxu0 %v7653
    %7912 = vmatprep.subr.bf16.mxu0 0
    %7913 = vmatpush1.bf16.msra.mxu0 %v7654
    %7914 = vmatprep.subr.bf16.mxu0 0
    %7915 = vmatpush1.bf16.msra.mxu0 %v7655
    %7916 = vmatprep.subr.bf16.mxu0 0
    %7917 = vmatpush1.bf16.msra.mxu0 %v7656
    %7918 = vmatprep.subr.bf16.mxu0 0
    %7919 = vmatpush1.bf16.msra.mxu0 %v7657
    %7920 = vmatprep.subr.bf16.mxu0 0
    %7921 = vmatpush1.bf16.msra.mxu0 %v7658
    %7922 = vmatprep.subr.bf16.mxu0 0
    %7923 = vmatpush1.bf16.msra.mxu0 %v7659
    %7924 = vmatprep.mubr.bf16.mxu0 %v7559
    %7925 = vmatmul.mubr.bf16.gmra.mrb[0].mxu0 %v7558
    %v7926 = vpop.f32.mrb[0].mxu0
    %v7927 = vadd.f32 %v7887, %v7926
    %v7928 = vpop.f32.mrb[0].mxu0
    %v7929 = vpop.f32.mrb[0].mxu0
    %v7930 = vpop.f32.mrb[0].mxu0
    %7931 = vdwg.mxu0
    %7932 = vmatprep.subr.bf16.mxu0 0
    %7933 = vmatpush1.bf16.msra.mxu0 %v7660
    %7934 = vmatprep.subr.bf16.mxu0 0
    %7935 = vmatpush1.bf16.msra.mxu0 %v7661
    %7936 = vmatprep.subr.bf16.mxu0 0
    %7937 = vmatpush1.bf16.msra.mxu0 %v7662
    %7938 = vmatprep.subr.bf16.mxu0 0
    %7939 = vmatpush1.bf16.msra.mxu0 %v7663
    %7940 = vmatprep.subr.bf16.mxu0 0
    %7941 = vmatpush1.bf16.msra.mxu0 %v7664
    %7942 = vmatprep.subr.bf16.mxu0 0
    %7943 = vmatpush1.bf16.msra.mxu0 %v7665
    %7944 = vmatprep.subr.bf16.mxu0 0
    %7945 = vmatpush1.bf16.msra.mxu0 %v7666
    %7946 = vmatprep.subr.bf16.mxu0 0
    %7947 = vmatpush1.bf16.msra.mxu0 %v7667
    %7948 = vmatprep.subr.bf16.mxu0 0
    %7949 = vmatpush1.bf16.msra.mxu0 %v7668
    %7950 = vmatprep.subr.bf16.mxu0 0
    %7951 = vmatpush1.bf16.msra.mxu0 %v7669
    %7952 = vmatprep.subr.bf16.mxu0 0
    %7953 = vmatpush1.bf16.msra.mxu0 %v7670
    %7954 = vmatprep.subr.bf16.mxu0 0
    %7955 = vmatpush1.bf16.msra.mxu0 %v7671
    %7956 = vmatprep.subr.bf16.mxu0 0
    %7957 = vmatpush1.bf16.msra.mxu0 %v7672
    %7958 = vmatprep.subr.bf16.mxu0 0
    %7959 = vmatpush1.bf16.msra.mxu0 %v7673
    %7960 = vmatprep.subr.bf16.mxu0 0
    %7961 = vmatpush1.bf16.msra.mxu0 %v7674
    %7962 = vmatprep.subr.bf16.mxu0 0
    %7963 = vmatpush1.bf16.msra.mxu0 %v7675
    %7964 = vmatprep.mubr.bf16.mxu0 %v7561
    %7965 = vmatmul.mubr.bf16.gmra.mrb[0].mxu0 %v7560
    %v7966 = vpop.f32.mrb[0].mxu0
    %v7967 = vadd.f32 %v7927, %v7966
    %v7968 = vpop.f32.mrb[0].mxu0
    %v7969 = vpop.f32.mrb[0].mxu0
    %v7970 = vpop.f32.mrb[0].mxu0
    %7971 = vdwg.mxu0
    %7972 = vmatprep.subr.bf16.mxu0 0
    %7973 = vmatpush1.bf16.msra.mxu0 %v7676
    %7974 = vmatprep.subr.bf16.mxu0 0
    %7975 = vmatpush1.bf16.msra.mxu0 %v7677
    %7976 = vmatprep.subr.bf16.mxu0 0
    %7977 = vmatpush1.bf16.msra.mxu0 %v7678
    %7978 = vmatprep.subr.bf16.mxu0 0
    %7979 = vmatpush1.bf16.msra.mxu0 %v7679
    %7980 = vmatprep.subr.bf16.mxu0 0
    %7981 = vmatpush1.bf16.msra.mxu0 %v7680
    %7982 = vmatprep.subr.bf16.mxu0 0
    %7983 = vmatpush1.bf16.msra.mxu0 %v7681
    %7984 = vmatprep.subr.bf16.mxu0 0
    %7985 = vmatpush1.bf16.msra.mxu0 %v7682
    %7986 = vmatprep.subr.bf16.mxu0 0
    %7987 = vmatpush1.bf16.msra.mxu0 %v7683
    %7988 = vmatprep.subr.bf16.mxu0 0
    %7989 = vmatpush1.bf16.msra.mxu0 %v7684
    %7990 = vmatprep.subr.bf16.mxu0 0
    %7991 = vmatpush1.bf16.msra.mxu0 %v7685
    %7992 = vmatprep.subr.bf16.mxu0 0
    %7993 = vmatpush1.bf16.msra.mxu0 %v7686
    %7994 = vmatprep.subr.bf16.mxu0 0
    %7995 = vmatpush1.bf16.msra.mxu0 %v7687
    %7996 = vmatprep.subr.bf16.mxu0 0
    %7997 = vmatpush1.bf16.msra.mxu0 %v7688
    %7998 = vmatprep.subr.bf16.mxu0 0
    %7999 = vmatpush1.bf16.msra.mxu0 %v7689
    %8000 = vmatprep.subr.bf16.mxu0 0
    %8001 = vmatpush1.bf16.msra.mxu0 %v7690
    %8002 = vmatprep.subr.bf16.mxu0 0
    %8003 = vmatpush1.bf16.msra.mxu0 %v7691
    %8004 = vmatprep.mubr.bf16.mxu0 %v7563
    %8005 = vmatmul.mubr.bf16.gmra.mrb[0].mxu0 %v7562
    %v8006 = vpop.f32.mrb[0].mxu0
    %v8007 = vadd.f32 %v7967, %v8006
    %v8008 = vpop.f32.mrb[0].mxu0
    %v8009 = vpop.f32.mrb[0].mxu0
    %v8010 = vpop.f32.mrb[0].mxu0
    %8011 = vdwg.mxu0
    %v8012 = vadd.f32 %v7453, %v8007
    %v8013 = vld [vmem:[#allocation8 + $0x110] sm:$0x1]
    %v8014 = vlaneseq
    %v8015 = vshrl.u32 %v8014, 7
    %v8016 = vsub.s32 0, %v8015
    %v8017 = vrot.slane %v8013, %v8016
    %v8018 = vadd.f32 %v8012, %v8017
    %v8019 = vmax.f32 %v8018, 0.0
    %v8020 = vld [vmem:[#allocation8 + $0x170] sm:$0xff]
    %v8021 = vld [vmem:[#allocation8 + $0x178] sm:$0xff]
    %v8022 = vld [vmem:[#allocation8 + $0x180] sm:$0xff]
    %v8023 = vld [vmem:[#allocation8 + $0x188] sm:$0xff]
    %v8024 = vld [vmem:[#allocation8 + $0x190] sm:$0xff]
    %v8025 = vld [vmem:[#allocation8 + $0x198] sm:$0xff]
    %v8026 = vld [vmem:[#allocation8 + $0x1a0] sm:$0xff]
    %v8027 = vld [vmem:[#allocation8 + $0x1a8] sm:$0xff]
    %v8028 = vld [vmem:[#allocation8 + $0x1b0] sm:$0xff]
    %v8029 = vld [vmem:[#allocation8 + $0x1b8] sm:$0xff]
    %v8030 = vld [vmem:[#allocation8 + $0x1c0] sm:$0xff]
    %v8031 = vld [vmem:[#allocation8 + $0x1c8] sm:$0xff]
    %v8032 = vld [vmem:[#allocation8 + $0x1d0] sm:$0xff]
    %v8033 = vld [vmem:[#allocation8 + $0x1d8] sm:$0xff]
    %v8034 = vld [vmem:[#allocation8 + $0x1e0] sm:$0xff]
    %v8035 = vld [vmem:[#allocation8 + $0x1e8] sm:$0xff]
    %v8036 = vld [vmem:[#allocation8 + $0x1f0] sm:$0xff]
    %v8037 = vld [vmem:[#allocation8 + $0x1f8] sm:$0xff]
    %v8038 = vld [vmem:[#allocation8 + $0x200] sm:$0xff]
    %v8039 = vld [vmem:[#allocation8 + $0x208] sm:$0xff]
    %v8040 = vld [vmem:[#allocation8 + $0x210] sm:$0xff]
    %v8041 = vld [vmem:[#allocation8 + $0x218] sm:$0xff]
    %v8042 = vld [vmem:[#allocation8 + $0x220] sm:$0xff]
    %v8043 = vld [vmem:[#allocation8 + $0x228] sm:$0xff]
    %v8044 = vld [vmem:[#allocation8 + $0x230] sm:$0xff]
    %v8045 = vld [vmem:[#allocation8 + $0x238] sm:$0xff]
    %v8046 = vld [vmem:[#allocation8 + $0x240] sm:$0xff]
    %v8047 = vld [vmem:[#allocation8 + $0x248] sm:$0xff]
    %v8048 = vld [vmem:[#allocation8 + $0x250] sm:$0xff]
    %v8049 = vld [vmem:[#allocation8 + $0x258] sm:$0xff]
    %v8050 = vld [vmem:[#allocation8 + $0x260] sm:$0xff]
    %v8051 = vld [vmem:[#allocation8 + $0x268] sm:$0xff]
    %8052 = vmatprep.subr.mxu0 0.0
    %8053 = vmatpush1.msra.mxu0 %v8036
    %8054 = vmatprep.subr.mxu0 0.0
    %8055 = vmatpush1.msra.mxu0 %v8037
    %8056 = vmatprep.subr.mxu0 0.0
    %8057 = vmatpush1.msra.mxu0 %v8038
    %8058 = vmatprep.subr.mxu0 0.0
    %8059 = vmatpush1.msra.mxu0 %v8039
    %8060 = vmatprep.subr.mxu0 0.0
    %8061 = vmatpush1.msra.mxu0 %v8040
    %8062 = vmatprep.subr.mxu0 0.0
    %8063 = vmatpush1.msra.mxu0 %v8041
    %8064 = vmatprep.subr.mxu0 0.0
    %8065 = vmatpush1.msra.mxu0 %v8042
    %8066 = vmatprep.subr.mxu0 0.0
    %8067 = vmatpush1.msra.mxu0 %v8043
    %8068 = vmatprep.subr.mxu0 0.0
    %8069 = vmatpush1.msra.mxu0 %v8044
    %8070 = vmatprep.subr.mxu0 0.0
    %8071 = vmatpush1.msra.mxu0 %v8045
    %8072 = vmatprep.subr.mxu0 0.0
    %8073 = vmatpush1.msra.mxu0 %v8046
    %8074 = vmatprep.subr.mxu0 0.0
    %8075 = vmatpush1.msra.mxu0 %v8047
    %8076 = vmatprep.subr.mxu0 0.0
    %8077 = vmatpush1.msra.mxu0 %v8048
    %8078 = vmatprep.subr.mxu0 0.0
    %8079 = vmatpush1.msra.mxu0 %v8049
    %8080 = vmatprep.subr.mxu0 0.0
    %8081 = vmatpush1.msra.mxu0 %v8050
    %8082 = vmatprep.subr.mxu0 0.0
    %8083 = vmatpush1.msra.mxu0 %v8051
    %8084 = vmatprep.subr.mxu0 0.0
    %8085 = vmatpush1.msra.mxu0 0.0
    %8086 = vmatprep.subr.mxu0 0.0
    %8087 = vmatpush1.msra.mxu0 0.0
    %8088 = vmatprep.subr.mxu0 0.0
    %8089 = vmatpush1.msra.mxu0 0.0
    %8090 = vmatprep.subr.mxu0 0.0
    %8091 = vmatpush1.msra.mxu0 0.0
    %8092 = vmatprep.subr.mxu0 0.0
    %8093 = vmatpush1.msra.mxu0 0.0
    %8094 = vmatprep.subr.mxu0 0.0
    %8095 = vmatpush1.msra.mxu0 0.0
    %8096 = vmatprep.subr.mxu0 0.0
    %8097 = vmatpush1.msra.mxu0 0.0
    %8098 = vmatprep.subr.mxu0 0.0
    %8099 = vmatpush1.msra.mxu0 0.0
    %8100 = vmatprep.subr.mxu0 0.0
    %8101 = vmatpush1.msra.mxu0 0.0
    %8102 = vmatprep.subr.mxu0 0.0
    %8103 = vmatpush1.msra.mxu0 0.0
    %8104 = vmatprep.subr.mxu0 0.0
    %8105 = vmatpush1.msra.mxu0 0.0
    %8106 = vmatprep.subr.mxu0 0.0
    %8107 = vmatpush1.msra.mxu0 0.0
    %8108 = vmatprep.subr.mxu0 0.0
    %8109 = vmatpush1.msra.mxu0 0.0
    %8110 = vmatprep.subr.mxu0 0.0
    %8111 = vmatpush1.msra.mxu0 0.0
    %8112 = vmatprep.subr.mxu0 0.0
    %8113 = vmatpush1.msra.mxu0 0.0
    %8114 = vmatprep.subr.mxu0 0.0
    %8115 = vmatpush1.msra.mxu0 0.0
    %8116 = vmatprep.mubr.f32.mxu0 0.0
    %8117 = vmatmul.mubr.f32.gmra.mrb[0].mxu0 %v5752
    %v8118 = vpop.f32.mrb[0].mxu0
    %v8119 = vadd.f32 0.0, %v8118
    %v8120 = vpop.f32.mrb[0].mxu0
    %8121 = vdwg.mxu0
    %8122 = vmatprep.subr.mxu0 0.0
    %8123 = vmatpush1.msra.mxu0 %v8020
    %8124 = vmatprep.subr.mxu0 0.0
    %8125 = vmatpush1.msra.mxu0 %v8021
    %8126 = vmatprep.subr.mxu0 0.0
    %8127 = vmatpush1.msra.mxu0 %v8022
    %8128 = vmatprep.subr.mxu0 0.0
    %8129 = vmatpush1.msra.mxu0 %v8023
    %8130 = vmatprep.subr.mxu0 0.0
    %8131 = vmatpush1.msra.mxu0 %v8024
    %8132 = vmatprep.subr.mxu0 0.0
    %8133 = vmatpush1.msra.mxu0 %v8025
    %8134 = vmatprep.subr.mxu0 0.0
    %8135 = vmatpush1.msra.mxu0 %v8026
    %8136 = vmatprep.subr.mxu0 0.0
    %8137 = vmatpush1.msra.mxu0 %v8027
    %8138 = vmatprep.subr.mxu0 0.0
    %8139 = vmatpush1.msra.mxu0 %v8028
    %8140 = vmatprep.subr.mxu0 0.0
    %8141 = vmatpush1.msra.mxu0 %v8029
    %8142 = vmatprep.subr.mxu0 0.0
    %8143 = vmatpush1.msra.mxu0 %v8030
    %8144 = vmatprep.subr.mxu0 0.0
    %8145 = vmatpush1.msra.mxu0 %v8031
    %8146 = vmatprep.subr.mxu0 0.0
    %8147 = vmatpush1.msra.mxu0 %v8032
    %8148 = vmatprep.subr.mxu0 0.0
    %8149 = vmatpush1.msra.mxu0 %v8033
    %8150 = vmatprep.subr.mxu0 0.0
    %8151 = vmatpush1.msra.mxu0 %v8034
    %8152 = vmatprep.subr.mxu0 0.0
    %8153 = vmatpush1.msra.mxu0 %v8035
    %8154 = vmatprep.subr.mxu0 0.0
    %8155 = vmatpush1.msra.mxu0 0.0
    %8156 = vmatprep.subr.mxu0 0.0
    %8157 = vmatpush1.msra.mxu0 0.0
    %8158 = vmatprep.subr.mxu0 0.0
    %8159 = vmatpush1.msra.mxu0 0.0
    %8160 = vmatprep.subr.mxu0 0.0
    %8161 = vmatpush1.msra.mxu0 0.0
    %8162 = vmatprep.subr.mxu0 0.0
    %8163 = vmatpush1.msra.mxu0 0.0
    %8164 = vmatprep.subr.mxu0 0.0
    %8165 = vmatpush1.msra.mxu0 0.0
    %8166 = vmatprep.subr.mxu0 0.0
    %8167 = vmatpush1.msra.mxu0 0.0
    %8168 = vmatprep.subr.mxu0 0.0
    %8169 = vmatpush1.msra.mxu0 0.0
    %8170 = vmatprep.subr.mxu0 0.0
    %8171 = vmatpush1.msra.mxu0 0.0
    %8172 = vmatprep.subr.mxu0 0.0
    %8173 = vmatpush1.msra.mxu0 0.0
    %8174 = vmatprep.subr.mxu0 0.0
    %8175 = vmatpush1.msra.mxu0 0.0
    %8176 = vmatprep.subr.mxu0 0.0
    %8177 = vmatpush1.msra.mxu0 0.0
    %8178 = vmatprep.subr.mxu0 0.0
    %8179 = vmatpush1.msra.mxu0 0.0
    %8180 = vmatprep.subr.mxu0 0.0
    %8181 = vmatpush1.msra.mxu0 0.0
    %8182 = vmatprep.subr.mxu0 0.0
    %8183 = vmatpush1.msra.mxu0 0.0
    %8184 = vmatprep.subr.mxu0 0.0
    %8185 = vmatpush1.msra.mxu0 0.0
    %8186 = vmatprep.mubr.f32.mxu0 0.0
    %8187 = vmatmul.mubr.f32.gmra.mrb[0].mxu0 %v8019
    %v8188 = vpop.f32.mrb[0].mxu0
    %v8189 = vadd.f32 %v8119, %v8188
    %v8190 = vpop.f32.mrb[0].mxu0
    %8191 = vdwg.mxu0
    %v8192 = vld [vmem:[#allocation8 + $0x270] sm:$0x1]
    %v8193 = vlaneseq
    %v8194 = vshrl.u32 %v8193, 7
    %v8195 = vsub.s32 0, %v8194
    %v8196 = vrot.slane %v8192, %v8195
    %v8197 = vadd.f32 %v8189, %v8196
    %v8198 = vmax.f32 %v8197, 0.0
    %v8199 = vld [vmem:[#allocation8 + $0x278] sm:$0xff]
    %v8200 = vld [vmem:[#allocation8 + $0x280] sm:$0xff]
    %v8201 = vld [vmem:[#allocation8 + $0x288] sm:$0xff]
    %v8202 = vld [vmem:[#allocation8 + $0x290] sm:$0xff]
    %v8203 = vld [vmem:[#allocation8 + $0x298] sm:$0xff]
    %v8204 = vld [vmem:[#allocation8 + $0x2a0] sm:$0xff]
    %v8205 = vld [vmem:[#allocation8 + $0x2a8] sm:$0xff]
    %v8206 = vld [vmem:[#allocation8 + $0x2b0] sm:$0xff]
    %v8207 = vld [vmem:[#allocation8 + $0x2b8] sm:$0x1]
    %v8208 = vlaneseq
    %v8209 = vshrl.u32 %v8208, 7
    %v8210 = vsub.s32 0, %v8209
    %v8211 = vrot.slane %v8207, %v8210
    %v8213 = vsel %vm5678, %v8198, 0
    %8215 = vmatprep.subr.mxu0 0.0
    %8216 = vmatpush1.msra.mxu0 %v8199
    %8217 = vmatprep.subr.mxu0 0.0
    %8218 = vmatpush1.msra.mxu0 %v8200
    %8219 = vmatprep.subr.mxu0 0.0
    %8220 = vmatpush1.msra.mxu0 %v8201
    %8221 = vmatprep.subr.mxu0 0.0
    %8222 = vmatpush1.msra.mxu0 %v8202
    %8223 = vmatprep.subr.mxu0 0.0
    %8224 = vmatpush1.msra.mxu0 %v8203
    %8225 = vmatprep.subr.mxu0 0.0
    %8226 = vmatpush1.msra.mxu0 %v8204
    %8227 = vmatprep.subr.mxu0 0.0
    %8228 = vmatpush1.msra.mxu0 %v8205
    %8229 = vmatprep.subr.mxu0 0.0
    %8230 = vmatpush1.msra.mxu0 %v8206
    %8231 = vmatprep.subr.mxu0 0.0
    %8232 = vmatpush1.msra.mxu0 0.0
    %8233 = vmatprep.subr.mxu0 0.0
    %8234 = vmatpush1.msra.mxu0 0.0
    %8235 = vmatprep.subr.mxu0 0.0
    %8236 = vmatpush1.msra.mxu0 0.0
    %8237 = vmatprep.subr.mxu0 0.0
    %8238 = vmatpush1.msra.mxu0 0.0
    %8239 = vmatprep.subr.mxu0 0.0
    %8240 = vmatpush1.msra.mxu0 0.0
    %8241 = vmatprep.subr.mxu0 0.0
    %8242 = vmatpush1.msra.mxu0 0.0
    %8243 = vmatprep.subr.mxu0 0.0
    %8244 = vmatpush1.msra.mxu0 0.0
    %8245 = vmatprep.subr.mxu0 0.0
    %8246 = vmatpush1.msra.mxu0 0.0
    %8247 = vmatprep.subr.mxu0 0.0
    %8248 = vmatpush1.msra.mxu0 0.0
    %8249 = vmatprep.subr.mxu0 0.0
    %8250 = vmatpush1.msra.mxu0 0.0
    %8251 = vmatprep.subr.mxu0 0.0
    %8252 = vmatpush1.msra.mxu0 0.0
    %8253 = vmatprep.subr.mxu0 0.0
    %8254 = vmatpush1.msra.mxu0 0.0
    %8255 = vmatprep.subr.mxu0 0.0
    %8256 = vmatpush1.msra.mxu0 0.0
    %8257 = vmatprep.subr.mxu0 0.0
    %8258 = vmatpush1.msra.mxu0 0.0
    %8259 = vmatprep.subr.mxu0 0.0
    %8260 = vmatpush1.msra.mxu0 0.0
    %8261 = vmatprep.subr.mxu0 0.0
    %8262 = vmatpush1.msra.mxu0 0.0
    %8263 = vmatprep.subr.mxu0 0.0
    %8264 = vmatpush1.msra.mxu0 0.0
    %8265 = vmatprep.subr.mxu0 0.0
    %8266 = vmatpush1.msra.mxu0 0.0
    %8267 = vmatprep.subr.mxu0 0.0
    %8268 = vmatpush1.msra.mxu0 0.0
    %8269 = vmatprep.subr.mxu0 0.0
    %8270 = vmatpush1.msra.mxu0 0.0
    %8271 = vmatprep.subr.mxu0 0.0
    %8272 = vmatpush1.msra.mxu0 0.0
    %8273 = vmatprep.subr.mxu0 0.0
    %8274 = vmatpush1.msra.mxu0 0.0
    %8275 = vmatprep.subr.mxu0 0.0
    %8276 = vmatpush1.msra.mxu0 0.0
    %8277 = vmatprep.subr.mxu0 0.0
    %8278 = vmatpush1.msra.mxu0 0.0
    %8279 = vmatprep.mubr.f32.mxu0 0.0
    %8280 = vmatmul.mubr.f32.gmra.mrb[0].mxu0 %v8213
    %v8281 = vpop.f32.mrb[0].mxu0
    %v8282 = vadd.f32 %v8211, %v8281
    %v8283 = vpop.f32.mrb[0].mxu0
    %8284 = vdwg.mxu0
    %vm8285 = vcmask 1024
    %8286 = vst.msk [vmem:[%s4] sm:$0x3] %vm8285, %v8282
    // Predicated region
    $region38: #{forward.1} parent=1 // pred_check
      _
    $region39: #{forward.1} parent=1 // pred_check_branch
      %8288 = sbr.rel (0) target = $region41
    $region40: #{forward.1} parent=1 // pred_region
      _
    $region41: #{forward.1} parent=1 // pred_fallthru
      _
    // Predicated region
    $region42: #{forward.1} parent=1 // pred_check
      _
    $region43: #{forward.1} parent=1 // pred_check_branch
      %8290 = sbr.rel (0) target = $region45
    $region44: #{forward.1} parent=1 // pred_region
      _
    $region45: #{forward.1} parent=1 // pred_fallthru
      _
    %8291 = vsyncpa [#allocation7], 1
    %8292 = vsyncpa [#allocation9], 1
  %8293 = vsyncmov [#allocation5]
  %s8294 = vpop.sfrf %8293
  %p8295 = scmp.eq.s32.totalorder %s8294, 0
  %p8296 = pneg %p8295
  %8298 = shalt.err (%p8296)
  %s8299 = scalar_lea.sflag [#allocation5], 1
  %8300 = vsyncmov %s8299
  %s8301 = vpop.sfrf %8300
  %p8302 = scmp.eq.s32.totalorder %s8301, 0
  %p8303 = pneg %p8302
  %8305 = shalt.err (%p8303)

</llo_original>
